<compile_context>
chip_gen: v7x
topology: tpu7x:2x2x1
jax: 0.10.0
libtpu: 0.0.40
codegen_flags: <defaults>
</compile_context>

<pallas_src>
import functools

import jax
import jax.numpy as jnp
from jax import lax
from jax.experimental import pallas as pl
from jax.experimental.pallas import tpu as pltpu


def _fe_kernel(p1_ref, w1_ref, b1_ref, w2_ref, b2_ref, o_ref,
               h1pad_ref, yh_ref, *, Bblk, H, W, C1, C2):
    M = Bblk * H * W

    # Zero only the 1-px border of the padded conv1-activation scratch; the
    # interior is fully overwritten below.  Done every step (cheap) so the
    # batch grid axis can be "parallel" (per-core scratch stays correct).
    h1pad_ref[:, 0:1, :, :] = jnp.zeros((Bblk, 1, W + 2, C1), jnp.float32)
    h1pad_ref[:, H + 1:H + 2, :, :] = jnp.zeros((Bblk, 1, W + 2, C1), jnp.float32)
    h1pad_ref[:, :, 0:1, :] = jnp.zeros((Bblk, H + 2, 1, C1), jnp.float32)
    h1pad_ref[:, :, W + 1:W + 2, :] = jnp.zeros((Bblk, H + 2, 1, C1), jnp.float32)

    # ---- conv1: im2col matmul (M, 9) @ (9, C1); bias + ReLU on the VPU ----
    h1 = jnp.dot(p1_ref[...].reshape(M, 9), w1_ref[...],
                 preferred_element_type=jnp.float32)
    h1 = jnp.maximum(h1 + b1_ref[...], 0.0)                        # (M, C1)
    h1pad_ref[:, 1:H + 1, 1:W + 1, :] = h1.reshape(Bblk, H, W, C1)

    # ---- conv2: single K = 9*C1 contraction on the MXU.  The 9-tap slab is
    #      built once; operands cast to bf16, f32 accumulation. ----
    slab = jnp.concatenate(
        [h1pad_ref[:, dy:dy + H, dx:dx + W, :]
         for dy in range(3) for dx in range(3)],
        axis=-1).reshape(M, 9 * C1)
    r = jnp.dot(slab.astype(jnp.bfloat16), w2_ref[...],
                preferred_element_type=jnp.float32)                # (M, C2) f32

    # ---- fused 2x2 maxpool + bias + ReLU (max / +bias / relu commute). ----
    # H-pool on the value: rows are (b, y, x) row-major, so each y-pair is two
    # aligned, contiguous W-row groups -> no strided access.
    r3 = r.reshape(Bblk * (H // 2), 2 * W, C2)
    yh = jnp.maximum(r3[:, :W, :], r3[:, W:, :])                   # (Bblk*H/2, W, C2)
    yh_ref[...] = yh.reshape(Bblk * (H // 2) * W, C2)

    # W-pool: partner rows are sublane-adjacent -> stride-2 row reads on the
    # already-halved data, then bias + ReLU straight to the output block.
    n2 = Bblk * (H // 2) * (W // 2)
    yw = jnp.maximum(yh_ref[pl.ds(0, n2, stride=2)],
                     yh_ref[pl.ds(1, n2, stride=2)])               # (n2, C2)
    o_ref[...] = jnp.maximum(yw + b2_ref[...], 0.0).reshape(
        Bblk, H // 2, W // 2, C2)


def _pick_block_b(B, H, W, block_b):
    if block_b is not None:
        return max(1, min(block_b, B))
    rows = H * W
    bb = max(1, 1024 // rows) if rows < 1024 else 1    # >= ~1024 MXU rows/step
    bb = min(bb, B)
    if B >= 2:                                         # keep >=2 grid steps (v7x: 2 TCs)
        bb = min(bb, (B + 1) // 2)
    return max(1, bb)


def feature_extractor(x_nchw, w1, b1, w2, b2, *, block_b=None):
    B, Cin, H, W = x_nchw.shape
    assert Cin == 1 and H % 2 == 0 and W % 2 == 0
    C1, C2 = w1.shape[0], w2.shape[0]

    Bblk = _pick_block_b(B, H, W, block_b)
    Bpad = ((B + Bblk - 1) // Bblk) * Bblk
    x = x_nchw
    if Bpad != B:
        x = jnp.pad(x, ((0, Bpad - B), (0, 0), (0, 0), (0, 0)))

    # glue: host-side im2col for the 1-channel first conv (tiny data movement)
    xp = jnp.pad(x[:, 0], ((0, 0), (1, 1), (1, 1)))
    cols = [xp[:, dy:dy + H, dx:dx + W].reshape(Bpad, H * W)
            for dy in range(3) for dx in range(3)]
    p1 = jnp.stack(cols, axis=-1)                                  # (Bpad, H*W, 9)

    # glue: repack weights -- conv1 f32, conv2 as one (9*C1, C2) bf16 matrix
    w1r = jnp.transpose(w1.reshape(C1, 9), (1, 0))                 # (9, C1)
    w2r = jnp.transpose(w2, (2, 3, 1, 0)).reshape(9 * C1, C2).astype(jnp.bfloat16)
    b1r = b1.reshape(1, C1)
    b2r = b2.reshape(1, C2)

    grid = (Bpad // Bblk,)
    flops = int(2 * Bpad * H * W * (9 * C1 + 9 * C1 * C2))
    bytes_accessed = int(4 * (p1.size + w1r.size + b1r.size + b2r.size
                              + Bpad * (H // 2) * (W // 2) * C2)
                         + 2 * w2r.size)

    kernel = functools.partial(_fe_kernel, Bblk=Bblk, H=H, W=W, C1=C1, C2=C2)
    out = pl.pallas_call(
        kernel,
        out_shape=jax.ShapeDtypeStruct((Bpad, H // 2, W // 2, C2), jnp.float32),
        grid_spec=pltpu.PrefetchScalarGridSpec(
            num_scalar_prefetch=0,
            grid=grid,
            in_specs=[
                pl.BlockSpec((Bblk, H * W, 9), lambda g: (g, 0, 0)),
                pl.BlockSpec((9, C1), lambda g: (0, 0)),
                pl.BlockSpec((1, C1), lambda g: (0, 0)),
                pl.BlockSpec((9 * C1, C2), lambda g: (0, 0)),
                pl.BlockSpec((1, C2), lambda g: (0, 0)),
            ],
            out_specs=pl.BlockSpec((Bblk, H // 2, W // 2, C2),
                                   lambda g: (g, 0, 0, 0)),
            scratch_shapes=[
                pltpu.VMEM((Bblk, H + 2, W + 2, C1), jnp.float32),   # padded conv1 act
                pltpu.VMEM((Bblk * (H // 2) * W, C2), jnp.float32),  # H-pooled rows
            ]),
        compiler_params=pltpu.CompilerParams(
            dimension_semantics=("parallel",),
            vmem_limit_bytes=32 * 1024 * 1024),
        cost_estimate=pl.CostEstimate(flops=flops, transcendentals=0,
                                      bytes_accessed=bytes_accessed),
    )(p1, w1r, b1r, w2r, b2r)

    out = out[:B]
    # NHWC (lane-dense in-kernel) -> NCHW to match the PyTorch module
    return jnp.transpose(out, (0, 3, 1, 2))


def reference(x, w1, b1, w2, b2):
    dn = ('NCHW', 'OIHW', 'NCHW')
    y = lax.conv_general_dilated(x, w1, (1, 1), 'SAME', dimension_numbers=dn)
    y = jax.nn.relu(y + b1[None, :, None, None])
    y = lax.conv_general_dilated(y, w2, (1, 1), 'SAME', dimension_numbers=dn)
    y = jax.nn.relu(y + b2[None, :, None, None])
    y = lax.reduce_window(y, -jnp.inf, lax.max, (1, 1, 2, 2), (1, 1, 2, 2), 'VALID')
    return y


if __name__ == "__main__":
    key = jax.random.PRNGKey(0)
    k1, k2, k3, k4, k5 = jax.random.split(key, 5)
    B, H, W = 8, 16, 16

    # deterministic synthetic parameters (shapes from the module's __init__)
    w1 = jax.random.normal(k1, (64, 1, 3, 3), jnp.float32) * 0.2
    b1 = jax.random.normal(k2, (64,), jnp.float32) * 0.1
    w2 = jax.random.normal(k3, (128, 64, 3, 3), jnp.float32) * 0.05
    b2 = jax.random.normal(k4, (128,), jnp.float32) * 0.1
    x = jax.random.normal(k5, (B, 1, H, W), jnp.float32)

    out = jax.block_until_ready(feature_extractor(x, w1, b1, w2, b2))

    ref = reference(x, w1, b1, w2, b2)
    assert out.shape == ref.shape == (B, 128, H // 2, W // 2), (out.shape, ref.shape)
    assert bool(jnp.allclose(out, ref, rtol=5e-2, atol=5e-2)), \
        float(jnp.max(jnp.abs(out - ref)))
    print("KERNEL_OK")
</pallas_src>

<mosaic_0001>
module attributes {stable_mosaic.version = 11 : i64} {
  func.func @_fe_kernel(%arg0: i32, %arg1: memref<4x256x9xf32, #tpu.memory_space<vmem>>, %arg2: memref<9x64xf32, #tpu.memory_space<vmem>>, %arg3: memref<1x64xf32, #tpu.memory_space<vmem>>, %arg4: memref<576x128xbf16, #tpu.memory_space<vmem>>, %arg5: memref<1x128xf32, #tpu.memory_space<vmem>>, %arg6: memref<4x8x8x128xf32, #tpu.memory_space<vmem>>, %arg7: memref<4x18x18x64xf32, #tpu.memory_space<vmem>>, %arg8: memref<512x128xf32, #tpu.memory_space<vmem>>) attributes {dimension_semantics = [#tpu.dimension_semantics<parallel>], iteration_bounds = array<i64: 2>, scalar_prefetch = 0 : i64, scratch_operands = 2 : i64, tpu.core_type = #tpu.core_type<tc>, window_params = [{transform_indices = @transform_0, window_bounds = array<i64: 4, 256, 9>}, {pipeline_mode = #tpu.pipeline_mode<synchronous>, transform_indices = @transform_1, window_bounds = array<i64: 9, 64>}, {pipeline_mode = #tpu.pipeline_mode<synchronous>, transform_indices = @transform_2, window_bounds = array<i64: 1, 64>}, {pipeline_mode = #tpu.pipeline_mode<synchronous>, transform_indices = @transform_3, window_bounds = array<i64: 576, 128>}, {pipeline_mode = #tpu.pipeline_mode<synchronous>, transform_indices = @transform_4, window_bounds = array<i64: 1, 128>}, {transform_indices = @transform_5, window_bounds = array<i64: 4, 8, 8, 128>}]} {
    %cst = arith.constant 0.000000e+00 : f32
    %0 = vector.broadcast %cst : f32 to vector<4x1x18x64xf32>
    %c0 = arith.constant 0 : index
    %c0_0 = arith.constant 0 : index
    %c0_1 = arith.constant 0 : index
    %c0_2 = arith.constant 0 : index
    %1 = vector.load %arg7[%c0, %c0_0, %c0_1, %c0_2] : memref<4x18x18x64xf32, #tpu.memory_space<vmem>>, vector<4x1x18x64xf32>
    tpu.vector_store %arg7[%c0, %c0_0, %c0_1, %c0_2], %0 {strides = array<i32>} : memref<4x18x18x64xf32, #tpu.memory_space<vmem>>, vector<4x1x18x64xf32>,
    %cst_3 = arith.constant 0.000000e+00 : f32
    %2 = vector.broadcast %cst_3 : f32 to vector<4x1x18x64xf32>
    %c0_4 = arith.constant 0 : index
    %c17 = arith.constant 17 : index
    %c0_5 = arith.constant 0 : index
    %c0_6 = arith.constant 0 : index
    %3 = vector.load %arg7[%c0_4, %c17, %c0_5, %c0_6] : memref<4x18x18x64xf32, #tpu.memory_space<vmem>>, vector<4x1x18x64xf32>
    tpu.vector_store %arg7[%c0_4, %c17, %c0_5, %c0_6], %2 {strides = array<i32>} : memref<4x18x18x64xf32, #tpu.memory_space<vmem>>, vector<4x1x18x64xf32>,
    %cst_7 = arith.constant 0.000000e+00 : f32
    %4 = vector.broadcast %cst_7 : f32 to vector<4x18x1x64xf32>
    %c0_8 = arith.constant 0 : index
    %c0_9 = arith.constant 0 : index
    %c0_10 = arith.constant 0 : index
    %c0_11 = arith.constant 0 : index
    %5 = vector.load %arg7[%c0_8, %c0_9, %c0_10, %c0_11] : memref<4x18x18x64xf32, #tpu.memory_space<vmem>>, vector<4x18x1x64xf32>
    tpu.vector_store %arg7[%c0_8, %c0_9, %c0_10, %c0_11], %4 {strides = array<i32>} : memref<4x18x18x64xf32, #tpu.memory_space<vmem>>, vector<4x18x1x64xf32>,
    %cst_12 = arith.constant 0.000000e+00 : f32
    %6 = vector.broadcast %cst_12 : f32 to vector<4x18x1x64xf32>
    %c0_13 = arith.constant 0 : index
    %c0_14 = arith.constant 0 : index
    %c17_15 = arith.constant 17 : index
    %c0_16 = arith.constant 0 : index
    %7 = vector.load %arg7[%c0_13, %c0_14, %c17_15, %c0_16] : memref<4x18x18x64xf32, #tpu.memory_space<vmem>>, vector<4x18x1x64xf32>
    tpu.vector_store %arg7[%c0_13, %c0_14, %c17_15, %c0_16], %6 {strides = array<i32>} : memref<4x18x18x64xf32, #tpu.memory_space<vmem>>, vector<4x18x1x64xf32>,
    %c0_17 = arith.constant 0 : index
    %c0_18 = arith.constant 0 : index
    %c0_19 = arith.constant 0 : index
    %8 = vector.load %arg1[%c0_17, %c0_18, %c0_19] : memref<4x256x9xf32, #tpu.memory_space<vmem>>, vector<4x256x9xf32>
    %9 = vector.shape_cast %8 : vector<4x256x9xf32> to vector<1024x9xf32>
    %c0_20 = arith.constant 0 : index
    %c0_21 = arith.constant 0 : index
    %10 = vector.load %arg2[%c0_20, %c0_21] : memref<9x64xf32, #tpu.memory_space<vmem>>, vector<9x64xf32>
    %cst_22 = arith.constant dense<0.000000e+00> : vector<1024x64xf32>
    %11 = tpu.matmul %9, %10, %cst_22 {dimension_numbers = #tpu.dot_dimension_numbers<[1], [0], [0], [1], [0, 0, 1, 1], [], []>} : vector<1024x9xf32>, vector<9x64xf32>, vector<1024x64xf32> -> vector<1024x64xf32>
    %c0_23 = arith.constant 0 : index
    %c0_24 = arith.constant 0 : index
    %12 = vector.load %arg3[%c0_23, %c0_24] : memref<1x64xf32, #tpu.memory_space<vmem>>, vector<1x64xf32>
    %13 = vector.broadcast %12 : vector<1x64xf32> to vector<1024x64xf32>
    %14 = arith.addf %11, %13 : vector<1024x64xf32>
    %cst_25 = arith.constant 0.000000e+00 : f32
    %15 = vector.broadcast %cst_25 : f32 to vector<1024x64xf32>
    %16 = arith.maximumf %14, %15 : vector<1024x64xf32>
    %17 = vector.shape_cast %16 : vector<1024x64xf32> to vector<4x16x16x64xf32>
    %c0_26 = arith.constant 0 : index
    %c1 = arith.constant 1 : index
    %c1_27 = arith.constant 1 : index
    %c0_28 = arith.constant 0 : index
    %18 = vector.load %arg7[%c0_26, %c1, %c1_27, %c0_28] : memref<4x18x18x64xf32, #tpu.memory_space<vmem>>, vector<4x16x16x64xf32>
    tpu.vector_store %arg7[%c0_26, %c1, %c1_27, %c0_28], %17 {strides = array<i32>} : memref<4x18x18x64xf32, #tpu.memory_space<vmem>>, vector<4x16x16x64xf32>,
    %c0_29 = arith.constant 0 : index
    %c0_30 = arith.constant 0 : index
    %c0_31 = arith.constant 0 : index
    %c0_32 = arith.constant 0 : index
    %19 = vector.load %arg7[%c0_29, %c0_30, %c0_31, %c0_32] : memref<4x18x18x64xf32, #tpu.memory_space<vmem>>, vector<4x16x16x64xf32>
    %c0_33 = arith.constant 0 : index
    %c0_34 = arith.constant 0 : index
    %c1_35 = arith.constant 1 : index
    %c0_36 = arith.constant 0 : index
    %20 = vector.load %arg7[%c0_33, %c0_34, %c1_35, %c0_36] : memref<4x18x18x64xf32, #tpu.memory_space<vmem>>, vector<4x16x16x64xf32>
    %c0_37 = arith.constant 0 : index
    %c0_38 = arith.constant 0 : index
    %c2 = arith.constant 2 : index
    %c0_39 = arith.constant 0 : index
    %21 = vector.load %arg7[%c0_37, %c0_38, %c2, %c0_39] : memref<4x18x18x64xf32, #tpu.memory_space<vmem>>, vector<4x16x16x64xf32>
    %c0_40 = arith.constant 0 : index
    %c1_41 = arith.constant 1 : index
    %c0_42 = arith.constant 0 : index
    %c0_43 = arith.constant 0 : index
    %22 = vector.load %arg7[%c0_40, %c1_41, %c0_42, %c0_43] : memref<4x18x18x64xf32, #tpu.memory_space<vmem>>, vector<4x16x16x64xf32>
    %c0_44 = arith.constant 0 : index
    %c1_45 = arith.constant 1 : index
    %c1_46 = arith.constant 1 : index
    %c0_47 = arith.constant 0 : index
    %23 = vector.load %arg7[%c0_44, %c1_45, %c1_46, %c0_47] : memref<4x18x18x64xf32, #tpu.memory_space<vmem>>, vector<4x16x16x64xf32>
    %c0_48 = arith.constant 0 : index
    %c1_49 = arith.constant 1 : index
    %c2_50 = arith.constant 2 : index
    %c0_51 = arith.constant 0 : index
    %24 = vector.load %arg7[%c0_48, %c1_49, %c2_50, %c0_51] : memref<4x18x18x64xf32, #tpu.memory_space<vmem>>, vector<4x16x16x64xf32>
    %c0_52 = arith.constant 0 : index
    %c2_53 = arith.constant 2 : index
    %c0_54 = arith.constant 0 : index
    %c0_55 = arith.constant 0 : index
    %25 = vector.load %arg7[%c0_52, %c2_53, %c0_54, %c0_55] : memref<4x18x18x64xf32, #tpu.memory_space<vmem>>, vector<4x16x16x64xf32>
    %c0_56 = arith.constant 0 : index
    %c2_57 = arith.constant 2 : index
    %c1_58 = arith.constant 1 : index
    %c0_59 = arith.constant 0 : index
    %26 = vector.load %arg7[%c0_56, %c2_57, %c1_58, %c0_59] : memref<4x18x18x64xf32, #tpu.memory_space<vmem>>, vector<4x16x16x64xf32>
    %c0_60 = arith.constant 0 : index
    %c2_61 = arith.constant 2 : index
    %c2_62 = arith.constant 2 : index
    %c0_63 = arith.constant 0 : index
    %27 = vector.load %arg7[%c0_60, %c2_61, %c2_62, %c0_63] : memref<4x18x18x64xf32, #tpu.memory_space<vmem>>, vector<4x16x16x64xf32>
    %28 = tpu.concatenate %19, %20, %21, %22, %23, %24, %25, %26, %27 in 3 : vector<4x16x16x64xf32>, vector<4x16x16x64xf32>, vector<4x16x16x64xf32>, vector<4x16x16x64xf32>, vector<4x16x16x64xf32>, vector<4x16x16x64xf32>, vector<4x16x16x64xf32>, vector<4x16x16x64xf32>, vector<4x16x16x64xf32> -> vector<4x16x16x576xf32>
    %29 = vector.shape_cast %28 : vector<4x16x16x576xf32> to vector<1024x576xf32>
    %30 = arith.truncf %29 : vector<1024x576xf32> to vector<1024x576xbf16>
    %c0_64 = arith.constant 0 : index
    %c0_65 = arith.constant 0 : index
    %31 = vector.load %arg4[%c0_64, %c0_65] : memref<576x128xbf16, #tpu.memory_space<vmem>>, vector<576x128xbf16>
    %cst_66 = arith.constant dense<0.000000e+00> : vector<1024x128xf32>
    %32 = tpu.matmul %30, %31, %cst_66 {dimension_numbers = #tpu.dot_dimension_numbers<[1], [0], [0], [1], [0, 0, 1, 1], [], []>} : vector<1024x576xbf16>, vector<576x128xbf16>, vector<1024x128xf32> -> vector<1024x128xf32>
    %33 = vector.shape_cast %32 : vector<1024x128xf32> to vector<32x32x128xf32>
    %34 = vector.extract_strided_slice %33 {offsets = [0, 0, 0], sizes = [32, 16, 128], strides = [1, 1, 1]} : vector<32x32x128xf32> to vector<32x16x128xf32>
    %35 = vector.extract_strided_slice %33 {offsets = [0, 16, 0], sizes = [32, 16, 128], strides = [1, 1, 1]} : vector<32x32x128xf32> to vector<32x16x128xf32>
    %36 = arith.maximumf %34, %35 : vector<32x16x128xf32>
    %37 = vector.shape_cast %36 : vector<32x16x128xf32> to vector<512x128xf32>
    %c0_67 = arith.constant 0 : index
    %c0_68 = arith.constant 0 : index
    %38 = vector.load %arg8[%c0_67, %c0_68] : memref<512x128xf32, #tpu.memory_space<vmem>>, vector<512x128xf32>
    tpu.vector_store %arg8[%c0_67, %c0_68], %37 {strides = array<i32>} : memref<512x128xf32, #tpu.memory_space<vmem>>, vector<512x128xf32>,
    %c0_69 = arith.constant 0 : index
    %c0_70 = arith.constant 0 : index
    %39 = tpu.strided_load %arg8[%c0_69, %c0_70] {strides = array<i32: 2, 1>} : memref<512x128xf32, #tpu.memory_space<vmem>>, vector<256x128xf32>
    %c1_71 = arith.constant 1 : index
    %c0_72 = arith.constant 0 : index
    %40 = tpu.strided_load %arg8[%c1_71, %c0_72] {strides = array<i32: 2, 1>} : memref<512x128xf32, #tpu.memory_space<vmem>>, vector<256x128xf32>
    %41 = arith.maximumf %39, %40 : vector<256x128xf32>
    %c0_73 = arith.constant 0 : index
    %c0_74 = arith.constant 0 : index
    %42 = vector.load %arg5[%c0_73, %c0_74] : memref<1x128xf32, #tpu.memory_space<vmem>>, vector<1x128xf32>
    %43 = vector.broadcast %42 : vector<1x128xf32> to vector<256x128xf32>
    %44 = arith.addf %41, %43 : vector<256x128xf32>
    %cst_75 = arith.constant 0.000000e+00 : f32
    %45 = vector.broadcast %cst_75 : f32 to vector<256x128xf32>
    %46 = arith.maximumf %44, %45 : vector<256x128xf32>
    %47 = vector.shape_cast %46 : vector<256x128xf32> to vector<4x8x8x128xf32>
    %c0_76 = arith.constant 0 : index
    %c0_77 = arith.constant 0 : index
    %c0_78 = arith.constant 0 : index
    %c0_79 = arith.constant 0 : index
    %48 = vector.load %arg6[%c0_76, %c0_77, %c0_78, %c0_79] : memref<4x8x8x128xf32, #tpu.memory_space<vmem>>, vector<4x8x8x128xf32>
    tpu.vector_store %arg6[%c0_76, %c0_77, %c0_78, %c0_79], %47 {strides = array<i32>} : memref<4x8x8x128xf32, #tpu.memory_space<vmem>>, vector<4x8x8x128xf32>,
    return
  }
  func.func @transform_0(%arg0: i32) -> (i32, i32, i32) {
    %c0_i32 = arith.constant 0 : i32
    %c0_i32_0 = arith.constant 0 : i32
    %c0_i32_1 = arith.constant 0 : i32
    return %arg0, %c0_i32, %c0_i32_0 : i32, i32, i32
  }
  func.func @transform_1(%arg0: i32) -> (i32, i32) {
    %c0_i32 = arith.constant 0 : i32
    %c0_i32_0 = arith.constant 0 : i32
    %c0_i32_1 = arith.constant 0 : i32
    return %c0_i32, %c0_i32_0 : i32, i32
  }
  func.func @transform_2(%arg0: i32) -> (i32, i32) {
    %c0_i32 = arith.constant 0 : i32
    %c0_i32_0 = arith.constant 0 : i32
    %c0_i32_1 = arith.constant 0 : i32
    return %c0_i32, %c0_i32_0 : i32, i32
  }
  func.func @transform_3(%arg0: i32) -> (i32, i32) {
    %c0_i32 = arith.constant 0 : i32
    %c0_i32_0 = arith.constant 0 : i32
    %c0_i32_1 = arith.constant 0 : i32
    return %c0_i32, %c0_i32_0 : i32, i32
  }
  func.func @transform_4(%arg0: i32) -> (i32, i32) {
    %c0_i32 = arith.constant 0 : i32
    %c0_i32_0 = arith.constant 0 : i32
    %c0_i32_1 = arith.constant 0 : i32
    return %c0_i32, %c0_i32_0 : i32, i32
  }
  func.func @transform_5(%arg0: i32) -> (i32, i32, i32, i32) {
    %c0_i32 = arith.constant 0 : i32
    %c0_i32_0 = arith.constant 0 : i32
    %c0_i32_1 = arith.constant 0 : i32
    %c0_i32_2 = arith.constant 0 : i32
    return %arg0, %c0_i32, %c0_i32_0, %c0_i32_1 : i32, i32, i32, i32
  }
}

</mosaic_0001>

<llo_original>
// kernel: tpu_custom_call.1
$region0: #{tpu_custom_call.1}
  #allocation0 [shape = 'u32[]', space=smem, size = 0x4, offset = 0x4, fixed_abs, tag = 'smem constant byte address 0x4 - core index']
  #allocation1 [shape = 'u32[144,128]{1,0:T(1,128)}', space=vmem, size = 0x12000, scoped, tag = 'internal scratch']
  #allocation2 [shape = 'f32[4,18,18,64]{3,2,1,0:T(8,128)}', space=vmem, size = 0xd8000, scoped, tag = 'scratch operand']
  #allocation3 [shape = 'f32[512,128]{1,0:T(8,128)}', space=vmem, size = 0x40000, scoped, tag = 'scratch operand']
  %s0 = inlined_call_operand.vmem [shape: f32[8,256,9], index: 0, kind: input, shape index: {}]
  %s1 = inlined_call_operand.vmem [shape: f32[9,64], index: 1, kind: input, shape index: {}]
  %s2 = inlined_call_operand.vmem [shape: f32[1,64], index: 2, kind: input, shape index: {}]
  %s3 = inlined_call_operand.vmem [shape: bf16[576,128], index: 3, kind: input, shape index: {}]
  %s4 = inlined_call_operand.vmem [shape: f32[1,128], index: 4, kind: input, shape index: {}]
  %s5 = inlined_call_operand.hbm [shape: f32[8,8,8,128], index: 5, kind: output, shape index: {}]
  %s6 = sld [smem:[#allocation0]]
  $region53: #{tpu_custom_call.1} parent=0
    _
  %s8 = ssub.s32 1, %s6
  %s9 = scalar_select 0, %s8, %s6
  $region1: #{tpu_custom_call.1} parent=0
    #allocation4 [shape = 'u8[262144]{0}', space=vmem, size = 0x40000, scoped, tag = 'output window, operand 0']
    #allocation5 [shape = 's32[2]{0}', space=sflag, size = 0x8, scoped, tag = 'scoped memory for tpu_custom_call.1']
    %10 = vsyncpa [#allocation5], 0
    %s11 = scalar_lea.sflag [#allocation5], 1
    %12 = vsyncpa %s11, 0
    loop: start=0, step=1, limit=4
    $region2: #{tpu_custom_call.1} parent=1 // loop_pre_header
      _
    $region3: #{tpu_custom_call.1} parent=1 // loop_header
      %s14 = sphi 0, %s18
      %p15 = scmp.ge.s32.totalorder %s14, 4
      %s24 = sphi 0, %s26
      %s27 = sphi 0, %s24
      %s28 = sphi 0, %s27
      %s44 = sphi 0, %s28
      %s48 = sphi 0, %s48
      %s50 = sphi 0, %s48
      %s51 = sphi 0, %s50
      %s65 = sphi 0, %s51
      %s69 = sphi 0, %s69
      %s71 = sphi 0, %s69
      %s72 = sphi 0, %s71
      %s86 = sphi 0, %s72
      %s90 = sphi 0, %s90
      %s92 = sphi 0, %s90
      %s93 = sphi 0, %s92
      %s107 = sphi 0, %s93
      %s111 = sphi 0, %s111
      %s113 = sphi 0, %s111
      %s114 = sphi 0, %s113
      %s128 = sphi 0, %s114
      %s134 = sphi 0, %s136
      %s137 = sphi 0, %s134
      %s138 = sphi 0, %s137
      %s154 = sphi 0, %s138
    $region4: #{tpu_custom_call.1} parent=1 // loop_header_branch
      %17 = sbr.rel (%p15) target = $region8
    $region5: #{tpu_custom_call.1} parent=1 // loop_body
      %s19 = ssub.s32 %s14, 1
      %s20 = ssub.s32 %s14, 2
      %s21 = sadd.s32 %s14, 1
      %s22 = ssub.s32 %s14, %s21
      %p23 = scmp.eq.s32.totalorder %s22, 0
      %s25 = sadd.s32 %s24, 1
      %s26 = scalar_select %p23, %s24, %s25
      %p29 = pneg %p23
      %p30 = scmp.eq.s32.totalorder %s14, 1
      %p31 = por %p29, %p30
      %p32 = scmp.ne.s32.totalorder %s24, %s27
      %p33 = scmp.eq.s32.totalorder %s14, 0
      %p34 = por %p32, %p33
      %p35 = scmp.ne.s32.totalorder %s24, %s27
      %p36 = scmp.eq.s32.totalorder %s19, 1
      %p37 = por %p35, %p36
      %p38 = scmp.ne.s32.totalorder %s27, %s28
      %p39 = scmp.eq.s32.totalorder %s19, 0
      %p40 = por %p38, %p39
      %p41 = scmp.ne.s32.totalorder %s27, %s28
      %p42 = scmp.eq.s32.totalorder %s20, 1
      %p43 = por %p41, %p42
      %p45 = scmp.ne.s32.totalorder %s28, %s44
      %p46 = scmp.eq.s32.totalorder %s20, 0
      %p47 = por %p45, %p46
      %s49 = sadd.s32 %s48, 1
      %p52 = scmp.eq.s32.totalorder %s14, 1
      %p53 = scmp.ne.s32.totalorder %s48, %s50
      %p54 = scmp.eq.s32.totalorder %s14, 0
      %p55 = por %p53, %p54
      %p56 = scmp.ne.s32.totalorder %s48, %s50
      %p57 = scmp.eq.s32.totalorder %s19, 1
      %p58 = por %p56, %p57
      %p59 = scmp.ne.s32.totalorder %s50, %s51
      %p60 = scmp.eq.s32.totalorder %s19, 0
      %p61 = por %p59, %p60
      %p62 = scmp.ne.s32.totalorder %s50, %s51
      %p63 = scmp.eq.s32.totalorder %s20, 1
      %p64 = por %p62, %p63
      %p66 = scmp.ne.s32.totalorder %s51, %s65
      %p67 = scmp.eq.s32.totalorder %s20, 0
      %p68 = por %p66, %p67
      %s70 = sadd.s32 %s69, 1
      %p73 = scmp.eq.s32.totalorder %s14, 1
      %p74 = scmp.ne.s32.totalorder %s69, %s71
      %p75 = scmp.eq.s32.totalorder %s14, 0
      %p76 = por %p74, %p75
      %p77 = scmp.ne.s32.totalorder %s69, %s71
      %p78 = scmp.eq.s32.totalorder %s19, 1
      %p79 = por %p77, %p78
      %p80 = scmp.ne.s32.totalorder %s71, %s72
      %p81 = scmp.eq.s32.totalorder %s19, 0
      %p82 = por %p80, %p81
      %p83 = scmp.ne.s32.totalorder %s71, %s72
      %p84 = scmp.eq.s32.totalorder %s20, 1
      %p85 = por %p83, %p84
      %p87 = scmp.ne.s32.totalorder %s72, %s86
      %p88 = scmp.eq.s32.totalorder %s20, 0
      %p89 = por %p87, %p88
      %s91 = sadd.s32 %s90, 1
      %p94 = scmp.eq.s32.totalorder %s14, 1
      %p95 = scmp.ne.s32.totalorder %s90, %s92
      %p96 = scmp.eq.s32.totalorder %s14, 0
      %p97 = por %p95, %p96
      %p98 = scmp.ne.s32.totalorder %s90, %s92
      %p99 = scmp.eq.s32.totalorder %s19, 1
      %p100 = por %p98, %p99
      %p101 = scmp.ne.s32.totalorder %s92, %s93
      %p102 = scmp.eq.s32.totalorder %s19, 0
      %p103 = por %p101, %p102
      %p104 = scmp.ne.s32.totalorder %s92, %s93
      %p105 = scmp.eq.s32.totalorder %s20, 1
      %p106 = por %p104, %p105
      %p108 = scmp.ne.s32.totalorder %s93, %s107
      %p109 = scmp.eq.s32.totalorder %s20, 0
      %p110 = por %p108, %p109
      %s112 = sadd.s32 %s111, 1
      %p115 = scmp.eq.s32.totalorder %s14, 1
      %p116 = scmp.ne.s32.totalorder %s111, %s113
      %p117 = scmp.eq.s32.totalorder %s14, 0
      %p118 = por %p116, %p117
      %p119 = scmp.ne.s32.totalorder %s111, %s113
      %p120 = scmp.eq.s32.totalorder %s19, 1
      %p121 = por %p119, %p120
      %p122 = scmp.ne.s32.totalorder %s113, %s114
      %p123 = scmp.eq.s32.totalorder %s19, 0
      %p124 = por %p122, %p123
      %p125 = scmp.ne.s32.totalorder %s113, %s114
      %p126 = scmp.eq.s32.totalorder %s20, 1
      %p127 = por %p125, %p126
      %p129 = scmp.ne.s32.totalorder %s114, %s128
      %p130 = scmp.eq.s32.totalorder %s20, 0
      %p131 = por %p129, %p130
      %s132 = ssub.s32 %s14, %s21
      %p133 = scmp.eq.s32.totalorder %s132, 0
      %s135 = sadd.s32 %s134, 1
      %s136 = scalar_select %p133, %s134, %s135
      %p139 = pneg %p133
      %p140 = scmp.eq.s32.totalorder %s14, 1
      %p141 = por %p139, %p140
      %p142 = scmp.ne.s32.totalorder %s134, %s137
      %p143 = scmp.eq.s32.totalorder %s14, 0
      %p144 = por %p142, %p143
      %p145 = scmp.ne.s32.totalorder %s134, %s137
      %p146 = scmp.eq.s32.totalorder %s19, 1
      %p147 = por %p145, %p146
      %p148 = scmp.ne.s32.totalorder %s137, %s138
      %p149 = scmp.eq.s32.totalorder %s19, 0
      %p150 = por %p148, %p149
      %p151 = scmp.ne.s32.totalorder %s137, %s138
      %p152 = scmp.eq.s32.totalorder %s20, 1
      %p153 = por %p151, %p152
      %p155 = scmp.ne.s32.totalorder %s138, %s154
      %p156 = scmp.eq.s32.totalorder %s20, 0
      %p157 = por %p155, %p156
      %p158 = scmp.le.s32.totalorder 1, %s14
      %p159 = scmp.lt.s32.totalorder %s14, 3
      %p160 = pnand %p158, %p159
      %p161 = pneg %p160
      // Predicated region
      $region9: #{tpu_custom_call.1} parent=5 // pred_check
        _
      $region10: #{tpu_custom_call.1} parent=5 // pred_check_branch
        %163 = sbr.rel (%p160) target = $region12
      $region11: #{tpu_custom_call.1} parent=5 // pred_region
        %s164 = ssub.s32 %s14, 1
        // Predicated region
        $region13: #{tpu_custom_call.1} parent=11 // pred_check
          %p165 = pneg %p61
        $region14: #{tpu_custom_call.1} parent=11 // pred_check_branch
          %167 = sbr.rel (%p165) target = $region16
        $region15: #{tpu_custom_call.1} parent=11 // pred_region
          _
        $region16: #{tpu_custom_call.1} parent=11 // pred_fallthru
          _
        // Predicated region
        $region17: #{tpu_custom_call.1} parent=11 // pred_check
          %p168 = pneg %p82
        $region18: #{tpu_custom_call.1} parent=11 // pred_check_branch
          %170 = sbr.rel (%p168) target = $region20
        $region19: #{tpu_custom_call.1} parent=11 // pred_region
          _
        $region20: #{tpu_custom_call.1} parent=11 // pred_fallthru
          _
        // Predicated region
        $region21: #{tpu_custom_call.1} parent=11 // pred_check
          %p171 = pneg %p103
        $region22: #{tpu_custom_call.1} parent=11 // pred_check_branch
          %173 = sbr.rel (%p171) target = $region24
        $region23: #{tpu_custom_call.1} parent=11 // pred_region
          _
        $region24: #{tpu_custom_call.1} parent=11 // pred_fallthru
          _
        // Predicated region
        $region25: #{tpu_custom_call.1} parent=11 // pred_check
          %p174 = pneg %p124
        $region26: #{tpu_custom_call.1} parent=11 // pred_check_branch
          %176 = sbr.rel (%p174) target = $region28
        $region27: #{tpu_custom_call.1} parent=11 // pred_region
          _
        $region28: #{tpu_custom_call.1} parent=11 // pred_fallthru
          _
      $region12: #{tpu_custom_call.1} parent=5 // pred_fallthru
        _
      %p177 = scmp.lt.s32.totalorder %s14, 2
      // Predicated region
      $region29: #{tpu_custom_call.1} parent=5 // pred_check
        %p178 = pneg %p177
      $region30: #{tpu_custom_call.1} parent=5 // pred_check_branch
        %180 = sbr.rel (%p178) target = $region32
      $region31: #{tpu_custom_call.1} parent=5 // pred_region
        // Predicated region
        $region33: #{tpu_custom_call.1} parent=31 // pred_check
          %p181 = pneg %p34
        $region34: #{tpu_custom_call.1} parent=31 // pred_check_branch
          %183 = sbr.rel (%p181) target = $region36
        $region35: #{tpu_custom_call.1} parent=31 // pred_region
          %s184 = smul.u32 4, %s14
          %p185 = scmp.lt.s32.totalorder %s184, 7
          %s186 = scalar_select %p185, %s184, 7
          %s187 = smul.addr %s186, 32
          %s188 = smul.addr %s187, 8
          %s189 = scalar_lea.vmem %s0, %s188
          %s190 = smul.u32 4, %s14
        $region36: #{tpu_custom_call.1} parent=31 // pred_fallthru
          _
      $region32: #{tpu_custom_call.1} parent=5 // pred_fallthru
        _
      %p191 = scmp.le.s32.totalorder 1, %s14
      %p192 = scmp.lt.s32.totalorder %s14, 3
      %p193 = pnand %p191, %p192
      %p194 = pneg %p193
      // Predicated region
      $region37: #{tpu_custom_call.1} parent=5 // pred_check
        _
      $region38: #{tpu_custom_call.1} parent=5 // pred_check_branch
        %196 = sbr.rel (%p193) target = $region40
      $region39: #{tpu_custom_call.1} parent=5 // pred_region
        %s197 = ssub.s32 %s14, 1
        %s198 = smul.u32 4, %s19
        %p199 = scmp.lt.s32.totalorder %s198, 7
        %s200 = scalar_select %p199, %s198, 7
        %s201 = smul.addr %s200, 32
        %s202 = smul.addr %s201, 8
        %s203 = scalar_lea.vmem %s0, %s202
        %p204 = pneg %p40
        %p205 = pneg %p37
        %p206 = pneg %p61
        %p207 = pneg %p58
        %p208 = pneg %p82
        %p209 = pneg %p79
        %p210 = pneg %p103
        %p211 = pneg %p100
        %p212 = pneg %p124
        %p213 = pneg %p121
        %p214 = pneg %p150
        %p215 = pneg %p147
        %s216 = sand.u32 %s137, 1
        %s217 = scalar_lea.sflag [#allocation5], %s216
        %s218 = sand.u32 %s137, 1
        %s219 = smul.addr %s218, 256
        %s220 = scalar_lea.vmem [#allocation4], %s219
        %s221 = smul.u32 4, %s19
        %p222 = scmp.lt.s32.totalorder %s221, 7
        %s223 = scalar_select %p222, %s221, 7
        %s224 = smul.addr %s223, 32
        %s225 = smul.addr %s224, 8
        %s226 = scalar_lea.vmem %s0, %s225
        %s227 = smul.u32 4, %s19
        %s228 = smul.u32 4, %s19
        %vm230 = vcmask 523264
        %231 = vst.msk [vmem:[#allocation2] sm:$0xff] %vm230, 0.0
        %232 = vst.msk [vmem:[#allocation2 + $0x8] sm:$0xff] %vm230, 0.0
        %vm233 = vcmask 517120
        %234 = vst.msk [vmem:[#allocation2 + $0x10] sm:$0x3] %vm233, 0.0
        %235 = vst.msk [vmem:[#allocation2 + $0x1b0] sm:$0xff] %vm230, 0.0
        %236 = vst.msk [vmem:[#allocation2 + $0x1b8] sm:$0xff] %vm230, 0.0
        %237 = vst.msk [vmem:[#allocation2 + $0x1c0] sm:$0x3] %vm233, 0.0
        %238 = vst.msk [vmem:[#allocation2 + $0x360] sm:$0xff] %vm230, 0.0
        %239 = vst.msk [vmem:[#allocation2 + $0x368] sm:$0xff] %vm230, 0.0
        %240 = vst.msk [vmem:[#allocation2 + $0x370] sm:$0x3] %vm233, 0.0
        %241 = vst.msk [vmem:[#allocation2 + $0x510] sm:$0xff] %vm230, 0.0
        %242 = vst.msk [vmem:[#allocation2 + $0x518] sm:$0xff] %vm230, 0.0
        %243 = vst.msk [vmem:[#allocation2 + $0x520] sm:$0x3] %vm233, 0.0
        %s244 = scalar_lea.vmem [#allocation2], 408
        %245 = vst.msk [vmem:[%s244] sm:$0xff] %vm230, 0.0
        %246 = vst.msk [vmem:[%s244 + $0x8] sm:$0xff] %vm230, 0.0
        %247 = vst.msk [vmem:[%s244 + $0x10] sm:$0x3] %vm233, 0.0
        %248 = vst.msk [vmem:[%s244 + $0x1b0] sm:$0xff] %vm230, 0.0
        %249 = vst.msk [vmem:[%s244 + $0x1b8] sm:$0xff] %vm230, 0.0
        %250 = vst.msk [vmem:[%s244 + $0x1c0] sm:$0x3] %vm233, 0.0
        %251 = vst.msk [vmem:[%s244 + $0x360] sm:$0xff] %vm230, 0.0
        %252 = vst.msk [vmem:[%s244 + $0x368] sm:$0xff] %vm230, 0.0
        %253 = vst.msk [vmem:[%s244 + $0x370] sm:$0x3] %vm233, 0.0
        %254 = vst.msk [vmem:[%s244 + $0x510] sm:$0xff] %vm230, 0.0
        %255 = vst.msk [vmem:[%s244 + $0x518] sm:$0xff] %vm230, 0.0
        %256 = vst.msk [vmem:[%s244 + $0x520] sm:$0x3] %vm233, 0.0
        %vm257 = vcmask 516096
        %258 = vst.msk [vmem:[#allocation2] sm:$0x1] %vm257, 0.0
        %259 = vst.msk [vmem:[#allocation2 + $0x18] sm:$0x1] %vm257, 0.0
        %260 = vst.msk [vmem:[#allocation2 + $0x30] sm:$0x1] %vm257, 0.0
        %261 = vst.msk [vmem:[#allocation2 + $0x48] sm:$0x1] %vm257, 0.0
        %262 = vst.msk [vmem:[#allocation2 + $0x60] sm:$0x1] %vm257, 0.0
        %263 = vst.msk [vmem:[#allocation2 + $0x78] sm:$0x1] %vm257, 0.0
        %264 = vst.msk [vmem:[#allocation2 + $0x90] sm:$0x1] %vm257, 0.0
        %265 = vst.msk [vmem:[#allocation2 + $0xa8] sm:$0x1] %vm257, 0.0
        %266 = vst.msk [vmem:[#allocation2 + $0xc0] sm:$0x1] %vm257, 0.0
        %267 = vst.msk [vmem:[#allocation2 + $0xd8] sm:$0x1] %vm257, 0.0
        %268 = vst.msk [vmem:[#allocation2 + $0xf0] sm:$0x1] %vm257, 0.0
        %269 = vst.msk [vmem:[#allocation2 + $0x108] sm:$0x1] %vm257, 0.0
        %270 = vst.msk [vmem:[#allocation2 + $0x120] sm:$0x1] %vm257, 0.0
        %271 = vst.msk [vmem:[#allocation2 + $0x138] sm:$0x1] %vm257, 0.0
        %272 = vst.msk [vmem:[#allocation2 + $0x150] sm:$0x1] %vm257, 0.0
        %273 = vst.msk [vmem:[#allocation2 + $0x168] sm:$0x1] %vm257, 0.0
        %274 = vst.msk [vmem:[#allocation2 + $0x180] sm:$0x1] %vm257, 0.0
        %275 = vst.msk [vmem:[#allocation2 + $0x198] sm:$0x1] %vm257, 0.0
        %276 = vst.msk [vmem:[#allocation2 + $0x1b0] sm:$0x1] %vm257, 0.0
        %277 = vst.msk [vmem:[#allocation2 + $0x1c8] sm:$0x1] %vm257, 0.0
        %278 = vst.msk [vmem:[#allocation2 + $0x1e0] sm:$0x1] %vm257, 0.0
        %279 = vst.msk [vmem:[#allocation2 + $0x1f8] sm:$0x1] %vm257, 0.0
        %280 = vst.msk [vmem:[#allocation2 + $0x210] sm:$0x1] %vm257, 0.0
        %281 = vst.msk [vmem:[#allocation2 + $0x228] sm:$0x1] %vm257, 0.0
        %282 = vst.msk [vmem:[#allocation2 + $0x240] sm:$0x1] %vm257, 0.0
        %283 = vst.msk [vmem:[#allocation2 + $0x258] sm:$0x1] %vm257, 0.0
        %284 = vst.msk [vmem:[#allocation2 + $0x270] sm:$0x1] %vm257, 0.0
        %285 = vst.msk [vmem:[#allocation2 + $0x288] sm:$0x1] %vm257, 0.0
        %286 = vst.msk [vmem:[#allocation2 + $0x2a0] sm:$0x1] %vm257, 0.0
        %287 = vst.msk [vmem:[#allocation2 + $0x2b8] sm:$0x1] %vm257, 0.0
        %288 = vst.msk [vmem:[#allocation2 + $0x2d0] sm:$0x1] %vm257, 0.0
        %289 = vst.msk [vmem:[#allocation2 + $0x2e8] sm:$0x1] %vm257, 0.0
        %290 = vst.msk [vmem:[#allocation2 + $0x300] sm:$0x1] %vm257, 0.0
        %291 = vst.msk [vmem:[#allocation2 + $0x318] sm:$0x1] %vm257, 0.0
        %292 = vst.msk [vmem:[#allocation2 + $0x330] sm:$0x1] %vm257, 0.0
        %293 = vst.msk [vmem:[#allocation2 + $0x348] sm:$0x1] %vm257, 0.0
        %294 = vst.msk [vmem:[#allocation2 + $0x360] sm:$0x1] %vm257, 0.0
        %295 = vst.msk [vmem:[#allocation2 + $0x378] sm:$0x1] %vm257, 0.0
        %296 = vst.msk [vmem:[#allocation2 + $0x390] sm:$0x1] %vm257, 0.0
        %297 = vst.msk [vmem:[#allocation2 + $0x3a8] sm:$0x1] %vm257, 0.0
        %298 = vst.msk [vmem:[#allocation2 + $0x3c0] sm:$0x1] %vm257, 0.0
        %299 = vst.msk [vmem:[#allocation2 + $0x3d8] sm:$0x1] %vm257, 0.0
        %300 = vst.msk [vmem:[#allocation2 + $0x3f0] sm:$0x1] %vm257, 0.0
        %301 = vst.msk [vmem:[#allocation2 + $0x408] sm:$0x1] %vm257, 0.0
        %302 = vst.msk [vmem:[#allocation2 + $0x420] sm:$0x1] %vm257, 0.0
        %303 = vst.msk [vmem:[#allocation2 + $0x438] sm:$0x1] %vm257, 0.0
        %304 = vst.msk [vmem:[#allocation2 + $0x450] sm:$0x1] %vm257, 0.0
        %305 = vst.msk [vmem:[#allocation2 + $0x468] sm:$0x1] %vm257, 0.0
        %306 = vst.msk [vmem:[#allocation2 + $0x480] sm:$0x1] %vm257, 0.0
        %307 = vst.msk [vmem:[#allocation2 + $0x498] sm:$0x1] %vm257, 0.0
        %308 = vst.msk [vmem:[#allocation2 + $0x4b0] sm:$0x1] %vm257, 0.0
        %309 = vst.msk [vmem:[#allocation2 + $0x4c8] sm:$0x1] %vm257, 0.0
        %310 = vst.msk [vmem:[#allocation2 + $0x4e0] sm:$0x1] %vm257, 0.0
        %311 = vst.msk [vmem:[#allocation2 + $0x4f8] sm:$0x1] %vm257, 0.0
        %312 = vst.msk [vmem:[#allocation2 + $0x510] sm:$0x1] %vm257, 0.0
        %313 = vst.msk [vmem:[#allocation2 + $0x528] sm:$0x1] %vm257, 0.0
        %314 = vst.msk [vmem:[#allocation2 + $0x540] sm:$0x1] %vm257, 0.0
        %315 = vst.msk [vmem:[#allocation2 + $0x558] sm:$0x1] %vm257, 0.0
        %316 = vst.msk [vmem:[#allocation2 + $0x570] sm:$0x1] %vm257, 0.0
        %317 = vst.msk [vmem:[#allocation2 + $0x588] sm:$0x1] %vm257, 0.0
        %318 = vst.msk [vmem:[#allocation2 + $0x5a0] sm:$0x1] %vm257, 0.0
        %319 = vst.msk [vmem:[#allocation2 + $0x5b8] sm:$0x1] %vm257, 0.0
        %320 = vst.msk [vmem:[#allocation2 + $0x5d0] sm:$0x1] %vm257, 0.0
        %321 = vst.msk [vmem:[#allocation2 + $0x5e8] sm:$0x1] %vm257, 0.0
        %322 = vst.msk [vmem:[#allocation2 + $0x600] sm:$0x1] %vm257, 0.0
        %323 = vst.msk [vmem:[#allocation2 + $0x618] sm:$0x1] %vm257, 0.0
        %324 = vst.msk [vmem:[#allocation2 + $0x630] sm:$0x1] %vm257, 0.0
        %325 = vst.msk [vmem:[#allocation2 + $0x648] sm:$0x1] %vm257, 0.0
        %326 = vst.msk [vmem:[#allocation2 + $0x660] sm:$0x1] %vm257, 0.0
        %327 = vst.msk [vmem:[#allocation2 + $0x678] sm:$0x1] %vm257, 0.0
        %328 = vst.msk [vmem:[#allocation2 + $0x690] sm:$0x1] %vm257, 0.0
        %329 = vst.msk [vmem:[#allocation2 + $0x6a8] sm:$0x1] %vm257, 0.0
        %330 = vst.msk [vmem:[#allocation2 + $0x11] sm:$0x1] %vm257, 0.0
        %331 = vst.msk [vmem:[#allocation2 + $0x29] sm:$0x1] %vm257, 0.0
        %332 = vst.msk [vmem:[#allocation2 + $0x41] sm:$0x1] %vm257, 0.0
        %333 = vst.msk [vmem:[#allocation2 + $0x59] sm:$0x1] %vm257, 0.0
        %334 = vst.msk [vmem:[#allocation2 + $0x71] sm:$0x1] %vm257, 0.0
        %335 = vst.msk [vmem:[#allocation2 + $0x89] sm:$0x1] %vm257, 0.0
        %336 = vst.msk [vmem:[#allocation2 + $0xa1] sm:$0x1] %vm257, 0.0
        %337 = vst.msk [vmem:[#allocation2 + $0xb9] sm:$0x1] %vm257, 0.0
        %338 = vst.msk [vmem:[#allocation2 + $0xd1] sm:$0x1] %vm257, 0.0
        %339 = vst.msk [vmem:[#allocation2 + $0xe9] sm:$0x1] %vm257, 0.0
        %340 = vst.msk [vmem:[#allocation2 + $0x101] sm:$0x1] %vm257, 0.0
        %341 = vst.msk [vmem:[#allocation2 + $0x119] sm:$0x1] %vm257, 0.0
        %342 = vst.msk [vmem:[#allocation2 + $0x131] sm:$0x1] %vm257, 0.0
        %343 = vst.msk [vmem:[#allocation2 + $0x149] sm:$0x1] %vm257, 0.0
        %344 = vst.msk [vmem:[#allocation2 + $0x161] sm:$0x1] %vm257, 0.0
        %345 = vst.msk [vmem:[#allocation2 + $0x179] sm:$0x1] %vm257, 0.0
        %346 = vst.msk [vmem:[#allocation2 + $0x191] sm:$0x1] %vm257, 0.0
        %347 = vst.msk [vmem:[#allocation2 + $0x1a9] sm:$0x1] %vm257, 0.0
        %348 = vst.msk [vmem:[#allocation2 + $0x1c1] sm:$0x1] %vm257, 0.0
        %349 = vst.msk [vmem:[#allocation2 + $0x1d9] sm:$0x1] %vm257, 0.0
        %350 = vst.msk [vmem:[#allocation2 + $0x1f1] sm:$0x1] %vm257, 0.0
        %351 = vst.msk [vmem:[#allocation2 + $0x209] sm:$0x1] %vm257, 0.0
        %352 = vst.msk [vmem:[#allocation2 + $0x221] sm:$0x1] %vm257, 0.0
        %353 = vst.msk [vmem:[#allocation2 + $0x239] sm:$0x1] %vm257, 0.0
        %354 = vst.msk [vmem:[#allocation2 + $0x251] sm:$0x1] %vm257, 0.0
        %355 = vst.msk [vmem:[#allocation2 + $0x269] sm:$0x1] %vm257, 0.0
        %356 = vst.msk [vmem:[#allocation2 + $0x281] sm:$0x1] %vm257, 0.0
        %357 = vst.msk [vmem:[#allocation2 + $0x299] sm:$0x1] %vm257, 0.0
        %358 = vst.msk [vmem:[#allocation2 + $0x2b1] sm:$0x1] %vm257, 0.0
        %359 = vst.msk [vmem:[#allocation2 + $0x2c9] sm:$0x1] %vm257, 0.0
        %360 = vst.msk [vmem:[#allocation2 + $0x2e1] sm:$0x1] %vm257, 0.0
        %361 = vst.msk [vmem:[#allocation2 + $0x2f9] sm:$0x1] %vm257, 0.0
        %362 = vst.msk [vmem:[#allocation2 + $0x311] sm:$0x1] %vm257, 0.0
        %363 = vst.msk [vmem:[#allocation2 + $0x329] sm:$0x1] %vm257, 0.0
        %364 = vst.msk [vmem:[#allocation2 + $0x341] sm:$0x1] %vm257, 0.0
        %365 = vst.msk [vmem:[#allocation2 + $0x359] sm:$0x1] %vm257, 0.0
        %366 = vst.msk [vmem:[#allocation2 + $0x371] sm:$0x1] %vm257, 0.0
        %367 = vst.msk [vmem:[#allocation2 + $0x389] sm:$0x1] %vm257, 0.0
        %368 = vst.msk [vmem:[#allocation2 + $0x3a1] sm:$0x1] %vm257, 0.0
        %369 = vst.msk [vmem:[#allocation2 + $0x3b9] sm:$0x1] %vm257, 0.0
        %370 = vst.msk [vmem:[#allocation2 + $0x3d1] sm:$0x1] %vm257, 0.0
        %371 = vst.msk [vmem:[#allocation2 + $0x3e9] sm:$0x1] %vm257, 0.0
        %372 = vst.msk [vmem:[#allocation2 + $0x401] sm:$0x1] %vm257, 0.0
        %373 = vst.msk [vmem:[#allocation2 + $0x419] sm:$0x1] %vm257, 0.0
        %374 = vst.msk [vmem:[#allocation2 + $0x431] sm:$0x1] %vm257, 0.0
        %375 = vst.msk [vmem:[#allocation2 + $0x449] sm:$0x1] %vm257, 0.0
        %376 = vst.msk [vmem:[#allocation2 + $0x461] sm:$0x1] %vm257, 0.0
        %377 = vst.msk [vmem:[#allocation2 + $0x479] sm:$0x1] %vm257, 0.0
        %378 = vst.msk [vmem:[#allocation2 + $0x491] sm:$0x1] %vm257, 0.0
        %379 = vst.msk [vmem:[#allocation2 + $0x4a9] sm:$0x1] %vm257, 0.0
        %380 = vst.msk [vmem:[#allocation2 + $0x4c1] sm:$0x1] %vm257, 0.0
        %381 = vst.msk [vmem:[#allocation2 + $0x4d9] sm:$0x1] %vm257, 0.0
        %382 = vst.msk [vmem:[#allocation2 + $0x4f1] sm:$0x1] %vm257, 0.0
        %383 = vst.msk [vmem:[#allocation2 + $0x509] sm:$0x1] %vm257, 0.0
        %384 = vst.msk [vmem:[#allocation2 + $0x521] sm:$0x1] %vm257, 0.0
        %385 = vst.msk [vmem:[#allocation2 + $0x539] sm:$0x1] %vm257, 0.0
        %386 = vst.msk [vmem:[#allocation2 + $0x551] sm:$0x1] %vm257, 0.0
        %387 = vst.msk [vmem:[#allocation2 + $0x569] sm:$0x1] %vm257, 0.0
        %388 = vst.msk [vmem:[#allocation2 + $0x581] sm:$0x1] %vm257, 0.0
        %389 = vst.msk [vmem:[#allocation2 + $0x599] sm:$0x1] %vm257, 0.0
        %390 = vst.msk [vmem:[#allocation2 + $0x5b1] sm:$0x1] %vm257, 0.0
        %391 = vst.msk [vmem:[#allocation2 + $0x5c9] sm:$0x1] %vm257, 0.0
        %392 = vst.msk [vmem:[#allocation2 + $0x5e1] sm:$0x1] %vm257, 0.0
        %393 = vst.msk [vmem:[#allocation2 + $0x5f9] sm:$0x1] %vm257, 0.0
        %394 = vst.msk [vmem:[#allocation2 + $0x611] sm:$0x1] %vm257, 0.0
        %395 = vst.msk [vmem:[#allocation2 + $0x629] sm:$0x1] %vm257, 0.0
        %396 = vst.msk [vmem:[#allocation2 + $0x641] sm:$0x1] %vm257, 0.0
        %397 = vst.msk [vmem:[#allocation2 + $0x659] sm:$0x1] %vm257, 0.0
        %398 = vst.msk [vmem:[#allocation2 + $0x671] sm:$0x1] %vm257, 0.0
        %399 = vst.msk [vmem:[#allocation2 + $0x689] sm:$0x1] %vm257, 0.0
        %400 = vst.msk [vmem:[#allocation2 + $0x6a1] sm:$0x1] %vm257, 0.0
        %401 = vst.msk [vmem:[#allocation2 + $0x6b9] sm:$0x1] %vm257, 0.0
        %v402 = vld [vmem:[%s226] sm:$0xff]
        %v403 = vld [vmem:[%s226 + $0x8] sm:$0xff]
        %v404 = vld [vmem:[%s226 + $0x10] sm:$0xff]
        %v405 = vld [vmem:[%s226 + $0x18] sm:$0xff]
        %v406 = vld [vmem:[%s226 + $0x20] sm:$0xff]
        %v407 = vld [vmem:[%s226 + $0x28] sm:$0xff]
        %v408 = vld [vmem:[%s226 + $0x30] sm:$0xff]
        %v409 = vld [vmem:[%s226 + $0x38] sm:$0xff]
        %v410 = vld [vmem:[%s226 + $0x40] sm:$0xff]
        %v411 = vld [vmem:[%s226 + $0x48] sm:$0xff]
        %v412 = vld [vmem:[%s226 + $0x50] sm:$0xff]
        %v413 = vld [vmem:[%s226 + $0x58] sm:$0xff]
        %v414 = vld [vmem:[%s226 + $0x60] sm:$0xff]
        %v415 = vld [vmem:[%s226 + $0x68] sm:$0xff]
        %v416 = vld [vmem:[%s226 + $0x70] sm:$0xff]
        %v417 = vld [vmem:[%s226 + $0x78] sm:$0xff]
        %v418 = vld [vmem:[%s226 + $0x80] sm:$0xff]
        %v419 = vld [vmem:[%s226 + $0x88] sm:$0xff]
        %v420 = vld [vmem:[%s226 + $0x90] sm:$0xff]
        %v421 = vld [vmem:[%s226 + $0x98] sm:$0xff]
        %v422 = vld [vmem:[%s226 + $0xa0] sm:$0xff]
        %v423 = vld [vmem:[%s226 + $0xa8] sm:$0xff]
        %v424 = vld [vmem:[%s226 + $0xb0] sm:$0xff]
        %v425 = vld [vmem:[%s226 + $0xb8] sm:$0xff]
        %v426 = vld [vmem:[%s226 + $0xc0] sm:$0xff]
        %v427 = vld [vmem:[%s226 + $0xc8] sm:$0xff]
        %v428 = vld [vmem:[%s226 + $0xd0] sm:$0xff]
        %v429 = vld [vmem:[%s226 + $0xd8] sm:$0xff]
        %v430 = vld [vmem:[%s226 + $0xe0] sm:$0xff]
        %v431 = vld [vmem:[%s226 + $0xe8] sm:$0xff]
        %v432 = vld [vmem:[%s226 + $0xf0] sm:$0xff]
        %v433 = vld [vmem:[%s226 + $0xf8] sm:$0xff]
        %v434 = vld [vmem:[%s226 + $0x100] sm:$0xff]
        %v435 = vld [vmem:[%s226 + $0x108] sm:$0xff]
        %v436 = vld [vmem:[%s226 + $0x110] sm:$0xff]
        %v437 = vld [vmem:[%s226 + $0x118] sm:$0xff]
        %v438 = vld [vmem:[%s226 + $0x120] sm:$0xff]
        %v439 = vld [vmem:[%s226 + $0x128] sm:$0xff]
        %v440 = vld [vmem:[%s226 + $0x130] sm:$0xff]
        %v441 = vld [vmem:[%s226 + $0x138] sm:$0xff]
        %v442 = vld [vmem:[%s226 + $0x140] sm:$0xff]
        %v443 = vld [vmem:[%s226 + $0x148] sm:$0xff]
        %v444 = vld [vmem:[%s226 + $0x150] sm:$0xff]
        %v445 = vld [vmem:[%s226 + $0x158] sm:$0xff]
        %v446 = vld [vmem:[%s226 + $0x160] sm:$0xff]
        %v447 = vld [vmem:[%s226 + $0x168] sm:$0xff]
        %v448 = vld [vmem:[%s226 + $0x170] sm:$0xff]
        %v449 = vld [vmem:[%s226 + $0x178] sm:$0xff]
        %v450 = vld [vmem:[%s226 + $0x180] sm:$0xff]
        %v451 = vld [vmem:[%s226 + $0x188] sm:$0xff]
        %v452 = vld [vmem:[%s226 + $0x190] sm:$0xff]
        %v453 = vld [vmem:[%s226 + $0x198] sm:$0xff]
        %v454 = vld [vmem:[%s226 + $0x1a0] sm:$0xff]
        %v455 = vld [vmem:[%s226 + $0x1a8] sm:$0xff]
        %v456 = vld [vmem:[%s226 + $0x1b0] sm:$0xff]
        %v457 = vld [vmem:[%s226 + $0x1b8] sm:$0xff]
        %v458 = vld [vmem:[%s226 + $0x1c0] sm:$0xff]
        %v459 = vld [vmem:[%s226 + $0x1c8] sm:$0xff]
        %v460 = vld [vmem:[%s226 + $0x1d0] sm:$0xff]
        %v461 = vld [vmem:[%s226 + $0x1d8] sm:$0xff]
        %v462 = vld [vmem:[%s226 + $0x1e0] sm:$0xff]
        %v463 = vld [vmem:[%s226 + $0x1e8] sm:$0xff]
        %v464 = vld [vmem:[%s226 + $0x1f0] sm:$0xff]
        %v465 = vld [vmem:[%s226 + $0x1f8] sm:$0xff]
        %v466 = vld [vmem:[%s226 + $0x200] sm:$0xff]
        %v467 = vld [vmem:[%s226 + $0x208] sm:$0xff]
        %v468 = vld [vmem:[%s226 + $0x210] sm:$0xff]
        %v469 = vld [vmem:[%s226 + $0x218] sm:$0xff]
        %v470 = vld [vmem:[%s226 + $0x220] sm:$0xff]
        %v471 = vld [vmem:[%s226 + $0x228] sm:$0xff]
        %v472 = vld [vmem:[%s226 + $0x230] sm:$0xff]
        %v473 = vld [vmem:[%s226 + $0x238] sm:$0xff]
        %v474 = vld [vmem:[%s226 + $0x240] sm:$0xff]
        %v475 = vld [vmem:[%s226 + $0x248] sm:$0xff]
        %v476 = vld [vmem:[%s226 + $0x250] sm:$0xff]
        %v477 = vld [vmem:[%s226 + $0x258] sm:$0xff]
        %v478 = vld [vmem:[%s226 + $0x260] sm:$0xff]
        %v479 = vld [vmem:[%s226 + $0x268] sm:$0xff]
        %v480 = vld [vmem:[%s226 + $0x270] sm:$0xff]
        %v481 = vld [vmem:[%s226 + $0x278] sm:$0xff]
        %v482 = vld [vmem:[%s226 + $0x280] sm:$0xff]
        %v483 = vld [vmem:[%s226 + $0x288] sm:$0xff]
        %v484 = vld [vmem:[%s226 + $0x290] sm:$0xff]
        %v485 = vld [vmem:[%s226 + $0x298] sm:$0xff]
        %v486 = vld [vmem:[%s226 + $0x2a0] sm:$0xff]
        %v487 = vld [vmem:[%s226 + $0x2a8] sm:$0xff]
        %v488 = vld [vmem:[%s226 + $0x2b0] sm:$0xff]
        %v489 = vld [vmem:[%s226 + $0x2b8] sm:$0xff]
        %v490 = vld [vmem:[%s226 + $0x2c0] sm:$0xff]
        %v491 = vld [vmem:[%s226 + $0x2c8] sm:$0xff]
        %v492 = vld [vmem:[%s226 + $0x2d0] sm:$0xff]
        %v493 = vld [vmem:[%s226 + $0x2d8] sm:$0xff]
        %v494 = vld [vmem:[%s226 + $0x2e0] sm:$0xff]
        %v495 = vld [vmem:[%s226 + $0x2e8] sm:$0xff]
        %v496 = vld [vmem:[%s226 + $0x2f0] sm:$0xff]
        %v497 = vld [vmem:[%s226 + $0x2f8] sm:$0xff]
        %v498 = vld [vmem:[%s226 + $0x300] sm:$0xff]
        %v499 = vld [vmem:[%s226 + $0x308] sm:$0xff]
        %v500 = vld [vmem:[%s226 + $0x310] sm:$0xff]
        %v501 = vld [vmem:[%s226 + $0x318] sm:$0xff]
        %v502 = vld [vmem:[%s226 + $0x320] sm:$0xff]
        %v503 = vld [vmem:[%s226 + $0x328] sm:$0xff]
        %v504 = vld [vmem:[%s226 + $0x330] sm:$0xff]
        %v505 = vld [vmem:[%s226 + $0x338] sm:$0xff]
        %v506 = vld [vmem:[%s226 + $0x340] sm:$0xff]
        %v507 = vld [vmem:[%s226 + $0x348] sm:$0xff]
        %v508 = vld [vmem:[%s226 + $0x350] sm:$0xff]
        %v509 = vld [vmem:[%s226 + $0x358] sm:$0xff]
        %v510 = vld [vmem:[%s226 + $0x360] sm:$0xff]
        %v511 = vld [vmem:[%s226 + $0x368] sm:$0xff]
        %v512 = vld [vmem:[%s226 + $0x370] sm:$0xff]
        %v513 = vld [vmem:[%s226 + $0x378] sm:$0xff]
        %v514 = vld [vmem:[%s226 + $0x380] sm:$0xff]
        %v515 = vld [vmem:[%s226 + $0x388] sm:$0xff]
        %v516 = vld [vmem:[%s226 + $0x390] sm:$0xff]
        %v517 = vld [vmem:[%s226 + $0x398] sm:$0xff]
        %v518 = vld [vmem:[%s226 + $0x3a0] sm:$0xff]
        %v519 = vld [vmem:[%s226 + $0x3a8] sm:$0xff]
        %v520 = vld [vmem:[%s226 + $0x3b0] sm:$0xff]
        %v521 = vld [vmem:[%s226 + $0x3b8] sm:$0xff]
        %v522 = vld [vmem:[%s226 + $0x3c0] sm:$0xff]
        %v523 = vld [vmem:[%s226 + $0x3c8] sm:$0xff]
        %v524 = vld [vmem:[%s226 + $0x3d0] sm:$0xff]
        %v525 = vld [vmem:[%s226 + $0x3d8] sm:$0xff]
        %v526 = vld [vmem:[%s226 + $0x3e0] sm:$0xff]
        %v527 = vld [vmem:[%s226 + $0x3e8] sm:$0xff]
        %v528 = vld [vmem:[%s226 + $0x3f0] sm:$0xff]
        %v529 = vld [vmem:[%s226 + $0x3f8] sm:$0xff]
        %v530 = vld [vmem:[%s1] sm:$0xff]
        %v531 = vld [vmem:[%s1 + $0x8] sm:$0x1]
        %v532 = vld [vmem:[%s2] sm:$0x1]
        %v534 = vlaneseq
        %v535 = vshrl.u32 %v534, 7
        %v536 = vsub.s32 0, %v535
        %v537 = vrot.slane %v532, %v536
        %vm539 = vcmask 72704
        %v541 = vsel %vm539, %v402, 0
        %v544 = vsel %vm539, %v403, 0
        %v547 = vsel %vm539, %v404, 0
        %v550 = vsel %vm539, %v405, 0
        %v553 = vsel %vm539, %v406, 0
        %v556 = vsel %vm539, %v407, 0
        %v559 = vsel %vm539, %v408, 0
        %v562 = vsel %vm539, %v409, 0
        %v565 = vsel %vm539, %v410, 0
        %v568 = vsel %vm539, %v411, 0
        %v571 = vsel %vm539, %v412, 0
        %v574 = vsel %vm539, %v413, 0
        %v577 = vsel %vm539, %v414, 0
        %v580 = vsel %vm539, %v415, 0
        %v583 = vsel %vm539, %v416, 0
        %v586 = vsel %vm539, %v417, 0
        %v589 = vsel %vm539, %v418, 0
        %v592 = vsel %vm539, %v419, 0
        %v595 = vsel %vm539, %v420, 0
        %v598 = vsel %vm539, %v421, 0
        %v601 = vsel %vm539, %v422, 0
        %v604 = vsel %vm539, %v423, 0
        %v607 = vsel %vm539, %v424, 0
        %v610 = vsel %vm539, %v425, 0
        %v613 = vsel %vm539, %v426, 0
        %v616 = vsel %vm539, %v427, 0
        %v619 = vsel %vm539, %v428, 0
        %v622 = vsel %vm539, %v429, 0
        %v625 = vsel %vm539, %v430, 0
        %v628 = vsel %vm539, %v431, 0
        %v631 = vsel %vm539, %v432, 0
        %v634 = vsel %vm539, %v433, 0
        %v637 = vsel %vm539, %v434, 0
        %v640 = vsel %vm539, %v435, 0
        %v643 = vsel %vm539, %v436, 0
        %v646 = vsel %vm539, %v437, 0
        %v649 = vsel %vm539, %v438, 0
        %v652 = vsel %vm539, %v439, 0
        %v655 = vsel %vm539, %v440, 0
        %v658 = vsel %vm539, %v441, 0
        %v661 = vsel %vm539, %v442, 0
        %v664 = vsel %vm539, %v443, 0
        %v667 = vsel %vm539, %v444, 0
        %v670 = vsel %vm539, %v445, 0
        %v673 = vsel %vm539, %v446, 0
        %v676 = vsel %vm539, %v447, 0
        %v679 = vsel %vm539, %v448, 0
        %v682 = vsel %vm539, %v449, 0
        %v685 = vsel %vm539, %v450, 0
        %v688 = vsel %vm539, %v451, 0
        %v691 = vsel %vm539, %v452, 0
        %v694 = vsel %vm539, %v453, 0
        %v697 = vsel %vm539, %v454, 0
        %v700 = vsel %vm539, %v455, 0
        %v703 = vsel %vm539, %v456, 0
        %v706 = vsel %vm539, %v457, 0
        %v709 = vsel %vm539, %v458, 0
        %v712 = vsel %vm539, %v459, 0
        %v715 = vsel %vm539, %v460, 0
        %v718 = vsel %vm539, %v461, 0
        %v721 = vsel %vm539, %v462, 0
        %v724 = vsel %vm539, %v463, 0
        %v727 = vsel %vm539, %v464, 0
        %v730 = vsel %vm539, %v465, 0
        %v733 = vsel %vm539, %v466, 0
        %v736 = vsel %vm539, %v467, 0
        %v739 = vsel %vm539, %v468, 0
        %v742 = vsel %vm539, %v469, 0
        %v745 = vsel %vm539, %v470, 0
        %v748 = vsel %vm539, %v471, 0
        %v751 = vsel %vm539, %v472, 0
        %v754 = vsel %vm539, %v473, 0
        %v757 = vsel %vm539, %v474, 0
        %v760 = vsel %vm539, %v475, 0
        %v763 = vsel %vm539, %v476, 0
        %v766 = vsel %vm539, %v477, 0
        %v769 = vsel %vm539, %v478, 0
        %v772 = vsel %vm539, %v479, 0
        %v775 = vsel %vm539, %v480, 0
        %v778 = vsel %vm539, %v481, 0
        %v781 = vsel %vm539, %v482, 0
        %v784 = vsel %vm539, %v483, 0
        %v787 = vsel %vm539, %v484, 0
        %v790 = vsel %vm539, %v485, 0
        %v793 = vsel %vm539, %v486, 0
        %v796 = vsel %vm539, %v487, 0
        %v799 = vsel %vm539, %v488, 0
        %v802 = vsel %vm539, %v489, 0
        %v805 = vsel %vm539, %v490, 0
        %v808 = vsel %vm539, %v491, 0
        %v811 = vsel %vm539, %v492, 0
        %v814 = vsel %vm539, %v493, 0
        %v817 = vsel %vm539, %v494, 0
        %v820 = vsel %vm539, %v495, 0
        %v823 = vsel %vm539, %v496, 0
        %v826 = vsel %vm539, %v497, 0
        %v829 = vsel %vm539, %v498, 0
        %v832 = vsel %vm539, %v499, 0
        %v835 = vsel %vm539, %v500, 0
        %v838 = vsel %vm539, %v501, 0
        %v841 = vsel %vm539, %v502, 0
        %v844 = vsel %vm539, %v503, 0
        %v847 = vsel %vm539, %v504, 0
        %v850 = vsel %vm539, %v505, 0
        %v853 = vsel %vm539, %v506, 0
        %v856 = vsel %vm539, %v507, 0
        %v859 = vsel %vm539, %v508, 0
        %v862 = vsel %vm539, %v509, 0
        %v865 = vsel %vm539, %v510, 0
        %v868 = vsel %vm539, %v511, 0
        %v871 = vsel %vm539, %v512, 0
        %v874 = vsel %vm539, %v513, 0
        %v877 = vsel %vm539, %v514, 0
        %v880 = vsel %vm539, %v515, 0
        %v883 = vsel %vm539, %v516, 0
        %v886 = vsel %vm539, %v517, 0
        %v889 = vsel %vm539, %v518, 0
        %v892 = vsel %vm539, %v519, 0
        %v895 = vsel %vm539, %v520, 0
        %v898 = vsel %vm539, %v521, 0
        %v901 = vsel %vm539, %v522, 0
        %v904 = vsel %vm539, %v523, 0
        %v907 = vsel %vm539, %v524, 0
        %v910 = vsel %vm539, %v525, 0
        %v913 = vsel %vm539, %v526, 0
        %v916 = vsel %vm539, %v527, 0
        %v919 = vsel %vm539, %v528, 0
        %v922 = vsel %vm539, %v529, 0
        %vm924 = vcmask 1040384
        %v926 = vsel %vm924, %v531, 0
        %928 = vmatprep.subr.mxu0 0.0
        %929 = vmatpush1.msra.mxu0 %v530
        %930 = vmatprep.subr.mxu0 0.0
        %931 = vmatpush1.msra.mxu0 %v926
        %932 = vmatprep.subr.mxu0 0.0
        %933 = vmatpush1.msra.mxu0 0.0
        %934 = vmatprep.subr.mxu0 0.0
        %935 = vmatpush1.msra.mxu0 0.0
        %936 = vmatprep.subr.mxu0 0.0
        %937 = vmatpush1.msra.mxu0 0.0
        %938 = vmatprep.subr.mxu0 0.0
        %939 = vmatpush1.msra.mxu0 0.0
        %940 = vmatprep.subr.mxu0 0.0
        %941 = vmatpush1.msra.mxu0 0.0
        %942 = vmatprep.subr.mxu0 0.0
        %943 = vmatpush1.msra.mxu0 0.0
        %944 = vmatprep.subr.mxu0 0.0
        %945 = vmatpush1.msra.mxu0 0.0
        %946 = vmatprep.subr.mxu0 0.0
        %947 = vmatpush1.msra.mxu0 0.0
        %948 = vmatprep.subr.mxu0 0.0
        %949 = vmatpush1.msra.mxu0 0.0
        %950 = vmatprep.subr.mxu0 0.0
        %951 = vmatpush1.msra.mxu0 0.0
        %952 = vmatprep.subr.mxu0 0.0
        %953 = vmatpush1.msra.mxu0 0.0
        %954 = vmatprep.subr.mxu0 0.0
        %955 = vmatpush1.msra.mxu0 0.0
        %956 = vmatprep.subr.mxu0 0.0
        %957 = vmatpush1.msra.mxu0 0.0
        %958 = vmatprep.subr.mxu0 0.0
        %959 = vmatpush1.msra.mxu0 0.0
        %960 = vmatprep.subr.mxu0 0.0
        %961 = vmatpush1.msra.mxu0 0.0
        %962 = vmatprep.subr.mxu0 0.0
        %963 = vmatpush1.msra.mxu0 0.0
        %964 = vmatprep.subr.mxu0 0.0
        %965 = vmatpush1.msra.mxu0 0.0
        %966 = vmatprep.subr.mxu0 0.0
        %967 = vmatpush1.msra.mxu0 0.0
        %968 = vmatprep.subr.mxu0 0.0
        %969 = vmatpush1.msra.mxu0 0.0
        %970 = vmatprep.subr.mxu0 0.0
        %971 = vmatpush1.msra.mxu0 0.0
        %972 = vmatprep.subr.mxu0 0.0
        %973 = vmatpush1.msra.mxu0 0.0
        %974 = vmatprep.subr.mxu0 0.0
        %975 = vmatpush1.msra.mxu0 0.0
        %976 = vmatprep.subr.mxu0 0.0
        %977 = vmatpush1.msra.mxu0 0.0
        %978 = vmatprep.subr.mxu0 0.0
        %979 = vmatpush1.msra.mxu0 0.0
        %980 = vmatprep.subr.mxu0 0.0
        %981 = vmatpush1.msra.mxu0 0.0
        %982 = vmatprep.subr.mxu0 0.0
        %983 = vmatpush1.msra.mxu0 0.0
        %984 = vmatprep.subr.mxu0 0.0
        %985 = vmatpush1.msra.mxu0 0.0
        %986 = vmatprep.subr.mxu0 0.0
        %987 = vmatpush1.msra.mxu0 0.0
        %988 = vmatprep.subr.mxu0 0.0
        %989 = vmatpush1.msra.mxu0 0.0
        %990 = vmatprep.subr.mxu0 0.0
        %991 = vmatpush1.msra.mxu0 0.0
        %992 = vmatprep.mubr.f32.mxu0 0.0
        %993 = vmatmul.mubr.f32.gmra.mrb[0].mxu0 %v541
        %v994 = vpop.f32.mrb[0].mxu0
        %v995 = vadd.f32 %v537, %v994
        %v996 = vpop.f32.mrb[0].mxu0
        %997 = vmatprep.mubr.f32.mxu0 0.0
        %998 = vmatmul.mubr.f32.gmra.mrb[0].mxu0 %v544
        %v999 = vpop.f32.mrb[0].mxu0
        %v1000 = vadd.f32 %v537, %v999
        %v1001 = vpop.f32.mrb[0].mxu0
        %1002 = vmatprep.mubr.f32.mxu0 0.0
        %1003 = vmatmul.mubr.f32.gmra.mrb[0].mxu0 %v547
        %v1004 = vpop.f32.mrb[0].mxu0
        %v1005 = vadd.f32 %v537, %v1004
        %v1006 = vpop.f32.mrb[0].mxu0
        %1007 = vmatprep.mubr.f32.mxu0 0.0
        %1008 = vmatmul.mubr.f32.gmra.mrb[0].mxu0 %v550
        %v1009 = vpop.f32.mrb[0].mxu0
        %v1010 = vadd.f32 %v537, %v1009
        %v1011 = vpop.f32.mrb[0].mxu0
        %1012 = vmatprep.mubr.f32.mxu0 0.0
        %1013 = vmatmul.mubr.f32.gmra.mrb[0].mxu0 %v553
        %v1014 = vpop.f32.mrb[0].mxu0
        %v1015 = vadd.f32 %v537, %v1014
        %v1016 = vpop.f32.mrb[0].mxu0
        %1017 = vmatprep.mubr.f32.mxu0 0.0
        %1018 = vmatmul.mubr.f32.gmra.mrb[0].mxu0 %v556
        %v1019 = vpop.f32.mrb[0].mxu0
        %v1020 = vadd.f32 %v537, %v1019
        %v1021 = vpop.f32.mrb[0].mxu0
        %1022 = vmatprep.mubr.f32.mxu0 0.0
        %1023 = vmatmul.mubr.f32.gmra.mrb[0].mxu0 %v559
        %v1024 = vpop.f32.mrb[0].mxu0
        %v1025 = vadd.f32 %v537, %v1024
        %v1026 = vpop.f32.mrb[0].mxu0
        %1027 = vmatprep.mubr.f32.mxu0 0.0
        %1028 = vmatmul.mubr.f32.gmra.mrb[0].mxu0 %v562
        %v1029 = vpop.f32.mrb[0].mxu0
        %v1030 = vadd.f32 %v537, %v1029
        %v1031 = vpop.f32.mrb[0].mxu0
        %1032 = vmatprep.mubr.f32.mxu0 0.0
        %1033 = vmatmul.mubr.f32.gmra.mrb[0].mxu0 %v565
        %v1034 = vpop.f32.mrb[0].mxu0
        %v1035 = vadd.f32 %v537, %v1034
        %v1036 = vpop.f32.mrb[0].mxu0
        %1037 = vmatprep.mubr.f32.mxu0 0.0
        %1038 = vmatmul.mubr.f32.gmra.mrb[0].mxu0 %v568
        %v1039 = vpop.f32.mrb[0].mxu0
        %v1040 = vadd.f32 %v537, %v1039
        %v1041 = vpop.f32.mrb[0].mxu0
        %1042 = vmatprep.mubr.f32.mxu0 0.0
        %1043 = vmatmul.mubr.f32.gmra.mrb[0].mxu0 %v571
        %v1044 = vpop.f32.mrb[0].mxu0
        %v1045 = vadd.f32 %v537, %v1044
        %v1046 = vpop.f32.mrb[0].mxu0
        %1047 = vmatprep.mubr.f32.mxu0 0.0
        %1048 = vmatmul.mubr.f32.gmra.mrb[0].mxu0 %v574
        %v1049 = vpop.f32.mrb[0].mxu0
        %v1050 = vadd.f32 %v537, %v1049
        %v1051 = vpop.f32.mrb[0].mxu0
        %1052 = vmatprep.mubr.f32.mxu0 0.0
        %1053 = vmatmul.mubr.f32.gmra.mrb[0].mxu0 %v577
        %v1054 = vpop.f32.mrb[0].mxu0
        %v1055 = vadd.f32 %v537, %v1054
        %v1056 = vpop.f32.mrb[0].mxu0
        %1057 = vmatprep.mubr.f32.mxu0 0.0
        %1058 = vmatmul.mubr.f32.gmra.mrb[0].mxu0 %v580
        %v1059 = vpop.f32.mrb[0].mxu0
        %v1060 = vadd.f32 %v537, %v1059
        %v1061 = vpop.f32.mrb[0].mxu0
        %1062 = vmatprep.mubr.f32.mxu0 0.0
        %1063 = vmatmul.mubr.f32.gmra.mrb[0].mxu0 %v583
        %v1064 = vpop.f32.mrb[0].mxu0
        %v1065 = vadd.f32 %v537, %v1064
        %v1066 = vpop.f32.mrb[0].mxu0
        %1067 = vmatprep.mubr.f32.mxu0 0.0
        %1068 = vmatmul.mubr.f32.gmra.mrb[0].mxu0 %v586
        %v1069 = vpop.f32.mrb[0].mxu0
        %v1070 = vadd.f32 %v537, %v1069
        %v1071 = vpop.f32.mrb[0].mxu0
        %1072 = vmatprep.mubr.f32.mxu0 0.0
        %1073 = vmatmul.mubr.f32.gmra.mrb[0].mxu0 %v589
        %v1074 = vpop.f32.mrb[0].mxu0
        %v1075 = vadd.f32 %v537, %v1074
        %v1076 = vpop.f32.mrb[0].mxu0
        %1077 = vmatprep.mubr.f32.mxu0 0.0
        %1078 = vmatmul.mubr.f32.gmra.mrb[0].mxu0 %v592
        %v1079 = vpop.f32.mrb[0].mxu0
        %v1080 = vadd.f32 %v537, %v1079
        %v1081 = vpop.f32.mrb[0].mxu0
        %1082 = vmatprep.mubr.f32.mxu0 0.0
        %1083 = vmatmul.mubr.f32.gmra.mrb[0].mxu0 %v595
        %v1084 = vpop.f32.mrb[0].mxu0
        %v1085 = vadd.f32 %v537, %v1084
        %v1086 = vpop.f32.mrb[0].mxu0
        %1087 = vmatprep.mubr.f32.mxu0 0.0
        %1088 = vmatmul.mubr.f32.gmra.mrb[0].mxu0 %v598
        %v1089 = vpop.f32.mrb[0].mxu0
        %v1090 = vadd.f32 %v537, %v1089
        %v1091 = vpop.f32.mrb[0].mxu0
        %1092 = vmatprep.mubr.f32.mxu0 0.0
        %1093 = vmatmul.mubr.f32.gmra.mrb[0].mxu0 %v601
        %v1094 = vpop.f32.mrb[0].mxu0
        %v1095 = vadd.f32 %v537, %v1094
        %v1096 = vpop.f32.mrb[0].mxu0
        %1097 = vmatprep.mubr.f32.mxu0 0.0
        %1098 = vmatmul.mubr.f32.gmra.mrb[0].mxu0 %v604
        %v1099 = vpop.f32.mrb[0].mxu0
        %v1100 = vadd.f32 %v537, %v1099
        %v1101 = vpop.f32.mrb[0].mxu0
        %1102 = vmatprep.mubr.f32.mxu0 0.0
        %1103 = vmatmul.mubr.f32.gmra.mrb[0].mxu0 %v607
        %v1104 = vpop.f32.mrb[0].mxu0
        %v1105 = vadd.f32 %v537, %v1104
        %v1106 = vpop.f32.mrb[0].mxu0
        %1107 = vmatprep.mubr.f32.mxu0 0.0
        %1108 = vmatmul.mubr.f32.gmra.mrb[0].mxu0 %v610
        %v1109 = vpop.f32.mrb[0].mxu0
        %v1110 = vadd.f32 %v537, %v1109
        %v1111 = vpop.f32.mrb[0].mxu0
        %1112 = vmatprep.mubr.f32.mxu0 0.0
        %1113 = vmatmul.mubr.f32.gmra.mrb[0].mxu0 %v613
        %v1114 = vpop.f32.mrb[0].mxu0
        %v1115 = vadd.f32 %v537, %v1114
        %v1116 = vpop.f32.mrb[0].mxu0
        %1117 = vmatprep.mubr.f32.mxu0 0.0
        %1118 = vmatmul.mubr.f32.gmra.mrb[0].mxu0 %v616
        %v1119 = vpop.f32.mrb[0].mxu0
        %v1120 = vadd.f32 %v537, %v1119
        %v1121 = vpop.f32.mrb[0].mxu0
        %1122 = vmatprep.mubr.f32.mxu0 0.0
        %1123 = vmatmul.mubr.f32.gmra.mrb[0].mxu0 %v619
        %v1124 = vpop.f32.mrb[0].mxu0
        %v1125 = vadd.f32 %v537, %v1124
        %v1126 = vpop.f32.mrb[0].mxu0
        %1127 = vmatprep.mubr.f32.mxu0 0.0
        %1128 = vmatmul.mubr.f32.gmra.mrb[0].mxu0 %v622
        %v1129 = vpop.f32.mrb[0].mxu0
        %v1130 = vadd.f32 %v537, %v1129
        %v1131 = vpop.f32.mrb[0].mxu0
        %1132 = vmatprep.mubr.f32.mxu0 0.0
        %1133 = vmatmul.mubr.f32.gmra.mrb[0].mxu0 %v625
        %v1134 = vpop.f32.mrb[0].mxu0
        %v1135 = vadd.f32 %v537, %v1134
        %v1136 = vpop.f32.mrb[0].mxu0
        %1137 = vmatprep.mubr.f32.mxu0 0.0
        %1138 = vmatmul.mubr.f32.gmra.mrb[0].mxu0 %v628
        %v1139 = vpop.f32.mrb[0].mxu0
        %v1140 = vadd.f32 %v537, %v1139
        %v1141 = vpop.f32.mrb[0].mxu0
        %1142 = vmatprep.mubr.f32.mxu0 0.0
        %1143 = vmatmul.mubr.f32.gmra.mrb[0].mxu0 %v631
        %v1144 = vpop.f32.mrb[0].mxu0
        %v1145 = vadd.f32 %v537, %v1144
        %v1146 = vpop.f32.mrb[0].mxu0
        %1147 = vmatprep.mubr.f32.mxu0 0.0
        %1148 = vmatmul.mubr.f32.gmra.mrb[0].mxu0 %v634
        %v1149 = vpop.f32.mrb[0].mxu0
        %v1150 = vadd.f32 %v537, %v1149
        %v1151 = vpop.f32.mrb[0].mxu0
        %1152 = vmatprep.mubr.f32.mxu0 0.0
        %1153 = vmatmul.mubr.f32.gmra.mrb[0].mxu0 %v637
        %v1154 = vpop.f32.mrb[0].mxu0
        %v1155 = vadd.f32 %v537, %v1154
        %v1156 = vpop.f32.mrb[0].mxu0
        %1157 = vmatprep.mubr.f32.mxu0 0.0
        %1158 = vmatmul.mubr.f32.gmra.mrb[0].mxu0 %v640
        %v1159 = vpop.f32.mrb[0].mxu0
        %v1160 = vadd.f32 %v537, %v1159
        %v1161 = vpop.f32.mrb[0].mxu0
        %1162 = vmatprep.mubr.f32.mxu0 0.0
        %1163 = vmatmul.mubr.f32.gmra.mrb[0].mxu0 %v643
        %v1164 = vpop.f32.mrb[0].mxu0
        %v1165 = vadd.f32 %v537, %v1164
        %v1166 = vpop.f32.mrb[0].mxu0
        %1167 = vmatprep.mubr.f32.mxu0 0.0
        %1168 = vmatmul.mubr.f32.gmra.mrb[0].mxu0 %v646
        %v1169 = vpop.f32.mrb[0].mxu0
        %v1170 = vadd.f32 %v537, %v1169
        %v1171 = vpop.f32.mrb[0].mxu0
        %1172 = vmatprep.mubr.f32.mxu0 0.0
        %1173 = vmatmul.mubr.f32.gmra.mrb[0].mxu0 %v649
        %v1174 = vpop.f32.mrb[0].mxu0
        %v1175 = vadd.f32 %v537, %v1174
        %v1176 = vpop.f32.mrb[0].mxu0
        %1177 = vmatprep.mubr.f32.mxu0 0.0
        %1178 = vmatmul.mubr.f32.gmra.mrb[0].mxu0 %v652
        %v1179 = vpop.f32.mrb[0].mxu0
        %v1180 = vadd.f32 %v537, %v1179
        %v1181 = vpop.f32.mrb[0].mxu0
        %1182 = vmatprep.mubr.f32.mxu0 0.0
        %1183 = vmatmul.mubr.f32.gmra.mrb[0].mxu0 %v655
        %v1184 = vpop.f32.mrb[0].mxu0
        %v1185 = vadd.f32 %v537, %v1184
        %v1186 = vpop.f32.mrb[0].mxu0
        %1187 = vmatprep.mubr.f32.mxu0 0.0
        %1188 = vmatmul.mubr.f32.gmra.mrb[0].mxu0 %v658
        %v1189 = vpop.f32.mrb[0].mxu0
        %v1190 = vadd.f32 %v537, %v1189
        %v1191 = vpop.f32.mrb[0].mxu0
        %1192 = vmatprep.mubr.f32.mxu0 0.0
        %1193 = vmatmul.mubr.f32.gmra.mrb[0].mxu0 %v661
        %v1194 = vpop.f32.mrb[0].mxu0
        %v1195 = vadd.f32 %v537, %v1194
        %v1196 = vpop.f32.mrb[0].mxu0
        %1197 = vmatprep.mubr.f32.mxu0 0.0
        %1198 = vmatmul.mubr.f32.gmra.mrb[0].mxu0 %v664
        %v1199 = vpop.f32.mrb[0].mxu0
        %v1200 = vadd.f32 %v537, %v1199
        %v1201 = vpop.f32.mrb[0].mxu0
        %1202 = vmatprep.mubr.f32.mxu0 0.0
        %1203 = vmatmul.mubr.f32.gmra.mrb[0].mxu0 %v667
        %v1204 = vpop.f32.mrb[0].mxu0
        %v1205 = vadd.f32 %v537, %v1204
        %v1206 = vpop.f32.mrb[0].mxu0
        %1207 = vmatprep.mubr.f32.mxu0 0.0
        %1208 = vmatmul.mubr.f32.gmra.mrb[0].mxu0 %v670
        %v1209 = vpop.f32.mrb[0].mxu0
        %v1210 = vadd.f32 %v537, %v1209
        %v1211 = vpop.f32.mrb[0].mxu0
        %1212 = vmatprep.mubr.f32.mxu0 0.0
        %1213 = vmatmul.mubr.f32.gmra.mrb[0].mxu0 %v673
        %v1214 = vpop.f32.mrb[0].mxu0
        %v1215 = vadd.f32 %v537, %v1214
        %v1216 = vpop.f32.mrb[0].mxu0
        %1217 = vmatprep.mubr.f32.mxu0 0.0
        %1218 = vmatmul.mubr.f32.gmra.mrb[0].mxu0 %v676
        %v1219 = vpop.f32.mrb[0].mxu0
        %v1220 = vadd.f32 %v537, %v1219
        %v1221 = vpop.f32.mrb[0].mxu0
        %1222 = vmatprep.mubr.f32.mxu0 0.0
        %1223 = vmatmul.mubr.f32.gmra.mrb[0].mxu0 %v679
        %v1224 = vpop.f32.mrb[0].mxu0
        %v1225 = vadd.f32 %v537, %v1224
        %v1226 = vpop.f32.mrb[0].mxu0
        %1227 = vmatprep.mubr.f32.mxu0 0.0
        %1228 = vmatmul.mubr.f32.gmra.mrb[0].mxu0 %v682
        %v1229 = vpop.f32.mrb[0].mxu0
        %v1230 = vadd.f32 %v537, %v1229
        %v1231 = vpop.f32.mrb[0].mxu0
        %1232 = vmatprep.mubr.f32.mxu0 0.0
        %1233 = vmatmul.mubr.f32.gmra.mrb[0].mxu0 %v685
        %v1234 = vpop.f32.mrb[0].mxu0
        %v1235 = vadd.f32 %v537, %v1234
        %v1236 = vpop.f32.mrb[0].mxu0
        %1237 = vmatprep.mubr.f32.mxu0 0.0
        %1238 = vmatmul.mubr.f32.gmra.mrb[0].mxu0 %v688
        %v1239 = vpop.f32.mrb[0].mxu0
        %v1240 = vadd.f32 %v537, %v1239
        %v1241 = vpop.f32.mrb[0].mxu0
        %1242 = vmatprep.mubr.f32.mxu0 0.0
        %1243 = vmatmul.mubr.f32.gmra.mrb[0].mxu0 %v691
        %v1244 = vpop.f32.mrb[0].mxu0
        %v1245 = vadd.f32 %v537, %v1244
        %v1246 = vpop.f32.mrb[0].mxu0
        %1247 = vmatprep.mubr.f32.mxu0 0.0
        %1248 = vmatmul.mubr.f32.gmra.mrb[0].mxu0 %v694
        %v1249 = vpop.f32.mrb[0].mxu0
        %v1250 = vadd.f32 %v537, %v1249
        %v1251 = vpop.f32.mrb[0].mxu0
        %1252 = vmatprep.mubr.f32.mxu0 0.0
        %1253 = vmatmul.mubr.f32.gmra.mrb[0].mxu0 %v697
        %v1254 = vpop.f32.mrb[0].mxu0
        %v1255 = vadd.f32 %v537, %v1254
        %v1256 = vpop.f32.mrb[0].mxu0
        %1257 = vmatprep.mubr.f32.mxu0 0.0
        %1258 = vmatmul.mubr.f32.gmra.mrb[0].mxu0 %v700
        %v1259 = vpop.f32.mrb[0].mxu0
        %v1260 = vadd.f32 %v537, %v1259
        %v1261 = vpop.f32.mrb[0].mxu0
        %1262 = vmatprep.mubr.f32.mxu0 0.0
        %1263 = vmatmul.mubr.f32.gmra.mrb[0].mxu0 %v703
        %v1264 = vpop.f32.mrb[0].mxu0
        %v1265 = vadd.f32 %v537, %v1264
        %v1266 = vpop.f32.mrb[0].mxu0
        %1267 = vmatprep.mubr.f32.mxu0 0.0
        %1268 = vmatmul.mubr.f32.gmra.mrb[0].mxu0 %v706
        %v1269 = vpop.f32.mrb[0].mxu0
        %v1270 = vadd.f32 %v537, %v1269
        %v1271 = vpop.f32.mrb[0].mxu0
        %1272 = vmatprep.mubr.f32.mxu0 0.0
        %1273 = vmatmul.mubr.f32.gmra.mrb[0].mxu0 %v709
        %v1274 = vpop.f32.mrb[0].mxu0
        %v1275 = vadd.f32 %v537, %v1274
        %v1276 = vpop.f32.mrb[0].mxu0
        %1277 = vmatprep.mubr.f32.mxu0 0.0
        %1278 = vmatmul.mubr.f32.gmra.mrb[0].mxu0 %v712
        %v1279 = vpop.f32.mrb[0].mxu0
        %v1280 = vadd.f32 %v537, %v1279
        %v1281 = vpop.f32.mrb[0].mxu0
        %1282 = vmatprep.mubr.f32.mxu0 0.0
        %1283 = vmatmul.mubr.f32.gmra.mrb[0].mxu0 %v715
        %v1284 = vpop.f32.mrb[0].mxu0
        %v1285 = vadd.f32 %v537, %v1284
        %v1286 = vpop.f32.mrb[0].mxu0
        %1287 = vmatprep.mubr.f32.mxu0 0.0
        %1288 = vmatmul.mubr.f32.gmra.mrb[0].mxu0 %v718
        %v1289 = vpop.f32.mrb[0].mxu0
        %v1290 = vadd.f32 %v537, %v1289
        %v1291 = vpop.f32.mrb[0].mxu0
        %1292 = vmatprep.mubr.f32.mxu0 0.0
        %1293 = vmatmul.mubr.f32.gmra.mrb[0].mxu0 %v721
        %v1294 = vpop.f32.mrb[0].mxu0
        %v1295 = vadd.f32 %v537, %v1294
        %v1296 = vpop.f32.mrb[0].mxu0
        %1297 = vmatprep.mubr.f32.mxu0 0.0
        %1298 = vmatmul.mubr.f32.gmra.mrb[0].mxu0 %v724
        %v1299 = vpop.f32.mrb[0].mxu0
        %v1300 = vadd.f32 %v537, %v1299
        %v1301 = vpop.f32.mrb[0].mxu0
        %1302 = vmatprep.mubr.f32.mxu0 0.0
        %1303 = vmatmul.mubr.f32.gmra.mrb[0].mxu0 %v727
        %v1304 = vpop.f32.mrb[0].mxu0
        %v1305 = vadd.f32 %v537, %v1304
        %v1306 = vpop.f32.mrb[0].mxu0
        %1307 = vmatprep.mubr.f32.mxu0 0.0
        %1308 = vmatmul.mubr.f32.gmra.mrb[0].mxu0 %v730
        %v1309 = vpop.f32.mrb[0].mxu0
        %v1310 = vadd.f32 %v537, %v1309
        %v1311 = vpop.f32.mrb[0].mxu0
        %1312 = vmatprep.mubr.f32.mxu0 0.0
        %1313 = vmatmul.mubr.f32.gmra.mrb[0].mxu0 %v733
        %v1314 = vpop.f32.mrb[0].mxu0
        %v1315 = vadd.f32 %v537, %v1314
        %v1316 = vpop.f32.mrb[0].mxu0
        %1317 = vmatprep.mubr.f32.mxu0 0.0
        %1318 = vmatmul.mubr.f32.gmra.mrb[0].mxu0 %v736
        %v1319 = vpop.f32.mrb[0].mxu0
        %v1320 = vadd.f32 %v537, %v1319
        %v1321 = vpop.f32.mrb[0].mxu0
        %1322 = vmatprep.mubr.f32.mxu0 0.0
        %1323 = vmatmul.mubr.f32.gmra.mrb[0].mxu0 %v739
        %v1324 = vpop.f32.mrb[0].mxu0
        %v1325 = vadd.f32 %v537, %v1324
        %v1326 = vpop.f32.mrb[0].mxu0
        %1327 = vmatprep.mubr.f32.mxu0 0.0
        %1328 = vmatmul.mubr.f32.gmra.mrb[0].mxu0 %v742
        %v1329 = vpop.f32.mrb[0].mxu0
        %v1330 = vadd.f32 %v537, %v1329
        %v1331 = vpop.f32.mrb[0].mxu0
        %1332 = vmatprep.mubr.f32.mxu0 0.0
        %1333 = vmatmul.mubr.f32.gmra.mrb[0].mxu0 %v745
        %v1334 = vpop.f32.mrb[0].mxu0
        %v1335 = vadd.f32 %v537, %v1334
        %v1336 = vpop.f32.mrb[0].mxu0
        %1337 = vmatprep.mubr.f32.mxu0 0.0
        %1338 = vmatmul.mubr.f32.gmra.mrb[0].mxu0 %v748
        %v1339 = vpop.f32.mrb[0].mxu0
        %v1340 = vadd.f32 %v537, %v1339
        %v1341 = vpop.f32.mrb[0].mxu0
        %1342 = vmatprep.mubr.f32.mxu0 0.0
        %1343 = vmatmul.mubr.f32.gmra.mrb[0].mxu0 %v751
        %v1344 = vpop.f32.mrb[0].mxu0
        %v1345 = vadd.f32 %v537, %v1344
        %v1346 = vpop.f32.mrb[0].mxu0
        %1347 = vmatprep.mubr.f32.mxu0 0.0
        %1348 = vmatmul.mubr.f32.gmra.mrb[0].mxu0 %v754
        %v1349 = vpop.f32.mrb[0].mxu0
        %v1350 = vadd.f32 %v537, %v1349
        %v1351 = vpop.f32.mrb[0].mxu0
        %1352 = vmatprep.mubr.f32.mxu0 0.0
        %1353 = vmatmul.mubr.f32.gmra.mrb[0].mxu0 %v757
        %v1354 = vpop.f32.mrb[0].mxu0
        %v1355 = vadd.f32 %v537, %v1354
        %v1356 = vpop.f32.mrb[0].mxu0
        %1357 = vmatprep.mubr.f32.mxu0 0.0
        %1358 = vmatmul.mubr.f32.gmra.mrb[0].mxu0 %v760
        %v1359 = vpop.f32.mrb[0].mxu0
        %v1360 = vadd.f32 %v537, %v1359
        %v1361 = vpop.f32.mrb[0].mxu0
        %1362 = vmatprep.mubr.f32.mxu0 0.0
        %1363 = vmatmul.mubr.f32.gmra.mrb[0].mxu0 %v763
        %v1364 = vpop.f32.mrb[0].mxu0
        %v1365 = vadd.f32 %v537, %v1364
        %v1366 = vpop.f32.mrb[0].mxu0
        %1367 = vmatprep.mubr.f32.mxu0 0.0
        %1368 = vmatmul.mubr.f32.gmra.mrb[0].mxu0 %v766
        %v1369 = vpop.f32.mrb[0].mxu0
        %v1370 = vadd.f32 %v537, %v1369
        %v1371 = vpop.f32.mrb[0].mxu0
        %1372 = vmatprep.mubr.f32.mxu0 0.0
        %1373 = vmatmul.mubr.f32.gmra.mrb[0].mxu0 %v769
        %v1374 = vpop.f32.mrb[0].mxu0
        %v1375 = vadd.f32 %v537, %v1374
        %v1376 = vpop.f32.mrb[0].mxu0
        %1377 = vmatprep.mubr.f32.mxu0 0.0
        %1378 = vmatmul.mubr.f32.gmra.mrb[0].mxu0 %v772
        %v1379 = vpop.f32.mrb[0].mxu0
        %v1380 = vadd.f32 %v537, %v1379
        %v1381 = vpop.f32.mrb[0].mxu0
        %1382 = vmatprep.mubr.f32.mxu0 0.0
        %1383 = vmatmul.mubr.f32.gmra.mrb[0].mxu0 %v775
        %v1384 = vpop.f32.mrb[0].mxu0
        %v1385 = vadd.f32 %v537, %v1384
        %v1386 = vpop.f32.mrb[0].mxu0
        %1387 = vmatprep.mubr.f32.mxu0 0.0
        %1388 = vmatmul.mubr.f32.gmra.mrb[0].mxu0 %v778
        %v1389 = vpop.f32.mrb[0].mxu0
        %v1390 = vadd.f32 %v537, %v1389
        %v1391 = vpop.f32.mrb[0].mxu0
        %1392 = vmatprep.mubr.f32.mxu0 0.0
        %1393 = vmatmul.mubr.f32.gmra.mrb[0].mxu0 %v781
        %v1394 = vpop.f32.mrb[0].mxu0
        %v1395 = vadd.f32 %v537, %v1394
        %v1396 = vpop.f32.mrb[0].mxu0
        %1397 = vmatprep.mubr.f32.mxu0 0.0
        %1398 = vmatmul.mubr.f32.gmra.mrb[0].mxu0 %v784
        %v1399 = vpop.f32.mrb[0].mxu0
        %v1400 = vadd.f32 %v537, %v1399
        %v1401 = vpop.f32.mrb[0].mxu0
        %1402 = vmatprep.mubr.f32.mxu0 0.0
        %1403 = vmatmul.mubr.f32.gmra.mrb[0].mxu0 %v787
        %v1404 = vpop.f32.mrb[0].mxu0
        %v1405 = vadd.f32 %v537, %v1404
        %v1406 = vpop.f32.mrb[0].mxu0
        %1407 = vmatprep.mubr.f32.mxu0 0.0
        %1408 = vmatmul.mubr.f32.gmra.mrb[0].mxu0 %v790
        %v1409 = vpop.f32.mrb[0].mxu0
        %v1410 = vadd.f32 %v537, %v1409
        %v1411 = vpop.f32.mrb[0].mxu0
        %1412 = vmatprep.mubr.f32.mxu0 0.0
        %1413 = vmatmul.mubr.f32.gmra.mrb[0].mxu0 %v793
        %v1414 = vpop.f32.mrb[0].mxu0
        %v1415 = vadd.f32 %v537, %v1414
        %v1416 = vpop.f32.mrb[0].mxu0
        %1417 = vmatprep.mubr.f32.mxu0 0.0
        %1418 = vmatmul.mubr.f32.gmra.mrb[0].mxu0 %v796
        %v1419 = vpop.f32.mrb[0].mxu0
        %v1420 = vadd.f32 %v537, %v1419
        %v1421 = vpop.f32.mrb[0].mxu0
        %1422 = vmatprep.mubr.f32.mxu0 0.0
        %1423 = vmatmul.mubr.f32.gmra.mrb[0].mxu0 %v799
        %v1424 = vpop.f32.mrb[0].mxu0
        %v1425 = vadd.f32 %v537, %v1424
        %v1426 = vpop.f32.mrb[0].mxu0
        %1427 = vmatprep.mubr.f32.mxu0 0.0
        %1428 = vmatmul.mubr.f32.gmra.mrb[0].mxu0 %v802
        %v1429 = vpop.f32.mrb[0].mxu0
        %v1430 = vadd.f32 %v537, %v1429
        %v1431 = vpop.f32.mrb[0].mxu0
        %1432 = vmatprep.mubr.f32.mxu0 0.0
        %1433 = vmatmul.mubr.f32.gmra.mrb[0].mxu0 %v805
        %v1434 = vpop.f32.mrb[0].mxu0
        %v1435 = vadd.f32 %v537, %v1434
        %v1436 = vpop.f32.mrb[0].mxu0
        %1437 = vmatprep.mubr.f32.mxu0 0.0
        %1438 = vmatmul.mubr.f32.gmra.mrb[0].mxu0 %v808
        %v1439 = vpop.f32.mrb[0].mxu0
        %v1440 = vadd.f32 %v537, %v1439
        %v1441 = vpop.f32.mrb[0].mxu0
        %1442 = vmatprep.mubr.f32.mxu0 0.0
        %1443 = vmatmul.mubr.f32.gmra.mrb[0].mxu0 %v811
        %v1444 = vpop.f32.mrb[0].mxu0
        %v1445 = vadd.f32 %v537, %v1444
        %v1446 = vpop.f32.mrb[0].mxu0
        %1447 = vmatprep.mubr.f32.mxu0 0.0
        %1448 = vmatmul.mubr.f32.gmra.mrb[0].mxu0 %v814
        %v1449 = vpop.f32.mrb[0].mxu0
        %v1450 = vadd.f32 %v537, %v1449
        %v1451 = vpop.f32.mrb[0].mxu0
        %1452 = vmatprep.mubr.f32.mxu0 0.0
        %1453 = vmatmul.mubr.f32.gmra.mrb[0].mxu0 %v817
        %v1454 = vpop.f32.mrb[0].mxu0
        %v1455 = vadd.f32 %v537, %v1454
        %v1456 = vpop.f32.mrb[0].mxu0
        %1457 = vmatprep.mubr.f32.mxu0 0.0
        %1458 = vmatmul.mubr.f32.gmra.mrb[0].mxu0 %v820
        %v1459 = vpop.f32.mrb[0].mxu0
        %v1460 = vadd.f32 %v537, %v1459
        %v1461 = vpop.f32.mrb[0].mxu0
        %1462 = vmatprep.mubr.f32.mxu0 0.0
        %1463 = vmatmul.mubr.f32.gmra.mrb[0].mxu0 %v823
        %v1464 = vpop.f32.mrb[0].mxu0
        %v1465 = vadd.f32 %v537, %v1464
        %v1466 = vpop.f32.mrb[0].mxu0
        %1467 = vmatprep.mubr.f32.mxu0 0.0
        %1468 = vmatmul.mubr.f32.gmra.mrb[0].mxu0 %v826
        %v1469 = vpop.f32.mrb[0].mxu0
        %v1470 = vadd.f32 %v537, %v1469
        %v1471 = vpop.f32.mrb[0].mxu0
        %1472 = vmatprep.mubr.f32.mxu0 0.0
        %1473 = vmatmul.mubr.f32.gmra.mrb[0].mxu0 %v829
        %v1474 = vpop.f32.mrb[0].mxu0
        %v1475 = vadd.f32 %v537, %v1474
        %v1476 = vpop.f32.mrb[0].mxu0
        %1477 = vmatprep.mubr.f32.mxu0 0.0
        %1478 = vmatmul.mubr.f32.gmra.mrb[0].mxu0 %v832
        %v1479 = vpop.f32.mrb[0].mxu0
        %v1480 = vadd.f32 %v537, %v1479
        %v1481 = vpop.f32.mrb[0].mxu0
        %1482 = vmatprep.mubr.f32.mxu0 0.0
        %1483 = vmatmul.mubr.f32.gmra.mrb[0].mxu0 %v835
        %v1484 = vpop.f32.mrb[0].mxu0
        %v1485 = vadd.f32 %v537, %v1484
        %v1486 = vpop.f32.mrb[0].mxu0
        %1487 = vmatprep.mubr.f32.mxu0 0.0
        %1488 = vmatmul.mubr.f32.gmra.mrb[0].mxu0 %v838
        %v1489 = vpop.f32.mrb[0].mxu0
        %v1490 = vadd.f32 %v537, %v1489
        %v1491 = vpop.f32.mrb[0].mxu0
        %1492 = vmatprep.mubr.f32.mxu0 0.0
        %1493 = vmatmul.mubr.f32.gmra.mrb[0].mxu0 %v841
        %v1494 = vpop.f32.mrb[0].mxu0
        %v1495 = vadd.f32 %v537, %v1494
        %v1496 = vpop.f32.mrb[0].mxu0
        %1497 = vmatprep.mubr.f32.mxu0 0.0
        %1498 = vmatmul.mubr.f32.gmra.mrb[0].mxu0 %v844
        %v1499 = vpop.f32.mrb[0].mxu0
        %v1500 = vadd.f32 %v537, %v1499
        %v1501 = vpop.f32.mrb[0].mxu0
        %1502 = vmatprep.mubr.f32.mxu0 0.0
        %1503 = vmatmul.mubr.f32.gmra.mrb[0].mxu0 %v847
        %v1504 = vpop.f32.mrb[0].mxu0
        %v1505 = vadd.f32 %v537, %v1504
        %v1506 = vpop.f32.mrb[0].mxu0
        %1507 = vmatprep.mubr.f32.mxu0 0.0
        %1508 = vmatmul.mubr.f32.gmra.mrb[0].mxu0 %v850
        %v1509 = vpop.f32.mrb[0].mxu0
        %v1510 = vadd.f32 %v537, %v1509
        %v1511 = vpop.f32.mrb[0].mxu0
        %1512 = vmatprep.mubr.f32.mxu0 0.0
        %1513 = vmatmul.mubr.f32.gmra.mrb[0].mxu0 %v853
        %v1514 = vpop.f32.mrb[0].mxu0
        %v1515 = vadd.f32 %v537, %v1514
        %v1516 = vpop.f32.mrb[0].mxu0
        %1517 = vmatprep.mubr.f32.mxu0 0.0
        %1518 = vmatmul.mubr.f32.gmra.mrb[0].mxu0 %v856
        %v1519 = vpop.f32.mrb[0].mxu0
        %v1520 = vadd.f32 %v537, %v1519
        %v1521 = vpop.f32.mrb[0].mxu0
        %1522 = vmatprep.mubr.f32.mxu0 0.0
        %1523 = vmatmul.mubr.f32.gmra.mrb[0].mxu0 %v859
        %v1524 = vpop.f32.mrb[0].mxu0
        %v1525 = vadd.f32 %v537, %v1524
        %v1526 = vpop.f32.mrb[0].mxu0
        %1527 = vmatprep.mubr.f32.mxu0 0.0
        %1528 = vmatmul.mubr.f32.gmra.mrb[0].mxu0 %v862
        %v1529 = vpop.f32.mrb[0].mxu0
        %v1530 = vadd.f32 %v537, %v1529
        %v1531 = vpop.f32.mrb[0].mxu0
        %1532 = vmatprep.mubr.f32.mxu0 0.0
        %1533 = vmatmul.mubr.f32.gmra.mrb[0].mxu0 %v865
        %v1534 = vpop.f32.mrb[0].mxu0
        %v1535 = vadd.f32 %v537, %v1534
        %v1536 = vpop.f32.mrb[0].mxu0
        %1537 = vmatprep.mubr.f32.mxu0 0.0
        %1538 = vmatmul.mubr.f32.gmra.mrb[0].mxu0 %v868
        %v1539 = vpop.f32.mrb[0].mxu0
        %v1540 = vadd.f32 %v537, %v1539
        %v1541 = vpop.f32.mrb[0].mxu0
        %1542 = vmatprep.mubr.f32.mxu0 0.0
        %1543 = vmatmul.mubr.f32.gmra.mrb[0].mxu0 %v871
        %v1544 = vpop.f32.mrb[0].mxu0
        %v1545 = vadd.f32 %v537, %v1544
        %v1546 = vpop.f32.mrb[0].mxu0
        %1547 = vmatprep.mubr.f32.mxu0 0.0
        %1548 = vmatmul.mubr.f32.gmra.mrb[0].mxu0 %v874
        %v1549 = vpop.f32.mrb[0].mxu0
        %v1550 = vadd.f32 %v537, %v1549
        %v1551 = vpop.f32.mrb[0].mxu0
        %1552 = vmatprep.mubr.f32.mxu0 0.0
        %1553 = vmatmul.mubr.f32.gmra.mrb[0].mxu0 %v877
        %v1554 = vpop.f32.mrb[0].mxu0
        %v1555 = vadd.f32 %v537, %v1554
        %v1556 = vpop.f32.mrb[0].mxu0
        %1557 = vmatprep.mubr.f32.mxu0 0.0
        %1558 = vmatmul.mubr.f32.gmra.mrb[0].mxu0 %v880
        %v1559 = vpop.f32.mrb[0].mxu0
        %v1560 = vadd.f32 %v537, %v1559
        %v1561 = vpop.f32.mrb[0].mxu0
        %1562 = vmatprep.mubr.f32.mxu0 0.0
        %1563 = vmatmul.mubr.f32.gmra.mrb[0].mxu0 %v883
        %v1564 = vpop.f32.mrb[0].mxu0
        %v1565 = vadd.f32 %v537, %v1564
        %v1566 = vpop.f32.mrb[0].mxu0
        %1567 = vmatprep.mubr.f32.mxu0 0.0
        %1568 = vmatmul.mubr.f32.gmra.mrb[0].mxu0 %v886
        %v1569 = vpop.f32.mrb[0].mxu0
        %v1570 = vadd.f32 %v537, %v1569
        %v1571 = vpop.f32.mrb[0].mxu0
        %1572 = vmatprep.mubr.f32.mxu0 0.0
        %1573 = vmatmul.mubr.f32.gmra.mrb[0].mxu0 %v889
        %v1574 = vpop.f32.mrb[0].mxu0
        %v1575 = vadd.f32 %v537, %v1574
        %v1576 = vpop.f32.mrb[0].mxu0
        %1577 = vmatprep.mubr.f32.mxu0 0.0
        %1578 = vmatmul.mubr.f32.gmra.mrb[0].mxu0 %v892
        %v1579 = vpop.f32.mrb[0].mxu0
        %v1580 = vadd.f32 %v537, %v1579
        %v1581 = vpop.f32.mrb[0].mxu0
        %1582 = vmatprep.mubr.f32.mxu0 0.0
        %1583 = vmatmul.mubr.f32.gmra.mrb[0].mxu0 %v895
        %v1584 = vpop.f32.mrb[0].mxu0
        %v1585 = vadd.f32 %v537, %v1584
        %v1586 = vpop.f32.mrb[0].mxu0
        %1587 = vmatprep.mubr.f32.mxu0 0.0
        %1588 = vmatmul.mubr.f32.gmra.mrb[0].mxu0 %v898
        %v1589 = vpop.f32.mrb[0].mxu0
        %v1590 = vadd.f32 %v537, %v1589
        %v1591 = vpop.f32.mrb[0].mxu0
        %1592 = vmatprep.mubr.f32.mxu0 0.0
        %1593 = vmatmul.mubr.f32.gmra.mrb[0].mxu0 %v901
        %v1594 = vpop.f32.mrb[0].mxu0
        %v1595 = vadd.f32 %v537, %v1594
        %v1596 = vpop.f32.mrb[0].mxu0
        %1597 = vmatprep.mubr.f32.mxu0 0.0
        %1598 = vmatmul.mubr.f32.gmra.mrb[0].mxu0 %v904
        %v1599 = vpop.f32.mrb[0].mxu0
        %v1600 = vadd.f32 %v537, %v1599
        %v1601 = vpop.f32.mrb[0].mxu0
        %1602 = vmatprep.mubr.f32.mxu0 0.0
        %1603 = vmatmul.mubr.f32.gmra.mrb[0].mxu0 %v907
        %v1604 = vpop.f32.mrb[0].mxu0
        %v1605 = vadd.f32 %v537, %v1604
        %v1606 = vpop.f32.mrb[0].mxu0
        %1607 = vmatprep.mubr.f32.mxu0 0.0
        %1608 = vmatmul.mubr.f32.gmra.mrb[0].mxu0 %v910
        %v1609 = vpop.f32.mrb[0].mxu0
        %v1610 = vadd.f32 %v537, %v1609
        %v1611 = vpop.f32.mrb[0].mxu0
        %1612 = vmatprep.mubr.f32.mxu0 0.0
        %1613 = vmatmul.mubr.f32.gmra.mrb[0].mxu0 %v913
        %v1614 = vpop.f32.mrb[0].mxu0
        %v1615 = vadd.f32 %v537, %v1614
        %v1616 = vpop.f32.mrb[0].mxu0
        %1617 = vmatprep.mubr.f32.mxu0 0.0
        %1618 = vmatmul.mubr.f32.gmra.mrb[0].mxu0 %v916
        %v1619 = vpop.f32.mrb[0].mxu0
        %v1620 = vadd.f32 %v537, %v1619
        %v1621 = vpop.f32.mrb[0].mxu0
        %1622 = vmatprep.mubr.f32.mxu0 0.0
        %1623 = vmatmul.mubr.f32.gmra.mrb[0].mxu0 %v919
        %v1624 = vpop.f32.mrb[0].mxu0
        %v1625 = vadd.f32 %v537, %v1624
        %v1626 = vpop.f32.mrb[0].mxu0
        %1627 = vmatprep.mubr.f32.mxu0 0.0
        %1628 = vmatmul.mubr.f32.gmra.mrb[0].mxu0 %v922
        %v1629 = vpop.f32.mrb[0].mxu0
        %v1630 = vadd.f32 %v537, %v1629
        %v1631 = vpop.f32.mrb[0].mxu0
        %1632 = vdwg.mxu0
        %v1633 = vmax.f32 %v995, 0.0
        %v1634 = vmax.f32 %v1000, 0.0
        %v1635 = vmax.f32 %v1005, 0.0
        %v1636 = vmax.f32 %v1010, 0.0
        %v1637 = vmax.f32 %v1015, 0.0
        %v1638 = vmax.f32 %v1020, 0.0
        %v1639 = vmax.f32 %v1025, 0.0
        %v1640 = vmax.f32 %v1030, 0.0
        %v1641 = vmax.f32 %v1035, 0.0
        %v1642 = vmax.f32 %v1040, 0.0
        %v1643 = vmax.f32 %v1045, 0.0
        %v1644 = vmax.f32 %v1050, 0.0
        %v1645 = vmax.f32 %v1055, 0.0
        %v1646 = vmax.f32 %v1060, 0.0
        %v1647 = vmax.f32 %v1065, 0.0
        %v1648 = vmax.f32 %v1070, 0.0
        %v1649 = vmax.f32 %v1075, 0.0
        %v1650 = vmax.f32 %v1080, 0.0
        %v1651 = vmax.f32 %v1085, 0.0
        %v1652 = vmax.f32 %v1090, 0.0
        %v1653 = vmax.f32 %v1095, 0.0
        %v1654 = vmax.f32 %v1100, 0.0
        %v1655 = vmax.f32 %v1105, 0.0
        %v1656 = vmax.f32 %v1110, 0.0
        %v1657 = vmax.f32 %v1115, 0.0
        %v1658 = vmax.f32 %v1120, 0.0
        %v1659 = vmax.f32 %v1125, 0.0
        %v1660 = vmax.f32 %v1130, 0.0
        %v1661 = vmax.f32 %v1135, 0.0
        %v1662 = vmax.f32 %v1140, 0.0
        %v1663 = vmax.f32 %v1145, 0.0
        %v1664 = vmax.f32 %v1150, 0.0
        %v1665 = vmax.f32 %v1155, 0.0
        %v1666 = vmax.f32 %v1160, 0.0
        %v1667 = vmax.f32 %v1165, 0.0
        %v1668 = vmax.f32 %v1170, 0.0
        %v1669 = vmax.f32 %v1175, 0.0
        %v1670 = vmax.f32 %v1180, 0.0
        %v1671 = vmax.f32 %v1185, 0.0
        %v1672 = vmax.f32 %v1190, 0.0
        %v1673 = vmax.f32 %v1195, 0.0
        %v1674 = vmax.f32 %v1200, 0.0
        %v1675 = vmax.f32 %v1205, 0.0
        %v1676 = vmax.f32 %v1210, 0.0
        %v1677 = vmax.f32 %v1215, 0.0
        %v1678 = vmax.f32 %v1220, 0.0
        %v1679 = vmax.f32 %v1225, 0.0
        %v1680 = vmax.f32 %v1230, 0.0
        %v1681 = vmax.f32 %v1235, 0.0
        %v1682 = vmax.f32 %v1240, 0.0
        %v1683 = vmax.f32 %v1245, 0.0
        %v1684 = vmax.f32 %v1250, 0.0
        %v1685 = vmax.f32 %v1255, 0.0
        %v1686 = vmax.f32 %v1260, 0.0
        %v1687 = vmax.f32 %v1265, 0.0
        %v1688 = vmax.f32 %v1270, 0.0
        %v1689 = vmax.f32 %v1275, 0.0
        %v1690 = vmax.f32 %v1280, 0.0
        %v1691 = vmax.f32 %v1285, 0.0
        %v1692 = vmax.f32 %v1290, 0.0
        %v1693 = vmax.f32 %v1295, 0.0
        %v1694 = vmax.f32 %v1300, 0.0
        %v1695 = vmax.f32 %v1305, 0.0
        %v1696 = vmax.f32 %v1310, 0.0
        %v1697 = vmax.f32 %v1315, 0.0
        %v1698 = vmax.f32 %v1320, 0.0
        %v1699 = vmax.f32 %v1325, 0.0
        %v1700 = vmax.f32 %v1330, 0.0
        %v1701 = vmax.f32 %v1335, 0.0
        %v1702 = vmax.f32 %v1340, 0.0
        %v1703 = vmax.f32 %v1345, 0.0
        %v1704 = vmax.f32 %v1350, 0.0
        %v1705 = vmax.f32 %v1355, 0.0
        %v1706 = vmax.f32 %v1360, 0.0
        %v1707 = vmax.f32 %v1365, 0.0
        %v1708 = vmax.f32 %v1370, 0.0
        %v1709 = vmax.f32 %v1375, 0.0
        %v1710 = vmax.f32 %v1380, 0.0
        %v1711 = vmax.f32 %v1385, 0.0
        %v1712 = vmax.f32 %v1390, 0.0
        %v1713 = vmax.f32 %v1395, 0.0
        %v1714 = vmax.f32 %v1400, 0.0
        %v1715 = vmax.f32 %v1405, 0.0
        %v1716 = vmax.f32 %v1410, 0.0
        %v1717 = vmax.f32 %v1415, 0.0
        %v1718 = vmax.f32 %v1420, 0.0
        %v1719 = vmax.f32 %v1425, 0.0
        %v1720 = vmax.f32 %v1430, 0.0
        %v1721 = vmax.f32 %v1435, 0.0
        %v1722 = vmax.f32 %v1440, 0.0
        %v1723 = vmax.f32 %v1445, 0.0
        %v1724 = vmax.f32 %v1450, 0.0
        %v1725 = vmax.f32 %v1455, 0.0
        %v1726 = vmax.f32 %v1460, 0.0
        %v1727 = vmax.f32 %v1465, 0.0
        %v1728 = vmax.f32 %v1470, 0.0
        %v1729 = vmax.f32 %v1475, 0.0
        %v1730 = vmax.f32 %v1480, 0.0
        %v1731 = vmax.f32 %v1485, 0.0
        %v1732 = vmax.f32 %v1490, 0.0
        %v1733 = vmax.f32 %v1495, 0.0
        %v1734 = vmax.f32 %v1500, 0.0
        %v1735 = vmax.f32 %v1505, 0.0
        %v1736 = vmax.f32 %v1510, 0.0
        %v1737 = vmax.f32 %v1515, 0.0
        %v1738 = vmax.f32 %v1520, 0.0
        %v1739 = vmax.f32 %v1525, 0.0
        %v1740 = vmax.f32 %v1530, 0.0
        %v1741 = vmax.f32 %v1535, 0.0
        %v1742 = vmax.f32 %v1540, 0.0
        %v1743 = vmax.f32 %v1545, 0.0
        %v1744 = vmax.f32 %v1550, 0.0
        %v1745 = vmax.f32 %v1555, 0.0
        %v1746 = vmax.f32 %v1560, 0.0
        %v1747 = vmax.f32 %v1565, 0.0
        %v1748 = vmax.f32 %v1570, 0.0
        %v1749 = vmax.f32 %v1575, 0.0
        %v1750 = vmax.f32 %v1580, 0.0
        %v1751 = vmax.f32 %v1585, 0.0
        %v1752 = vmax.f32 %v1590, 0.0
        %v1753 = vmax.f32 %v1595, 0.0
        %v1754 = vmax.f32 %v1600, 0.0
        %v1755 = vmax.f32 %v1605, 0.0
        %v1756 = vmax.f32 %v1610, 0.0
        %v1757 = vmax.f32 %v1615, 0.0
        %v1758 = vmax.f32 %v1620, 0.0
        %v1759 = vmax.f32 %v1625, 0.0
        %v1760 = vmax.f32 %v1630, 0.0
        %s1761 = scalar_lea.vmem [#allocation2], 24
        %1762 = vst.msk [vmem:[%s1761 + $0x1] sm:$0xff] %vm230, %v1633
        %1763 = vst.msk [vmem:[%s1761 + $0x9] sm:$0xff] %vm230, %v1634
        %1764 = vst.msk [vmem:[%s1761 + $0x19] sm:$0xff] %vm230, %v1635
        %1765 = vst.msk [vmem:[%s1761 + $0x21] sm:$0xff] %vm230, %v1636
        %1766 = vst.msk [vmem:[%s1761 + $0x31] sm:$0xff] %vm230, %v1637
        %1767 = vst.msk [vmem:[%s1761 + $0x39] sm:$0xff] %vm230, %v1638
        %1768 = vst.msk [vmem:[%s1761 + $0x49] sm:$0xff] %vm230, %v1639
        %1769 = vst.msk [vmem:[%s1761 + $0x51] sm:$0xff] %vm230, %v1640
        %1770 = vst.msk [vmem:[%s1761 + $0x61] sm:$0xff] %vm230, %v1641
        %1771 = vst.msk [vmem:[%s1761 + $0x69] sm:$0xff] %vm230, %v1642
        %1772 = vst.msk [vmem:[%s1761 + $0x79] sm:$0xff] %vm230, %v1643
        %1773 = vst.msk [vmem:[%s1761 + $0x81] sm:$0xff] %vm230, %v1644
        %1774 = vst.msk [vmem:[%s1761 + $0x91] sm:$0xff] %vm230, %v1645
        %1775 = vst.msk [vmem:[%s1761 + $0x99] sm:$0xff] %vm230, %v1646
        %1776 = vst.msk [vmem:[%s1761 + $0xa9] sm:$0xff] %vm230, %v1647
        %1777 = vst.msk [vmem:[%s1761 + $0xb1] sm:$0xff] %vm230, %v1648
        %1778 = vst.msk [vmem:[%s1761 + $0xc1] sm:$0xff] %vm230, %v1649
        %1779 = vst.msk [vmem:[%s1761 + $0xc9] sm:$0xff] %vm230, %v1650
        %1780 = vst.msk [vmem:[%s1761 + $0xd9] sm:$0xff] %vm230, %v1651
        %1781 = vst.msk [vmem:[%s1761 + $0xe1] sm:$0xff] %vm230, %v1652
        %1782 = vst.msk [vmem:[%s1761 + $0xf1] sm:$0xff] %vm230, %v1653
        %1783 = vst.msk [vmem:[%s1761 + $0xf9] sm:$0xff] %vm230, %v1654
        %1784 = vst.msk [vmem:[%s1761 + $0x109] sm:$0xff] %vm230, %v1655
        %1785 = vst.msk [vmem:[%s1761 + $0x111] sm:$0xff] %vm230, %v1656
        %1786 = vst.msk [vmem:[%s1761 + $0x121] sm:$0xff] %vm230, %v1657
        %1787 = vst.msk [vmem:[%s1761 + $0x129] sm:$0xff] %vm230, %v1658
        %1788 = vst.msk [vmem:[%s1761 + $0x139] sm:$0xff] %vm230, %v1659
        %1789 = vst.msk [vmem:[%s1761 + $0x141] sm:$0xff] %vm230, %v1660
        %1790 = vst.msk [vmem:[%s1761 + $0x151] sm:$0xff] %vm230, %v1661
        %1791 = vst.msk [vmem:[%s1761 + $0x159] sm:$0xff] %vm230, %v1662
        %1792 = vst.msk [vmem:[%s1761 + $0x169] sm:$0xff] %vm230, %v1663
        %1793 = vst.msk [vmem:[%s1761 + $0x171] sm:$0xff] %vm230, %v1664
        %1794 = vst.msk [vmem:[%s1761 + $0x1b1] sm:$0xff] %vm230, %v1665
        %1795 = vst.msk [vmem:[%s1761 + $0x1b9] sm:$0xff] %vm230, %v1666
        %1796 = vst.msk [vmem:[%s1761 + $0x1c9] sm:$0xff] %vm230, %v1667
        %1797 = vst.msk [vmem:[%s1761 + $0x1d1] sm:$0xff] %vm230, %v1668
        %1798 = vst.msk [vmem:[%s1761 + $0x1e1] sm:$0xff] %vm230, %v1669
        %1799 = vst.msk [vmem:[%s1761 + $0x1e9] sm:$0xff] %vm230, %v1670
        %1800 = vst.msk [vmem:[%s1761 + $0x1f9] sm:$0xff] %vm230, %v1671
        %1801 = vst.msk [vmem:[%s1761 + $0x201] sm:$0xff] %vm230, %v1672
        %1802 = vst.msk [vmem:[%s1761 + $0x211] sm:$0xff] %vm230, %v1673
        %1803 = vst.msk [vmem:[%s1761 + $0x219] sm:$0xff] %vm230, %v1674
        %1804 = vst.msk [vmem:[%s1761 + $0x229] sm:$0xff] %vm230, %v1675
        %1805 = vst.msk [vmem:[%s1761 + $0x231] sm:$0xff] %vm230, %v1676
        %1806 = vst.msk [vmem:[%s1761 + $0x241] sm:$0xff] %vm230, %v1677
        %1807 = vst.msk [vmem:[%s1761 + $0x249] sm:$0xff] %vm230, %v1678
        %1808 = vst.msk [vmem:[%s1761 + $0x259] sm:$0xff] %vm230, %v1679
        %1809 = vst.msk [vmem:[%s1761 + $0x261] sm:$0xff] %vm230, %v1680
        %1810 = vst.msk [vmem:[%s1761 + $0x271] sm:$0xff] %vm230, %v1681
        %1811 = vst.msk [vmem:[%s1761 + $0x279] sm:$0xff] %vm230, %v1682
        %1812 = vst.msk [vmem:[%s1761 + $0x289] sm:$0xff] %vm230, %v1683
        %1813 = vst.msk [vmem:[%s1761 + $0x291] sm:$0xff] %vm230, %v1684
        %1814 = vst.msk [vmem:[%s1761 + $0x2a1] sm:$0xff] %vm230, %v1685
        %1815 = vst.msk [vmem:[%s1761 + $0x2a9] sm:$0xff] %vm230, %v1686
        %1816 = vst.msk [vmem:[%s1761 + $0x2b9] sm:$0xff] %vm230, %v1687
        %1817 = vst.msk [vmem:[%s1761 + $0x2c1] sm:$0xff] %vm230, %v1688
        %1818 = vst.msk [vmem:[%s1761 + $0x2d1] sm:$0xff] %vm230, %v1689
        %1819 = vst.msk [vmem:[%s1761 + $0x2d9] sm:$0xff] %vm230, %v1690
        %1820 = vst.msk [vmem:[%s1761 + $0x2e9] sm:$0xff] %vm230, %v1691
        %1821 = vst.msk [vmem:[%s1761 + $0x2f1] sm:$0xff] %vm230, %v1692
        %1822 = vst.msk [vmem:[%s1761 + $0x301] sm:$0xff] %vm230, %v1693
        %1823 = vst.msk [vmem:[%s1761 + $0x309] sm:$0xff] %vm230, %v1694
        %1824 = vst.msk [vmem:[%s1761 + $0x319] sm:$0xff] %vm230, %v1695
        %1825 = vst.msk [vmem:[%s1761 + $0x321] sm:$0xff] %vm230, %v1696
        %1826 = vst.msk [vmem:[%s1761 + $0x361] sm:$0xff] %vm230, %v1697
        %1827 = vst.msk [vmem:[%s1761 + $0x369] sm:$0xff] %vm230, %v1698
        %1828 = vst.msk [vmem:[%s1761 + $0x379] sm:$0xff] %vm230, %v1699
        %1829 = vst.msk [vmem:[%s1761 + $0x381] sm:$0xff] %vm230, %v1700
        %1830 = vst.msk [vmem:[%s1761 + $0x391] sm:$0xff] %vm230, %v1701
        %1831 = vst.msk [vmem:[%s1761 + $0x399] sm:$0xff] %vm230, %v1702
        %1832 = vst.msk [vmem:[%s1761 + $0x3a9] sm:$0xff] %vm230, %v1703
        %1833 = vst.msk [vmem:[%s1761 + $0x3b1] sm:$0xff] %vm230, %v1704
        %1834 = vst.msk [vmem:[%s1761 + $0x3c1] sm:$0xff] %vm230, %v1705
        %1835 = vst.msk [vmem:[%s1761 + $0x3c9] sm:$0xff] %vm230, %v1706
        %1836 = vst.msk [vmem:[%s1761 + $0x3d9] sm:$0xff] %vm230, %v1707
        %1837 = vst.msk [vmem:[%s1761 + $0x3e1] sm:$0xff] %vm230, %v1708
        %1838 = vst.msk [vmem:[%s1761 + $0x3f1] sm:$0xff] %vm230, %v1709
        %1839 = vst.msk [vmem:[%s1761 + $0x3f9] sm:$0xff] %vm230, %v1710
        %1840 = vst.msk [vmem:[%s1761 + $0x409] sm:$0xff] %vm230, %v1711
        %1841 = vst.msk [vmem:[%s1761 + $0x411] sm:$0xff] %vm230, %v1712
        %1842 = vst.msk [vmem:[%s1761 + $0x421] sm:$0xff] %vm230, %v1713
        %1843 = vst.msk [vmem:[%s1761 + $0x429] sm:$0xff] %vm230, %v1714
        %1844 = vst.msk [vmem:[%s1761 + $0x439] sm:$0xff] %vm230, %v1715
        %1845 = vst.msk [vmem:[%s1761 + $0x441] sm:$0xff] %vm230, %v1716
        %1846 = vst.msk [vmem:[%s1761 + $0x451] sm:$0xff] %vm230, %v1717
        %1847 = vst.msk [vmem:[%s1761 + $0x459] sm:$0xff] %vm230, %v1718
        %1848 = vst.msk [vmem:[%s1761 + $0x469] sm:$0xff] %vm230, %v1719
        %1849 = vst.msk [vmem:[%s1761 + $0x471] sm:$0xff] %vm230, %v1720
        %1850 = vst.msk [vmem:[%s1761 + $0x481] sm:$0xff] %vm230, %v1721
        %1851 = vst.msk [vmem:[%s1761 + $0x489] sm:$0xff] %vm230, %v1722
        %1852 = vst.msk [vmem:[%s1761 + $0x499] sm:$0xff] %vm230, %v1723
        %1853 = vst.msk [vmem:[%s1761 + $0x4a1] sm:$0xff] %vm230, %v1724
        %1854 = vst.msk [vmem:[%s1761 + $0x4b1] sm:$0xff] %vm230, %v1725
        %1855 = vst.msk [vmem:[%s1761 + $0x4b9] sm:$0xff] %vm230, %v1726
        %1856 = vst.msk [vmem:[%s1761 + $0x4c9] sm:$0xff] %vm230, %v1727
        %1857 = vst.msk [vmem:[%s1761 + $0x4d1] sm:$0xff] %vm230, %v1728
        %1858 = vst.msk [vmem:[%s1761 + $0x511] sm:$0xff] %vm230, %v1729
        %1859 = vst.msk [vmem:[%s1761 + $0x519] sm:$0xff] %vm230, %v1730
        %1860 = vst.msk [vmem:[%s1761 + $0x529] sm:$0xff] %vm230, %v1731
        %1861 = vst.msk [vmem:[%s1761 + $0x531] sm:$0xff] %vm230, %v1732
        %1862 = vst.msk [vmem:[%s1761 + $0x541] sm:$0xff] %vm230, %v1733
        %1863 = vst.msk [vmem:[%s1761 + $0x549] sm:$0xff] %vm230, %v1734
        %1864 = vst.msk [vmem:[%s1761 + $0x559] sm:$0xff] %vm230, %v1735
        %1865 = vst.msk [vmem:[%s1761 + $0x561] sm:$0xff] %vm230, %v1736
        %1866 = vst.msk [vmem:[%s1761 + $0x571] sm:$0xff] %vm230, %v1737
        %1867 = vst.msk [vmem:[%s1761 + $0x579] sm:$0xff] %vm230, %v1738
        %1868 = vst.msk [vmem:[%s1761 + $0x589] sm:$0xff] %vm230, %v1739
        %1869 = vst.msk [vmem:[%s1761 + $0x591] sm:$0xff] %vm230, %v1740
        %1870 = vst.msk [vmem:[%s1761 + $0x5a1] sm:$0xff] %vm230, %v1741
        %1871 = vst.msk [vmem:[%s1761 + $0x5a9] sm:$0xff] %vm230, %v1742
        %1872 = vst.msk [vmem:[%s1761 + $0x5b9] sm:$0xff] %vm230, %v1743
        %1873 = vst.msk [vmem:[%s1761 + $0x5c1] sm:$0xff] %vm230, %v1744
        %1874 = vst.msk [vmem:[%s1761 + $0x5d1] sm:$0xff] %vm230, %v1745
        %1875 = vst.msk [vmem:[%s1761 + $0x5d9] sm:$0xff] %vm230, %v1746
        %1876 = vst.msk [vmem:[%s1761 + $0x5e9] sm:$0xff] %vm230, %v1747
        %1877 = vst.msk [vmem:[%s1761 + $0x5f1] sm:$0xff] %vm230, %v1748
        %1878 = vst.msk [vmem:[%s1761 + $0x601] sm:$0xff] %vm230, %v1749
        %1879 = vst.msk [vmem:[%s1761 + $0x609] sm:$0xff] %vm230, %v1750
        %1880 = vst.msk [vmem:[%s1761 + $0x619] sm:$0xff] %vm230, %v1751
        %1881 = vst.msk [vmem:[%s1761 + $0x621] sm:$0xff] %vm230, %v1752
        %1882 = vst.msk [vmem:[%s1761 + $0x631] sm:$0xff] %vm230, %v1753
        %1883 = vst.msk [vmem:[%s1761 + $0x639] sm:$0xff] %vm230, %v1754
        %1884 = vst.msk [vmem:[%s1761 + $0x649] sm:$0xff] %vm230, %v1755
        %1885 = vst.msk [vmem:[%s1761 + $0x651] sm:$0xff] %vm230, %v1756
        %1886 = vst.msk [vmem:[%s1761 + $0x661] sm:$0xff] %vm230, %v1757
        %1887 = vst.msk [vmem:[%s1761 + $0x669] sm:$0xff] %vm230, %v1758
        %1888 = vst.msk [vmem:[%s1761 + $0x679] sm:$0xff] %vm230, %v1759
        %1889 = vst.msk [vmem:[%s1761 + $0x681] sm:$0xff] %vm230, %v1760
        %v1890 = vld [vmem:[#allocation2] sm:$0xff]
        %v1891 = vld [vmem:[#allocation2 + $0x8] sm:$0xff]
        %v1892 = vld [vmem:[#allocation2 + $0x18] sm:$0xff]
        %v1893 = vld [vmem:[#allocation2 + $0x20] sm:$0xff]
        %v1894 = vld [vmem:[#allocation2 + $0x30] sm:$0xff]
        %v1895 = vld [vmem:[#allocation2 + $0x38] sm:$0xff]
        %v1896 = vld [vmem:[#allocation2 + $0x48] sm:$0xff]
        %v1897 = vld [vmem:[#allocation2 + $0x50] sm:$0xff]
        %v1898 = vld [vmem:[#allocation2 + $0x60] sm:$0xff]
        %v1899 = vld [vmem:[#allocation2 + $0x68] sm:$0xff]
        %v1900 = vld [vmem:[#allocation2 + $0x78] sm:$0xff]
        %v1901 = vld [vmem:[#allocation2 + $0x80] sm:$0xff]
        %v1902 = vld [vmem:[#allocation2 + $0x90] sm:$0xff]
        %v1903 = vld [vmem:[#allocation2 + $0x98] sm:$0xff]
        %v1904 = vld [vmem:[#allocation2 + $0xa8] sm:$0xff]
        %v1905 = vld [vmem:[#allocation2 + $0xb0] sm:$0xff]
        %v1906 = vld [vmem:[#allocation2 + $0xc0] sm:$0xff]
        %v1907 = vld [vmem:[#allocation2 + $0xc8] sm:$0xff]
        %v1908 = vld [vmem:[#allocation2 + $0xd8] sm:$0xff]
        %v1909 = vld [vmem:[#allocation2 + $0xe0] sm:$0xff]
        %v1910 = vld [vmem:[#allocation2 + $0xf0] sm:$0xff]
        %v1911 = vld [vmem:[#allocation2 + $0xf8] sm:$0xff]
        %v1912 = vld [vmem:[#allocation2 + $0x108] sm:$0xff]
        %v1913 = vld [vmem:[#allocation2 + $0x110] sm:$0xff]
        %v1914 = vld [vmem:[#allocation2 + $0x120] sm:$0xff]
        %v1915 = vld [vmem:[#allocation2 + $0x128] sm:$0xff]
        %v1916 = vld [vmem:[#allocation2 + $0x138] sm:$0xff]
        %v1917 = vld [vmem:[#allocation2 + $0x140] sm:$0xff]
        %v1918 = vld [vmem:[#allocation2 + $0x150] sm:$0xff]
        %v1919 = vld [vmem:[#allocation2 + $0x158] sm:$0xff]
        %v1920 = vld [vmem:[#allocation2 + $0x168] sm:$0xff]
        %v1921 = vld [vmem:[#allocation2 + $0x170] sm:$0xff]
        %v1922 = vld [vmem:[#allocation2 + $0x1b0] sm:$0xff]
        %v1923 = vld [vmem:[#allocation2 + $0x1b8] sm:$0xff]
        %v1924 = vld [vmem:[#allocation2 + $0x1c8] sm:$0xff]
        %v1925 = vld [vmem:[#allocation2 + $0x1d0] sm:$0xff]
        %v1926 = vld [vmem:[#allocation2 + $0x1e0] sm:$0xff]
        %v1927 = vld [vmem:[#allocation2 + $0x1e8] sm:$0xff]
        %v1928 = vld [vmem:[#allocation2 + $0x1f8] sm:$0xff]
        %v1929 = vld [vmem:[#allocation2 + $0x200] sm:$0xff]
        %v1930 = vld [vmem:[#allocation2 + $0x210] sm:$0xff]
        %v1931 = vld [vmem:[#allocation2 + $0x218] sm:$0xff]
        %v1932 = vld [vmem:[#allocation2 + $0x228] sm:$0xff]
        %v1933 = vld [vmem:[#allocation2 + $0x230] sm:$0xff]
        %v1934 = vld [vmem:[#allocation2 + $0x240] sm:$0xff]
        %v1935 = vld [vmem:[#allocation2 + $0x248] sm:$0xff]
        %v1936 = vld [vmem:[#allocation2 + $0x258] sm:$0xff]
        %v1937 = vld [vmem:[#allocation2 + $0x260] sm:$0xff]
        %v1938 = vld [vmem:[#allocation2 + $0x270] sm:$0xff]
        %v1939 = vld [vmem:[#allocation2 + $0x278] sm:$0xff]
        %v1940 = vld [vmem:[#allocation2 + $0x288] sm:$0xff]
        %v1941 = vld [vmem:[#allocation2 + $0x290] sm:$0xff]
        %v1942 = vld [vmem:[#allocation2 + $0x2a0] sm:$0xff]
        %v1943 = vld [vmem:[#allocation2 + $0x2a8] sm:$0xff]
        %v1944 = vld [vmem:[#allocation2 + $0x2b8] sm:$0xff]
        %v1945 = vld [vmem:[#allocation2 + $0x2c0] sm:$0xff]
        %v1946 = vld [vmem:[#allocation2 + $0x2d0] sm:$0xff]
        %v1947 = vld [vmem:[#allocation2 + $0x2d8] sm:$0xff]
        %v1948 = vld [vmem:[#allocation2 + $0x2e8] sm:$0xff]
        %v1949 = vld [vmem:[#allocation2 + $0x2f0] sm:$0xff]
        %v1950 = vld [vmem:[#allocation2 + $0x300] sm:$0xff]
        %v1951 = vld [vmem:[#allocation2 + $0x308] sm:$0xff]
        %v1952 = vld [vmem:[#allocation2 + $0x318] sm:$0xff]
        %v1953 = vld [vmem:[#allocation2 + $0x320] sm:$0xff]
        %v1954 = vld [vmem:[#allocation2 + $0x360] sm:$0xff]
        %v1955 = vld [vmem:[#allocation2 + $0x368] sm:$0xff]
        %v1956 = vld [vmem:[#allocation2 + $0x378] sm:$0xff]
        %v1957 = vld [vmem:[#allocation2 + $0x380] sm:$0xff]
        %v1958 = vld [vmem:[#allocation2 + $0x390] sm:$0xff]
        %v1959 = vld [vmem:[#allocation2 + $0x398] sm:$0xff]
        %v1960 = vld [vmem:[#allocation2 + $0x3a8] sm:$0xff]
        %v1961 = vld [vmem:[#allocation2 + $0x3b0] sm:$0xff]
        %v1962 = vld [vmem:[#allocation2 + $0x3c0] sm:$0xff]
        %v1963 = vld [vmem:[#allocation2 + $0x3c8] sm:$0xff]
        %v1964 = vld [vmem:[#allocation2 + $0x3d8] sm:$0xff]
        %v1965 = vld [vmem:[#allocation2 + $0x3e0] sm:$0xff]
        %v1966 = vld [vmem:[#allocation2 + $0x3f0] sm:$0xff]
        %v1967 = vld [vmem:[#allocation2 + $0x3f8] sm:$0xff]
        %v1968 = vld [vmem:[#allocation2 + $0x408] sm:$0xff]
        %v1969 = vld [vmem:[#allocation2 + $0x410] sm:$0xff]
        %v1970 = vld [vmem:[#allocation2 + $0x420] sm:$0xff]
        %v1971 = vld [vmem:[#allocation2 + $0x428] sm:$0xff]
        %v1972 = vld [vmem:[#allocation2 + $0x438] sm:$0xff]
        %v1973 = vld [vmem:[#allocation2 + $0x440] sm:$0xff]
        %v1974 = vld [vmem:[#allocation2 + $0x450] sm:$0xff]
        %v1975 = vld [vmem:[#allocation2 + $0x458] sm:$0xff]
        %v1976 = vld [vmem:[#allocation2 + $0x468] sm:$0xff]
        %v1977 = vld [vmem:[#allocation2 + $0x470] sm:$0xff]
        %v1978 = vld [vmem:[#allocation2 + $0x480] sm:$0xff]
        %v1979 = vld [vmem:[#allocation2 + $0x488] sm:$0xff]
        %v1980 = vld [vmem:[#allocation2 + $0x498] sm:$0xff]
        %v1981 = vld [vmem:[#allocation2 + $0x4a0] sm:$0xff]
        %v1982 = vld [vmem:[#allocation2 + $0x4b0] sm:$0xff]
        %v1983 = vld [vmem:[#allocation2 + $0x4b8] sm:$0xff]
        %v1984 = vld [vmem:[#allocation2 + $0x4c8] sm:$0xff]
        %v1985 = vld [vmem:[#allocation2 + $0x4d0] sm:$0xff]
        %v1986 = vld [vmem:[#allocation2 + $0x510] sm:$0xff]
        %v1987 = vld [vmem:[#allocation2 + $0x518] sm:$0xff]
        %v1988 = vld [vmem:[#allocation2 + $0x528] sm:$0xff]
        %v1989 = vld [vmem:[#allocation2 + $0x530] sm:$0xff]
        %v1990 = vld [vmem:[#allocation2 + $0x540] sm:$0xff]
        %v1991 = vld [vmem:[#allocation2 + $0x548] sm:$0xff]
        %v1992 = vld [vmem:[#allocation2 + $0x558] sm:$0xff]
        %v1993 = vld [vmem:[#allocation2 + $0x560] sm:$0xff]
        %v1994 = vld [vmem:[#allocation2 + $0x570] sm:$0xff]
        %v1995 = vld [vmem:[#allocation2 + $0x578] sm:$0xff]
        %v1996 = vld [vmem:[#allocation2 + $0x588] sm:$0xff]
        %v1997 = vld [vmem:[#allocation2 + $0x590] sm:$0xff]
        %v1998 = vld [vmem:[#allocation2 + $0x5a0] sm:$0xff]
        %v1999 = vld [vmem:[#allocation2 + $0x5a8] sm:$0xff]
        %v2000 = vld [vmem:[#allocation2 + $0x5b8] sm:$0xff]
        %v2001 = vld [vmem:[#allocation2 + $0x5c0] sm:$0xff]
        %v2002 = vld [vmem:[#allocation2 + $0x5d0] sm:$0xff]
        %v2003 = vld [vmem:[#allocation2 + $0x5d8] sm:$0xff]
        %v2004 = vld [vmem:[#allocation2 + $0x5e8] sm:$0xff]
        %v2005 = vld [vmem:[#allocation2 + $0x5f0] sm:$0xff]
        %v2006 = vld [vmem:[#allocation2 + $0x600] sm:$0xff]
        %v2007 = vld [vmem:[#allocation2 + $0x608] sm:$0xff]
        %v2008 = vld [vmem:[#allocation2 + $0x618] sm:$0xff]
        %v2009 = vld [vmem:[#allocation2 + $0x620] sm:$0xff]
        %v2010 = vld [vmem:[#allocation2 + $0x630] sm:$0xff]
        %v2011 = vld [vmem:[#allocation2 + $0x638] sm:$0xff]
        %v2012 = vld [vmem:[#allocation2 + $0x648] sm:$0xff]
        %v2013 = vld [vmem:[#allocation2 + $0x650] sm:$0xff]
        %v2014 = vld [vmem:[#allocation2 + $0x660] sm:$0xff]
        %v2015 = vld [vmem:[#allocation2 + $0x668] sm:$0xff]
        %v2016 = vld [vmem:[#allocation2 + $0x678] sm:$0xff]
        %v2017 = vld [vmem:[#allocation2 + $0x680] sm:$0xff]
        %v2018 = vld [vmem:[#allocation2 + $0x1] sm:$0xff]
        %v2019 = vld [vmem:[#allocation2 + $0x9] sm:$0xff]
        %v2020 = vld [vmem:[#allocation2 + $0x19] sm:$0xff]
        %v2021 = vld [vmem:[#allocation2 + $0x21] sm:$0xff]
        %v2022 = vld [vmem:[#allocation2 + $0x31] sm:$0xff]
        %v2023 = vld [vmem:[#allocation2 + $0x39] sm:$0xff]
        %v2024 = vld [vmem:[#allocation2 + $0x49] sm:$0xff]
        %v2025 = vld [vmem:[#allocation2 + $0x51] sm:$0xff]
        %v2026 = vld [vmem:[#allocation2 + $0x61] sm:$0xff]
        %v2027 = vld [vmem:[#allocation2 + $0x69] sm:$0xff]
        %v2028 = vld [vmem:[#allocation2 + $0x79] sm:$0xff]
        %v2029 = vld [vmem:[#allocation2 + $0x81] sm:$0xff]
        %v2030 = vld [vmem:[#allocation2 + $0x91] sm:$0xff]
        %v2031 = vld [vmem:[#allocation2 + $0x99] sm:$0xff]
        %v2032 = vld [vmem:[#allocation2 + $0xa9] sm:$0xff]
        %v2033 = vld [vmem:[#allocation2 + $0xb1] sm:$0xff]
        %v2034 = vld [vmem:[#allocation2 + $0xc1] sm:$0xff]
        %v2035 = vld [vmem:[#allocation2 + $0xc9] sm:$0xff]
        %v2036 = vld [vmem:[#allocation2 + $0xd9] sm:$0xff]
        %v2037 = vld [vmem:[#allocation2 + $0xe1] sm:$0xff]
        %v2038 = vld [vmem:[#allocation2 + $0xf1] sm:$0xff]
        %v2039 = vld [vmem:[#allocation2 + $0xf9] sm:$0xff]
        %v2040 = vld [vmem:[#allocation2 + $0x109] sm:$0xff]
        %v2041 = vld [vmem:[#allocation2 + $0x111] sm:$0xff]
        %v2042 = vld [vmem:[#allocation2 + $0x121] sm:$0xff]
        %v2043 = vld [vmem:[#allocation2 + $0x129] sm:$0xff]
        %v2044 = vld [vmem:[#allocation2 + $0x139] sm:$0xff]
        %v2045 = vld [vmem:[#allocation2 + $0x141] sm:$0xff]
        %v2046 = vld [vmem:[#allocation2 + $0x151] sm:$0xff]
        %v2047 = vld [vmem:[#allocation2 + $0x159] sm:$0xff]
        %v2048 = vld [vmem:[#allocation2 + $0x169] sm:$0xff]
        %v2049 = vld [vmem:[#allocation2 + $0x171] sm:$0xff]
        %v2050 = vld [vmem:[#allocation2 + $0x1b1] sm:$0xff]
        %v2051 = vld [vmem:[#allocation2 + $0x1b9] sm:$0xff]
        %v2052 = vld [vmem:[#allocation2 + $0x1c9] sm:$0xff]
        %v2053 = vld [vmem:[#allocation2 + $0x1d1] sm:$0xff]
        %v2054 = vld [vmem:[#allocation2 + $0x1e1] sm:$0xff]
        %v2055 = vld [vmem:[#allocation2 + $0x1e9] sm:$0xff]
        %v2056 = vld [vmem:[#allocation2 + $0x1f9] sm:$0xff]
        %v2057 = vld [vmem:[#allocation2 + $0x201] sm:$0xff]
        %v2058 = vld [vmem:[#allocation2 + $0x211] sm:$0xff]
        %v2059 = vld [vmem:[#allocation2 + $0x219] sm:$0xff]
        %v2060 = vld [vmem:[#allocation2 + $0x229] sm:$0xff]
        %v2061 = vld [vmem:[#allocation2 + $0x231] sm:$0xff]
        %v2062 = vld [vmem:[#allocation2 + $0x241] sm:$0xff]
        %v2063 = vld [vmem:[#allocation2 + $0x249] sm:$0xff]
        %v2064 = vld [vmem:[#allocation2 + $0x259] sm:$0xff]
        %v2065 = vld [vmem:[#allocation2 + $0x261] sm:$0xff]
        %v2066 = vld [vmem:[#allocation2 + $0x271] sm:$0xff]
        %v2067 = vld [vmem:[#allocation2 + $0x279] sm:$0xff]
        %v2068 = vld [vmem:[#allocation2 + $0x289] sm:$0xff]
        %v2069 = vld [vmem:[#allocation2 + $0x291] sm:$0xff]
        %v2070 = vld [vmem:[#allocation2 + $0x2a1] sm:$0xff]
        %v2071 = vld [vmem:[#allocation2 + $0x2a9] sm:$0xff]
        %v2072 = vld [vmem:[#allocation2 + $0x2b9] sm:$0xff]
        %v2073 = vld [vmem:[#allocation2 + $0x2c1] sm:$0xff]
        %v2074 = vld [vmem:[#allocation2 + $0x2d1] sm:$0xff]
        %v2075 = vld [vmem:[#allocation2 + $0x2d9] sm:$0xff]
        %v2076 = vld [vmem:[#allocation2 + $0x2e9] sm:$0xff]
        %v2077 = vld [vmem:[#allocation2 + $0x2f1] sm:$0xff]
        %v2078 = vld [vmem:[#allocation2 + $0x301] sm:$0xff]
        %v2079 = vld [vmem:[#allocation2 + $0x309] sm:$0xff]
        %v2080 = vld [vmem:[#allocation2 + $0x319] sm:$0xff]
        %v2081 = vld [vmem:[#allocation2 + $0x321] sm:$0xff]
        %v2082 = vld [vmem:[#allocation2 + $0x361] sm:$0xff]
        %v2083 = vld [vmem:[#allocation2 + $0x369] sm:$0xff]
        %v2084 = vld [vmem:[#allocation2 + $0x379] sm:$0xff]
        %v2085 = vld [vmem:[#allocation2 + $0x381] sm:$0xff]
        %v2086 = vld [vmem:[#allocation2 + $0x391] sm:$0xff]
        %v2087 = vld [vmem:[#allocation2 + $0x399] sm:$0xff]
        %v2088 = vld [vmem:[#allocation2 + $0x3a9] sm:$0xff]
        %v2089 = vld [vmem:[#allocation2 + $0x3b1] sm:$0xff]
        %v2090 = vld [vmem:[#allocation2 + $0x3c1] sm:$0xff]
        %v2091 = vld [vmem:[#allocation2 + $0x3c9] sm:$0xff]
        %v2092 = vld [vmem:[#allocation2 + $0x3d9] sm:$0xff]
        %v2093 = vld [vmem:[#allocation2 + $0x3e1] sm:$0xff]
        %v2094 = vld [vmem:[#allocation2 + $0x3f1] sm:$0xff]
        %v2095 = vld [vmem:[#allocation2 + $0x3f9] sm:$0xff]
        %v2096 = vld [vmem:[#allocation2 + $0x409] sm:$0xff]
        %v2097 = vld [vmem:[#allocation2 + $0x411] sm:$0xff]
        %v2098 = vld [vmem:[#allocation2 + $0x421] sm:$0xff]
        %v2099 = vld [vmem:[#allocation2 + $0x429] sm:$0xff]
        %v2100 = vld [vmem:[#allocation2 + $0x439] sm:$0xff]
        %v2101 = vld [vmem:[#allocation2 + $0x441] sm:$0xff]
        %v2102 = vld [vmem:[#allocation2 + $0x451] sm:$0xff]
        %v2103 = vld [vmem:[#allocation2 + $0x459] sm:$0xff]
        %v2104 = vld [vmem:[#allocation2 + $0x469] sm:$0xff]
        %v2105 = vld [vmem:[#allocation2 + $0x471] sm:$0xff]
        %v2106 = vld [vmem:[#allocation2 + $0x481] sm:$0xff]
        %v2107 = vld [vmem:[#allocation2 + $0x489] sm:$0xff]
        %v2108 = vld [vmem:[#allocation2 + $0x499] sm:$0xff]
        %v2109 = vld [vmem:[#allocation2 + $0x4a1] sm:$0xff]
        %v2110 = vld [vmem:[#allocation2 + $0x4b1] sm:$0xff]
        %v2111 = vld [vmem:[#allocation2 + $0x4b9] sm:$0xff]
        %v2112 = vld [vmem:[#allocation2 + $0x4c9] sm:$0xff]
        %v2113 = vld [vmem:[#allocation2 + $0x4d1] sm:$0xff]
        %v2114 = vld [vmem:[#allocation2 + $0x511] sm:$0xff]
        %v2115 = vld [vmem:[#allocation2 + $0x519] sm:$0xff]
        %v2116 = vld [vmem:[#allocation2 + $0x529] sm:$0xff]
        %v2117 = vld [vmem:[#allocation2 + $0x531] sm:$0xff]
        %v2118 = vld [vmem:[#allocation2 + $0x541] sm:$0xff]
        %v2119 = vld [vmem:[#allocation2 + $0x549] sm:$0xff]
        %v2120 = vld [vmem:[#allocation2 + $0x559] sm:$0xff]
        %v2121 = vld [vmem:[#allocation2 + $0x561] sm:$0xff]
        %v2122 = vld [vmem:[#allocation2 + $0x571] sm:$0xff]
        %v2123 = vld [vmem:[#allocation2 + $0x579] sm:$0xff]
        %v2124 = vld [vmem:[#allocation2 + $0x589] sm:$0xff]
        %v2125 = vld [vmem:[#allocation2 + $0x591] sm:$0xff]
        %v2126 = vld [vmem:[#allocation2 + $0x5a1] sm:$0xff]
        %v2127 = vld [vmem:[#allocation2 + $0x5a9] sm:$0xff]
        %v2128 = vld [vmem:[#allocation2 + $0x5b9] sm:$0xff]
        %v2129 = vld [vmem:[#allocation2 + $0x5c1] sm:$0xff]
        %v2130 = vld [vmem:[#allocation2 + $0x5d1] sm:$0xff]
        %v2131 = vld [vmem:[#allocation2 + $0x5d9] sm:$0xff]
        %v2132 = vld [vmem:[#allocation2 + $0x5e9] sm:$0xff]
        %v2133 = vld [vmem:[#allocation2 + $0x5f1] sm:$0xff]
        %v2134 = vld [vmem:[#allocation2 + $0x601] sm:$0xff]
        %v2135 = vld [vmem:[#allocation2 + $0x609] sm:$0xff]
        %v2136 = vld [vmem:[#allocation2 + $0x619] sm:$0xff]
        %v2137 = vld [vmem:[#allocation2 + $0x621] sm:$0xff]
        %v2138 = vld [vmem:[#allocation2 + $0x631] sm:$0xff]
        %v2139 = vld [vmem:[#allocation2 + $0x639] sm:$0xff]
        %v2140 = vld [vmem:[#allocation2 + $0x649] sm:$0xff]
        %v2141 = vld [vmem:[#allocation2 + $0x651] sm:$0xff]
        %v2142 = vld [vmem:[#allocation2 + $0x661] sm:$0xff]
        %v2143 = vld [vmem:[#allocation2 + $0x669] sm:$0xff]
        %v2144 = vld [vmem:[#allocation2 + $0x679] sm:$0xff]
        %v2145 = vld [vmem:[#allocation2 + $0x681] sm:$0xff]
        %v2146 = vld [vmem:[#allocation2 + $0x2] sm:$0xff]
        %v2147 = vld [vmem:[#allocation2 + $0xa] sm:$0xff]
        %v2148 = vld [vmem:[#allocation2 + $0x1a] sm:$0xff]
        %v2149 = vld [vmem:[#allocation2 + $0x22] sm:$0xff]
        %v2150 = vld [vmem:[#allocation2 + $0x32] sm:$0xff]
        %v2151 = vld [vmem:[#allocation2 + $0x3a] sm:$0xff]
        %v2152 = vld [vmem:[#allocation2 + $0x4a] sm:$0xff]
        %v2153 = vld [vmem:[#allocation2 + $0x52] sm:$0xff]
        %v2154 = vld [vmem:[#allocation2 + $0x62] sm:$0xff]
        %v2155 = vld [vmem:[#allocation2 + $0x6a] sm:$0xff]
        %v2156 = vld [vmem:[#allocation2 + $0x7a] sm:$0xff]
        %v2157 = vld [vmem:[#allocation2 + $0x82] sm:$0xff]
        %v2158 = vld [vmem:[#allocation2 + $0x92] sm:$0xff]
        %v2159 = vld [vmem:[#allocation2 + $0x9a] sm:$0xff]
        %v2160 = vld [vmem:[#allocation2 + $0xaa] sm:$0xff]
        %v2161 = vld [vmem:[#allocation2 + $0xb2] sm:$0xff]
        %v2162 = vld [vmem:[#allocation2 + $0xc2] sm:$0xff]
        %v2163 = vld [vmem:[#allocation2 + $0xca] sm:$0xff]
        %v2164 = vld [vmem:[#allocation2 + $0xda] sm:$0xff]
        %v2165 = vld [vmem:[#allocation2 + $0xe2] sm:$0xff]
        %v2166 = vld [vmem:[#allocation2 + $0xf2] sm:$0xff]
        %v2167 = vld [vmem:[#allocation2 + $0xfa] sm:$0xff]
        %v2168 = vld [vmem:[#allocation2 + $0x10a] sm:$0xff]
        %v2169 = vld [vmem:[#allocation2 + $0x112] sm:$0xff]
        %v2170 = vld [vmem:[#allocation2 + $0x122] sm:$0xff]
        %v2171 = vld [vmem:[#allocation2 + $0x12a] sm:$0xff]
        %v2172 = vld [vmem:[#allocation2 + $0x13a] sm:$0xff]
        %v2173 = vld [vmem:[#allocation2 + $0x142] sm:$0xff]
        %v2174 = vld [vmem:[#allocation2 + $0x152] sm:$0xff]
        %v2175 = vld [vmem:[#allocation2 + $0x15a] sm:$0xff]
        %v2176 = vld [vmem:[#allocation2 + $0x16a] sm:$0xff]
        %v2177 = vld [vmem:[#allocation2 + $0x172] sm:$0xff]
        %v2178 = vld [vmem:[#allocation2 + $0x1b2] sm:$0xff]
        %v2179 = vld [vmem:[#allocation2 + $0x1ba] sm:$0xff]
        %v2180 = vld [vmem:[#allocation2 + $0x1ca] sm:$0xff]
        %v2181 = vld [vmem:[#allocation2 + $0x1d2] sm:$0xff]
        %v2182 = vld [vmem:[#allocation2 + $0x1e2] sm:$0xff]
        %v2183 = vld [vmem:[#allocation2 + $0x1ea] sm:$0xff]
        %v2184 = vld [vmem:[#allocation2 + $0x1fa] sm:$0xff]
        %v2185 = vld [vmem:[#allocation2 + $0x202] sm:$0xff]
        %v2186 = vld [vmem:[#allocation2 + $0x212] sm:$0xff]
        %v2187 = vld [vmem:[#allocation2 + $0x21a] sm:$0xff]
        %v2188 = vld [vmem:[#allocation2 + $0x22a] sm:$0xff]
        %v2189 = vld [vmem:[#allocation2 + $0x232] sm:$0xff]
        %v2190 = vld [vmem:[#allocation2 + $0x242] sm:$0xff]
        %v2191 = vld [vmem:[#allocation2 + $0x24a] sm:$0xff]
        %v2192 = vld [vmem:[#allocation2 + $0x25a] sm:$0xff]
        %v2193 = vld [vmem:[#allocation2 + $0x262] sm:$0xff]
        %v2194 = vld [vmem:[#allocation2 + $0x272] sm:$0xff]
        %v2195 = vld [vmem:[#allocation2 + $0x27a] sm:$0xff]
        %v2196 = vld [vmem:[#allocation2 + $0x28a] sm:$0xff]
        %v2197 = vld [vmem:[#allocation2 + $0x292] sm:$0xff]
        %v2198 = vld [vmem:[#allocation2 + $0x2a2] sm:$0xff]
        %v2199 = vld [vmem:[#allocation2 + $0x2aa] sm:$0xff]
        %v2200 = vld [vmem:[#allocation2 + $0x2ba] sm:$0xff]
        %v2201 = vld [vmem:[#allocation2 + $0x2c2] sm:$0xff]
        %v2202 = vld [vmem:[#allocation2 + $0x2d2] sm:$0xff]
        %v2203 = vld [vmem:[#allocation2 + $0x2da] sm:$0xff]
        %v2204 = vld [vmem:[#allocation2 + $0x2ea] sm:$0xff]
        %v2205 = vld [vmem:[#allocation2 + $0x2f2] sm:$0xff]
        %v2206 = vld [vmem:[#allocation2 + $0x302] sm:$0xff]
        %v2207 = vld [vmem:[#allocation2 + $0x30a] sm:$0xff]
        %v2208 = vld [vmem:[#allocation2 + $0x31a] sm:$0xff]
        %v2209 = vld [vmem:[#allocation2 + $0x322] sm:$0xff]
        %v2210 = vld [vmem:[#allocation2 + $0x362] sm:$0xff]
        %v2211 = vld [vmem:[#allocation2 + $0x36a] sm:$0xff]
        %v2212 = vld [vmem:[#allocation2 + $0x37a] sm:$0xff]
        %v2213 = vld [vmem:[#allocation2 + $0x382] sm:$0xff]
        %v2214 = vld [vmem:[#allocation2 + $0x392] sm:$0xff]
        %v2215 = vld [vmem:[#allocation2 + $0x39a] sm:$0xff]
        %v2216 = vld [vmem:[#allocation2 + $0x3aa] sm:$0xff]
        %v2217 = vld [vmem:[#allocation2 + $0x3b2] sm:$0xff]
        %v2218 = vld [vmem:[#allocation2 + $0x3c2] sm:$0xff]
        %v2219 = vld [vmem:[#allocation2 + $0x3ca] sm:$0xff]
        %v2220 = vld [vmem:[#allocation2 + $0x3da] sm:$0xff]
        %v2221 = vld [vmem:[#allocation2 + $0x3e2] sm:$0xff]
        %v2222 = vld [vmem:[#allocation2 + $0x3f2] sm:$0xff]
        %v2223 = vld [vmem:[#allocation2 + $0x3fa] sm:$0xff]
        %v2224 = vld [vmem:[#allocation2 + $0x40a] sm:$0xff]
        %v2225 = vld [vmem:[#allocation2 + $0x412] sm:$0xff]
        %v2226 = vld [vmem:[#allocation2 + $0x422] sm:$0xff]
        %v2227 = vld [vmem:[#allocation2 + $0x42a] sm:$0xff]
        %v2228 = vld [vmem:[#allocation2 + $0x43a] sm:$0xff]
        %v2229 = vld [vmem:[#allocation2 + $0x442] sm:$0xff]
        %v2230 = vld [vmem:[#allocation2 + $0x452] sm:$0xff]
        %v2231 = vld [vmem:[#allocation2 + $0x45a] sm:$0xff]
        %v2232 = vld [vmem:[#allocation2 + $0x46a] sm:$0xff]
        %v2233 = vld [vmem:[#allocation2 + $0x472] sm:$0xff]
        %v2234 = vld [vmem:[#allocation2 + $0x482] sm:$0xff]
        %v2235 = vld [vmem:[#allocation2 + $0x48a] sm:$0xff]
        %v2236 = vld [vmem:[#allocation2 + $0x49a] sm:$0xff]
        %v2237 = vld [vmem:[#allocation2 + $0x4a2] sm:$0xff]
        %v2238 = vld [vmem:[#allocation2 + $0x4b2] sm:$0xff]
        %v2239 = vld [vmem:[#allocation2 + $0x4ba] sm:$0xff]
        %v2240 = vld [vmem:[#allocation2 + $0x4ca] sm:$0xff]
        %v2241 = vld [vmem:[#allocation2 + $0x4d2] sm:$0xff]
        %v2242 = vld [vmem:[#allocation2 + $0x512] sm:$0xff]
        %v2243 = vld [vmem:[#allocation2 + $0x51a] sm:$0xff]
        %v2244 = vld [vmem:[#allocation2 + $0x52a] sm:$0xff]
        %v2245 = vld [vmem:[#allocation2 + $0x532] sm:$0xff]
        %v2246 = vld [vmem:[#allocation2 + $0x542] sm:$0xff]
        %v2247 = vld [vmem:[#allocation2 + $0x54a] sm:$0xff]
        %v2248 = vld [vmem:[#allocation2 + $0x55a] sm:$0xff]
        %v2249 = vld [vmem:[#allocation2 + $0x562] sm:$0xff]
        %v2250 = vld [vmem:[#allocation2 + $0x572] sm:$0xff]
        %v2251 = vld [vmem:[#allocation2 + $0x57a] sm:$0xff]
        %v2252 = vld [vmem:[#allocation2 + $0x58a] sm:$0xff]
        %v2253 = vld [vmem:[#allocation2 + $0x592] sm:$0xff]
        %v2254 = vld [vmem:[#allocation2 + $0x5a2] sm:$0xff]
        %v2255 = vld [vmem:[#allocation2 + $0x5aa] sm:$0xff]
        %v2256 = vld [vmem:[#allocation2 + $0x5ba] sm:$0xff]
        %v2257 = vld [vmem:[#allocation2 + $0x5c2] sm:$0xff]
        %v2258 = vld [vmem:[#allocation2 + $0x5d2] sm:$0xff]
        %v2259 = vld [vmem:[#allocation2 + $0x5da] sm:$0xff]
        %v2260 = vld [vmem:[#allocation2 + $0x5ea] sm:$0xff]
        %v2261 = vld [vmem:[#allocation2 + $0x5f2] sm:$0xff]
        %v2262 = vld [vmem:[#allocation2 + $0x602] sm:$0xff]
        %v2263 = vld [vmem:[#allocation2 + $0x60a] sm:$0xff]
        %v2264 = vld [vmem:[#allocation2 + $0x61a] sm:$0xff]
        %v2265 = vld [vmem:[#allocation2 + $0x622] sm:$0xff]
        %v2266 = vld [vmem:[#allocation2 + $0x632] sm:$0xff]
        %v2267 = vld [vmem:[#allocation2 + $0x63a] sm:$0xff]
        %v2268 = vld [vmem:[#allocation2 + $0x64a] sm:$0xff]
        %v2269 = vld [vmem:[#allocation2 + $0x652] sm:$0xff]
        %v2270 = vld [vmem:[#allocation2 + $0x662] sm:$0xff]
        %v2271 = vld [vmem:[#allocation2 + $0x66a] sm:$0xff]
        %v2272 = vld [vmem:[#allocation2 + $0x67a] sm:$0xff]
        %v2273 = vld [vmem:[#allocation2 + $0x682] sm:$0xff]
        %v2274 = vld [vmem:[%s1761] sm:$0xff]
        %v2275 = vld [vmem:[%s1761 + $0x8] sm:$0xff]
        %v2276 = vld [vmem:[%s1761 + $0x18] sm:$0xff]
        %v2277 = vld [vmem:[%s1761 + $0x20] sm:$0xff]
        %v2278 = vld [vmem:[%s1761 + $0x30] sm:$0xff]
        %v2279 = vld [vmem:[%s1761 + $0x38] sm:$0xff]
        %v2280 = vld [vmem:[%s1761 + $0x48] sm:$0xff]
        %v2281 = vld [vmem:[%s1761 + $0x50] sm:$0xff]
        %v2282 = vld [vmem:[%s1761 + $0x60] sm:$0xff]
        %v2283 = vld [vmem:[%s1761 + $0x68] sm:$0xff]
        %v2284 = vld [vmem:[%s1761 + $0x78] sm:$0xff]
        %v2285 = vld [vmem:[%s1761 + $0x80] sm:$0xff]
        %v2286 = vld [vmem:[%s1761 + $0x90] sm:$0xff]
        %v2287 = vld [vmem:[%s1761 + $0x98] sm:$0xff]
        %v2288 = vld [vmem:[%s1761 + $0xa8] sm:$0xff]
        %v2289 = vld [vmem:[%s1761 + $0xb0] sm:$0xff]
        %v2290 = vld [vmem:[%s1761 + $0xc0] sm:$0xff]
        %v2291 = vld [vmem:[%s1761 + $0xc8] sm:$0xff]
        %v2292 = vld [vmem:[%s1761 + $0xd8] sm:$0xff]
        %v2293 = vld [vmem:[%s1761 + $0xe0] sm:$0xff]
        %v2294 = vld [vmem:[%s1761 + $0xf0] sm:$0xff]
        %v2295 = vld [vmem:[%s1761 + $0xf8] sm:$0xff]
        %v2296 = vld [vmem:[%s1761 + $0x108] sm:$0xff]
        %v2297 = vld [vmem:[%s1761 + $0x110] sm:$0xff]
        %v2298 = vld [vmem:[%s1761 + $0x120] sm:$0xff]
        %v2299 = vld [vmem:[%s1761 + $0x128] sm:$0xff]
        %v2300 = vld [vmem:[%s1761 + $0x138] sm:$0xff]
        %v2301 = vld [vmem:[%s1761 + $0x140] sm:$0xff]
        %v2302 = vld [vmem:[%s1761 + $0x150] sm:$0xff]
        %v2303 = vld [vmem:[%s1761 + $0x158] sm:$0xff]
        %v2304 = vld [vmem:[%s1761 + $0x168] sm:$0xff]
        %v2305 = vld [vmem:[%s1761 + $0x170] sm:$0xff]
        %v2306 = vld [vmem:[%s1761 + $0x1b0] sm:$0xff]
        %v2307 = vld [vmem:[%s1761 + $0x1b8] sm:$0xff]
        %v2308 = vld [vmem:[%s1761 + $0x1c8] sm:$0xff]
        %v2309 = vld [vmem:[%s1761 + $0x1d0] sm:$0xff]
        %v2310 = vld [vmem:[%s1761 + $0x1e0] sm:$0xff]
        %v2311 = vld [vmem:[%s1761 + $0x1e8] sm:$0xff]
        %v2312 = vld [vmem:[%s1761 + $0x1f8] sm:$0xff]
        %v2313 = vld [vmem:[%s1761 + $0x200] sm:$0xff]
        %v2314 = vld [vmem:[%s1761 + $0x210] sm:$0xff]
        %v2315 = vld [vmem:[%s1761 + $0x218] sm:$0xff]
        %v2316 = vld [vmem:[%s1761 + $0x228] sm:$0xff]
        %v2317 = vld [vmem:[%s1761 + $0x230] sm:$0xff]
        %v2318 = vld [vmem:[%s1761 + $0x240] sm:$0xff]
        %v2319 = vld [vmem:[%s1761 + $0x248] sm:$0xff]
        %v2320 = vld [vmem:[%s1761 + $0x258] sm:$0xff]
        %v2321 = vld [vmem:[%s1761 + $0x260] sm:$0xff]
        %v2322 = vld [vmem:[%s1761 + $0x270] sm:$0xff]
        %v2323 = vld [vmem:[%s1761 + $0x278] sm:$0xff]
        %v2324 = vld [vmem:[%s1761 + $0x288] sm:$0xff]
        %v2325 = vld [vmem:[%s1761 + $0x290] sm:$0xff]
        %v2326 = vld [vmem:[%s1761 + $0x2a0] sm:$0xff]
        %v2327 = vld [vmem:[%s1761 + $0x2a8] sm:$0xff]
        %v2328 = vld [vmem:[%s1761 + $0x2b8] sm:$0xff]
        %v2329 = vld [vmem:[%s1761 + $0x2c0] sm:$0xff]
        %v2330 = vld [vmem:[%s1761 + $0x2d0] sm:$0xff]
        %v2331 = vld [vmem:[%s1761 + $0x2d8] sm:$0xff]
        %v2332 = vld [vmem:[%s1761 + $0x2e8] sm:$0xff]
        %v2333 = vld [vmem:[%s1761 + $0x2f0] sm:$0xff]
        %v2334 = vld [vmem:[%s1761 + $0x300] sm:$0xff]
        %v2335 = vld [vmem:[%s1761 + $0x308] sm:$0xff]
        %v2336 = vld [vmem:[%s1761 + $0x318] sm:$0xff]
        %v2337 = vld [vmem:[%s1761 + $0x320] sm:$0xff]
        %v2338 = vld [vmem:[%s1761 + $0x360] sm:$0xff]
        %v2339 = vld [vmem:[%s1761 + $0x368] sm:$0xff]
        %v2340 = vld [vmem:[%s1761 + $0x378] sm:$0xff]
        %v2341 = vld [vmem:[%s1761 + $0x380] sm:$0xff]
        %v2342 = vld [vmem:[%s1761 + $0x390] sm:$0xff]
        %v2343 = vld [vmem:[%s1761 + $0x398] sm:$0xff]
        %v2344 = vld [vmem:[%s1761 + $0x3a8] sm:$0xff]
        %v2345 = vld [vmem:[%s1761 + $0x3b0] sm:$0xff]
        %v2346 = vld [vmem:[%s1761 + $0x3c0] sm:$0xff]
        %v2347 = vld [vmem:[%s1761 + $0x3c8] sm:$0xff]
        %v2348 = vld [vmem:[%s1761 + $0x3d8] sm:$0xff]
        %v2349 = vld [vmem:[%s1761 + $0x3e0] sm:$0xff]
        %v2350 = vld [vmem:[%s1761 + $0x3f0] sm:$0xff]
        %v2351 = vld [vmem:[%s1761 + $0x3f8] sm:$0xff]
        %v2352 = vld [vmem:[%s1761 + $0x408] sm:$0xff]
        %v2353 = vld [vmem:[%s1761 + $0x410] sm:$0xff]
        %v2354 = vld [vmem:[%s1761 + $0x420] sm:$0xff]
        %v2355 = vld [vmem:[%s1761 + $0x428] sm:$0xff]
        %v2356 = vld [vmem:[%s1761 + $0x438] sm:$0xff]
        %v2357 = vld [vmem:[%s1761 + $0x440] sm:$0xff]
        %v2358 = vld [vmem:[%s1761 + $0x450] sm:$0xff]
        %v2359 = vld [vmem:[%s1761 + $0x458] sm:$0xff]
        %v2360 = vld [vmem:[%s1761 + $0x468] sm:$0xff]
        %v2361 = vld [vmem:[%s1761 + $0x470] sm:$0xff]
        %v2362 = vld [vmem:[%s1761 + $0x480] sm:$0xff]
        %v2363 = vld [vmem:[%s1761 + $0x488] sm:$0xff]
        %v2364 = vld [vmem:[%s1761 + $0x498] sm:$0xff]
        %v2365 = vld [vmem:[%s1761 + $0x4a0] sm:$0xff]
        %v2366 = vld [vmem:[%s1761 + $0x4b0] sm:$0xff]
        %v2367 = vld [vmem:[%s1761 + $0x4b8] sm:$0xff]
        %v2368 = vld [vmem:[%s1761 + $0x4c8] sm:$0xff]
        %v2369 = vld [vmem:[%s1761 + $0x4d0] sm:$0xff]
        %v2370 = vld [vmem:[%s1761 + $0x510] sm:$0xff]
        %v2371 = vld [vmem:[%s1761 + $0x518] sm:$0xff]
        %v2372 = vld [vmem:[%s1761 + $0x528] sm:$0xff]
        %v2373 = vld [vmem:[%s1761 + $0x530] sm:$0xff]
        %v2374 = vld [vmem:[%s1761 + $0x540] sm:$0xff]
        %v2375 = vld [vmem:[%s1761 + $0x548] sm:$0xff]
        %v2376 = vld [vmem:[%s1761 + $0x558] sm:$0xff]
        %v2377 = vld [vmem:[%s1761 + $0x560] sm:$0xff]
        %v2378 = vld [vmem:[%s1761 + $0x570] sm:$0xff]
        %v2379 = vld [vmem:[%s1761 + $0x578] sm:$0xff]
        %v2380 = vld [vmem:[%s1761 + $0x588] sm:$0xff]
        %v2381 = vld [vmem:[%s1761 + $0x590] sm:$0xff]
        %v2382 = vld [vmem:[%s1761 + $0x5a0] sm:$0xff]
        %v2383 = vld [vmem:[%s1761 + $0x5a8] sm:$0xff]
        %v2384 = vld [vmem:[%s1761 + $0x5b8] sm:$0xff]
        %v2385 = vld [vmem:[%s1761 + $0x5c0] sm:$0xff]
        %v2386 = vld [vmem:[%s1761 + $0x5d0] sm:$0xff]
        %v2387 = vld [vmem:[%s1761 + $0x5d8] sm:$0xff]
        %v2388 = vld [vmem:[%s1761 + $0x5e8] sm:$0xff]
        %v2389 = vld [vmem:[%s1761 + $0x5f0] sm:$0xff]
        %v2390 = vld [vmem:[%s1761 + $0x600] sm:$0xff]
        %v2391 = vld [vmem:[%s1761 + $0x608] sm:$0xff]
        %v2392 = vld [vmem:[%s1761 + $0x618] sm:$0xff]
        %v2393 = vld [vmem:[%s1761 + $0x620] sm:$0xff]
        %v2394 = vld [vmem:[%s1761 + $0x630] sm:$0xff]
        %v2395 = vld [vmem:[%s1761 + $0x638] sm:$0xff]
        %v2396 = vld [vmem:[%s1761 + $0x648] sm:$0xff]
        %v2397 = vld [vmem:[%s1761 + $0x650] sm:$0xff]
        %v2398 = vld [vmem:[%s1761 + $0x660] sm:$0xff]
        %v2399 = vld [vmem:[%s1761 + $0x668] sm:$0xff]
        %v2400 = vld [vmem:[%s1761 + $0x678] sm:$0xff]
        %v2401 = vld [vmem:[%s1761 + $0x680] sm:$0xff]
        %v2402 = vld [vmem:[%s1761 + $0x1] sm:$0xff]
        %v2403 = vld [vmem:[%s1761 + $0x9] sm:$0xff]
        %v2404 = vld [vmem:[%s1761 + $0x19] sm:$0xff]
        %v2405 = vld [vmem:[%s1761 + $0x21] sm:$0xff]
        %v2406 = vld [vmem:[%s1761 + $0x31] sm:$0xff]
        %v2407 = vld [vmem:[%s1761 + $0x39] sm:$0xff]
        %v2408 = vld [vmem:[%s1761 + $0x49] sm:$0xff]
        %v2409 = vld [vmem:[%s1761 + $0x51] sm:$0xff]
        %v2410 = vld [vmem:[%s1761 + $0x61] sm:$0xff]
        %v2411 = vld [vmem:[%s1761 + $0x69] sm:$0xff]
        %v2412 = vld [vmem:[%s1761 + $0x79] sm:$0xff]
        %v2413 = vld [vmem:[%s1761 + $0x81] sm:$0xff]
        %v2414 = vld [vmem:[%s1761 + $0x91] sm:$0xff]
        %v2415 = vld [vmem:[%s1761 + $0x99] sm:$0xff]
        %v2416 = vld [vmem:[%s1761 + $0xa9] sm:$0xff]
        %v2417 = vld [vmem:[%s1761 + $0xb1] sm:$0xff]
        %v2418 = vld [vmem:[%s1761 + $0xc1] sm:$0xff]
        %v2419 = vld [vmem:[%s1761 + $0xc9] sm:$0xff]
        %v2420 = vld [vmem:[%s1761 + $0xd9] sm:$0xff]
        %v2421 = vld [vmem:[%s1761 + $0xe1] sm:$0xff]
        %v2422 = vld [vmem:[%s1761 + $0xf1] sm:$0xff]
        %v2423 = vld [vmem:[%s1761 + $0xf9] sm:$0xff]
        %v2424 = vld [vmem:[%s1761 + $0x109] sm:$0xff]
        %v2425 = vld [vmem:[%s1761 + $0x111] sm:$0xff]
        %v2426 = vld [vmem:[%s1761 + $0x121] sm:$0xff]
        %v2427 = vld [vmem:[%s1761 + $0x129] sm:$0xff]
        %v2428 = vld [vmem:[%s1761 + $0x139] sm:$0xff]
        %v2429 = vld [vmem:[%s1761 + $0x141] sm:$0xff]
        %v2430 = vld [vmem:[%s1761 + $0x151] sm:$0xff]
        %v2431 = vld [vmem:[%s1761 + $0x159] sm:$0xff]
        %v2432 = vld [vmem:[%s1761 + $0x169] sm:$0xff]
        %v2433 = vld [vmem:[%s1761 + $0x171] sm:$0xff]
        %v2434 = vld [vmem:[%s1761 + $0x1b1] sm:$0xff]
        %v2435 = vld [vmem:[%s1761 + $0x1b9] sm:$0xff]
        %v2436 = vld [vmem:[%s1761 + $0x1c9] sm:$0xff]
        %v2437 = vld [vmem:[%s1761 + $0x1d1] sm:$0xff]
        %v2438 = vld [vmem:[%s1761 + $0x1e1] sm:$0xff]
        %v2439 = vld [vmem:[%s1761 + $0x1e9] sm:$0xff]
        %v2440 = vld [vmem:[%s1761 + $0x1f9] sm:$0xff]
        %v2441 = vld [vmem:[%s1761 + $0x201] sm:$0xff]
        %v2442 = vld [vmem:[%s1761 + $0x211] sm:$0xff]
        %v2443 = vld [vmem:[%s1761 + $0x219] sm:$0xff]
        %v2444 = vld [vmem:[%s1761 + $0x229] sm:$0xff]
        %v2445 = vld [vmem:[%s1761 + $0x231] sm:$0xff]
        %v2446 = vld [vmem:[%s1761 + $0x241] sm:$0xff]
        %v2447 = vld [vmem:[%s1761 + $0x249] sm:$0xff]
        %v2448 = vld [vmem:[%s1761 + $0x259] sm:$0xff]
        %v2449 = vld [vmem:[%s1761 + $0x261] sm:$0xff]
        %v2450 = vld [vmem:[%s1761 + $0x271] sm:$0xff]
        %v2451 = vld [vmem:[%s1761 + $0x279] sm:$0xff]
        %v2452 = vld [vmem:[%s1761 + $0x289] sm:$0xff]
        %v2453 = vld [vmem:[%s1761 + $0x291] sm:$0xff]
        %v2454 = vld [vmem:[%s1761 + $0x2a1] sm:$0xff]
        %v2455 = vld [vmem:[%s1761 + $0x2a9] sm:$0xff]
        %v2456 = vld [vmem:[%s1761 + $0x2b9] sm:$0xff]
        %v2457 = vld [vmem:[%s1761 + $0x2c1] sm:$0xff]
        %v2458 = vld [vmem:[%s1761 + $0x2d1] sm:$0xff]
        %v2459 = vld [vmem:[%s1761 + $0x2d9] sm:$0xff]
        %v2460 = vld [vmem:[%s1761 + $0x2e9] sm:$0xff]
        %v2461 = vld [vmem:[%s1761 + $0x2f1] sm:$0xff]
        %v2462 = vld [vmem:[%s1761 + $0x301] sm:$0xff]
        %v2463 = vld [vmem:[%s1761 + $0x309] sm:$0xff]
        %v2464 = vld [vmem:[%s1761 + $0x319] sm:$0xff]
        %v2465 = vld [vmem:[%s1761 + $0x321] sm:$0xff]
        %v2466 = vld [vmem:[%s1761 + $0x361] sm:$0xff]
        %v2467 = vld [vmem:[%s1761 + $0x369] sm:$0xff]
        %v2468 = vld [vmem:[%s1761 + $0x379] sm:$0xff]
        %v2469 = vld [vmem:[%s1761 + $0x381] sm:$0xff]
        %v2470 = vld [vmem:[%s1761 + $0x391] sm:$0xff]
        %v2471 = vld [vmem:[%s1761 + $0x399] sm:$0xff]
        %v2472 = vld [vmem:[%s1761 + $0x3a9] sm:$0xff]
        %v2473 = vld [vmem:[%s1761 + $0x3b1] sm:$0xff]
        %v2474 = vld [vmem:[%s1761 + $0x3c1] sm:$0xff]
        %v2475 = vld [vmem:[%s1761 + $0x3c9] sm:$0xff]
        %v2476 = vld [vmem:[%s1761 + $0x3d9] sm:$0xff]
        %v2477 = vld [vmem:[%s1761 + $0x3e1] sm:$0xff]
        %v2478 = vld [vmem:[%s1761 + $0x3f1] sm:$0xff]
        %v2479 = vld [vmem:[%s1761 + $0x3f9] sm:$0xff]
        %v2480 = vld [vmem:[%s1761 + $0x409] sm:$0xff]
        %v2481 = vld [vmem:[%s1761 + $0x411] sm:$0xff]
        %v2482 = vld [vmem:[%s1761 + $0x421] sm:$0xff]
        %v2483 = vld [vmem:[%s1761 + $0x429] sm:$0xff]
        %v2484 = vld [vmem:[%s1761 + $0x439] sm:$0xff]
        %v2485 = vld [vmem:[%s1761 + $0x441] sm:$0xff]
        %v2486 = vld [vmem:[%s1761 + $0x451] sm:$0xff]
        %v2487 = vld [vmem:[%s1761 + $0x459] sm:$0xff]
        %v2488 = vld [vmem:[%s1761 + $0x469] sm:$0xff]
        %v2489 = vld [vmem:[%s1761 + $0x471] sm:$0xff]
        %v2490 = vld [vmem:[%s1761 + $0x481] sm:$0xff]
        %v2491 = vld [vmem:[%s1761 + $0x489] sm:$0xff]
        %v2492 = vld [vmem:[%s1761 + $0x499] sm:$0xff]
        %v2493 = vld [vmem:[%s1761 + $0x4a1] sm:$0xff]
        %v2494 = vld [vmem:[%s1761 + $0x4b1] sm:$0xff]
        %v2495 = vld [vmem:[%s1761 + $0x4b9] sm:$0xff]
        %v2496 = vld [vmem:[%s1761 + $0x4c9] sm:$0xff]
        %v2497 = vld [vmem:[%s1761 + $0x4d1] sm:$0xff]
        %v2498 = vld [vmem:[%s1761 + $0x511] sm:$0xff]
        %v2499 = vld [vmem:[%s1761 + $0x519] sm:$0xff]
        %v2500 = vld [vmem:[%s1761 + $0x529] sm:$0xff]
        %v2501 = vld [vmem:[%s1761 + $0x531] sm:$0xff]
        %v2502 = vld [vmem:[%s1761 + $0x541] sm:$0xff]
        %v2503 = vld [vmem:[%s1761 + $0x549] sm:$0xff]
        %v2504 = vld [vmem:[%s1761 + $0x559] sm:$0xff]
        %v2505 = vld [vmem:[%s1761 + $0x561] sm:$0xff]
        %v2506 = vld [vmem:[%s1761 + $0x571] sm:$0xff]
        %v2507 = vld [vmem:[%s1761 + $0x579] sm:$0xff]
        %v2508 = vld [vmem:[%s1761 + $0x589] sm:$0xff]
        %v2509 = vld [vmem:[%s1761 + $0x591] sm:$0xff]
        %v2510 = vld [vmem:[%s1761 + $0x5a1] sm:$0xff]
        %v2511 = vld [vmem:[%s1761 + $0x5a9] sm:$0xff]
        %v2512 = vld [vmem:[%s1761 + $0x5b9] sm:$0xff]
        %v2513 = vld [vmem:[%s1761 + $0x5c1] sm:$0xff]
        %v2514 = vld [vmem:[%s1761 + $0x5d1] sm:$0xff]
        %v2515 = vld [vmem:[%s1761 + $0x5d9] sm:$0xff]
        %v2516 = vld [vmem:[%s1761 + $0x5e9] sm:$0xff]
        %v2517 = vld [vmem:[%s1761 + $0x5f1] sm:$0xff]
        %v2518 = vld [vmem:[%s1761 + $0x601] sm:$0xff]
        %v2519 = vld [vmem:[%s1761 + $0x609] sm:$0xff]
        %v2520 = vld [vmem:[%s1761 + $0x619] sm:$0xff]
        %v2521 = vld [vmem:[%s1761 + $0x621] sm:$0xff]
        %v2522 = vld [vmem:[%s1761 + $0x631] sm:$0xff]
        %v2523 = vld [vmem:[%s1761 + $0x639] sm:$0xff]
        %v2524 = vld [vmem:[%s1761 + $0x649] sm:$0xff]
        %v2525 = vld [vmem:[%s1761 + $0x651] sm:$0xff]
        %v2526 = vld [vmem:[%s1761 + $0x661] sm:$0xff]
        %v2527 = vld [vmem:[%s1761 + $0x669] sm:$0xff]
        %v2528 = vld [vmem:[%s1761 + $0x679] sm:$0xff]
        %v2529 = vld [vmem:[%s1761 + $0x681] sm:$0xff]
        %v2530 = vld [vmem:[%s1761 + $0x2] sm:$0xff]
        %v2531 = vld [vmem:[%s1761 + $0xa] sm:$0xff]
        %v2532 = vld [vmem:[%s1761 + $0x1a] sm:$0xff]
        %v2533 = vld [vmem:[%s1761 + $0x22] sm:$0xff]
        %v2534 = vld [vmem:[%s1761 + $0x32] sm:$0xff]
        %v2535 = vld [vmem:[%s1761 + $0x3a] sm:$0xff]
        %v2536 = vld [vmem:[%s1761 + $0x4a] sm:$0xff]
        %v2537 = vld [vmem:[%s1761 + $0x52] sm:$0xff]
        %v2538 = vld [vmem:[%s1761 + $0x62] sm:$0xff]
        %v2539 = vld [vmem:[%s1761 + $0x6a] sm:$0xff]
        %v2540 = vld [vmem:[%s1761 + $0x7a] sm:$0xff]
        %v2541 = vld [vmem:[%s1761 + $0x82] sm:$0xff]
        %v2542 = vld [vmem:[%s1761 + $0x92] sm:$0xff]
        %v2543 = vld [vmem:[%s1761 + $0x9a] sm:$0xff]
        %v2544 = vld [vmem:[%s1761 + $0xaa] sm:$0xff]
        %v2545 = vld [vmem:[%s1761 + $0xb2] sm:$0xff]
        %v2546 = vld [vmem:[%s1761 + $0xc2] sm:$0xff]
        %v2547 = vld [vmem:[%s1761 + $0xca] sm:$0xff]
        %v2548 = vld [vmem:[%s1761 + $0xda] sm:$0xff]
        %v2549 = vld [vmem:[%s1761 + $0xe2] sm:$0xff]
        %v2550 = vld [vmem:[%s1761 + $0xf2] sm:$0xff]
        %v2551 = vld [vmem:[%s1761 + $0xfa] sm:$0xff]
        %v2552 = vld [vmem:[%s1761 + $0x10a] sm:$0xff]
        %v2553 = vld [vmem:[%s1761 + $0x112] sm:$0xff]
        %v2554 = vld [vmem:[%s1761 + $0x122] sm:$0xff]
        %v2555 = vld [vmem:[%s1761 + $0x12a] sm:$0xff]
        %v2556 = vld [vmem:[%s1761 + $0x13a] sm:$0xff]
        %v2557 = vld [vmem:[%s1761 + $0x142] sm:$0xff]
        %v2558 = vld [vmem:[%s1761 + $0x152] sm:$0xff]
        %v2559 = vld [vmem:[%s1761 + $0x15a] sm:$0xff]
        %v2560 = vld [vmem:[%s1761 + $0x16a] sm:$0xff]
        %v2561 = vld [vmem:[%s1761 + $0x172] sm:$0xff]
        %v2562 = vld [vmem:[%s1761 + $0x1b2] sm:$0xff]
        %v2563 = vld [vmem:[%s1761 + $0x1ba] sm:$0xff]
        %v2564 = vld [vmem:[%s1761 + $0x1ca] sm:$0xff]
        %v2565 = vld [vmem:[%s1761 + $0x1d2] sm:$0xff]
        %v2566 = vld [vmem:[%s1761 + $0x1e2] sm:$0xff]
        %v2567 = vld [vmem:[%s1761 + $0x1ea] sm:$0xff]
        %v2568 = vld [vmem:[%s1761 + $0x1fa] sm:$0xff]
        %v2569 = vld [vmem:[%s1761 + $0x202] sm:$0xff]
        %v2570 = vld [vmem:[%s1761 + $0x212] sm:$0xff]
        %v2571 = vld [vmem:[%s1761 + $0x21a] sm:$0xff]
        %v2572 = vld [vmem:[%s1761 + $0x22a] sm:$0xff]
        %v2573 = vld [vmem:[%s1761 + $0x232] sm:$0xff]
        %v2574 = vld [vmem:[%s1761 + $0x242] sm:$0xff]
        %v2575 = vld [vmem:[%s1761 + $0x24a] sm:$0xff]
        %v2576 = vld [vmem:[%s1761 + $0x25a] sm:$0xff]
        %v2577 = vld [vmem:[%s1761 + $0x262] sm:$0xff]
        %v2578 = vld [vmem:[%s1761 + $0x272] sm:$0xff]
        %v2579 = vld [vmem:[%s1761 + $0x27a] sm:$0xff]
        %v2580 = vld [vmem:[%s1761 + $0x28a] sm:$0xff]
        %v2581 = vld [vmem:[%s1761 + $0x292] sm:$0xff]
        %v2582 = vld [vmem:[%s1761 + $0x2a2] sm:$0xff]
        %v2583 = vld [vmem:[%s1761 + $0x2aa] sm:$0xff]
        %v2584 = vld [vmem:[%s1761 + $0x2ba] sm:$0xff]
        %v2585 = vld [vmem:[%s1761 + $0x2c2] sm:$0xff]
        %v2586 = vld [vmem:[%s1761 + $0x2d2] sm:$0xff]
        %v2587 = vld [vmem:[%s1761 + $0x2da] sm:$0xff]
        %v2588 = vld [vmem:[%s1761 + $0x2ea] sm:$0xff]
        %v2589 = vld [vmem:[%s1761 + $0x2f2] sm:$0xff]
        %v2590 = vld [vmem:[%s1761 + $0x302] sm:$0xff]
        %v2591 = vld [vmem:[%s1761 + $0x30a] sm:$0xff]
        %v2592 = vld [vmem:[%s1761 + $0x31a] sm:$0xff]
        %v2593 = vld [vmem:[%s1761 + $0x322] sm:$0xff]
        %v2594 = vld [vmem:[%s1761 + $0x362] sm:$0xff]
        %v2595 = vld [vmem:[%s1761 + $0x36a] sm:$0xff]
        %v2596 = vld [vmem:[%s1761 + $0x37a] sm:$0xff]
        %v2597 = vld [vmem:[%s1761 + $0x382] sm:$0xff]
        %v2598 = vld [vmem:[%s1761 + $0x392] sm:$0xff]
        %v2599 = vld [vmem:[%s1761 + $0x39a] sm:$0xff]
        %v2600 = vld [vmem:[%s1761 + $0x3aa] sm:$0xff]
        %v2601 = vld [vmem:[%s1761 + $0x3b2] sm:$0xff]
        %v2602 = vld [vmem:[%s1761 + $0x3c2] sm:$0xff]
        %v2603 = vld [vmem:[%s1761 + $0x3ca] sm:$0xff]
        %v2604 = vld [vmem:[%s1761 + $0x3da] sm:$0xff]
        %v2605 = vld [vmem:[%s1761 + $0x3e2] sm:$0xff]
        %v2606 = vld [vmem:[%s1761 + $0x3f2] sm:$0xff]
        %v2607 = vld [vmem:[%s1761 + $0x3fa] sm:$0xff]
        %v2608 = vld [vmem:[%s1761 + $0x40a] sm:$0xff]
        %v2609 = vld [vmem:[%s1761 + $0x412] sm:$0xff]
        %v2610 = vld [vmem:[%s1761 + $0x422] sm:$0xff]
        %v2611 = vld [vmem:[%s1761 + $0x42a] sm:$0xff]
        %v2612 = vld [vmem:[%s1761 + $0x43a] sm:$0xff]
        %v2613 = vld [vmem:[%s1761 + $0x442] sm:$0xff]
        %v2614 = vld [vmem:[%s1761 + $0x452] sm:$0xff]
        %v2615 = vld [vmem:[%s1761 + $0x45a] sm:$0xff]
        %v2616 = vld [vmem:[%s1761 + $0x46a] sm:$0xff]
        %v2617 = vld [vmem:[%s1761 + $0x472] sm:$0xff]
        %v2618 = vld [vmem:[%s1761 + $0x482] sm:$0xff]
        %v2619 = vld [vmem:[%s1761 + $0x48a] sm:$0xff]
        %v2620 = vld [vmem:[%s1761 + $0x49a] sm:$0xff]
        %v2621 = vld [vmem:[%s1761 + $0x4a2] sm:$0xff]
        %v2622 = vld [vmem:[%s1761 + $0x4b2] sm:$0xff]
        %v2623 = vld [vmem:[%s1761 + $0x4ba] sm:$0xff]
        %v2624 = vld [vmem:[%s1761 + $0x4ca] sm:$0xff]
        %v2625 = vld [vmem:[%s1761 + $0x4d2] sm:$0xff]
        %v2626 = vld [vmem:[%s1761 + $0x512] sm:$0xff]
        %v2627 = vld [vmem:[%s1761 + $0x51a] sm:$0xff]
        %v2628 = vld [vmem:[%s1761 + $0x52a] sm:$0xff]
        %v2629 = vld [vmem:[%s1761 + $0x532] sm:$0xff]
        %v2630 = vld [vmem:[%s1761 + $0x542] sm:$0xff]
        %v2631 = vld [vmem:[%s1761 + $0x54a] sm:$0xff]
        %v2632 = vld [vmem:[%s1761 + $0x55a] sm:$0xff]
        %v2633 = vld [vmem:[%s1761 + $0x562] sm:$0xff]
        %v2634 = vld [vmem:[%s1761 + $0x572] sm:$0xff]
        %v2635 = vld [vmem:[%s1761 + $0x57a] sm:$0xff]
        %v2636 = vld [vmem:[%s1761 + $0x58a] sm:$0xff]
        %v2637 = vld [vmem:[%s1761 + $0x592] sm:$0xff]
        %v2638 = vld [vmem:[%s1761 + $0x5a2] sm:$0xff]
        %v2639 = vld [vmem:[%s1761 + $0x5aa] sm:$0xff]
        %v2640 = vld [vmem:[%s1761 + $0x5ba] sm:$0xff]
        %v2641 = vld [vmem:[%s1761 + $0x5c2] sm:$0xff]
        %v2642 = vld [vmem:[%s1761 + $0x5d2] sm:$0xff]
        %v2643 = vld [vmem:[%s1761 + $0x5da] sm:$0xff]
        %v2644 = vld [vmem:[%s1761 + $0x5ea] sm:$0xff]
        %v2645 = vld [vmem:[%s1761 + $0x5f2] sm:$0xff]
        %v2646 = vld [vmem:[%s1761 + $0x602] sm:$0xff]
        %v2647 = vld [vmem:[%s1761 + $0x60a] sm:$0xff]
        %v2648 = vld [vmem:[%s1761 + $0x61a] sm:$0xff]
        %v2649 = vld [vmem:[%s1761 + $0x622] sm:$0xff]
        %v2650 = vld [vmem:[%s1761 + $0x632] sm:$0xff]
        %v2651 = vld [vmem:[%s1761 + $0x63a] sm:$0xff]
        %v2652 = vld [vmem:[%s1761 + $0x64a] sm:$0xff]
        %v2653 = vld [vmem:[%s1761 + $0x652] sm:$0xff]
        %v2654 = vld [vmem:[%s1761 + $0x662] sm:$0xff]
        %v2655 = vld [vmem:[%s1761 + $0x66a] sm:$0xff]
        %v2656 = vld [vmem:[%s1761 + $0x67a] sm:$0xff]
        %v2657 = vld [vmem:[%s1761 + $0x682] sm:$0xff]
        %s2658 = scalar_lea.vmem [#allocation2], 48
        %v2659 = vld [vmem:[%s2658] sm:$0xff]
        %v2660 = vld [vmem:[%s2658 + $0x8] sm:$0xff]
        %v2661 = vld [vmem:[%s2658 + $0x18] sm:$0xff]
        %v2662 = vld [vmem:[%s2658 + $0x20] sm:$0xff]
        %v2663 = vld [vmem:[%s2658 + $0x30] sm:$0xff]
        %v2664 = vld [vmem:[%s2658 + $0x38] sm:$0xff]
        %v2665 = vld [vmem:[%s2658 + $0x48] sm:$0xff]
        %v2666 = vld [vmem:[%s2658 + $0x50] sm:$0xff]
        %v2667 = vld [vmem:[%s2658 + $0x60] sm:$0xff]
        %v2668 = vld [vmem:[%s2658 + $0x68] sm:$0xff]
        %v2669 = vld [vmem:[%s2658 + $0x78] sm:$0xff]
        %v2670 = vld [vmem:[%s2658 + $0x80] sm:$0xff]
        %v2671 = vld [vmem:[%s2658 + $0x90] sm:$0xff]
        %v2672 = vld [vmem:[%s2658 + $0x98] sm:$0xff]
        %v2673 = vld [vmem:[%s2658 + $0xa8] sm:$0xff]
        %v2674 = vld [vmem:[%s2658 + $0xb0] sm:$0xff]
        %v2675 = vld [vmem:[%s2658 + $0xc0] sm:$0xff]
        %v2676 = vld [vmem:[%s2658 + $0xc8] sm:$0xff]
        %v2677 = vld [vmem:[%s2658 + $0xd8] sm:$0xff]
        %v2678 = vld [vmem:[%s2658 + $0xe0] sm:$0xff]
        %v2679 = vld [vmem:[%s2658 + $0xf0] sm:$0xff]
        %v2680 = vld [vmem:[%s2658 + $0xf8] sm:$0xff]
        %v2681 = vld [vmem:[%s2658 + $0x108] sm:$0xff]
        %v2682 = vld [vmem:[%s2658 + $0x110] sm:$0xff]
        %v2683 = vld [vmem:[%s2658 + $0x120] sm:$0xff]
        %v2684 = vld [vmem:[%s2658 + $0x128] sm:$0xff]
        %v2685 = vld [vmem:[%s2658 + $0x138] sm:$0xff]
        %v2686 = vld [vmem:[%s2658 + $0x140] sm:$0xff]
        %v2687 = vld [vmem:[%s2658 + $0x150] sm:$0xff]
        %v2688 = vld [vmem:[%s2658 + $0x158] sm:$0xff]
        %v2689 = vld [vmem:[%s2658 + $0x168] sm:$0xff]
        %v2690 = vld [vmem:[%s2658 + $0x170] sm:$0xff]
        %v2691 = vld [vmem:[%s2658 + $0x1b0] sm:$0xff]
        %v2692 = vld [vmem:[%s2658 + $0x1b8] sm:$0xff]
        %v2693 = vld [vmem:[%s2658 + $0x1c8] sm:$0xff]
        %v2694 = vld [vmem:[%s2658 + $0x1d0] sm:$0xff]
        %v2695 = vld [vmem:[%s2658 + $0x1e0] sm:$0xff]
        %v2696 = vld [vmem:[%s2658 + $0x1e8] sm:$0xff]
        %v2697 = vld [vmem:[%s2658 + $0x1f8] sm:$0xff]
        %v2698 = vld [vmem:[%s2658 + $0x200] sm:$0xff]
        %v2699 = vld [vmem:[%s2658 + $0x210] sm:$0xff]
        %v2700 = vld [vmem:[%s2658 + $0x218] sm:$0xff]
        %v2701 = vld [vmem:[%s2658 + $0x228] sm:$0xff]
        %v2702 = vld [vmem:[%s2658 + $0x230] sm:$0xff]
        %v2703 = vld [vmem:[%s2658 + $0x240] sm:$0xff]
        %v2704 = vld [vmem:[%s2658 + $0x248] sm:$0xff]
        %v2705 = vld [vmem:[%s2658 + $0x258] sm:$0xff]
        %v2706 = vld [vmem:[%s2658 + $0x260] sm:$0xff]
        %v2707 = vld [vmem:[%s2658 + $0x270] sm:$0xff]
        %v2708 = vld [vmem:[%s2658 + $0x278] sm:$0xff]
        %v2709 = vld [vmem:[%s2658 + $0x288] sm:$0xff]
        %v2710 = vld [vmem:[%s2658 + $0x290] sm:$0xff]
        %v2711 = vld [vmem:[%s2658 + $0x2a0] sm:$0xff]
        %v2712 = vld [vmem:[%s2658 + $0x2a8] sm:$0xff]
        %v2713 = vld [vmem:[%s2658 + $0x2b8] sm:$0xff]
        %v2714 = vld [vmem:[%s2658 + $0x2c0] sm:$0xff]
        %v2715 = vld [vmem:[%s2658 + $0x2d0] sm:$0xff]
        %v2716 = vld [vmem:[%s2658 + $0x2d8] sm:$0xff]
        %v2717 = vld [vmem:[%s2658 + $0x2e8] sm:$0xff]
        %v2718 = vld [vmem:[%s2658 + $0x2f0] sm:$0xff]
        %v2719 = vld [vmem:[%s2658 + $0x300] sm:$0xff]
        %v2720 = vld [vmem:[%s2658 + $0x308] sm:$0xff]
        %v2721 = vld [vmem:[%s2658 + $0x318] sm:$0xff]
        %v2722 = vld [vmem:[%s2658 + $0x320] sm:$0xff]
        %v2723 = vld [vmem:[%s2658 + $0x360] sm:$0xff]
        %v2724 = vld [vmem:[%s2658 + $0x368] sm:$0xff]
        %v2725 = vld [vmem:[%s2658 + $0x378] sm:$0xff]
        %v2726 = vld [vmem:[%s2658 + $0x380] sm:$0xff]
        %v2727 = vld [vmem:[%s2658 + $0x390] sm:$0xff]
        %v2728 = vld [vmem:[%s2658 + $0x398] sm:$0xff]
        %v2729 = vld [vmem:[%s2658 + $0x3a8] sm:$0xff]
        %v2730 = vld [vmem:[%s2658 + $0x3b0] sm:$0xff]
        %v2731 = vld [vmem:[%s2658 + $0x3c0] sm:$0xff]
        %v2732 = vld [vmem:[%s2658 + $0x3c8] sm:$0xff]
        %v2733 = vld [vmem:[%s2658 + $0x3d8] sm:$0xff]
        %v2734 = vld [vmem:[%s2658 + $0x3e0] sm:$0xff]
        %v2735 = vld [vmem:[%s2658 + $0x3f0] sm:$0xff]
        %v2736 = vld [vmem:[%s2658 + $0x3f8] sm:$0xff]
        %v2737 = vld [vmem:[%s2658 + $0x408] sm:$0xff]
        %v2738 = vld [vmem:[%s2658 + $0x410] sm:$0xff]
        %v2739 = vld [vmem:[%s2658 + $0x420] sm:$0xff]
        %v2740 = vld [vmem:[%s2658 + $0x428] sm:$0xff]
        %v2741 = vld [vmem:[%s2658 + $0x438] sm:$0xff]
        %v2742 = vld [vmem:[%s2658 + $0x440] sm:$0xff]
        %v2743 = vld [vmem:[%s2658 + $0x450] sm:$0xff]
        %v2744 = vld [vmem:[%s2658 + $0x458] sm:$0xff]
        %v2745 = vld [vmem:[%s2658 + $0x468] sm:$0xff]
        %v2746 = vld [vmem:[%s2658 + $0x470] sm:$0xff]
        %v2747 = vld [vmem:[%s2658 + $0x480] sm:$0xff]
        %v2748 = vld [vmem:[%s2658 + $0x488] sm:$0xff]
        %v2749 = vld [vmem:[%s2658 + $0x498] sm:$0xff]
        %v2750 = vld [vmem:[%s2658 + $0x4a0] sm:$0xff]
        %v2751 = vld [vmem:[%s2658 + $0x4b0] sm:$0xff]
        %v2752 = vld [vmem:[%s2658 + $0x4b8] sm:$0xff]
        %v2753 = vld [vmem:[%s2658 + $0x4c8] sm:$0xff]
        %v2754 = vld [vmem:[%s2658 + $0x4d0] sm:$0xff]
        %v2755 = vld [vmem:[%s2658 + $0x510] sm:$0xff]
        %v2756 = vld [vmem:[%s2658 + $0x518] sm:$0xff]
        %v2757 = vld [vmem:[%s2658 + $0x528] sm:$0xff]
        %v2758 = vld [vmem:[%s2658 + $0x530] sm:$0xff]
        %v2759 = vld [vmem:[%s2658 + $0x540] sm:$0xff]
        %v2760 = vld [vmem:[%s2658 + $0x548] sm:$0xff]
        %v2761 = vld [vmem:[%s2658 + $0x558] sm:$0xff]
        %v2762 = vld [vmem:[%s2658 + $0x560] sm:$0xff]
        %v2763 = vld [vmem:[%s2658 + $0x570] sm:$0xff]
        %v2764 = vld [vmem:[%s2658 + $0x578] sm:$0xff]
        %v2765 = vld [vmem:[%s2658 + $0x588] sm:$0xff]
        %v2766 = vld [vmem:[%s2658 + $0x590] sm:$0xff]
        %v2767 = vld [vmem:[%s2658 + $0x5a0] sm:$0xff]
        %v2768 = vld [vmem:[%s2658 + $0x5a8] sm:$0xff]
        %v2769 = vld [vmem:[%s2658 + $0x5b8] sm:$0xff]
        %v2770 = vld [vmem:[%s2658 + $0x5c0] sm:$0xff]
        %v2771 = vld [vmem:[%s2658 + $0x5d0] sm:$0xff]
        %v2772 = vld [vmem:[%s2658 + $0x5d8] sm:$0xff]
        %v2773 = vld [vmem:[%s2658 + $0x5e8] sm:$0xff]
        %v2774 = vld [vmem:[%s2658 + $0x5f0] sm:$0xff]
        %v2775 = vld [vmem:[%s2658 + $0x600] sm:$0xff]
        %v2776 = vld [vmem:[%s2658 + $0x608] sm:$0xff]
        %v2777 = vld [vmem:[%s2658 + $0x618] sm:$0xff]
        %v2778 = vld [vmem:[%s2658 + $0x620] sm:$0xff]
        %v2779 = vld [vmem:[%s2658 + $0x630] sm:$0xff]
        %v2780 = vld [vmem:[%s2658 + $0x638] sm:$0xff]
        %v2781 = vld [vmem:[%s2658 + $0x648] sm:$0xff]
        %v2782 = vld [vmem:[%s2658 + $0x650] sm:$0xff]
        %v2783 = vld [vmem:[%s2658 + $0x660] sm:$0xff]
        %v2784 = vld [vmem:[%s2658 + $0x668] sm:$0xff]
        %v2785 = vld [vmem:[%s2658 + $0x678] sm:$0xff]
        %v2786 = vld [vmem:[%s2658 + $0x680] sm:$0xff]
        %v2787 = vld [vmem:[%s2658 + $0x1] sm:$0xff]
        %v2788 = vld [vmem:[%s2658 + $0x9] sm:$0xff]
        %v2789 = vld [vmem:[%s2658 + $0x19] sm:$0xff]
        %v2790 = vld [vmem:[%s2658 + $0x21] sm:$0xff]
        %v2791 = vld [vmem:[%s2658 + $0x31] sm:$0xff]
        %v2792 = vld [vmem:[%s2658 + $0x39] sm:$0xff]
        %v2793 = vld [vmem:[%s2658 + $0x49] sm:$0xff]
        %v2794 = vld [vmem:[%s2658 + $0x51] sm:$0xff]
        %v2795 = vld [vmem:[%s2658 + $0x61] sm:$0xff]
        %v2796 = vld [vmem:[%s2658 + $0x69] sm:$0xff]
        %v2797 = vld [vmem:[%s2658 + $0x79] sm:$0xff]
        %v2798 = vld [vmem:[%s2658 + $0x81] sm:$0xff]
        %v2799 = vld [vmem:[%s2658 + $0x91] sm:$0xff]
        %v2800 = vld [vmem:[%s2658 + $0x99] sm:$0xff]
        %v2801 = vld [vmem:[%s2658 + $0xa9] sm:$0xff]
        %v2802 = vld [vmem:[%s2658 + $0xb1] sm:$0xff]
        %v2803 = vld [vmem:[%s2658 + $0xc1] sm:$0xff]
        %v2804 = vld [vmem:[%s2658 + $0xc9] sm:$0xff]
        %v2805 = vld [vmem:[%s2658 + $0xd9] sm:$0xff]
        %v2806 = vld [vmem:[%s2658 + $0xe1] sm:$0xff]
        %v2807 = vld [vmem:[%s2658 + $0xf1] sm:$0xff]
        %v2808 = vld [vmem:[%s2658 + $0xf9] sm:$0xff]
        %v2809 = vld [vmem:[%s2658 + $0x109] sm:$0xff]
        %v2810 = vld [vmem:[%s2658 + $0x111] sm:$0xff]
        %v2811 = vld [vmem:[%s2658 + $0x121] sm:$0xff]
        %v2812 = vld [vmem:[%s2658 + $0x129] sm:$0xff]
        %v2813 = vld [vmem:[%s2658 + $0x139] sm:$0xff]
        %v2814 = vld [vmem:[%s2658 + $0x141] sm:$0xff]
        %v2815 = vld [vmem:[%s2658 + $0x151] sm:$0xff]
        %v2816 = vld [vmem:[%s2658 + $0x159] sm:$0xff]
        %v2817 = vld [vmem:[%s2658 + $0x169] sm:$0xff]
        %v2818 = vld [vmem:[%s2658 + $0x171] sm:$0xff]
        %v2819 = vld [vmem:[%s2658 + $0x1b1] sm:$0xff]
        %v2820 = vld [vmem:[%s2658 + $0x1b9] sm:$0xff]
        %v2821 = vld [vmem:[%s2658 + $0x1c9] sm:$0xff]
        %v2822 = vld [vmem:[%s2658 + $0x1d1] sm:$0xff]
        %v2823 = vld [vmem:[%s2658 + $0x1e1] sm:$0xff]
        %v2824 = vld [vmem:[%s2658 + $0x1e9] sm:$0xff]
        %v2825 = vld [vmem:[%s2658 + $0x1f9] sm:$0xff]
        %v2826 = vld [vmem:[%s2658 + $0x201] sm:$0xff]
        %v2827 = vld [vmem:[%s2658 + $0x211] sm:$0xff]
        %v2828 = vld [vmem:[%s2658 + $0x219] sm:$0xff]
        %v2829 = vld [vmem:[%s2658 + $0x229] sm:$0xff]
        %v2830 = vld [vmem:[%s2658 + $0x231] sm:$0xff]
        %v2831 = vld [vmem:[%s2658 + $0x241] sm:$0xff]
        %v2832 = vld [vmem:[%s2658 + $0x249] sm:$0xff]
        %v2833 = vld [vmem:[%s2658 + $0x259] sm:$0xff]
        %v2834 = vld [vmem:[%s2658 + $0x261] sm:$0xff]
        %v2835 = vld [vmem:[%s2658 + $0x271] sm:$0xff]
        %v2836 = vld [vmem:[%s2658 + $0x279] sm:$0xff]
        %v2837 = vld [vmem:[%s2658 + $0x289] sm:$0xff]
        %v2838 = vld [vmem:[%s2658 + $0x291] sm:$0xff]
        %v2839 = vld [vmem:[%s2658 + $0x2a1] sm:$0xff]
        %v2840 = vld [vmem:[%s2658 + $0x2a9] sm:$0xff]
        %v2841 = vld [vmem:[%s2658 + $0x2b9] sm:$0xff]
        %v2842 = vld [vmem:[%s2658 + $0x2c1] sm:$0xff]
        %v2843 = vld [vmem:[%s2658 + $0x2d1] sm:$0xff]
        %v2844 = vld [vmem:[%s2658 + $0x2d9] sm:$0xff]
        %v2845 = vld [vmem:[%s2658 + $0x2e9] sm:$0xff]
        %v2846 = vld [vmem:[%s2658 + $0x2f1] sm:$0xff]
        %v2847 = vld [vmem:[%s2658 + $0x301] sm:$0xff]
        %v2848 = vld [vmem:[%s2658 + $0x309] sm:$0xff]
        %v2849 = vld [vmem:[%s2658 + $0x319] sm:$0xff]
        %v2850 = vld [vmem:[%s2658 + $0x321] sm:$0xff]
        %v2851 = vld [vmem:[%s2658 + $0x361] sm:$0xff]
        %v2852 = vld [vmem:[%s2658 + $0x369] sm:$0xff]
        %v2853 = vld [vmem:[%s2658 + $0x379] sm:$0xff]
        %v2854 = vld [vmem:[%s2658 + $0x381] sm:$0xff]
        %v2855 = vld [vmem:[%s2658 + $0x391] sm:$0xff]
        %v2856 = vld [vmem:[%s2658 + $0x399] sm:$0xff]
        %v2857 = vld [vmem:[%s2658 + $0x3a9] sm:$0xff]
        %v2858 = vld [vmem:[%s2658 + $0x3b1] sm:$0xff]
        %v2859 = vld [vmem:[%s2658 + $0x3c1] sm:$0xff]
        %v2860 = vld [vmem:[%s2658 + $0x3c9] sm:$0xff]
        %v2861 = vld [vmem:[%s2658 + $0x3d9] sm:$0xff]
        %v2862 = vld [vmem:[%s2658 + $0x3e1] sm:$0xff]
        %v2863 = vld [vmem:[%s2658 + $0x3f1] sm:$0xff]
        %v2864 = vld [vmem:[%s2658 + $0x3f9] sm:$0xff]
        %v2865 = vld [vmem:[%s2658 + $0x409] sm:$0xff]
        %v2866 = vld [vmem:[%s2658 + $0x411] sm:$0xff]
        %v2867 = vld [vmem:[%s2658 + $0x421] sm:$0xff]
        %v2868 = vld [vmem:[%s2658 + $0x429] sm:$0xff]
        %v2869 = vld [vmem:[%s2658 + $0x439] sm:$0xff]
        %v2870 = vld [vmem:[%s2658 + $0x441] sm:$0xff]
        %v2871 = vld [vmem:[%s2658 + $0x451] sm:$0xff]
        %v2872 = vld [vmem:[%s2658 + $0x459] sm:$0xff]
        %v2873 = vld [vmem:[%s2658 + $0x469] sm:$0xff]
        %v2874 = vld [vmem:[%s2658 + $0x471] sm:$0xff]
        %v2875 = vld [vmem:[%s2658 + $0x481] sm:$0xff]
        %v2876 = vld [vmem:[%s2658 + $0x489] sm:$0xff]
        %v2877 = vld [vmem:[%s2658 + $0x499] sm:$0xff]
        %v2878 = vld [vmem:[%s2658 + $0x4a1] sm:$0xff]
        %v2879 = vld [vmem:[%s2658 + $0x4b1] sm:$0xff]
        %v2880 = vld [vmem:[%s2658 + $0x4b9] sm:$0xff]
        %v2881 = vld [vmem:[%s2658 + $0x4c9] sm:$0xff]
        %v2882 = vld [vmem:[%s2658 + $0x4d1] sm:$0xff]
        %v2883 = vld [vmem:[%s2658 + $0x511] sm:$0xff]
        %v2884 = vld [vmem:[%s2658 + $0x519] sm:$0xff]
        %v2885 = vld [vmem:[%s2658 + $0x529] sm:$0xff]
        %v2886 = vld [vmem:[%s2658 + $0x531] sm:$0xff]
        %v2887 = vld [vmem:[%s2658 + $0x541] sm:$0xff]
        %v2888 = vld [vmem:[%s2658 + $0x549] sm:$0xff]
        %v2889 = vld [vmem:[%s2658 + $0x559] sm:$0xff]
        %v2890 = vld [vmem:[%s2658 + $0x561] sm:$0xff]
        %v2891 = vld [vmem:[%s2658 + $0x571] sm:$0xff]
        %v2892 = vld [vmem:[%s2658 + $0x579] sm:$0xff]
        %v2893 = vld [vmem:[%s2658 + $0x589] sm:$0xff]
        %v2894 = vld [vmem:[%s2658 + $0x591] sm:$0xff]
        %v2895 = vld [vmem:[%s2658 + $0x5a1] sm:$0xff]
        %v2896 = vld [vmem:[%s2658 + $0x5a9] sm:$0xff]
        %v2897 = vld [vmem:[%s2658 + $0x5b9] sm:$0xff]
        %v2898 = vld [vmem:[%s2658 + $0x5c1] sm:$0xff]
        %v2899 = vld [vmem:[%s2658 + $0x5d1] sm:$0xff]
        %v2900 = vld [vmem:[%s2658 + $0x5d9] sm:$0xff]
        %v2901 = vld [vmem:[%s2658 + $0x5e9] sm:$0xff]
        %v2902 = vld [vmem:[%s2658 + $0x5f1] sm:$0xff]
        %v2903 = vld [vmem:[%s2658 + $0x601] sm:$0xff]
        %v2904 = vld [vmem:[%s2658 + $0x609] sm:$0xff]
        %v2905 = vld [vmem:[%s2658 + $0x619] sm:$0xff]
        %v2906 = vld [vmem:[%s2658 + $0x621] sm:$0xff]
        %v2907 = vld [vmem:[%s2658 + $0x631] sm:$0xff]
        %v2908 = vld [vmem:[%s2658 + $0x639] sm:$0xff]
        %v2909 = vld [vmem:[%s2658 + $0x649] sm:$0xff]
        %v2910 = vld [vmem:[%s2658 + $0x651] sm:$0xff]
        %v2911 = vld [vmem:[%s2658 + $0x661] sm:$0xff]
        %v2912 = vld [vmem:[%s2658 + $0x669] sm:$0xff]
        %v2913 = vld [vmem:[%s2658 + $0x679] sm:$0xff]
        %v2914 = vld [vmem:[%s2658 + $0x681] sm:$0xff]
        %v2915 = vld [vmem:[%s2658 + $0x2] sm:$0xff]
        %v2916 = vld [vmem:[%s2658 + $0xa] sm:$0xff]
        %v2917 = vld [vmem:[%s2658 + $0x1a] sm:$0xff]
        %v2918 = vld [vmem:[%s2658 + $0x22] sm:$0xff]
        %v2919 = vld [vmem:[%s2658 + $0x32] sm:$0xff]
        %v2920 = vld [vmem:[%s2658 + $0x3a] sm:$0xff]
        %v2921 = vld [vmem:[%s2658 + $0x4a] sm:$0xff]
        %v2922 = vld [vmem:[%s2658 + $0x52] sm:$0xff]
        %v2923 = vld [vmem:[%s2658 + $0x62] sm:$0xff]
        %v2924 = vld [vmem:[%s2658 + $0x6a] sm:$0xff]
        %v2925 = vld [vmem:[%s2658 + $0x7a] sm:$0xff]
        %v2926 = vld [vmem:[%s2658 + $0x82] sm:$0xff]
        %v2927 = vld [vmem:[%s2658 + $0x92] sm:$0xff]
        %v2928 = vld [vmem:[%s2658 + $0x9a] sm:$0xff]
        %v2929 = vld [vmem:[%s2658 + $0xaa] sm:$0xff]
        %v2930 = vld [vmem:[%s2658 + $0xb2] sm:$0xff]
        %v2931 = vld [vmem:[%s2658 + $0xc2] sm:$0xff]
        %v2932 = vld [vmem:[%s2658 + $0xca] sm:$0xff]
        %v2933 = vld [vmem:[%s2658 + $0xda] sm:$0xff]
        %v2934 = vld [vmem:[%s2658 + $0xe2] sm:$0xff]
        %v2935 = vld [vmem:[%s2658 + $0xf2] sm:$0xff]
        %v2936 = vld [vmem:[%s2658 + $0xfa] sm:$0xff]
        %v2937 = vld [vmem:[%s2658 + $0x10a] sm:$0xff]
        %v2938 = vld [vmem:[%s2658 + $0x112] sm:$0xff]
        %v2939 = vld [vmem:[%s2658 + $0x122] sm:$0xff]
        %v2940 = vld [vmem:[%s2658 + $0x12a] sm:$0xff]
        %v2941 = vld [vmem:[%s2658 + $0x13a] sm:$0xff]
        %v2942 = vld [vmem:[%s2658 + $0x142] sm:$0xff]
        %v2943 = vld [vmem:[%s2658 + $0x152] sm:$0xff]
        %v2944 = vld [vmem:[%s2658 + $0x15a] sm:$0xff]
        %v2945 = vld [vmem:[%s2658 + $0x16a] sm:$0xff]
        %v2946 = vld [vmem:[%s2658 + $0x172] sm:$0xff]
        %v2947 = vld [vmem:[%s2658 + $0x1b2] sm:$0xff]
        %v2948 = vld [vmem:[%s2658 + $0x1ba] sm:$0xff]
        %v2949 = vld [vmem:[%s2658 + $0x1ca] sm:$0xff]
        %v2950 = vld [vmem:[%s2658 + $0x1d2] sm:$0xff]
        %v2951 = vld [vmem:[%s2658 + $0x1e2] sm:$0xff]
        %v2952 = vld [vmem:[%s2658 + $0x1ea] sm:$0xff]
        %v2953 = vld [vmem:[%s2658 + $0x1fa] sm:$0xff]
        %v2954 = vld [vmem:[%s2658 + $0x202] sm:$0xff]
        %v2955 = vld [vmem:[%s2658 + $0x212] sm:$0xff]
        %v2956 = vld [vmem:[%s2658 + $0x21a] sm:$0xff]
        %v2957 = vld [vmem:[%s2658 + $0x22a] sm:$0xff]
        %v2958 = vld [vmem:[%s2658 + $0x232] sm:$0xff]
        %v2959 = vld [vmem:[%s2658 + $0x242] sm:$0xff]
        %v2960 = vld [vmem:[%s2658 + $0x24a] sm:$0xff]
        %v2961 = vld [vmem:[%s2658 + $0x25a] sm:$0xff]
        %v2962 = vld [vmem:[%s2658 + $0x262] sm:$0xff]
        %v2963 = vld [vmem:[%s2658 + $0x272] sm:$0xff]
        %v2964 = vld [vmem:[%s2658 + $0x27a] sm:$0xff]
        %v2965 = vld [vmem:[%s2658 + $0x28a] sm:$0xff]
        %v2966 = vld [vmem:[%s2658 + $0x292] sm:$0xff]
        %v2967 = vld [vmem:[%s2658 + $0x2a2] sm:$0xff]
        %v2968 = vld [vmem:[%s2658 + $0x2aa] sm:$0xff]
        %v2969 = vld [vmem:[%s2658 + $0x2ba] sm:$0xff]
        %v2970 = vld [vmem:[%s2658 + $0x2c2] sm:$0xff]
        %v2971 = vld [vmem:[%s2658 + $0x2d2] sm:$0xff]
        %v2972 = vld [vmem:[%s2658 + $0x2da] sm:$0xff]
        %v2973 = vld [vmem:[%s2658 + $0x2ea] sm:$0xff]
        %v2974 = vld [vmem:[%s2658 + $0x2f2] sm:$0xff]
        %v2975 = vld [vmem:[%s2658 + $0x302] sm:$0xff]
        %v2976 = vld [vmem:[%s2658 + $0x30a] sm:$0xff]
        %v2977 = vld [vmem:[%s2658 + $0x31a] sm:$0xff]
        %v2978 = vld [vmem:[%s2658 + $0x322] sm:$0xff]
        %v2979 = vld [vmem:[%s2658 + $0x362] sm:$0xff]
        %v2980 = vld [vmem:[%s2658 + $0x36a] sm:$0xff]
        %v2981 = vld [vmem:[%s2658 + $0x37a] sm:$0xff]
        %v2982 = vld [vmem:[%s2658 + $0x382] sm:$0xff]
        %v2983 = vld [vmem:[%s2658 + $0x392] sm:$0xff]
        %v2984 = vld [vmem:[%s2658 + $0x39a] sm:$0xff]
        %v2985 = vld [vmem:[%s2658 + $0x3aa] sm:$0xff]
        %v2986 = vld [vmem:[%s2658 + $0x3b2] sm:$0xff]
        %v2987 = vld [vmem:[%s2658 + $0x3c2] sm:$0xff]
        %v2988 = vld [vmem:[%s2658 + $0x3ca] sm:$0xff]
        %v2989 = vld [vmem:[%s2658 + $0x3da] sm:$0xff]
        %v2990 = vld [vmem:[%s2658 + $0x3e2] sm:$0xff]
        %v2991 = vld [vmem:[%s2658 + $0x3f2] sm:$0xff]
        %v2992 = vld [vmem:[%s2658 + $0x3fa] sm:$0xff]
        %v2993 = vld [vmem:[%s2658 + $0x40a] sm:$0xff]
        %v2994 = vld [vmem:[%s2658 + $0x412] sm:$0xff]
        %v2995 = vld [vmem:[%s2658 + $0x422] sm:$0xff]
        %v2996 = vld [vmem:[%s2658 + $0x42a] sm:$0xff]
        %v2997 = vld [vmem:[%s2658 + $0x43a] sm:$0xff]
        %v2998 = vld [vmem:[%s2658 + $0x442] sm:$0xff]
        %v2999 = vld [vmem:[%s2658 + $0x452] sm:$0xff]
        %v3000 = vld [vmem:[%s2658 + $0x45a] sm:$0xff]
        %v3001 = vld [vmem:[%s2658 + $0x46a] sm:$0xff]
        %v3002 = vld [vmem:[%s2658 + $0x472] sm:$0xff]
        %v3003 = vld [vmem:[%s2658 + $0x482] sm:$0xff]
        %v3004 = vld [vmem:[%s2658 + $0x48a] sm:$0xff]
        %v3005 = vld [vmem:[%s2658 + $0x49a] sm:$0xff]
        %v3006 = vld [vmem:[%s2658 + $0x4a2] sm:$0xff]
        %v3007 = vld [vmem:[%s2658 + $0x4b2] sm:$0xff]
        %v3008 = vld [vmem:[%s2658 + $0x4ba] sm:$0xff]
        %v3009 = vld [vmem:[%s2658 + $0x4ca] sm:$0xff]
        %v3010 = vld [vmem:[%s2658 + $0x4d2] sm:$0xff]
        %v3011 = vld [vmem:[%s2658 + $0x512] sm:$0xff]
        %v3012 = vld [vmem:[%s2658 + $0x51a] sm:$0xff]
        %v3013 = vld [vmem:[%s2658 + $0x52a] sm:$0xff]
        %v3014 = vld [vmem:[%s2658 + $0x532] sm:$0xff]
        %v3015 = vld [vmem:[%s2658 + $0x542] sm:$0xff]
        %v3016 = vld [vmem:[%s2658 + $0x54a] sm:$0xff]
        %v3017 = vld [vmem:[%s2658 + $0x55a] sm:$0xff]
        %v3018 = vld [vmem:[%s2658 + $0x562] sm:$0xff]
        %v3019 = vld [vmem:[%s2658 + $0x572] sm:$0xff]
        %v3020 = vld [vmem:[%s2658 + $0x57a] sm:$0xff]
        %v3021 = vld [vmem:[%s2658 + $0x58a] sm:$0xff]
        %v3022 = vld [vmem:[%s2658 + $0x592] sm:$0xff]
        %v3023 = vld [vmem:[%s2658 + $0x5a2] sm:$0xff]
        %v3024 = vld [vmem:[%s2658 + $0x5aa] sm:$0xff]
        %v3025 = vld [vmem:[%s2658 + $0x5ba] sm:$0xff]
        %v3026 = vld [vmem:[%s2658 + $0x5c2] sm:$0xff]
        %v3027 = vld [vmem:[%s2658 + $0x5d2] sm:$0xff]
        %v3028 = vld [vmem:[%s2658 + $0x5da] sm:$0xff]
        %v3029 = vld [vmem:[%s2658 + $0x5ea] sm:$0xff]
        %v3030 = vld [vmem:[%s2658 + $0x5f2] sm:$0xff]
        %v3031 = vld [vmem:[%s2658 + $0x602] sm:$0xff]
        %v3032 = vld [vmem:[%s2658 + $0x60a] sm:$0xff]
        %v3033 = vld [vmem:[%s2658 + $0x61a] sm:$0xff]
        %v3034 = vld [vmem:[%s2658 + $0x622] sm:$0xff]
        %v3035 = vld [vmem:[%s2658 + $0x632] sm:$0xff]
        %v3036 = vld [vmem:[%s2658 + $0x63a] sm:$0xff]
        %v3037 = vld [vmem:[%s2658 + $0x64a] sm:$0xff]
        %v3038 = vld [vmem:[%s2658 + $0x652] sm:$0xff]
        %v3039 = vld [vmem:[%s2658 + $0x662] sm:$0xff]
        %v3040 = vld [vmem:[%s2658 + $0x66a] sm:$0xff]
        %v3041 = vld [vmem:[%s2658 + $0x67a] sm:$0xff]
        %v3042 = vld [vmem:[%s2658 + $0x682] sm:$0xff]
        %3171 = vrot.lane.b32.xlu0 %v2018, 64
        %v3172 = vpop.permute.xlu0 %3171
        %3173 = vrot.lane.b32.xlu0 %v2019, 64
        %v3174 = vpop.permute.xlu0 %3173
        %3175 = vrot.lane.b32.xlu0 %v2020, 64
        %v3176 = vpop.permute.xlu0 %3175
        %3177 = vrot.lane.b32.xlu0 %v2021, 64
        %v3178 = vpop.permute.xlu0 %3177
        %3179 = vrot.lane.b32.xlu0 %v2022, 64
        %v3180 = vpop.permute.xlu0 %3179
        %3181 = vrot.lane.b32.xlu0 %v2023, 64
        %v3182 = vpop.permute.xlu0 %3181
        %3183 = vrot.lane.b32.xlu0 %v2024, 64
        %v3184 = vpop.permute.xlu0 %3183
        %3185 = vrot.lane.b32.xlu0 %v2025, 64
        %v3186 = vpop.permute.xlu0 %3185
        %3187 = vrot.lane.b32.xlu0 %v2026, 64
        %v3188 = vpop.permute.xlu0 %3187
        %3189 = vrot.lane.b32.xlu0 %v2027, 64
        %v3190 = vpop.permute.xlu0 %3189
        %3191 = vrot.lane.b32.xlu0 %v2028, 64
        %v3192 = vpop.permute.xlu0 %3191
        %3193 = vrot.lane.b32.xlu0 %v2029, 64
        %v3194 = vpop.permute.xlu0 %3193
        %3195 = vrot.lane.b32.xlu0 %v2030, 64
        %v3196 = vpop.permute.xlu0 %3195
        %3197 = vrot.lane.b32.xlu0 %v2031, 64
        %v3198 = vpop.permute.xlu0 %3197
        %3199 = vrot.lane.b32.xlu0 %v2032, 64
        %v3200 = vpop.permute.xlu0 %3199
        %3201 = vrot.lane.b32.xlu0 %v2033, 64
        %v3202 = vpop.permute.xlu0 %3201
        %3203 = vrot.lane.b32.xlu0 %v2034, 64
        %v3204 = vpop.permute.xlu0 %3203
        %3205 = vrot.lane.b32.xlu0 %v2035, 64
        %v3206 = vpop.permute.xlu0 %3205
        %3207 = vrot.lane.b32.xlu0 %v2036, 64
        %v3208 = vpop.permute.xlu0 %3207
        %3209 = vrot.lane.b32.xlu0 %v2037, 64
        %v3210 = vpop.permute.xlu0 %3209
        %3211 = vrot.lane.b32.xlu0 %v2038, 64
        %v3212 = vpop.permute.xlu0 %3211
        %3213 = vrot.lane.b32.xlu0 %v2039, 64
        %v3214 = vpop.permute.xlu0 %3213
        %3215 = vrot.lane.b32.xlu0 %v2040, 64
        %v3216 = vpop.permute.xlu0 %3215
        %3217 = vrot.lane.b32.xlu0 %v2041, 64
        %v3218 = vpop.permute.xlu0 %3217
        %3219 = vrot.lane.b32.xlu0 %v2042, 64
        %v3220 = vpop.permute.xlu0 %3219
        %3221 = vrot.lane.b32.xlu0 %v2043, 64
        %v3222 = vpop.permute.xlu0 %3221
        %3223 = vrot.lane.b32.xlu0 %v2044, 64
        %v3224 = vpop.permute.xlu0 %3223
        %3225 = vrot.lane.b32.xlu0 %v2045, 64
        %v3226 = vpop.permute.xlu0 %3225
        %3227 = vrot.lane.b32.xlu0 %v2046, 64
        %v3228 = vpop.permute.xlu0 %3227
        %3229 = vrot.lane.b32.xlu0 %v2047, 64
        %v3230 = vpop.permute.xlu0 %3229
        %3231 = vrot.lane.b32.xlu0 %v2048, 64
        %v3232 = vpop.permute.xlu0 %3231
        %3233 = vrot.lane.b32.xlu0 %v2049, 64
        %v3234 = vpop.permute.xlu0 %3233
        %3235 = vrot.lane.b32.xlu0 %v2050, 64
        %v3236 = vpop.permute.xlu0 %3235
        %3237 = vrot.lane.b32.xlu0 %v2051, 64
        %v3238 = vpop.permute.xlu0 %3237
        %3239 = vrot.lane.b32.xlu0 %v2052, 64
        %v3240 = vpop.permute.xlu0 %3239
        %3241 = vrot.lane.b32.xlu0 %v2053, 64
        %v3242 = vpop.permute.xlu0 %3241
        %3243 = vrot.lane.b32.xlu0 %v2054, 64
        %v3244 = vpop.permute.xlu0 %3243
        %3245 = vrot.lane.b32.xlu0 %v2055, 64
        %v3246 = vpop.permute.xlu0 %3245
        %3247 = vrot.lane.b32.xlu0 %v2056, 64
        %v3248 = vpop.permute.xlu0 %3247
        %3249 = vrot.lane.b32.xlu0 %v2057, 64
        %v3250 = vpop.permute.xlu0 %3249
        %3251 = vrot.lane.b32.xlu0 %v2058, 64
        %v3252 = vpop.permute.xlu0 %3251
        %3253 = vrot.lane.b32.xlu0 %v2059, 64
        %v3254 = vpop.permute.xlu0 %3253
        %3255 = vrot.lane.b32.xlu0 %v2060, 64
        %v3256 = vpop.permute.xlu0 %3255
        %3257 = vrot.lane.b32.xlu0 %v2061, 64
        %v3258 = vpop.permute.xlu0 %3257
        %3259 = vrot.lane.b32.xlu0 %v2062, 64
        %v3260 = vpop.permute.xlu0 %3259
        %3261 = vrot.lane.b32.xlu0 %v2063, 64
        %v3262 = vpop.permute.xlu0 %3261
        %3263 = vrot.lane.b32.xlu0 %v2064, 64
        %v3264 = vpop.permute.xlu0 %3263
        %3265 = vrot.lane.b32.xlu0 %v2065, 64
        %v3266 = vpop.permute.xlu0 %3265
        %3267 = vrot.lane.b32.xlu0 %v2066, 64
        %v3268 = vpop.permute.xlu0 %3267
        %3269 = vrot.lane.b32.xlu0 %v2067, 64
        %v3270 = vpop.permute.xlu0 %3269
        %3271 = vrot.lane.b32.xlu0 %v2068, 64
        %v3272 = vpop.permute.xlu0 %3271
        %3273 = vrot.lane.b32.xlu0 %v2069, 64
        %v3274 = vpop.permute.xlu0 %3273
        %3275 = vrot.lane.b32.xlu0 %v2070, 64
        %v3276 = vpop.permute.xlu0 %3275
        %3277 = vrot.lane.b32.xlu0 %v2071, 64
        %v3278 = vpop.permute.xlu0 %3277
        %3279 = vrot.lane.b32.xlu0 %v2072, 64
        %v3280 = vpop.permute.xlu0 %3279
        %3281 = vrot.lane.b32.xlu0 %v2073, 64
        %v3282 = vpop.permute.xlu0 %3281
        %3283 = vrot.lane.b32.xlu0 %v2074, 64
        %v3284 = vpop.permute.xlu0 %3283
        %3285 = vrot.lane.b32.xlu0 %v2075, 64
        %v3286 = vpop.permute.xlu0 %3285
        %3287 = vrot.lane.b32.xlu0 %v2076, 64
        %v3288 = vpop.permute.xlu0 %3287
        %3289 = vrot.lane.b32.xlu0 %v2077, 64
        %v3290 = vpop.permute.xlu0 %3289
        %3291 = vrot.lane.b32.xlu0 %v2078, 64
        %v3292 = vpop.permute.xlu0 %3291
        %3293 = vrot.lane.b32.xlu0 %v2079, 64
        %v3294 = vpop.permute.xlu0 %3293
        %3295 = vrot.lane.b32.xlu0 %v2080, 64
        %v3296 = vpop.permute.xlu0 %3295
        %3297 = vrot.lane.b32.xlu0 %v2081, 64
        %v3298 = vpop.permute.xlu0 %3297
        %3299 = vrot.lane.b32.xlu0 %v2082, 64
        %v3300 = vpop.permute.xlu0 %3299
        %3301 = vrot.lane.b32.xlu0 %v2083, 64
        %v3302 = vpop.permute.xlu0 %3301
        %3303 = vrot.lane.b32.xlu0 %v2084, 64
        %v3304 = vpop.permute.xlu0 %3303
        %3305 = vrot.lane.b32.xlu0 %v2085, 64
        %v3306 = vpop.permute.xlu0 %3305
        %3307 = vrot.lane.b32.xlu0 %v2086, 64
        %v3308 = vpop.permute.xlu0 %3307
        %3309 = vrot.lane.b32.xlu0 %v2087, 64
        %v3310 = vpop.permute.xlu0 %3309
        %3311 = vrot.lane.b32.xlu0 %v2088, 64
        %v3312 = vpop.permute.xlu0 %3311
        %3313 = vrot.lane.b32.xlu0 %v2089, 64
        %v3314 = vpop.permute.xlu0 %3313
        %3315 = vrot.lane.b32.xlu0 %v2090, 64
        %v3316 = vpop.permute.xlu0 %3315
        %3317 = vrot.lane.b32.xlu0 %v2091, 64
        %v3318 = vpop.permute.xlu0 %3317
        %3319 = vrot.lane.b32.xlu0 %v2092, 64
        %v3320 = vpop.permute.xlu0 %3319
        %3321 = vrot.lane.b32.xlu0 %v2093, 64
        %v3322 = vpop.permute.xlu0 %3321
        %3323 = vrot.lane.b32.xlu0 %v2094, 64
        %v3324 = vpop.permute.xlu0 %3323
        %3325 = vrot.lane.b32.xlu0 %v2095, 64
        %v3326 = vpop.permute.xlu0 %3325
        %3327 = vrot.lane.b32.xlu0 %v2096, 64
        %v3328 = vpop.permute.xlu0 %3327
        %3329 = vrot.lane.b32.xlu0 %v2097, 64
        %v3330 = vpop.permute.xlu0 %3329
        %3331 = vrot.lane.b32.xlu0 %v2098, 64
        %v3332 = vpop.permute.xlu0 %3331
        %3333 = vrot.lane.b32.xlu0 %v2099, 64
        %v3334 = vpop.permute.xlu0 %3333
        %3335 = vrot.lane.b32.xlu0 %v2100, 64
        %v3336 = vpop.permute.xlu0 %3335
        %3337 = vrot.lane.b32.xlu0 %v2101, 64
        %v3338 = vpop.permute.xlu0 %3337
        %3339 = vrot.lane.b32.xlu0 %v2102, 64
        %v3340 = vpop.permute.xlu0 %3339
        %3341 = vrot.lane.b32.xlu0 %v2103, 64
        %v3342 = vpop.permute.xlu0 %3341
        %3343 = vrot.lane.b32.xlu0 %v2104, 64
        %v3344 = vpop.permute.xlu0 %3343
        %3345 = vrot.lane.b32.xlu0 %v2105, 64
        %v3346 = vpop.permute.xlu0 %3345
        %3347 = vrot.lane.b32.xlu0 %v2106, 64
        %v3348 = vpop.permute.xlu0 %3347
        %3349 = vrot.lane.b32.xlu0 %v2107, 64
        %v3350 = vpop.permute.xlu0 %3349
        %3351 = vrot.lane.b32.xlu0 %v2108, 64
        %v3352 = vpop.permute.xlu0 %3351
        %3353 = vrot.lane.b32.xlu0 %v2109, 64
        %v3354 = vpop.permute.xlu0 %3353
        %3355 = vrot.lane.b32.xlu0 %v2110, 64
        %v3356 = vpop.permute.xlu0 %3355
        %3357 = vrot.lane.b32.xlu0 %v2111, 64
        %v3358 = vpop.permute.xlu0 %3357
        %3359 = vrot.lane.b32.xlu0 %v2112, 64
        %v3360 = vpop.permute.xlu0 %3359
        %3361 = vrot.lane.b32.xlu0 %v2113, 64
        %v3362 = vpop.permute.xlu0 %3361
        %3363 = vrot.lane.b32.xlu0 %v2114, 64
        %v3364 = vpop.permute.xlu0 %3363
        %3365 = vrot.lane.b32.xlu0 %v2115, 64
        %v3366 = vpop.permute.xlu0 %3365
        %3367 = vrot.lane.b32.xlu0 %v2116, 64
        %v3368 = vpop.permute.xlu0 %3367
        %3369 = vrot.lane.b32.xlu0 %v2117, 64
        %v3370 = vpop.permute.xlu0 %3369
        %3371 = vrot.lane.b32.xlu0 %v2118, 64
        %v3372 = vpop.permute.xlu0 %3371
        %3373 = vrot.lane.b32.xlu0 %v2119, 64
        %v3374 = vpop.permute.xlu0 %3373
        %3375 = vrot.lane.b32.xlu0 %v2120, 64
        %v3376 = vpop.permute.xlu0 %3375
        %3377 = vrot.lane.b32.xlu0 %v2121, 64
        %v3378 = vpop.permute.xlu0 %3377
        %3379 = vrot.lane.b32.xlu0 %v2122, 64
        %v3380 = vpop.permute.xlu0 %3379
        %3381 = vrot.lane.b32.xlu0 %v2123, 64
        %v3382 = vpop.permute.xlu0 %3381
        %3383 = vrot.lane.b32.xlu0 %v2124, 64
        %v3384 = vpop.permute.xlu0 %3383
        %3385 = vrot.lane.b32.xlu0 %v2125, 64
        %v3386 = vpop.permute.xlu0 %3385
        %3387 = vrot.lane.b32.xlu0 %v2126, 64
        %v3388 = vpop.permute.xlu0 %3387
        %3389 = vrot.lane.b32.xlu0 %v2127, 64
        %v3390 = vpop.permute.xlu0 %3389
        %3391 = vrot.lane.b32.xlu0 %v2128, 64
        %v3392 = vpop.permute.xlu0 %3391
        %3393 = vrot.lane.b32.xlu0 %v2129, 64
        %v3394 = vpop.permute.xlu0 %3393
        %3395 = vrot.lane.b32.xlu0 %v2130, 64
        %v3396 = vpop.permute.xlu0 %3395
        %3397 = vrot.lane.b32.xlu0 %v2131, 64
        %v3398 = vpop.permute.xlu0 %3397
        %3399 = vrot.lane.b32.xlu0 %v2132, 64
        %v3400 = vpop.permute.xlu0 %3399
        %3401 = vrot.lane.b32.xlu0 %v2133, 64
        %v3402 = vpop.permute.xlu0 %3401
        %3403 = vrot.lane.b32.xlu0 %v2134, 64
        %v3404 = vpop.permute.xlu0 %3403
        %3405 = vrot.lane.b32.xlu0 %v2135, 64
        %v3406 = vpop.permute.xlu0 %3405
        %3407 = vrot.lane.b32.xlu0 %v2136, 64
        %v3408 = vpop.permute.xlu0 %3407
        %3409 = vrot.lane.b32.xlu0 %v2137, 64
        %v3410 = vpop.permute.xlu0 %3409
        %3411 = vrot.lane.b32.xlu0 %v2138, 64
        %v3412 = vpop.permute.xlu0 %3411
        %3413 = vrot.lane.b32.xlu0 %v2139, 64
        %v3414 = vpop.permute.xlu0 %3413
        %3415 = vrot.lane.b32.xlu0 %v2140, 64
        %v3416 = vpop.permute.xlu0 %3415
        %3417 = vrot.lane.b32.xlu0 %v2141, 64
        %v3418 = vpop.permute.xlu0 %3417
        %3419 = vrot.lane.b32.xlu0 %v2142, 64
        %v3420 = vpop.permute.xlu0 %3419
        %3421 = vrot.lane.b32.xlu0 %v2143, 64
        %v3422 = vpop.permute.xlu0 %3421
        %3423 = vrot.lane.b32.xlu0 %v2144, 64
        %v3424 = vpop.permute.xlu0 %3423
        %3425 = vrot.lane.b32.xlu0 %v2145, 64
        %v3426 = vpop.permute.xlu0 %3425
        %3683 = vrot.lane.b32.xlu0 %v2274, 64
        %v3684 = vpop.permute.xlu0 %3683
        %3685 = vrot.lane.b32.xlu0 %v2275, 64
        %v3686 = vpop.permute.xlu0 %3685
        %3687 = vrot.lane.b32.xlu0 %v2276, 64
        %v3688 = vpop.permute.xlu0 %3687
        %3689 = vrot.lane.b32.xlu0 %v2277, 64
        %v3690 = vpop.permute.xlu0 %3689
        %3691 = vrot.lane.b32.xlu0 %v2278, 64
        %v3692 = vpop.permute.xlu0 %3691
        %3693 = vrot.lane.b32.xlu0 %v2279, 64
        %v3694 = vpop.permute.xlu0 %3693
        %3695 = vrot.lane.b32.xlu0 %v2280, 64
        %v3696 = vpop.permute.xlu0 %3695
        %3697 = vrot.lane.b32.xlu0 %v2281, 64
        %v3698 = vpop.permute.xlu0 %3697
        %3699 = vrot.lane.b32.xlu0 %v2282, 64
        %v3700 = vpop.permute.xlu0 %3699
        %3701 = vrot.lane.b32.xlu0 %v2283, 64
        %v3702 = vpop.permute.xlu0 %3701
        %3703 = vrot.lane.b32.xlu0 %v2284, 64
        %v3704 = vpop.permute.xlu0 %3703
        %3705 = vrot.lane.b32.xlu0 %v2285, 64
        %v3706 = vpop.permute.xlu0 %3705
        %3707 = vrot.lane.b32.xlu0 %v2286, 64
        %v3708 = vpop.permute.xlu0 %3707
        %3709 = vrot.lane.b32.xlu0 %v2287, 64
        %v3710 = vpop.permute.xlu0 %3709
        %3711 = vrot.lane.b32.xlu0 %v2288, 64
        %v3712 = vpop.permute.xlu0 %3711
        %3713 = vrot.lane.b32.xlu0 %v2289, 64
        %v3714 = vpop.permute.xlu0 %3713
        %3715 = vrot.lane.b32.xlu0 %v2290, 64
        %v3716 = vpop.permute.xlu0 %3715
        %3717 = vrot.lane.b32.xlu0 %v2291, 64
        %v3718 = vpop.permute.xlu0 %3717
        %3719 = vrot.lane.b32.xlu0 %v2292, 64
        %v3720 = vpop.permute.xlu0 %3719
        %3721 = vrot.lane.b32.xlu0 %v2293, 64
        %v3722 = vpop.permute.xlu0 %3721
        %3723 = vrot.lane.b32.xlu0 %v2294, 64
        %v3724 = vpop.permute.xlu0 %3723
        %3725 = vrot.lane.b32.xlu0 %v2295, 64
        %v3726 = vpop.permute.xlu0 %3725
        %3727 = vrot.lane.b32.xlu0 %v2296, 64
        %v3728 = vpop.permute.xlu0 %3727
        %3729 = vrot.lane.b32.xlu0 %v2297, 64
        %v3730 = vpop.permute.xlu0 %3729
        %3731 = vrot.lane.b32.xlu0 %v2298, 64
        %v3732 = vpop.permute.xlu0 %3731
        %3733 = vrot.lane.b32.xlu0 %v2299, 64
        %v3734 = vpop.permute.xlu0 %3733
        %3735 = vrot.lane.b32.xlu0 %v2300, 64
        %v3736 = vpop.permute.xlu0 %3735
        %3737 = vrot.lane.b32.xlu0 %v2301, 64
        %v3738 = vpop.permute.xlu0 %3737
        %3739 = vrot.lane.b32.xlu0 %v2302, 64
        %v3740 = vpop.permute.xlu0 %3739
        %3741 = vrot.lane.b32.xlu0 %v2303, 64
        %v3742 = vpop.permute.xlu0 %3741
        %3743 = vrot.lane.b32.xlu0 %v2304, 64
        %v3744 = vpop.permute.xlu0 %3743
        %3745 = vrot.lane.b32.xlu0 %v2305, 64
        %v3746 = vpop.permute.xlu0 %3745
        %3747 = vrot.lane.b32.xlu0 %v2306, 64
        %v3748 = vpop.permute.xlu0 %3747
        %3749 = vrot.lane.b32.xlu0 %v2307, 64
        %v3750 = vpop.permute.xlu0 %3749
        %3751 = vrot.lane.b32.xlu0 %v2308, 64
        %v3752 = vpop.permute.xlu0 %3751
        %3753 = vrot.lane.b32.xlu0 %v2309, 64
        %v3754 = vpop.permute.xlu0 %3753
        %3755 = vrot.lane.b32.xlu0 %v2310, 64
        %v3756 = vpop.permute.xlu0 %3755
        %3757 = vrot.lane.b32.xlu0 %v2311, 64
        %v3758 = vpop.permute.xlu0 %3757
        %3759 = vrot.lane.b32.xlu0 %v2312, 64
        %v3760 = vpop.permute.xlu0 %3759
        %3761 = vrot.lane.b32.xlu0 %v2313, 64
        %v3762 = vpop.permute.xlu0 %3761
        %3763 = vrot.lane.b32.xlu0 %v2314, 64
        %v3764 = vpop.permute.xlu0 %3763
        %3765 = vrot.lane.b32.xlu0 %v2315, 64
        %v3766 = vpop.permute.xlu0 %3765
        %3767 = vrot.lane.b32.xlu0 %v2316, 64
        %v3768 = vpop.permute.xlu0 %3767
        %3769 = vrot.lane.b32.xlu0 %v2317, 64
        %v3770 = vpop.permute.xlu0 %3769
        %3771 = vrot.lane.b32.xlu0 %v2318, 64
        %v3772 = vpop.permute.xlu0 %3771
        %3773 = vrot.lane.b32.xlu0 %v2319, 64
        %v3774 = vpop.permute.xlu0 %3773
        %3775 = vrot.lane.b32.xlu0 %v2320, 64
        %v3776 = vpop.permute.xlu0 %3775
        %3777 = vrot.lane.b32.xlu0 %v2321, 64
        %v3778 = vpop.permute.xlu0 %3777
        %3779 = vrot.lane.b32.xlu0 %v2322, 64
        %v3780 = vpop.permute.xlu0 %3779
        %3781 = vrot.lane.b32.xlu0 %v2323, 64
        %v3782 = vpop.permute.xlu0 %3781
        %3783 = vrot.lane.b32.xlu0 %v2324, 64
        %v3784 = vpop.permute.xlu0 %3783
        %3785 = vrot.lane.b32.xlu0 %v2325, 64
        %v3786 = vpop.permute.xlu0 %3785
        %3787 = vrot.lane.b32.xlu0 %v2326, 64
        %v3788 = vpop.permute.xlu0 %3787
        %3789 = vrot.lane.b32.xlu0 %v2327, 64
        %v3790 = vpop.permute.xlu0 %3789
        %3791 = vrot.lane.b32.xlu0 %v2328, 64
        %v3792 = vpop.permute.xlu0 %3791
        %3793 = vrot.lane.b32.xlu0 %v2329, 64
        %v3794 = vpop.permute.xlu0 %3793
        %3795 = vrot.lane.b32.xlu0 %v2330, 64
        %v3796 = vpop.permute.xlu0 %3795
        %3797 = vrot.lane.b32.xlu0 %v2331, 64
        %v3798 = vpop.permute.xlu0 %3797
        %3799 = vrot.lane.b32.xlu0 %v2332, 64
        %v3800 = vpop.permute.xlu0 %3799
        %3801 = vrot.lane.b32.xlu0 %v2333, 64
        %v3802 = vpop.permute.xlu0 %3801
        %3803 = vrot.lane.b32.xlu0 %v2334, 64
        %v3804 = vpop.permute.xlu0 %3803
        %3805 = vrot.lane.b32.xlu0 %v2335, 64
        %v3806 = vpop.permute.xlu0 %3805
        %3807 = vrot.lane.b32.xlu0 %v2336, 64
        %v3808 = vpop.permute.xlu0 %3807
        %3809 = vrot.lane.b32.xlu0 %v2337, 64
        %v3810 = vpop.permute.xlu0 %3809
        %3811 = vrot.lane.b32.xlu0 %v2338, 64
        %v3812 = vpop.permute.xlu0 %3811
        %3813 = vrot.lane.b32.xlu0 %v2339, 64
        %v3814 = vpop.permute.xlu0 %3813
        %3815 = vrot.lane.b32.xlu0 %v2340, 64
        %v3816 = vpop.permute.xlu0 %3815
        %3817 = vrot.lane.b32.xlu0 %v2341, 64
        %v3818 = vpop.permute.xlu0 %3817
        %3819 = vrot.lane.b32.xlu0 %v2342, 64
        %v3820 = vpop.permute.xlu0 %3819
        %3821 = vrot.lane.b32.xlu0 %v2343, 64
        %v3822 = vpop.permute.xlu0 %3821
        %3823 = vrot.lane.b32.xlu0 %v2344, 64
        %v3824 = vpop.permute.xlu0 %3823
        %3825 = vrot.lane.b32.xlu0 %v2345, 64
        %v3826 = vpop.permute.xlu0 %3825
        %3827 = vrot.lane.b32.xlu0 %v2346, 64
        %v3828 = vpop.permute.xlu0 %3827
        %3829 = vrot.lane.b32.xlu0 %v2347, 64
        %v3830 = vpop.permute.xlu0 %3829
        %3831 = vrot.lane.b32.xlu0 %v2348, 64
        %v3832 = vpop.permute.xlu0 %3831
        %3833 = vrot.lane.b32.xlu0 %v2349, 64
        %v3834 = vpop.permute.xlu0 %3833
        %3835 = vrot.lane.b32.xlu0 %v2350, 64
        %v3836 = vpop.permute.xlu0 %3835
        %3837 = vrot.lane.b32.xlu0 %v2351, 64
        %v3838 = vpop.permute.xlu0 %3837
        %3839 = vrot.lane.b32.xlu0 %v2352, 64
        %v3840 = vpop.permute.xlu0 %3839
        %3841 = vrot.lane.b32.xlu0 %v2353, 64
        %v3842 = vpop.permute.xlu0 %3841
        %3843 = vrot.lane.b32.xlu0 %v2354, 64
        %v3844 = vpop.permute.xlu0 %3843
        %3845 = vrot.lane.b32.xlu0 %v2355, 64
        %v3846 = vpop.permute.xlu0 %3845
        %3847 = vrot.lane.b32.xlu0 %v2356, 64
        %v3848 = vpop.permute.xlu0 %3847
        %3849 = vrot.lane.b32.xlu0 %v2357, 64
        %v3850 = vpop.permute.xlu0 %3849
        %3851 = vrot.lane.b32.xlu0 %v2358, 64
        %v3852 = vpop.permute.xlu0 %3851
        %3853 = vrot.lane.b32.xlu0 %v2359, 64
        %v3854 = vpop.permute.xlu0 %3853
        %3855 = vrot.lane.b32.xlu0 %v2360, 64
        %v3856 = vpop.permute.xlu0 %3855
        %3857 = vrot.lane.b32.xlu0 %v2361, 64
        %v3858 = vpop.permute.xlu0 %3857
        %3859 = vrot.lane.b32.xlu0 %v2362, 64
        %v3860 = vpop.permute.xlu0 %3859
        %3861 = vrot.lane.b32.xlu0 %v2363, 64
        %v3862 = vpop.permute.xlu0 %3861
        %3863 = vrot.lane.b32.xlu0 %v2364, 64
        %v3864 = vpop.permute.xlu0 %3863
        %3865 = vrot.lane.b32.xlu0 %v2365, 64
        %v3866 = vpop.permute.xlu0 %3865
        %3867 = vrot.lane.b32.xlu0 %v2366, 64
        %v3868 = vpop.permute.xlu0 %3867
        %3869 = vrot.lane.b32.xlu0 %v2367, 64
        %v3870 = vpop.permute.xlu0 %3869
        %3871 = vrot.lane.b32.xlu0 %v2368, 64
        %v3872 = vpop.permute.xlu0 %3871
        %3873 = vrot.lane.b32.xlu0 %v2369, 64
        %v3874 = vpop.permute.xlu0 %3873
        %3875 = vrot.lane.b32.xlu0 %v2370, 64
        %v3876 = vpop.permute.xlu0 %3875
        %3877 = vrot.lane.b32.xlu0 %v2371, 64
        %v3878 = vpop.permute.xlu0 %3877
        %3879 = vrot.lane.b32.xlu0 %v2372, 64
        %v3880 = vpop.permute.xlu0 %3879
        %3881 = vrot.lane.b32.xlu0 %v2373, 64
        %v3882 = vpop.permute.xlu0 %3881
        %3883 = vrot.lane.b32.xlu0 %v2374, 64
        %v3884 = vpop.permute.xlu0 %3883
        %3885 = vrot.lane.b32.xlu0 %v2375, 64
        %v3886 = vpop.permute.xlu0 %3885
        %3887 = vrot.lane.b32.xlu0 %v2376, 64
        %v3888 = vpop.permute.xlu0 %3887
        %3889 = vrot.lane.b32.xlu0 %v2377, 64
        %v3890 = vpop.permute.xlu0 %3889
        %3891 = vrot.lane.b32.xlu0 %v2378, 64
        %v3892 = vpop.permute.xlu0 %3891
        %3893 = vrot.lane.b32.xlu0 %v2379, 64
        %v3894 = vpop.permute.xlu0 %3893
        %3895 = vrot.lane.b32.xlu0 %v2380, 64
        %v3896 = vpop.permute.xlu0 %3895
        %3897 = vrot.lane.b32.xlu0 %v2381, 64
        %v3898 = vpop.permute.xlu0 %3897
        %3899 = vrot.lane.b32.xlu0 %v2382, 64
        %v3900 = vpop.permute.xlu0 %3899
        %3901 = vrot.lane.b32.xlu0 %v2383, 64
        %v3902 = vpop.permute.xlu0 %3901
        %3903 = vrot.lane.b32.xlu0 %v2384, 64
        %v3904 = vpop.permute.xlu0 %3903
        %3905 = vrot.lane.b32.xlu0 %v2385, 64
        %v3906 = vpop.permute.xlu0 %3905
        %3907 = vrot.lane.b32.xlu0 %v2386, 64
        %v3908 = vpop.permute.xlu0 %3907
        %3909 = vrot.lane.b32.xlu0 %v2387, 64
        %v3910 = vpop.permute.xlu0 %3909
        %3911 = vrot.lane.b32.xlu0 %v2388, 64
        %v3912 = vpop.permute.xlu0 %3911
        %3913 = vrot.lane.b32.xlu0 %v2389, 64
        %v3914 = vpop.permute.xlu0 %3913
        %3915 = vrot.lane.b32.xlu0 %v2390, 64
        %v3916 = vpop.permute.xlu0 %3915
        %3917 = vrot.lane.b32.xlu0 %v2391, 64
        %v3918 = vpop.permute.xlu0 %3917
        %3919 = vrot.lane.b32.xlu0 %v2392, 64
        %v3920 = vpop.permute.xlu0 %3919
        %3921 = vrot.lane.b32.xlu0 %v2393, 64
        %v3922 = vpop.permute.xlu0 %3921
        %3923 = vrot.lane.b32.xlu0 %v2394, 64
        %v3924 = vpop.permute.xlu0 %3923
        %3925 = vrot.lane.b32.xlu0 %v2395, 64
        %v3926 = vpop.permute.xlu0 %3925
        %3927 = vrot.lane.b32.xlu0 %v2396, 64
        %v3928 = vpop.permute.xlu0 %3927
        %3929 = vrot.lane.b32.xlu0 %v2397, 64
        %v3930 = vpop.permute.xlu0 %3929
        %3931 = vrot.lane.b32.xlu0 %v2398, 64
        %v3932 = vpop.permute.xlu0 %3931
        %3933 = vrot.lane.b32.xlu0 %v2399, 64
        %v3934 = vpop.permute.xlu0 %3933
        %3935 = vrot.lane.b32.xlu0 %v2400, 64
        %v3936 = vpop.permute.xlu0 %3935
        %3937 = vrot.lane.b32.xlu0 %v2401, 64
        %v3938 = vpop.permute.xlu0 %3937
        %4195 = vrot.lane.b32.xlu0 %v2530, 64
        %v4196 = vpop.permute.xlu0 %4195
        %4197 = vrot.lane.b32.xlu0 %v2531, 64
        %v4198 = vpop.permute.xlu0 %4197
        %4199 = vrot.lane.b32.xlu0 %v2532, 64
        %v4200 = vpop.permute.xlu0 %4199
        %4201 = vrot.lane.b32.xlu0 %v2533, 64
        %v4202 = vpop.permute.xlu0 %4201
        %4203 = vrot.lane.b32.xlu0 %v2534, 64
        %v4204 = vpop.permute.xlu0 %4203
        %4205 = vrot.lane.b32.xlu0 %v2535, 64
        %v4206 = vpop.permute.xlu0 %4205
        %4207 = vrot.lane.b32.xlu0 %v2536, 64
        %v4208 = vpop.permute.xlu0 %4207
        %4209 = vrot.lane.b32.xlu0 %v2537, 64
        %v4210 = vpop.permute.xlu0 %4209
        %4211 = vrot.lane.b32.xlu0 %v2538, 64
        %v4212 = vpop.permute.xlu0 %4211
        %4213 = vrot.lane.b32.xlu0 %v2539, 64
        %v4214 = vpop.permute.xlu0 %4213
        %4215 = vrot.lane.b32.xlu0 %v2540, 64
        %v4216 = vpop.permute.xlu0 %4215
        %4217 = vrot.lane.b32.xlu0 %v2541, 64
        %v4218 = vpop.permute.xlu0 %4217
        %4219 = vrot.lane.b32.xlu0 %v2542, 64
        %v4220 = vpop.permute.xlu0 %4219
        %4221 = vrot.lane.b32.xlu0 %v2543, 64
        %v4222 = vpop.permute.xlu0 %4221
        %4223 = vrot.lane.b32.xlu0 %v2544, 64
        %v4224 = vpop.permute.xlu0 %4223
        %4225 = vrot.lane.b32.xlu0 %v2545, 64
        %v4226 = vpop.permute.xlu0 %4225
        %4227 = vrot.lane.b32.xlu0 %v2546, 64
        %v4228 = vpop.permute.xlu0 %4227
        %4229 = vrot.lane.b32.xlu0 %v2547, 64
        %v4230 = vpop.permute.xlu0 %4229
        %4231 = vrot.lane.b32.xlu0 %v2548, 64
        %v4232 = vpop.permute.xlu0 %4231
        %4233 = vrot.lane.b32.xlu0 %v2549, 64
        %v4234 = vpop.permute.xlu0 %4233
        %4235 = vrot.lane.b32.xlu0 %v2550, 64
        %v4236 = vpop.permute.xlu0 %4235
        %4237 = vrot.lane.b32.xlu0 %v2551, 64
        %v4238 = vpop.permute.xlu0 %4237
        %4239 = vrot.lane.b32.xlu0 %v2552, 64
        %v4240 = vpop.permute.xlu0 %4239
        %4241 = vrot.lane.b32.xlu0 %v2553, 64
        %v4242 = vpop.permute.xlu0 %4241
        %4243 = vrot.lane.b32.xlu0 %v2554, 64
        %v4244 = vpop.permute.xlu0 %4243
        %4245 = vrot.lane.b32.xlu0 %v2555, 64
        %v4246 = vpop.permute.xlu0 %4245
        %4247 = vrot.lane.b32.xlu0 %v2556, 64
        %v4248 = vpop.permute.xlu0 %4247
        %4249 = vrot.lane.b32.xlu0 %v2557, 64
        %v4250 = vpop.permute.xlu0 %4249
        %4251 = vrot.lane.b32.xlu0 %v2558, 64
        %v4252 = vpop.permute.xlu0 %4251
        %4253 = vrot.lane.b32.xlu0 %v2559, 64
        %v4254 = vpop.permute.xlu0 %4253
        %4255 = vrot.lane.b32.xlu0 %v2560, 64
        %v4256 = vpop.permute.xlu0 %4255
        %4257 = vrot.lane.b32.xlu0 %v2561, 64
        %v4258 = vpop.permute.xlu0 %4257
        %4259 = vrot.lane.b32.xlu0 %v2562, 64
        %v4260 = vpop.permute.xlu0 %4259
        %4261 = vrot.lane.b32.xlu0 %v2563, 64
        %v4262 = vpop.permute.xlu0 %4261
        %4263 = vrot.lane.b32.xlu0 %v2564, 64
        %v4264 = vpop.permute.xlu0 %4263
        %4265 = vrot.lane.b32.xlu0 %v2565, 64
        %v4266 = vpop.permute.xlu0 %4265
        %4267 = vrot.lane.b32.xlu0 %v2566, 64
        %v4268 = vpop.permute.xlu0 %4267
        %4269 = vrot.lane.b32.xlu0 %v2567, 64
        %v4270 = vpop.permute.xlu0 %4269
        %4271 = vrot.lane.b32.xlu0 %v2568, 64
        %v4272 = vpop.permute.xlu0 %4271
        %4273 = vrot.lane.b32.xlu0 %v2569, 64
        %v4274 = vpop.permute.xlu0 %4273
        %4275 = vrot.lane.b32.xlu0 %v2570, 64
        %v4276 = vpop.permute.xlu0 %4275
        %4277 = vrot.lane.b32.xlu0 %v2571, 64
        %v4278 = vpop.permute.xlu0 %4277
        %4279 = vrot.lane.b32.xlu0 %v2572, 64
        %v4280 = vpop.permute.xlu0 %4279
        %4281 = vrot.lane.b32.xlu0 %v2573, 64
        %v4282 = vpop.permute.xlu0 %4281
        %4283 = vrot.lane.b32.xlu0 %v2574, 64
        %v4284 = vpop.permute.xlu0 %4283
        %4285 = vrot.lane.b32.xlu0 %v2575, 64
        %v4286 = vpop.permute.xlu0 %4285
        %4287 = vrot.lane.b32.xlu0 %v2576, 64
        %v4288 = vpop.permute.xlu0 %4287
        %4289 = vrot.lane.b32.xlu0 %v2577, 64
        %v4290 = vpop.permute.xlu0 %4289
        %4291 = vrot.lane.b32.xlu0 %v2578, 64
        %v4292 = vpop.permute.xlu0 %4291
        %4293 = vrot.lane.b32.xlu0 %v2579, 64
        %v4294 = vpop.permute.xlu0 %4293
        %4295 = vrot.lane.b32.xlu0 %v2580, 64
        %v4296 = vpop.permute.xlu0 %4295
        %4297 = vrot.lane.b32.xlu0 %v2581, 64
        %v4298 = vpop.permute.xlu0 %4297
        %4299 = vrot.lane.b32.xlu0 %v2582, 64
        %v4300 = vpop.permute.xlu0 %4299
        %4301 = vrot.lane.b32.xlu0 %v2583, 64
        %v4302 = vpop.permute.xlu0 %4301
        %4303 = vrot.lane.b32.xlu0 %v2584, 64
        %v4304 = vpop.permute.xlu0 %4303
        %4305 = vrot.lane.b32.xlu0 %v2585, 64
        %v4306 = vpop.permute.xlu0 %4305
        %4307 = vrot.lane.b32.xlu0 %v2586, 64
        %v4308 = vpop.permute.xlu0 %4307
        %4309 = vrot.lane.b32.xlu0 %v2587, 64
        %v4310 = vpop.permute.xlu0 %4309
        %4311 = vrot.lane.b32.xlu0 %v2588, 64
        %v4312 = vpop.permute.xlu0 %4311
        %4313 = vrot.lane.b32.xlu0 %v2589, 64
        %v4314 = vpop.permute.xlu0 %4313
        %4315 = vrot.lane.b32.xlu0 %v2590, 64
        %v4316 = vpop.permute.xlu0 %4315
        %4317 = vrot.lane.b32.xlu0 %v2591, 64
        %v4318 = vpop.permute.xlu0 %4317
        %4319 = vrot.lane.b32.xlu0 %v2592, 64
        %v4320 = vpop.permute.xlu0 %4319
        %4321 = vrot.lane.b32.xlu0 %v2593, 64
        %v4322 = vpop.permute.xlu0 %4321
        %4323 = vrot.lane.b32.xlu0 %v2594, 64
        %v4324 = vpop.permute.xlu0 %4323
        %4325 = vrot.lane.b32.xlu0 %v2595, 64
        %v4326 = vpop.permute.xlu0 %4325
        %4327 = vrot.lane.b32.xlu0 %v2596, 64
        %v4328 = vpop.permute.xlu0 %4327
        %4329 = vrot.lane.b32.xlu0 %v2597, 64
        %v4330 = vpop.permute.xlu0 %4329
        %4331 = vrot.lane.b32.xlu0 %v2598, 64
        %v4332 = vpop.permute.xlu0 %4331
        %4333 = vrot.lane.b32.xlu0 %v2599, 64
        %v4334 = vpop.permute.xlu0 %4333
        %4335 = vrot.lane.b32.xlu0 %v2600, 64
        %v4336 = vpop.permute.xlu0 %4335
        %4337 = vrot.lane.b32.xlu0 %v2601, 64
        %v4338 = vpop.permute.xlu0 %4337
        %4339 = vrot.lane.b32.xlu0 %v2602, 64
        %v4340 = vpop.permute.xlu0 %4339
        %4341 = vrot.lane.b32.xlu0 %v2603, 64
        %v4342 = vpop.permute.xlu0 %4341
        %4343 = vrot.lane.b32.xlu0 %v2604, 64
        %v4344 = vpop.permute.xlu0 %4343
        %4345 = vrot.lane.b32.xlu0 %v2605, 64
        %v4346 = vpop.permute.xlu0 %4345
        %4347 = vrot.lane.b32.xlu0 %v2606, 64
        %v4348 = vpop.permute.xlu0 %4347
        %4349 = vrot.lane.b32.xlu0 %v2607, 64
        %v4350 = vpop.permute.xlu0 %4349
        %4351 = vrot.lane.b32.xlu0 %v2608, 64
        %v4352 = vpop.permute.xlu0 %4351
        %4353 = vrot.lane.b32.xlu0 %v2609, 64
        %v4354 = vpop.permute.xlu0 %4353
        %4355 = vrot.lane.b32.xlu0 %v2610, 64
        %v4356 = vpop.permute.xlu0 %4355
        %4357 = vrot.lane.b32.xlu0 %v2611, 64
        %v4358 = vpop.permute.xlu0 %4357
        %4359 = vrot.lane.b32.xlu0 %v2612, 64
        %v4360 = vpop.permute.xlu0 %4359
        %4361 = vrot.lane.b32.xlu0 %v2613, 64
        %v4362 = vpop.permute.xlu0 %4361
        %4363 = vrot.lane.b32.xlu0 %v2614, 64
        %v4364 = vpop.permute.xlu0 %4363
        %4365 = vrot.lane.b32.xlu0 %v2615, 64
        %v4366 = vpop.permute.xlu0 %4365
        %4367 = vrot.lane.b32.xlu0 %v2616, 64
        %v4368 = vpop.permute.xlu0 %4367
        %4369 = vrot.lane.b32.xlu0 %v2617, 64
        %v4370 = vpop.permute.xlu0 %4369
        %4371 = vrot.lane.b32.xlu0 %v2618, 64
        %v4372 = vpop.permute.xlu0 %4371
        %4373 = vrot.lane.b32.xlu0 %v2619, 64
        %v4374 = vpop.permute.xlu0 %4373
        %4375 = vrot.lane.b32.xlu0 %v2620, 64
        %v4376 = vpop.permute.xlu0 %4375
        %4377 = vrot.lane.b32.xlu0 %v2621, 64
        %v4378 = vpop.permute.xlu0 %4377
        %4379 = vrot.lane.b32.xlu0 %v2622, 64
        %v4380 = vpop.permute.xlu0 %4379
        %4381 = vrot.lane.b32.xlu0 %v2623, 64
        %v4382 = vpop.permute.xlu0 %4381
        %4383 = vrot.lane.b32.xlu0 %v2624, 64
        %v4384 = vpop.permute.xlu0 %4383
        %4385 = vrot.lane.b32.xlu0 %v2625, 64
        %v4386 = vpop.permute.xlu0 %4385
        %4387 = vrot.lane.b32.xlu0 %v2626, 64
        %v4388 = vpop.permute.xlu0 %4387
        %4389 = vrot.lane.b32.xlu0 %v2627, 64
        %v4390 = vpop.permute.xlu0 %4389
        %4391 = vrot.lane.b32.xlu0 %v2628, 64
        %v4392 = vpop.permute.xlu0 %4391
        %4393 = vrot.lane.b32.xlu0 %v2629, 64
        %v4394 = vpop.permute.xlu0 %4393
        %4395 = vrot.lane.b32.xlu0 %v2630, 64
        %v4396 = vpop.permute.xlu0 %4395
        %4397 = vrot.lane.b32.xlu0 %v2631, 64
        %v4398 = vpop.permute.xlu0 %4397
        %4399 = vrot.lane.b32.xlu0 %v2632, 64
        %v4400 = vpop.permute.xlu0 %4399
        %4401 = vrot.lane.b32.xlu0 %v2633, 64
        %v4402 = vpop.permute.xlu0 %4401
        %4403 = vrot.lane.b32.xlu0 %v2634, 64
        %v4404 = vpop.permute.xlu0 %4403
        %4405 = vrot.lane.b32.xlu0 %v2635, 64
        %v4406 = vpop.permute.xlu0 %4405
        %4407 = vrot.lane.b32.xlu0 %v2636, 64
        %v4408 = vpop.permute.xlu0 %4407
        %4409 = vrot.lane.b32.xlu0 %v2637, 64
        %v4410 = vpop.permute.xlu0 %4409
        %4411 = vrot.lane.b32.xlu0 %v2638, 64
        %v4412 = vpop.permute.xlu0 %4411
        %4413 = vrot.lane.b32.xlu0 %v2639, 64
        %v4414 = vpop.permute.xlu0 %4413
        %4415 = vrot.lane.b32.xlu0 %v2640, 64
        %v4416 = vpop.permute.xlu0 %4415
        %4417 = vrot.lane.b32.xlu0 %v2641, 64
        %v4418 = vpop.permute.xlu0 %4417
        %4419 = vrot.lane.b32.xlu0 %v2642, 64
        %v4420 = vpop.permute.xlu0 %4419
        %4421 = vrot.lane.b32.xlu0 %v2643, 64
        %v4422 = vpop.permute.xlu0 %4421
        %4423 = vrot.lane.b32.xlu0 %v2644, 64
        %v4424 = vpop.permute.xlu0 %4423
        %4425 = vrot.lane.b32.xlu0 %v2645, 64
        %v4426 = vpop.permute.xlu0 %4425
        %4427 = vrot.lane.b32.xlu0 %v2646, 64
        %v4428 = vpop.permute.xlu0 %4427
        %4429 = vrot.lane.b32.xlu0 %v2647, 64
        %v4430 = vpop.permute.xlu0 %4429
        %4431 = vrot.lane.b32.xlu0 %v2648, 64
        %v4432 = vpop.permute.xlu0 %4431
        %4433 = vrot.lane.b32.xlu0 %v2649, 64
        %v4434 = vpop.permute.xlu0 %4433
        %4435 = vrot.lane.b32.xlu0 %v2650, 64
        %v4436 = vpop.permute.xlu0 %4435
        %4437 = vrot.lane.b32.xlu0 %v2651, 64
        %v4438 = vpop.permute.xlu0 %4437
        %4439 = vrot.lane.b32.xlu0 %v2652, 64
        %v4440 = vpop.permute.xlu0 %4439
        %4441 = vrot.lane.b32.xlu0 %v2653, 64
        %v4442 = vpop.permute.xlu0 %4441
        %4443 = vrot.lane.b32.xlu0 %v2654, 64
        %v4444 = vpop.permute.xlu0 %4443
        %4445 = vrot.lane.b32.xlu0 %v2655, 64
        %v4446 = vpop.permute.xlu0 %4445
        %4447 = vrot.lane.b32.xlu0 %v2656, 64
        %v4448 = vpop.permute.xlu0 %4447
        %4449 = vrot.lane.b32.xlu0 %v2657, 64
        %v4450 = vpop.permute.xlu0 %4449
        %4707 = vrot.lane.b32.xlu0 %v2787, 64
        %v4708 = vpop.permute.xlu0 %4707
        %4709 = vrot.lane.b32.xlu0 %v2788, 64
        %v4710 = vpop.permute.xlu0 %4709
        %4711 = vrot.lane.b32.xlu0 %v2789, 64
        %v4712 = vpop.permute.xlu0 %4711
        %4713 = vrot.lane.b32.xlu0 %v2790, 64
        %v4714 = vpop.permute.xlu0 %4713
        %4715 = vrot.lane.b32.xlu0 %v2791, 64
        %v4716 = vpop.permute.xlu0 %4715
        %4717 = vrot.lane.b32.xlu0 %v2792, 64
        %v4718 = vpop.permute.xlu0 %4717
        %4719 = vrot.lane.b32.xlu0 %v2793, 64
        %v4720 = vpop.permute.xlu0 %4719
        %4721 = vrot.lane.b32.xlu0 %v2794, 64
        %v4722 = vpop.permute.xlu0 %4721
        %4723 = vrot.lane.b32.xlu0 %v2795, 64
        %v4724 = vpop.permute.xlu0 %4723
        %4725 = vrot.lane.b32.xlu0 %v2796, 64
        %v4726 = vpop.permute.xlu0 %4725
        %4727 = vrot.lane.b32.xlu0 %v2797, 64
        %v4728 = vpop.permute.xlu0 %4727
        %4729 = vrot.lane.b32.xlu0 %v2798, 64
        %v4730 = vpop.permute.xlu0 %4729
        %4731 = vrot.lane.b32.xlu0 %v2799, 64
        %v4732 = vpop.permute.xlu0 %4731
        %4733 = vrot.lane.b32.xlu0 %v2800, 64
        %v4734 = vpop.permute.xlu0 %4733
        %4735 = vrot.lane.b32.xlu0 %v2801, 64
        %v4736 = vpop.permute.xlu0 %4735
        %4737 = vrot.lane.b32.xlu0 %v2802, 64
        %v4738 = vpop.permute.xlu0 %4737
        %4739 = vrot.lane.b32.xlu0 %v2803, 64
        %v4740 = vpop.permute.xlu0 %4739
        %4741 = vrot.lane.b32.xlu0 %v2804, 64
        %v4742 = vpop.permute.xlu0 %4741
        %4743 = vrot.lane.b32.xlu0 %v2805, 64
        %v4744 = vpop.permute.xlu0 %4743
        %4745 = vrot.lane.b32.xlu0 %v2806, 64
        %v4746 = vpop.permute.xlu0 %4745
        %4747 = vrot.lane.b32.xlu0 %v2807, 64
        %v4748 = vpop.permute.xlu0 %4747
        %4749 = vrot.lane.b32.xlu0 %v2808, 64
        %v4750 = vpop.permute.xlu0 %4749
        %4751 = vrot.lane.b32.xlu0 %v2809, 64
        %v4752 = vpop.permute.xlu0 %4751
        %4753 = vrot.lane.b32.xlu0 %v2810, 64
        %v4754 = vpop.permute.xlu0 %4753
        %4755 = vrot.lane.b32.xlu0 %v2811, 64
        %v4756 = vpop.permute.xlu0 %4755
        %4757 = vrot.lane.b32.xlu0 %v2812, 64
        %v4758 = vpop.permute.xlu0 %4757
        %4759 = vrot.lane.b32.xlu0 %v2813, 64
        %v4760 = vpop.permute.xlu0 %4759
        %4761 = vrot.lane.b32.xlu0 %v2814, 64
        %v4762 = vpop.permute.xlu0 %4761
        %4763 = vrot.lane.b32.xlu0 %v2815, 64
        %v4764 = vpop.permute.xlu0 %4763
        %4765 = vrot.lane.b32.xlu0 %v2816, 64
        %v4766 = vpop.permute.xlu0 %4765
        %4767 = vrot.lane.b32.xlu0 %v2817, 64
        %v4768 = vpop.permute.xlu0 %4767
        %4769 = vrot.lane.b32.xlu0 %v2818, 64
        %v4770 = vpop.permute.xlu0 %4769
        %4771 = vrot.lane.b32.xlu0 %v2819, 64
        %v4772 = vpop.permute.xlu0 %4771
        %4773 = vrot.lane.b32.xlu0 %v2820, 64
        %v4774 = vpop.permute.xlu0 %4773
        %4775 = vrot.lane.b32.xlu0 %v2821, 64
        %v4776 = vpop.permute.xlu0 %4775
        %4777 = vrot.lane.b32.xlu0 %v2822, 64
        %v4778 = vpop.permute.xlu0 %4777
        %4779 = vrot.lane.b32.xlu0 %v2823, 64
        %v4780 = vpop.permute.xlu0 %4779
        %4781 = vrot.lane.b32.xlu0 %v2824, 64
        %v4782 = vpop.permute.xlu0 %4781
        %4783 = vrot.lane.b32.xlu0 %v2825, 64
        %v4784 = vpop.permute.xlu0 %4783
        %4785 = vrot.lane.b32.xlu0 %v2826, 64
        %v4786 = vpop.permute.xlu0 %4785
        %4787 = vrot.lane.b32.xlu0 %v2827, 64
        %v4788 = vpop.permute.xlu0 %4787
        %4789 = vrot.lane.b32.xlu0 %v2828, 64
        %v4790 = vpop.permute.xlu0 %4789
        %4791 = vrot.lane.b32.xlu0 %v2829, 64
        %v4792 = vpop.permute.xlu0 %4791
        %4793 = vrot.lane.b32.xlu0 %v2830, 64
        %v4794 = vpop.permute.xlu0 %4793
        %4795 = vrot.lane.b32.xlu0 %v2831, 64
        %v4796 = vpop.permute.xlu0 %4795
        %4797 = vrot.lane.b32.xlu0 %v2832, 64
        %v4798 = vpop.permute.xlu0 %4797
        %4799 = vrot.lane.b32.xlu0 %v2833, 64
        %v4800 = vpop.permute.xlu0 %4799
        %4801 = vrot.lane.b32.xlu0 %v2834, 64
        %v4802 = vpop.permute.xlu0 %4801
        %4803 = vrot.lane.b32.xlu0 %v2835, 64
        %v4804 = vpop.permute.xlu0 %4803
        %4805 = vrot.lane.b32.xlu0 %v2836, 64
        %v4806 = vpop.permute.xlu0 %4805
        %4807 = vrot.lane.b32.xlu0 %v2837, 64
        %v4808 = vpop.permute.xlu0 %4807
        %4809 = vrot.lane.b32.xlu0 %v2838, 64
        %v4810 = vpop.permute.xlu0 %4809
        %4811 = vrot.lane.b32.xlu0 %v2839, 64
        %v4812 = vpop.permute.xlu0 %4811
        %4813 = vrot.lane.b32.xlu0 %v2840, 64
        %v4814 = vpop.permute.xlu0 %4813
        %4815 = vrot.lane.b32.xlu0 %v2841, 64
        %v4816 = vpop.permute.xlu0 %4815
        %4817 = vrot.lane.b32.xlu0 %v2842, 64
        %v4818 = vpop.permute.xlu0 %4817
        %4819 = vrot.lane.b32.xlu0 %v2843, 64
        %v4820 = vpop.permute.xlu0 %4819
        %4821 = vrot.lane.b32.xlu0 %v2844, 64
        %v4822 = vpop.permute.xlu0 %4821
        %4823 = vrot.lane.b32.xlu0 %v2845, 64
        %v4824 = vpop.permute.xlu0 %4823
        %4825 = vrot.lane.b32.xlu0 %v2846, 64
        %v4826 = vpop.permute.xlu0 %4825
        %4827 = vrot.lane.b32.xlu0 %v2847, 64
        %v4828 = vpop.permute.xlu0 %4827
        %4829 = vrot.lane.b32.xlu0 %v2848, 64
        %v4830 = vpop.permute.xlu0 %4829
        %4831 = vrot.lane.b32.xlu0 %v2849, 64
        %v4832 = vpop.permute.xlu0 %4831
        %4833 = vrot.lane.b32.xlu0 %v2850, 64
        %v4834 = vpop.permute.xlu0 %4833
        %4835 = vrot.lane.b32.xlu0 %v2851, 64
        %v4836 = vpop.permute.xlu0 %4835
        %4837 = vrot.lane.b32.xlu0 %v2852, 64
        %v4838 = vpop.permute.xlu0 %4837
        %4839 = vrot.lane.b32.xlu0 %v2853, 64
        %v4840 = vpop.permute.xlu0 %4839
        %4841 = vrot.lane.b32.xlu0 %v2854, 64
        %v4842 = vpop.permute.xlu0 %4841
        %4843 = vrot.lane.b32.xlu0 %v2855, 64
        %v4844 = vpop.permute.xlu0 %4843
        %4845 = vrot.lane.b32.xlu0 %v2856, 64
        %v4846 = vpop.permute.xlu0 %4845
        %4847 = vrot.lane.b32.xlu0 %v2857, 64
        %v4848 = vpop.permute.xlu0 %4847
        %4849 = vrot.lane.b32.xlu0 %v2858, 64
        %v4850 = vpop.permute.xlu0 %4849
        %4851 = vrot.lane.b32.xlu0 %v2859, 64
        %v4852 = vpop.permute.xlu0 %4851
        %4853 = vrot.lane.b32.xlu0 %v2860, 64
        %v4854 = vpop.permute.xlu0 %4853
        %4855 = vrot.lane.b32.xlu0 %v2861, 64
        %v4856 = vpop.permute.xlu0 %4855
        %4857 = vrot.lane.b32.xlu0 %v2862, 64
        %v4858 = vpop.permute.xlu0 %4857
        %4859 = vrot.lane.b32.xlu0 %v2863, 64
        %v4860 = vpop.permute.xlu0 %4859
        %4861 = vrot.lane.b32.xlu0 %v2864, 64
        %v4862 = vpop.permute.xlu0 %4861
        %4863 = vrot.lane.b32.xlu0 %v2865, 64
        %v4864 = vpop.permute.xlu0 %4863
        %4865 = vrot.lane.b32.xlu0 %v2866, 64
        %v4866 = vpop.permute.xlu0 %4865
        %4867 = vrot.lane.b32.xlu0 %v2867, 64
        %v4868 = vpop.permute.xlu0 %4867
        %4869 = vrot.lane.b32.xlu0 %v2868, 64
        %v4870 = vpop.permute.xlu0 %4869
        %4871 = vrot.lane.b32.xlu0 %v2869, 64
        %v4872 = vpop.permute.xlu0 %4871
        %4873 = vrot.lane.b32.xlu0 %v2870, 64
        %v4874 = vpop.permute.xlu0 %4873
        %4875 = vrot.lane.b32.xlu0 %v2871, 64
        %v4876 = vpop.permute.xlu0 %4875
        %4877 = vrot.lane.b32.xlu0 %v2872, 64
        %v4878 = vpop.permute.xlu0 %4877
        %4879 = vrot.lane.b32.xlu0 %v2873, 64
        %v4880 = vpop.permute.xlu0 %4879
        %4881 = vrot.lane.b32.xlu0 %v2874, 64
        %v4882 = vpop.permute.xlu0 %4881
        %4883 = vrot.lane.b32.xlu0 %v2875, 64
        %v4884 = vpop.permute.xlu0 %4883
        %4885 = vrot.lane.b32.xlu0 %v2876, 64
        %v4886 = vpop.permute.xlu0 %4885
        %4887 = vrot.lane.b32.xlu0 %v2877, 64
        %v4888 = vpop.permute.xlu0 %4887
        %4889 = vrot.lane.b32.xlu0 %v2878, 64
        %v4890 = vpop.permute.xlu0 %4889
        %4891 = vrot.lane.b32.xlu0 %v2879, 64
        %v4892 = vpop.permute.xlu0 %4891
        %4893 = vrot.lane.b32.xlu0 %v2880, 64
        %v4894 = vpop.permute.xlu0 %4893
        %4895 = vrot.lane.b32.xlu0 %v2881, 64
        %v4896 = vpop.permute.xlu0 %4895
        %4897 = vrot.lane.b32.xlu0 %v2882, 64
        %v4898 = vpop.permute.xlu0 %4897
        %4899 = vrot.lane.b32.xlu0 %v2883, 64
        %v4900 = vpop.permute.xlu0 %4899
        %4901 = vrot.lane.b32.xlu0 %v2884, 64
        %v4902 = vpop.permute.xlu0 %4901
        %4903 = vrot.lane.b32.xlu0 %v2885, 64
        %v4904 = vpop.permute.xlu0 %4903
        %4905 = vrot.lane.b32.xlu0 %v2886, 64
        %v4906 = vpop.permute.xlu0 %4905
        %4907 = vrot.lane.b32.xlu0 %v2887, 64
        %v4908 = vpop.permute.xlu0 %4907
        %4909 = vrot.lane.b32.xlu0 %v2888, 64
        %v4910 = vpop.permute.xlu0 %4909
        %4911 = vrot.lane.b32.xlu0 %v2889, 64
        %v4912 = vpop.permute.xlu0 %4911
        %4913 = vrot.lane.b32.xlu0 %v2890, 64
        %v4914 = vpop.permute.xlu0 %4913
        %4915 = vrot.lane.b32.xlu0 %v2891, 64
        %v4916 = vpop.permute.xlu0 %4915
        %4917 = vrot.lane.b32.xlu0 %v2892, 64
        %v4918 = vpop.permute.xlu0 %4917
        %4919 = vrot.lane.b32.xlu0 %v2893, 64
        %v4920 = vpop.permute.xlu0 %4919
        %4921 = vrot.lane.b32.xlu0 %v2894, 64
        %v4922 = vpop.permute.xlu0 %4921
        %4923 = vrot.lane.b32.xlu0 %v2895, 64
        %v4924 = vpop.permute.xlu0 %4923
        %4925 = vrot.lane.b32.xlu0 %v2896, 64
        %v4926 = vpop.permute.xlu0 %4925
        %4927 = vrot.lane.b32.xlu0 %v2897, 64
        %v4928 = vpop.permute.xlu0 %4927
        %4929 = vrot.lane.b32.xlu0 %v2898, 64
        %v4930 = vpop.permute.xlu0 %4929
        %4931 = vrot.lane.b32.xlu0 %v2899, 64
        %v4932 = vpop.permute.xlu0 %4931
        %4933 = vrot.lane.b32.xlu0 %v2900, 64
        %v4934 = vpop.permute.xlu0 %4933
        %4935 = vrot.lane.b32.xlu0 %v2901, 64
        %v4936 = vpop.permute.xlu0 %4935
        %4937 = vrot.lane.b32.xlu0 %v2902, 64
        %v4938 = vpop.permute.xlu0 %4937
        %4939 = vrot.lane.b32.xlu0 %v2903, 64
        %v4940 = vpop.permute.xlu0 %4939
        %4941 = vrot.lane.b32.xlu0 %v2904, 64
        %v4942 = vpop.permute.xlu0 %4941
        %4943 = vrot.lane.b32.xlu0 %v2905, 64
        %v4944 = vpop.permute.xlu0 %4943
        %4945 = vrot.lane.b32.xlu0 %v2906, 64
        %v4946 = vpop.permute.xlu0 %4945
        %4947 = vrot.lane.b32.xlu0 %v2907, 64
        %v4948 = vpop.permute.xlu0 %4947
        %4949 = vrot.lane.b32.xlu0 %v2908, 64
        %v4950 = vpop.permute.xlu0 %4949
        %4951 = vrot.lane.b32.xlu0 %v2909, 64
        %v4952 = vpop.permute.xlu0 %4951
        %4953 = vrot.lane.b32.xlu0 %v2910, 64
        %v4954 = vpop.permute.xlu0 %4953
        %4955 = vrot.lane.b32.xlu0 %v2911, 64
        %v4956 = vpop.permute.xlu0 %4955
        %4957 = vrot.lane.b32.xlu0 %v2912, 64
        %v4958 = vpop.permute.xlu0 %4957
        %4959 = vrot.lane.b32.xlu0 %v2913, 64
        %v4960 = vpop.permute.xlu0 %4959
        %4961 = vrot.lane.b32.xlu0 %v2914, 64
        %v4962 = vpop.permute.xlu0 %4961
        %v5091 = vsel %vm230, %v1890, %v3172
        %v5092 = vsel %vm230, %v1891, %v3174
        %v5093 = vsel %vm230, %v1892, %v3176
        %v5094 = vsel %vm230, %v1893, %v3178
        %v5095 = vsel %vm230, %v1894, %v3180
        %v5096 = vsel %vm230, %v1895, %v3182
        %v5097 = vsel %vm230, %v1896, %v3184
        %v5098 = vsel %vm230, %v1897, %v3186
        %v5099 = vsel %vm230, %v1898, %v3188
        %v5100 = vsel %vm230, %v1899, %v3190
        %v5101 = vsel %vm230, %v1900, %v3192
        %v5102 = vsel %vm230, %v1901, %v3194
        %v5103 = vsel %vm230, %v1902, %v3196
        %v5104 = vsel %vm230, %v1903, %v3198
        %v5105 = vsel %vm230, %v1904, %v3200
        %v5106 = vsel %vm230, %v1905, %v3202
        %v5107 = vsel %vm230, %v1906, %v3204
        %v5108 = vsel %vm230, %v1907, %v3206
        %v5109 = vsel %vm230, %v1908, %v3208
        %v5110 = vsel %vm230, %v1909, %v3210
        %v5111 = vsel %vm230, %v1910, %v3212
        %v5112 = vsel %vm230, %v1911, %v3214
        %v5113 = vsel %vm230, %v1912, %v3216
        %v5114 = vsel %vm230, %v1913, %v3218
        %v5115 = vsel %vm230, %v1914, %v3220
        %v5116 = vsel %vm230, %v1915, %v3222
        %v5117 = vsel %vm230, %v1916, %v3224
        %v5118 = vsel %vm230, %v1917, %v3226
        %v5119 = vsel %vm230, %v1918, %v3228
        %v5120 = vsel %vm230, %v1919, %v3230
        %v5121 = vsel %vm230, %v1920, %v3232
        %v5122 = vsel %vm230, %v1921, %v3234
        %v5123 = vsel %vm230, %v1922, %v3236
        %v5124 = vsel %vm230, %v1923, %v3238
        %v5125 = vsel %vm230, %v1924, %v3240
        %v5126 = vsel %vm230, %v1925, %v3242
        %v5127 = vsel %vm230, %v1926, %v3244
        %v5128 = vsel %vm230, %v1927, %v3246
        %v5129 = vsel %vm230, %v1928, %v3248
        %v5130 = vsel %vm230, %v1929, %v3250
        %v5131 = vsel %vm230, %v1930, %v3252
        %v5132 = vsel %vm230, %v1931, %v3254
        %v5133 = vsel %vm230, %v1932, %v3256
        %v5134 = vsel %vm230, %v1933, %v3258
        %v5135 = vsel %vm230, %v1934, %v3260
        %v5136 = vsel %vm230, %v1935, %v3262
        %v5137 = vsel %vm230, %v1936, %v3264
        %v5138 = vsel %vm230, %v1937, %v3266
        %v5139 = vsel %vm230, %v1938, %v3268
        %v5140 = vsel %vm230, %v1939, %v3270
        %v5141 = vsel %vm230, %v1940, %v3272
        %v5142 = vsel %vm230, %v1941, %v3274
        %v5143 = vsel %vm230, %v1942, %v3276
        %v5144 = vsel %vm230, %v1943, %v3278
        %v5145 = vsel %vm230, %v1944, %v3280
        %v5146 = vsel %vm230, %v1945, %v3282
        %v5147 = vsel %vm230, %v1946, %v3284
        %v5148 = vsel %vm230, %v1947, %v3286
        %v5149 = vsel %vm230, %v1948, %v3288
        %v5150 = vsel %vm230, %v1949, %v3290
        %v5151 = vsel %vm230, %v1950, %v3292
        %v5152 = vsel %vm230, %v1951, %v3294
        %v5153 = vsel %vm230, %v1952, %v3296
        %v5154 = vsel %vm230, %v1953, %v3298
        %v5155 = vsel %vm230, %v1954, %v3300
        %v5156 = vsel %vm230, %v1955, %v3302
        %v5157 = vsel %vm230, %v1956, %v3304
        %v5158 = vsel %vm230, %v1957, %v3306
        %v5159 = vsel %vm230, %v1958, %v3308
        %v5160 = vsel %vm230, %v1959, %v3310
        %v5161 = vsel %vm230, %v1960, %v3312
        %v5162 = vsel %vm230, %v1961, %v3314
        %v5163 = vsel %vm230, %v1962, %v3316
        %v5164 = vsel %vm230, %v1963, %v3318
        %v5165 = vsel %vm230, %v1964, %v3320
        %v5166 = vsel %vm230, %v1965, %v3322
        %v5167 = vsel %vm230, %v1966, %v3324
        %v5168 = vsel %vm230, %v1967, %v3326
        %v5169 = vsel %vm230, %v1968, %v3328
        %v5170 = vsel %vm230, %v1969, %v3330
        %v5171 = vsel %vm230, %v1970, %v3332
        %v5172 = vsel %vm230, %v1971, %v3334
        %v5173 = vsel %vm230, %v1972, %v3336
        %v5174 = vsel %vm230, %v1973, %v3338
        %v5175 = vsel %vm230, %v1974, %v3340
        %v5176 = vsel %vm230, %v1975, %v3342
        %v5177 = vsel %vm230, %v1976, %v3344
        %v5178 = vsel %vm230, %v1977, %v3346
        %v5179 = vsel %vm230, %v1978, %v3348
        %v5180 = vsel %vm230, %v1979, %v3350
        %v5181 = vsel %vm230, %v1980, %v3352
        %v5182 = vsel %vm230, %v1981, %v3354
        %v5183 = vsel %vm230, %v1982, %v3356
        %v5184 = vsel %vm230, %v1983, %v3358
        %v5185 = vsel %vm230, %v1984, %v3360
        %v5186 = vsel %vm230, %v1985, %v3362
        %v5187 = vsel %vm230, %v1986, %v3364
        %v5188 = vsel %vm230, %v1987, %v3366
        %v5189 = vsel %vm230, %v1988, %v3368
        %v5190 = vsel %vm230, %v1989, %v3370
        %v5191 = vsel %vm230, %v1990, %v3372
        %v5192 = vsel %vm230, %v1991, %v3374
        %v5193 = vsel %vm230, %v1992, %v3376
        %v5194 = vsel %vm230, %v1993, %v3378
        %v5195 = vsel %vm230, %v1994, %v3380
        %v5196 = vsel %vm230, %v1995, %v3382
        %v5197 = vsel %vm230, %v1996, %v3384
        %v5198 = vsel %vm230, %v1997, %v3386
        %v5199 = vsel %vm230, %v1998, %v3388
        %v5200 = vsel %vm230, %v1999, %v3390
        %v5201 = vsel %vm230, %v2000, %v3392
        %v5202 = vsel %vm230, %v2001, %v3394
        %v5203 = vsel %vm230, %v2002, %v3396
        %v5204 = vsel %vm230, %v2003, %v3398
        %v5205 = vsel %vm230, %v2004, %v3400
        %v5206 = vsel %vm230, %v2005, %v3402
        %v5207 = vsel %vm230, %v2006, %v3404
        %v5208 = vsel %vm230, %v2007, %v3406
        %v5209 = vsel %vm230, %v2008, %v3408
        %v5210 = vsel %vm230, %v2009, %v3410
        %v5211 = vsel %vm230, %v2010, %v3412
        %v5212 = vsel %vm230, %v2011, %v3414
        %v5213 = vsel %vm230, %v2012, %v3416
        %v5214 = vsel %vm230, %v2013, %v3418
        %v5215 = vsel %vm230, %v2014, %v3420
        %v5216 = vsel %vm230, %v2015, %v3422
        %v5217 = vsel %vm230, %v2016, %v3424
        %v5218 = vsel %vm230, %v2017, %v3426
        %v5219 = vsel %vm230, %v2146, %v3684
        %v5220 = vsel %vm230, %v2147, %v3686
        %v5221 = vsel %vm230, %v2148, %v3688
        %v5222 = vsel %vm230, %v2149, %v3690
        %v5223 = vsel %vm230, %v2150, %v3692
        %v5224 = vsel %vm230, %v2151, %v3694
        %v5225 = vsel %vm230, %v2152, %v3696
        %v5226 = vsel %vm230, %v2153, %v3698
        %v5227 = vsel %vm230, %v2154, %v3700
        %v5228 = vsel %vm230, %v2155, %v3702
        %v5229 = vsel %vm230, %v2156, %v3704
        %v5230 = vsel %vm230, %v2157, %v3706
        %v5231 = vsel %vm230, %v2158, %v3708
        %v5232 = vsel %vm230, %v2159, %v3710
        %v5233 = vsel %vm230, %v2160, %v3712
        %v5234 = vsel %vm230, %v2161, %v3714
        %v5235 = vsel %vm230, %v2162, %v3716
        %v5236 = vsel %vm230, %v2163, %v3718
        %v5237 = vsel %vm230, %v2164, %v3720
        %v5238 = vsel %vm230, %v2165, %v3722
        %v5239 = vsel %vm230, %v2166, %v3724
        %v5240 = vsel %vm230, %v2167, %v3726
        %v5241 = vsel %vm230, %v2168, %v3728
        %v5242 = vsel %vm230, %v2169, %v3730
        %v5243 = vsel %vm230, %v2170, %v3732
        %v5244 = vsel %vm230, %v2171, %v3734
        %v5245 = vsel %vm230, %v2172, %v3736
        %v5246 = vsel %vm230, %v2173, %v3738
        %v5247 = vsel %vm230, %v2174, %v3740
        %v5248 = vsel %vm230, %v2175, %v3742
        %v5249 = vsel %vm230, %v2176, %v3744
        %v5250 = vsel %vm230, %v2177, %v3746
        %v5251 = vsel %vm230, %v2178, %v3748
        %v5252 = vsel %vm230, %v2179, %v3750
        %v5253 = vsel %vm230, %v2180, %v3752
        %v5254 = vsel %vm230, %v2181, %v3754
        %v5255 = vsel %vm230, %v2182, %v3756
        %v5256 = vsel %vm230, %v2183, %v3758
        %v5257 = vsel %vm230, %v2184, %v3760
        %v5258 = vsel %vm230, %v2185, %v3762
        %v5259 = vsel %vm230, %v2186, %v3764
        %v5260 = vsel %vm230, %v2187, %v3766
        %v5261 = vsel %vm230, %v2188, %v3768
        %v5262 = vsel %vm230, %v2189, %v3770
        %v5263 = vsel %vm230, %v2190, %v3772
        %v5264 = vsel %vm230, %v2191, %v3774
        %v5265 = vsel %vm230, %v2192, %v3776
        %v5266 = vsel %vm230, %v2193, %v3778
        %v5267 = vsel %vm230, %v2194, %v3780
        %v5268 = vsel %vm230, %v2195, %v3782
        %v5269 = vsel %vm230, %v2196, %v3784
        %v5270 = vsel %vm230, %v2197, %v3786
        %v5271 = vsel %vm230, %v2198, %v3788
        %v5272 = vsel %vm230, %v2199, %v3790
        %v5273 = vsel %vm230, %v2200, %v3792
        %v5274 = vsel %vm230, %v2201, %v3794
        %v5275 = vsel %vm230, %v2202, %v3796
        %v5276 = vsel %vm230, %v2203, %v3798
        %v5277 = vsel %vm230, %v2204, %v3800
        %v5278 = vsel %vm230, %v2205, %v3802
        %v5279 = vsel %vm230, %v2206, %v3804
        %v5280 = vsel %vm230, %v2207, %v3806
        %v5281 = vsel %vm230, %v2208, %v3808
        %v5282 = vsel %vm230, %v2209, %v3810
        %v5283 = vsel %vm230, %v2210, %v3812
        %v5284 = vsel %vm230, %v2211, %v3814
        %v5285 = vsel %vm230, %v2212, %v3816
        %v5286 = vsel %vm230, %v2213, %v3818
        %v5287 = vsel %vm230, %v2214, %v3820
        %v5288 = vsel %vm230, %v2215, %v3822
        %v5289 = vsel %vm230, %v2216, %v3824
        %v5290 = vsel %vm230, %v2217, %v3826
        %v5291 = vsel %vm230, %v2218, %v3828
        %v5292 = vsel %vm230, %v2219, %v3830
        %v5293 = vsel %vm230, %v2220, %v3832
        %v5294 = vsel %vm230, %v2221, %v3834
        %v5295 = vsel %vm230, %v2222, %v3836
        %v5296 = vsel %vm230, %v2223, %v3838
        %v5297 = vsel %vm230, %v2224, %v3840
        %v5298 = vsel %vm230, %v2225, %v3842
        %v5299 = vsel %vm230, %v2226, %v3844
        %v5300 = vsel %vm230, %v2227, %v3846
        %v5301 = vsel %vm230, %v2228, %v3848
        %v5302 = vsel %vm230, %v2229, %v3850
        %v5303 = vsel %vm230, %v2230, %v3852
        %v5304 = vsel %vm230, %v2231, %v3854
        %v5305 = vsel %vm230, %v2232, %v3856
        %v5306 = vsel %vm230, %v2233, %v3858
        %v5307 = vsel %vm230, %v2234, %v3860
        %v5308 = vsel %vm230, %v2235, %v3862
        %v5309 = vsel %vm230, %v2236, %v3864
        %v5310 = vsel %vm230, %v2237, %v3866
        %v5311 = vsel %vm230, %v2238, %v3868
        %v5312 = vsel %vm230, %v2239, %v3870
        %v5313 = vsel %vm230, %v2240, %v3872
        %v5314 = vsel %vm230, %v2241, %v3874
        %v5315 = vsel %vm230, %v2242, %v3876
        %v5316 = vsel %vm230, %v2243, %v3878
        %v5317 = vsel %vm230, %v2244, %v3880
        %v5318 = vsel %vm230, %v2245, %v3882
        %v5319 = vsel %vm230, %v2246, %v3884
        %v5320 = vsel %vm230, %v2247, %v3886
        %v5321 = vsel %vm230, %v2248, %v3888
        %v5322 = vsel %vm230, %v2249, %v3890
        %v5323 = vsel %vm230, %v2250, %v3892
        %v5324 = vsel %vm230, %v2251, %v3894
        %v5325 = vsel %vm230, %v2252, %v3896
        %v5326 = vsel %vm230, %v2253, %v3898
        %v5327 = vsel %vm230, %v2254, %v3900
        %v5328 = vsel %vm230, %v2255, %v3902
        %v5329 = vsel %vm230, %v2256, %v3904
        %v5330 = vsel %vm230, %v2257, %v3906
        %v5331 = vsel %vm230, %v2258, %v3908
        %v5332 = vsel %vm230, %v2259, %v3910
        %v5333 = vsel %vm230, %v2260, %v3912
        %v5334 = vsel %vm230, %v2261, %v3914
        %v5335 = vsel %vm230, %v2262, %v3916
        %v5336 = vsel %vm230, %v2263, %v3918
        %v5337 = vsel %vm230, %v2264, %v3920
        %v5338 = vsel %vm230, %v2265, %v3922
        %v5339 = vsel %vm230, %v2266, %v3924
        %v5340 = vsel %vm230, %v2267, %v3926
        %v5341 = vsel %vm230, %v2268, %v3928
        %v5342 = vsel %vm230, %v2269, %v3930
        %v5343 = vsel %vm230, %v2270, %v3932
        %v5344 = vsel %vm230, %v2271, %v3934
        %v5345 = vsel %vm230, %v2272, %v3936
        %v5346 = vsel %vm230, %v2273, %v3938
        %v5347 = vsel %vm230, %v2402, %v4196
        %v5348 = vsel %vm230, %v2403, %v4198
        %v5349 = vsel %vm230, %v2404, %v4200
        %v5350 = vsel %vm230, %v2405, %v4202
        %v5351 = vsel %vm230, %v2406, %v4204
        %v5352 = vsel %vm230, %v2407, %v4206
        %v5353 = vsel %vm230, %v2408, %v4208
        %v5354 = vsel %vm230, %v2409, %v4210
        %v5355 = vsel %vm230, %v2410, %v4212
        %v5356 = vsel %vm230, %v2411, %v4214
        %v5357 = vsel %vm230, %v2412, %v4216
        %v5358 = vsel %vm230, %v2413, %v4218
        %v5359 = vsel %vm230, %v2414, %v4220
        %v5360 = vsel %vm230, %v2415, %v4222
        %v5361 = vsel %vm230, %v2416, %v4224
        %v5362 = vsel %vm230, %v2417, %v4226
        %v5363 = vsel %vm230, %v2418, %v4228
        %v5364 = vsel %vm230, %v2419, %v4230
        %v5365 = vsel %vm230, %v2420, %v4232
        %v5366 = vsel %vm230, %v2421, %v4234
        %v5367 = vsel %vm230, %v2422, %v4236
        %v5368 = vsel %vm230, %v2423, %v4238
        %v5369 = vsel %vm230, %v2424, %v4240
        %v5370 = vsel %vm230, %v2425, %v4242
        %v5371 = vsel %vm230, %v2426, %v4244
        %v5372 = vsel %vm230, %v2427, %v4246
        %v5373 = vsel %vm230, %v2428, %v4248
        %v5374 = vsel %vm230, %v2429, %v4250
        %v5375 = vsel %vm230, %v2430, %v4252
        %v5376 = vsel %vm230, %v2431, %v4254
        %v5377 = vsel %vm230, %v2432, %v4256
        %v5378 = vsel %vm230, %v2433, %v4258
        %v5379 = vsel %vm230, %v2434, %v4260
        %v5380 = vsel %vm230, %v2435, %v4262
        %v5381 = vsel %vm230, %v2436, %v4264
        %v5382 = vsel %vm230, %v2437, %v4266
        %v5383 = vsel %vm230, %v2438, %v4268
        %v5384 = vsel %vm230, %v2439, %v4270
        %v5385 = vsel %vm230, %v2440, %v4272
        %v5386 = vsel %vm230, %v2441, %v4274
        %v5387 = vsel %vm230, %v2442, %v4276
        %v5388 = vsel %vm230, %v2443, %v4278
        %v5389 = vsel %vm230, %v2444, %v4280
        %v5390 = vsel %vm230, %v2445, %v4282
        %v5391 = vsel %vm230, %v2446, %v4284
        %v5392 = vsel %vm230, %v2447, %v4286
        %v5393 = vsel %vm230, %v2448, %v4288
        %v5394 = vsel %vm230, %v2449, %v4290
        %v5395 = vsel %vm230, %v2450, %v4292
        %v5396 = vsel %vm230, %v2451, %v4294
        %v5397 = vsel %vm230, %v2452, %v4296
        %v5398 = vsel %vm230, %v2453, %v4298
        %v5399 = vsel %vm230, %v2454, %v4300
        %v5400 = vsel %vm230, %v2455, %v4302
        %v5401 = vsel %vm230, %v2456, %v4304
        %v5402 = vsel %vm230, %v2457, %v4306
        %v5403 = vsel %vm230, %v2458, %v4308
        %v5404 = vsel %vm230, %v2459, %v4310
        %v5405 = vsel %vm230, %v2460, %v4312
        %v5406 = vsel %vm230, %v2461, %v4314
        %v5407 = vsel %vm230, %v2462, %v4316
        %v5408 = vsel %vm230, %v2463, %v4318
        %v5409 = vsel %vm230, %v2464, %v4320
        %v5410 = vsel %vm230, %v2465, %v4322
        %v5411 = vsel %vm230, %v2466, %v4324
        %v5412 = vsel %vm230, %v2467, %v4326
        %v5413 = vsel %vm230, %v2468, %v4328
        %v5414 = vsel %vm230, %v2469, %v4330
        %v5415 = vsel %vm230, %v2470, %v4332
        %v5416 = vsel %vm230, %v2471, %v4334
        %v5417 = vsel %vm230, %v2472, %v4336
        %v5418 = vsel %vm230, %v2473, %v4338
        %v5419 = vsel %vm230, %v2474, %v4340
        %v5420 = vsel %vm230, %v2475, %v4342
        %v5421 = vsel %vm230, %v2476, %v4344
        %v5422 = vsel %vm230, %v2477, %v4346
        %v5423 = vsel %vm230, %v2478, %v4348
        %v5424 = vsel %vm230, %v2479, %v4350
        %v5425 = vsel %vm230, %v2480, %v4352
        %v5426 = vsel %vm230, %v2481, %v4354
        %v5427 = vsel %vm230, %v2482, %v4356
        %v5428 = vsel %vm230, %v2483, %v4358
        %v5429 = vsel %vm230, %v2484, %v4360
        %v5430 = vsel %vm230, %v2485, %v4362
        %v5431 = vsel %vm230, %v2486, %v4364
        %v5432 = vsel %vm230, %v2487, %v4366
        %v5433 = vsel %vm230, %v2488, %v4368
        %v5434 = vsel %vm230, %v2489, %v4370
        %v5435 = vsel %vm230, %v2490, %v4372
        %v5436 = vsel %vm230, %v2491, %v4374
        %v5437 = vsel %vm230, %v2492, %v4376
        %v5438 = vsel %vm230, %v2493, %v4378
        %v5439 = vsel %vm230, %v2494, %v4380
        %v5440 = vsel %vm230, %v2495, %v4382
        %v5441 = vsel %vm230, %v2496, %v4384
        %v5442 = vsel %vm230, %v2497, %v4386
        %v5443 = vsel %vm230, %v2498, %v4388
        %v5444 = vsel %vm230, %v2499, %v4390
        %v5445 = vsel %vm230, %v2500, %v4392
        %v5446 = vsel %vm230, %v2501, %v4394
        %v5447 = vsel %vm230, %v2502, %v4396
        %v5448 = vsel %vm230, %v2503, %v4398
        %v5449 = vsel %vm230, %v2504, %v4400
        %v5450 = vsel %vm230, %v2505, %v4402
        %v5451 = vsel %vm230, %v2506, %v4404
        %v5452 = vsel %vm230, %v2507, %v4406
        %v5453 = vsel %vm230, %v2508, %v4408
        %v5454 = vsel %vm230, %v2509, %v4410
        %v5455 = vsel %vm230, %v2510, %v4412
        %v5456 = vsel %vm230, %v2511, %v4414
        %v5457 = vsel %vm230, %v2512, %v4416
        %v5458 = vsel %vm230, %v2513, %v4418
        %v5459 = vsel %vm230, %v2514, %v4420
        %v5460 = vsel %vm230, %v2515, %v4422
        %v5461 = vsel %vm230, %v2516, %v4424
        %v5462 = vsel %vm230, %v2517, %v4426
        %v5463 = vsel %vm230, %v2518, %v4428
        %v5464 = vsel %vm230, %v2519, %v4430
        %v5465 = vsel %vm230, %v2520, %v4432
        %v5466 = vsel %vm230, %v2521, %v4434
        %v5467 = vsel %vm230, %v2522, %v4436
        %v5468 = vsel %vm230, %v2523, %v4438
        %v5469 = vsel %vm230, %v2524, %v4440
        %v5470 = vsel %vm230, %v2525, %v4442
        %v5471 = vsel %vm230, %v2526, %v4444
        %v5472 = vsel %vm230, %v2527, %v4446
        %v5473 = vsel %vm230, %v2528, %v4448
        %v5474 = vsel %vm230, %v2529, %v4450
        %v5475 = vsel %vm230, %v2659, %v4708
        %v5476 = vsel %vm230, %v2660, %v4710
        %v5477 = vsel %vm230, %v2661, %v4712
        %v5478 = vsel %vm230, %v2662, %v4714
        %v5479 = vsel %vm230, %v2663, %v4716
        %v5480 = vsel %vm230, %v2664, %v4718
        %v5481 = vsel %vm230, %v2665, %v4720
        %v5482 = vsel %vm230, %v2666, %v4722
        %v5483 = vsel %vm230, %v2667, %v4724
        %v5484 = vsel %vm230, %v2668, %v4726
        %v5485 = vsel %vm230, %v2669, %v4728
        %v5486 = vsel %vm230, %v2670, %v4730
        %v5487 = vsel %vm230, %v2671, %v4732
        %v5488 = vsel %vm230, %v2672, %v4734
        %v5489 = vsel %vm230, %v2673, %v4736
        %v5490 = vsel %vm230, %v2674, %v4738
        %v5491 = vsel %vm230, %v2675, %v4740
        %v5492 = vsel %vm230, %v2676, %v4742
        %v5493 = vsel %vm230, %v2677, %v4744
        %v5494 = vsel %vm230, %v2678, %v4746
        %v5495 = vsel %vm230, %v2679, %v4748
        %v5496 = vsel %vm230, %v2680, %v4750
        %v5497 = vsel %vm230, %v2681, %v4752
        %v5498 = vsel %vm230, %v2682, %v4754
        %v5499 = vsel %vm230, %v2683, %v4756
        %v5500 = vsel %vm230, %v2684, %v4758
        %v5501 = vsel %vm230, %v2685, %v4760
        %v5502 = vsel %vm230, %v2686, %v4762
        %v5503 = vsel %vm230, %v2687, %v4764
        %v5504 = vsel %vm230, %v2688, %v4766
        %v5505 = vsel %vm230, %v2689, %v4768
        %v5506 = vsel %vm230, %v2690, %v4770
        %v5507 = vsel %vm230, %v2691, %v4772
        %v5508 = vsel %vm230, %v2692, %v4774
        %v5509 = vsel %vm230, %v2693, %v4776
        %v5510 = vsel %vm230, %v2694, %v4778
        %v5511 = vsel %vm230, %v2695, %v4780
        %v5512 = vsel %vm230, %v2696, %v4782
        %v5513 = vsel %vm230, %v2697, %v4784
        %v5514 = vsel %vm230, %v2698, %v4786
        %v5515 = vsel %vm230, %v2699, %v4788
        %v5516 = vsel %vm230, %v2700, %v4790
        %v5517 = vsel %vm230, %v2701, %v4792
        %v5518 = vsel %vm230, %v2702, %v4794
        %v5519 = vsel %vm230, %v2703, %v4796
        %v5520 = vsel %vm230, %v2704, %v4798
        %v5521 = vsel %vm230, %v2705, %v4800
        %v5522 = vsel %vm230, %v2706, %v4802
        %v5523 = vsel %vm230, %v2707, %v4804
        %v5524 = vsel %vm230, %v2708, %v4806
        %v5525 = vsel %vm230, %v2709, %v4808
        %v5526 = vsel %vm230, %v2710, %v4810
        %v5527 = vsel %vm230, %v2711, %v4812
        %v5528 = vsel %vm230, %v2712, %v4814
        %v5529 = vsel %vm230, %v2713, %v4816
        %v5530 = vsel %vm230, %v2714, %v4818
        %v5531 = vsel %vm230, %v2715, %v4820
        %v5532 = vsel %vm230, %v2716, %v4822
        %v5533 = vsel %vm230, %v2717, %v4824
        %v5534 = vsel %vm230, %v2718, %v4826
        %v5535 = vsel %vm230, %v2719, %v4828
        %v5536 = vsel %vm230, %v2720, %v4830
        %v5537 = vsel %vm230, %v2721, %v4832
        %v5538 = vsel %vm230, %v2722, %v4834
        %v5539 = vsel %vm230, %v2723, %v4836
        %v5540 = vsel %vm230, %v2724, %v4838
        %v5541 = vsel %vm230, %v2725, %v4840
        %v5542 = vsel %vm230, %v2726, %v4842
        %v5543 = vsel %vm230, %v2727, %v4844
        %v5544 = vsel %vm230, %v2728, %v4846
        %v5545 = vsel %vm230, %v2729, %v4848
        %v5546 = vsel %vm230, %v2730, %v4850
        %v5547 = vsel %vm230, %v2731, %v4852
        %v5548 = vsel %vm230, %v2732, %v4854
        %v5549 = vsel %vm230, %v2733, %v4856
        %v5550 = vsel %vm230, %v2734, %v4858
        %v5551 = vsel %vm230, %v2735, %v4860
        %v5552 = vsel %vm230, %v2736, %v4862
        %v5553 = vsel %vm230, %v2737, %v4864
        %v5554 = vsel %vm230, %v2738, %v4866
        %v5555 = vsel %vm230, %v2739, %v4868
        %v5556 = vsel %vm230, %v2740, %v4870
        %v5557 = vsel %vm230, %v2741, %v4872
        %v5558 = vsel %vm230, %v2742, %v4874
        %v5559 = vsel %vm230, %v2743, %v4876
        %v5560 = vsel %vm230, %v2744, %v4878
        %v5561 = vsel %vm230, %v2745, %v4880
        %v5562 = vsel %vm230, %v2746, %v4882
        %v5563 = vsel %vm230, %v2747, %v4884
        %v5564 = vsel %vm230, %v2748, %v4886
        %v5565 = vsel %vm230, %v2749, %v4888
        %v5566 = vsel %vm230, %v2750, %v4890
        %v5567 = vsel %vm230, %v2751, %v4892
        %v5568 = vsel %vm230, %v2752, %v4894
        %v5569 = vsel %vm230, %v2753, %v4896
        %v5570 = vsel %vm230, %v2754, %v4898
        %v5571 = vsel %vm230, %v2755, %v4900
        %v5572 = vsel %vm230, %v2756, %v4902
        %v5573 = vsel %vm230, %v2757, %v4904
        %v5574 = vsel %vm230, %v2758, %v4906
        %v5575 = vsel %vm230, %v2759, %v4908
        %v5576 = vsel %vm230, %v2760, %v4910
        %v5577 = vsel %vm230, %v2761, %v4912
        %v5578 = vsel %vm230, %v2762, %v4914
        %v5579 = vsel %vm230, %v2763, %v4916
        %v5580 = vsel %vm230, %v2764, %v4918
        %v5581 = vsel %vm230, %v2765, %v4920
        %v5582 = vsel %vm230, %v2766, %v4922
        %v5583 = vsel %vm230, %v2767, %v4924
        %v5584 = vsel %vm230, %v2768, %v4926
        %v5585 = vsel %vm230, %v2769, %v4928
        %v5586 = vsel %vm230, %v2770, %v4930
        %v5587 = vsel %vm230, %v2771, %v4932
        %v5588 = vsel %vm230, %v2772, %v4934
        %v5589 = vsel %vm230, %v2773, %v4936
        %v5590 = vsel %vm230, %v2774, %v4938
        %v5591 = vsel %vm230, %v2775, %v4940
        %v5592 = vsel %vm230, %v2776, %v4942
        %v5593 = vsel %vm230, %v2777, %v4944
        %v5594 = vsel %vm230, %v2778, %v4946
        %v5595 = vsel %vm230, %v2779, %v4948
        %v5596 = vsel %vm230, %v2780, %v4950
        %v5597 = vsel %vm230, %v2781, %v4952
        %v5598 = vsel %vm230, %v2782, %v4954
        %v5599 = vsel %vm230, %v2783, %v4956
        %v5600 = vsel %vm230, %v2784, %v4958
        %v5601 = vsel %vm230, %v2785, %v4960
        %v5602 = vsel %vm230, %v2786, %v4962
        %v5603 = vpack.c.bf16 %v5092, %v5091
        %v5604 = vpack.c.bf16 %v5220, %v5219
        %v5605 = vpack.c.bf16 %v5348, %v5347
        %v5606 = vpack.c.bf16 %v5476, %v5475
        %v5607 = vpack.c.bf16 %v2916, %v2915
        %v5608 = vpack.c.bf16 %v5094, %v5093
        %v5609 = vpack.c.bf16 %v5222, %v5221
        %v5610 = vpack.c.bf16 %v5350, %v5349
        %v5611 = vpack.c.bf16 %v5478, %v5477
        %v5612 = vpack.c.bf16 %v2918, %v2917
        %v5613 = vpack.c.bf16 %v5096, %v5095
        %v5614 = vpack.c.bf16 %v5224, %v5223
        %v5615 = vpack.c.bf16 %v5352, %v5351
        %v5616 = vpack.c.bf16 %v5480, %v5479
        %v5617 = vpack.c.bf16 %v2920, %v2919
        %v5618 = vpack.c.bf16 %v5098, %v5097
        %v5619 = vpack.c.bf16 %v5226, %v5225
        %v5620 = vpack.c.bf16 %v5354, %v5353
        %v5621 = vpack.c.bf16 %v5482, %v5481
        %v5622 = vpack.c.bf16 %v2922, %v2921
        %v5623 = vpack.c.bf16 %v5100, %v5099
        %v5624 = vpack.c.bf16 %v5228, %v5227
        %v5625 = vpack.c.bf16 %v5356, %v5355
        %v5626 = vpack.c.bf16 %v5484, %v5483
        %v5627 = vpack.c.bf16 %v2924, %v2923
        %v5628 = vpack.c.bf16 %v5102, %v5101
        %v5629 = vpack.c.bf16 %v5230, %v5229
        %v5630 = vpack.c.bf16 %v5358, %v5357
        %v5631 = vpack.c.bf16 %v5486, %v5485
        %v5632 = vpack.c.bf16 %v2926, %v2925
        %v5633 = vpack.c.bf16 %v5104, %v5103
        %v5634 = vpack.c.bf16 %v5232, %v5231
        %v5635 = vpack.c.bf16 %v5360, %v5359
        %v5636 = vpack.c.bf16 %v5488, %v5487
        %v5637 = vpack.c.bf16 %v2928, %v2927
        %v5638 = vpack.c.bf16 %v5106, %v5105
        %v5639 = vpack.c.bf16 %v5234, %v5233
        %v5640 = vpack.c.bf16 %v5362, %v5361
        %v5641 = vpack.c.bf16 %v5490, %v5489
        %v5642 = vpack.c.bf16 %v2930, %v2929
        %v5643 = vpack.c.bf16 %v5108, %v5107
        %v5644 = vpack.c.bf16 %v5236, %v5235
        %v5645 = vpack.c.bf16 %v5364, %v5363
        %v5646 = vpack.c.bf16 %v5492, %v5491
        %v5647 = vpack.c.bf16 %v2932, %v2931
        %v5648 = vpack.c.bf16 %v5110, %v5109
        %v5649 = vpack.c.bf16 %v5238, %v5237
        %v5650 = vpack.c.bf16 %v5366, %v5365
        %v5651 = vpack.c.bf16 %v5494, %v5493
        %v5652 = vpack.c.bf16 %v2934, %v2933
        %v5653 = vpack.c.bf16 %v5112, %v5111
        %v5654 = vpack.c.bf16 %v5240, %v5239
        %v5655 = vpack.c.bf16 %v5368, %v5367
        %v5656 = vpack.c.bf16 %v5496, %v5495
        %v5657 = vpack.c.bf16 %v2936, %v2935
        %v5658 = vpack.c.bf16 %v5114, %v5113
        %v5659 = vpack.c.bf16 %v5242, %v5241
        %v5660 = vpack.c.bf16 %v5370, %v5369
        %v5661 = vpack.c.bf16 %v5498, %v5497
        %v5662 = vpack.c.bf16 %v2938, %v2937
        %v5663 = vpack.c.bf16 %v5116, %v5115
        %v5664 = vpack.c.bf16 %v5244, %v5243
        %v5665 = vpack.c.bf16 %v5372, %v5371
        %v5666 = vpack.c.bf16 %v5500, %v5499
        %v5667 = vpack.c.bf16 %v2940, %v2939
        %v5668 = vpack.c.bf16 %v5118, %v5117
        %v5669 = vpack.c.bf16 %v5246, %v5245
        %v5670 = vpack.c.bf16 %v5374, %v5373
        %v5671 = vpack.c.bf16 %v5502, %v5501
        %v5672 = vpack.c.bf16 %v2942, %v2941
        %v5673 = vpack.c.bf16 %v5120, %v5119
        %v5674 = vpack.c.bf16 %v5248, %v5247
        %v5675 = vpack.c.bf16 %v5376, %v5375
        %v5676 = vpack.c.bf16 %v5504, %v5503
        %v5677 = vpack.c.bf16 %v2944, %v2943
        %v5678 = vpack.c.bf16 %v5122, %v5121
        %v5679 = vpack.c.bf16 %v5250, %v5249
        %v5680 = vpack.c.bf16 %v5378, %v5377
        %v5681 = vpack.c.bf16 %v5506, %v5505
        %v5682 = vpack.c.bf16 %v2946, %v2945
        %v5683 = vpack.c.bf16 %v5124, %v5123
        %v5684 = vpack.c.bf16 %v5252, %v5251
        %v5685 = vpack.c.bf16 %v5380, %v5379
        %v5686 = vpack.c.bf16 %v5508, %v5507
        %v5687 = vpack.c.bf16 %v2948, %v2947
        %v5688 = vpack.c.bf16 %v5126, %v5125
        %v5689 = vpack.c.bf16 %v5254, %v5253
        %v5690 = vpack.c.bf16 %v5382, %v5381
        %v5691 = vpack.c.bf16 %v5510, %v5509
        %v5692 = vpack.c.bf16 %v2950, %v2949
        %v5693 = vpack.c.bf16 %v5128, %v5127
        %v5694 = vpack.c.bf16 %v5256, %v5255
        %v5695 = vpack.c.bf16 %v5384, %v5383
        %v5696 = vpack.c.bf16 %v5512, %v5511
        %v5697 = vpack.c.bf16 %v2952, %v2951
        %v5698 = vpack.c.bf16 %v5130, %v5129
        %v5699 = vpack.c.bf16 %v5258, %v5257
        %v5700 = vpack.c.bf16 %v5386, %v5385
        %v5701 = vpack.c.bf16 %v5514, %v5513
        %v5702 = vpack.c.bf16 %v2954, %v2953
        %v5703 = vpack.c.bf16 %v5132, %v5131
        %v5704 = vpack.c.bf16 %v5260, %v5259
        %v5705 = vpack.c.bf16 %v5388, %v5387
        %v5706 = vpack.c.bf16 %v5516, %v5515
        %v5707 = vpack.c.bf16 %v2956, %v2955
        %v5708 = vpack.c.bf16 %v5134, %v5133
        %v5709 = vpack.c.bf16 %v5262, %v5261
        %v5710 = vpack.c.bf16 %v5390, %v5389
        %v5711 = vpack.c.bf16 %v5518, %v5517
        %v5712 = vpack.c.bf16 %v2958, %v2957
        %v5713 = vpack.c.bf16 %v5136, %v5135
        %v5714 = vpack.c.bf16 %v5264, %v5263
        %v5715 = vpack.c.bf16 %v5392, %v5391
        %v5716 = vpack.c.bf16 %v5520, %v5519
        %v5717 = vpack.c.bf16 %v2960, %v2959
        %v5718 = vpack.c.bf16 %v5138, %v5137
        %v5719 = vpack.c.bf16 %v5266, %v5265
        %v5720 = vpack.c.bf16 %v5394, %v5393
        %v5721 = vpack.c.bf16 %v5522, %v5521
        %v5722 = vpack.c.bf16 %v2962, %v2961
        %v5723 = vpack.c.bf16 %v5140, %v5139
        %v5724 = vpack.c.bf16 %v5268, %v5267
        %v5725 = vpack.c.bf16 %v5396, %v5395
        %v5726 = vpack.c.bf16 %v5524, %v5523
        %v5727 = vpack.c.bf16 %v2964, %v2963
        %v5728 = vpack.c.bf16 %v5142, %v5141
        %v5729 = vpack.c.bf16 %v5270, %v5269
        %v5730 = vpack.c.bf16 %v5398, %v5397
        %v5731 = vpack.c.bf16 %v5526, %v5525
        %v5732 = vpack.c.bf16 %v2966, %v2965
        %v5733 = vpack.c.bf16 %v5144, %v5143
        %v5734 = vpack.c.bf16 %v5272, %v5271
        %v5735 = vpack.c.bf16 %v5400, %v5399
        %v5736 = vpack.c.bf16 %v5528, %v5527
        %v5737 = vpack.c.bf16 %v2968, %v2967
        %v5738 = vpack.c.bf16 %v5146, %v5145
        %v5739 = vpack.c.bf16 %v5274, %v5273
        %v5740 = vpack.c.bf16 %v5402, %v5401
        %v5741 = vpack.c.bf16 %v5530, %v5529
        %v5742 = vpack.c.bf16 %v2970, %v2969
        %v5743 = vpack.c.bf16 %v5148, %v5147
        %v5744 = vpack.c.bf16 %v5276, %v5275
        %v5745 = vpack.c.bf16 %v5404, %v5403
        %v5746 = vpack.c.bf16 %v5532, %v5531
        %v5747 = vpack.c.bf16 %v2972, %v2971
        %v5748 = vpack.c.bf16 %v5150, %v5149
        %v5749 = vpack.c.bf16 %v5278, %v5277
        %v5750 = vpack.c.bf16 %v5406, %v5405
        %v5751 = vpack.c.bf16 %v5534, %v5533
        %v5752 = vpack.c.bf16 %v2974, %v2973
        %v5753 = vpack.c.bf16 %v5152, %v5151
        %v5754 = vpack.c.bf16 %v5280, %v5279
        %v5755 = vpack.c.bf16 %v5408, %v5407
        %v5756 = vpack.c.bf16 %v5536, %v5535
        %v5757 = vpack.c.bf16 %v2976, %v2975
        %v5758 = vpack.c.bf16 %v5154, %v5153
        %v5759 = vpack.c.bf16 %v5282, %v5281
        %v5760 = vpack.c.bf16 %v5410, %v5409
        %v5761 = vpack.c.bf16 %v5538, %v5537
        %v5762 = vpack.c.bf16 %v2978, %v2977
        %v5763 = vpack.c.bf16 %v5156, %v5155
        %v5764 = vpack.c.bf16 %v5284, %v5283
        %v5765 = vpack.c.bf16 %v5412, %v5411
        %v5766 = vpack.c.bf16 %v5540, %v5539
        %v5767 = vpack.c.bf16 %v2980, %v2979
        %v5768 = vpack.c.bf16 %v5158, %v5157
        %v5769 = vpack.c.bf16 %v5286, %v5285
        %v5770 = vpack.c.bf16 %v5414, %v5413
        %v5771 = vpack.c.bf16 %v5542, %v5541
        %v5772 = vpack.c.bf16 %v2982, %v2981
        %v5773 = vpack.c.bf16 %v5160, %v5159
        %v5774 = vpack.c.bf16 %v5288, %v5287
        %v5775 = vpack.c.bf16 %v5416, %v5415
        %v5776 = vpack.c.bf16 %v5544, %v5543
        %v5777 = vpack.c.bf16 %v2984, %v2983
        %v5778 = vpack.c.bf16 %v5162, %v5161
        %v5779 = vpack.c.bf16 %v5290, %v5289
        %v5780 = vpack.c.bf16 %v5418, %v5417
        %v5781 = vpack.c.bf16 %v5546, %v5545
        %v5782 = vpack.c.bf16 %v2986, %v2985
        %v5783 = vpack.c.bf16 %v5164, %v5163
        %v5784 = vpack.c.bf16 %v5292, %v5291
        %v5785 = vpack.c.bf16 %v5420, %v5419
        %v5786 = vpack.c.bf16 %v5548, %v5547
        %v5787 = vpack.c.bf16 %v2988, %v2987
        %v5788 = vpack.c.bf16 %v5166, %v5165
        %v5789 = vpack.c.bf16 %v5294, %v5293
        %v5790 = vpack.c.bf16 %v5422, %v5421
        %v5791 = vpack.c.bf16 %v5550, %v5549
        %v5792 = vpack.c.bf16 %v2990, %v2989
        %v5793 = vpack.c.bf16 %v5168, %v5167
        %v5794 = vpack.c.bf16 %v5296, %v5295
        %v5795 = vpack.c.bf16 %v5424, %v5423
        %v5796 = vpack.c.bf16 %v5552, %v5551
        %v5797 = vpack.c.bf16 %v2992, %v2991
        %v5798 = vpack.c.bf16 %v5170, %v5169
        %v5799 = vpack.c.bf16 %v5298, %v5297
        %v5800 = vpack.c.bf16 %v5426, %v5425
        %v5801 = vpack.c.bf16 %v5554, %v5553
        %v5802 = vpack.c.bf16 %v2994, %v2993
        %v5803 = vpack.c.bf16 %v5172, %v5171
        %v5804 = vpack.c.bf16 %v5300, %v5299
        %v5805 = vpack.c.bf16 %v5428, %v5427
        %v5806 = vpack.c.bf16 %v5556, %v5555
        %v5807 = vpack.c.bf16 %v2996, %v2995
        %v5808 = vpack.c.bf16 %v5174, %v5173
        %v5809 = vpack.c.bf16 %v5302, %v5301
        %v5810 = vpack.c.bf16 %v5430, %v5429
        %v5811 = vpack.c.bf16 %v5558, %v5557
        %v5812 = vpack.c.bf16 %v2998, %v2997
        %v5813 = vpack.c.bf16 %v5176, %v5175
        %v5814 = vpack.c.bf16 %v5304, %v5303
        %v5815 = vpack.c.bf16 %v5432, %v5431
        %v5816 = vpack.c.bf16 %v5560, %v5559
        %v5817 = vpack.c.bf16 %v3000, %v2999
        %v5818 = vpack.c.bf16 %v5178, %v5177
        %v5819 = vpack.c.bf16 %v5306, %v5305
        %v5820 = vpack.c.bf16 %v5434, %v5433
        %v5821 = vpack.c.bf16 %v5562, %v5561
        %v5822 = vpack.c.bf16 %v3002, %v3001
        %v5823 = vpack.c.bf16 %v5180, %v5179
        %v5824 = vpack.c.bf16 %v5308, %v5307
        %v5825 = vpack.c.bf16 %v5436, %v5435
        %v5826 = vpack.c.bf16 %v5564, %v5563
        %v5827 = vpack.c.bf16 %v3004, %v3003
        %v5828 = vpack.c.bf16 %v5182, %v5181
        %v5829 = vpack.c.bf16 %v5310, %v5309
        %v5830 = vpack.c.bf16 %v5438, %v5437
        %v5831 = vpack.c.bf16 %v5566, %v5565
        %v5832 = vpack.c.bf16 %v3006, %v3005
        %v5833 = vpack.c.bf16 %v5184, %v5183
        %v5834 = vpack.c.bf16 %v5312, %v5311
        %v5835 = vpack.c.bf16 %v5440, %v5439
        %v5836 = vpack.c.bf16 %v5568, %v5567
        %v5837 = vpack.c.bf16 %v3008, %v3007
        %v5838 = vpack.c.bf16 %v5186, %v5185
        %v5839 = vpack.c.bf16 %v5314, %v5313
        %v5840 = vpack.c.bf16 %v5442, %v5441
        %v5841 = vpack.c.bf16 %v5570, %v5569
        %v5842 = vpack.c.bf16 %v3010, %v3009
        %v5843 = vpack.c.bf16 %v5188, %v5187
        %v5844 = vpack.c.bf16 %v5316, %v5315
        %v5845 = vpack.c.bf16 %v5444, %v5443
        %v5846 = vpack.c.bf16 %v5572, %v5571
        %v5847 = vpack.c.bf16 %v3012, %v3011
        %v5848 = vpack.c.bf16 %v5190, %v5189
        %v5849 = vpack.c.bf16 %v5318, %v5317
        %v5850 = vpack.c.bf16 %v5446, %v5445
        %v5851 = vpack.c.bf16 %v5574, %v5573
        %v5852 = vpack.c.bf16 %v3014, %v3013
        %v5853 = vpack.c.bf16 %v5192, %v5191
        %v5854 = vpack.c.bf16 %v5320, %v5319
        %v5855 = vpack.c.bf16 %v5448, %v5447
        %v5856 = vpack.c.bf16 %v5576, %v5575
        %v5857 = vpack.c.bf16 %v3016, %v3015
        %v5858 = vpack.c.bf16 %v5194, %v5193
        %v5859 = vpack.c.bf16 %v5322, %v5321
        %v5860 = vpack.c.bf16 %v5450, %v5449
        %v5861 = vpack.c.bf16 %v5578, %v5577
        %v5862 = vpack.c.bf16 %v3018, %v3017
        %v5863 = vpack.c.bf16 %v5196, %v5195
        %v5864 = vpack.c.bf16 %v5324, %v5323
        %v5865 = vpack.c.bf16 %v5452, %v5451
        %v5866 = vpack.c.bf16 %v5580, %v5579
        %v5867 = vpack.c.bf16 %v3020, %v3019
        %v5868 = vpack.c.bf16 %v5198, %v5197
        %v5869 = vpack.c.bf16 %v5326, %v5325
        %v5870 = vpack.c.bf16 %v5454, %v5453
        %v5871 = vpack.c.bf16 %v5582, %v5581
        %v5872 = vpack.c.bf16 %v3022, %v3021
        %v5873 = vpack.c.bf16 %v5200, %v5199
        %v5874 = vpack.c.bf16 %v5328, %v5327
        %v5875 = vpack.c.bf16 %v5456, %v5455
        %v5876 = vpack.c.bf16 %v5584, %v5583
        %v5877 = vpack.c.bf16 %v3024, %v3023
        %v5878 = vpack.c.bf16 %v5202, %v5201
        %v5879 = vpack.c.bf16 %v5330, %v5329
        %v5880 = vpack.c.bf16 %v5458, %v5457
        %v5881 = vpack.c.bf16 %v5586, %v5585
        %v5882 = vpack.c.bf16 %v3026, %v3025
        %v5883 = vpack.c.bf16 %v5204, %v5203
        %v5884 = vpack.c.bf16 %v5332, %v5331
        %v5885 = vpack.c.bf16 %v5460, %v5459
        %v5886 = vpack.c.bf16 %v5588, %v5587
        %v5887 = vpack.c.bf16 %v3028, %v3027
        %v5888 = vpack.c.bf16 %v5206, %v5205
        %v5889 = vpack.c.bf16 %v5334, %v5333
        %v5890 = vpack.c.bf16 %v5462, %v5461
        %v5891 = vpack.c.bf16 %v5590, %v5589
        %v5892 = vpack.c.bf16 %v3030, %v3029
        %v5893 = vpack.c.bf16 %v5208, %v5207
        %v5894 = vpack.c.bf16 %v5336, %v5335
        %v5895 = vpack.c.bf16 %v5464, %v5463
        %v5896 = vpack.c.bf16 %v5592, %v5591
        %v5897 = vpack.c.bf16 %v3032, %v3031
        %v5898 = vpack.c.bf16 %v5210, %v5209
        %v5899 = vpack.c.bf16 %v5338, %v5337
        %v5900 = vpack.c.bf16 %v5466, %v5465
        %v5901 = vpack.c.bf16 %v5594, %v5593
        %v5902 = vpack.c.bf16 %v3034, %v3033
        %v5903 = vpack.c.bf16 %v5212, %v5211
        %v5904 = vpack.c.bf16 %v5340, %v5339
        %v5905 = vpack.c.bf16 %v5468, %v5467
        %v5906 = vpack.c.bf16 %v5596, %v5595
        %v5907 = vpack.c.bf16 %v3036, %v3035
        %v5908 = vpack.c.bf16 %v5214, %v5213
        %v5909 = vpack.c.bf16 %v5342, %v5341
        %v5910 = vpack.c.bf16 %v5470, %v5469
        %v5911 = vpack.c.bf16 %v5598, %v5597
        %v5912 = vpack.c.bf16 %v3038, %v3037
        %v5913 = vpack.c.bf16 %v5216, %v5215
        %v5914 = vpack.c.bf16 %v5344, %v5343
        %v5915 = vpack.c.bf16 %v5472, %v5471
        %v5916 = vpack.c.bf16 %v5600, %v5599
        %v5917 = vpack.c.bf16 %v3040, %v3039
        %v5918 = vpack.c.bf16 %v5218, %v5217
        %v5919 = vpack.c.bf16 %v5346, %v5345
        %v5920 = vpack.c.bf16 %v5474, %v5473
        %v5921 = vpack.c.bf16 %v5602, %v5601
        %v5922 = vpack.c.bf16 %v3042, %v3041
        %v5923 = vld [vmem:[%s3] sm:$0xf]
        %v5924 = vld [vmem:[%s3 + $0x4] sm:$0xf]
        %v5925 = vld [vmem:[%s3 + $0x8] sm:$0xf]
        %v5926 = vld [vmem:[%s3 + $0xc] sm:$0xf]
        %v5927 = vld [vmem:[%s3 + $0x10] sm:$0xf]
        %v5928 = vld [vmem:[%s3 + $0x14] sm:$0xf]
        %v5929 = vld [vmem:[%s3 + $0x18] sm:$0xf]
        %v5930 = vld [vmem:[%s3 + $0x1c] sm:$0xf]
        %v5931 = vld [vmem:[%s3 + $0x20] sm:$0xf]
        %v5932 = vld [vmem:[%s3 + $0x24] sm:$0xf]
        %v5933 = vld [vmem:[%s3 + $0x28] sm:$0xf]
        %v5934 = vld [vmem:[%s3 + $0x2c] sm:$0xf]
        %v5935 = vld [vmem:[%s3 + $0x30] sm:$0xf]
        %v5936 = vld [vmem:[%s3 + $0x34] sm:$0xf]
        %v5937 = vld [vmem:[%s3 + $0x38] sm:$0xf]
        %v5938 = vld [vmem:[%s3 + $0x3c] sm:$0xf]
        %v5939 = vld [vmem:[%s3 + $0x40] sm:$0xf]
        %v5940 = vld [vmem:[%s3 + $0x44] sm:$0xf]
        %v5941 = vld [vmem:[%s3 + $0x48] sm:$0xf]
        %v5942 = vld [vmem:[%s3 + $0x4c] sm:$0xf]
        %v5943 = vld [vmem:[%s3 + $0x50] sm:$0xf]
        %v5944 = vld [vmem:[%s3 + $0x54] sm:$0xf]
        %v5945 = vld [vmem:[%s3 + $0x58] sm:$0xf]
        %v5946 = vld [vmem:[%s3 + $0x5c] sm:$0xf]
        %v5947 = vld [vmem:[%s3 + $0x60] sm:$0xf]
        %v5948 = vld [vmem:[%s3 + $0x64] sm:$0xf]
        %v5949 = vld [vmem:[%s3 + $0x68] sm:$0xf]
        %v5950 = vld [vmem:[%s3 + $0x6c] sm:$0xf]
        %v5951 = vld [vmem:[%s3 + $0x70] sm:$0xf]
        %v5952 = vld [vmem:[%s3 + $0x74] sm:$0xf]
        %v5953 = vld [vmem:[%s3 + $0x78] sm:$0xf]
        %v5954 = vld [vmem:[%s3 + $0x7c] sm:$0xf]
        %v5955 = vld [vmem:[%s3 + $0x80] sm:$0xf]
        %v5956 = vld [vmem:[%s3 + $0x84] sm:$0xf]
        %v5957 = vld [vmem:[%s3 + $0x88] sm:$0xf]
        %v5958 = vld [vmem:[%s3 + $0x8c] sm:$0xf]
        %v5959 = vld [vmem:[%s3 + $0x90] sm:$0xf]
        %v5960 = vld [vmem:[%s3 + $0x94] sm:$0xf]
        %v5961 = vld [vmem:[%s3 + $0x98] sm:$0xf]
        %v5962 = vld [vmem:[%s3 + $0x9c] sm:$0xf]
        %v5963 = vld [vmem:[%s3 + $0xa0] sm:$0xf]
        %v5964 = vld [vmem:[%s3 + $0xa4] sm:$0xf]
        %v5965 = vld [vmem:[%s3 + $0xa8] sm:$0xf]
        %v5966 = vld [vmem:[%s3 + $0xac] sm:$0xf]
        %v5967 = vld [vmem:[%s3 + $0xb0] sm:$0xf]
        %v5968 = vld [vmem:[%s3 + $0xb4] sm:$0xf]
        %v5969 = vld [vmem:[%s3 + $0xb8] sm:$0xf]
        %v5970 = vld [vmem:[%s3 + $0xbc] sm:$0xf]
        %v5971 = vld [vmem:[%s3 + $0xc0] sm:$0xf]
        %v5972 = vld [vmem:[%s3 + $0xc4] sm:$0xf]
        %v5973 = vld [vmem:[%s3 + $0xc8] sm:$0xf]
        %v5974 = vld [vmem:[%s3 + $0xcc] sm:$0xf]
        %v5975 = vld [vmem:[%s3 + $0xd0] sm:$0xf]
        %v5976 = vld [vmem:[%s3 + $0xd4] sm:$0xf]
        %v5977 = vld [vmem:[%s3 + $0xd8] sm:$0xf]
        %v5978 = vld [vmem:[%s3 + $0xdc] sm:$0xf]
        %v5979 = vld [vmem:[%s3 + $0xe0] sm:$0xf]
        %v5980 = vld [vmem:[%s3 + $0xe4] sm:$0xf]
        %v5981 = vld [vmem:[%s3 + $0xe8] sm:$0xf]
        %v5982 = vld [vmem:[%s3 + $0xec] sm:$0xf]
        %v5983 = vld [vmem:[%s3 + $0xf0] sm:$0xf]
        %v5984 = vld [vmem:[%s3 + $0xf4] sm:$0xf]
        %v5985 = vld [vmem:[%s3 + $0xf8] sm:$0xf]
        %v5986 = vld [vmem:[%s3 + $0xfc] sm:$0xf]
        %v5987 = vld [vmem:[%s3 + $0x100] sm:$0xf]
        %v5988 = vld [vmem:[%s3 + $0x104] sm:$0xf]
        %v5989 = vld [vmem:[%s3 + $0x108] sm:$0xf]
        %v5990 = vld [vmem:[%s3 + $0x10c] sm:$0xf]
        %v5991 = vld [vmem:[%s3 + $0x110] sm:$0xf]
        %v5992 = vld [vmem:[%s3 + $0x114] sm:$0xf]
        %v5993 = vld [vmem:[%s3 + $0x118] sm:$0xf]
        %v5994 = vld [vmem:[%s3 + $0x11c] sm:$0xf]
        %v6067 = vunpack.c.l.b16 %v5923
        %v6068 = vunpack.c.l.b16 %v5924
        %v6069 = vunpack.c.l.b16 %v5925
        %v6070 = vunpack.c.l.b16 %v5926
        %v6071 = vunpack.c.l.b16 %v5927
        %v6072 = vunpack.c.l.b16 %v5928
        %v6073 = vunpack.c.l.b16 %v5929
        %v6074 = vunpack.c.l.b16 %v5930
        %v6075 = vunpack.c.l.b16 %v5931
        %v6076 = vunpack.c.l.b16 %v5932
        %v6077 = vunpack.c.l.b16 %v5933
        %v6078 = vunpack.c.l.b16 %v5934
        %v6079 = vunpack.c.l.b16 %v5935
        %v6080 = vunpack.c.l.b16 %v5936
        %v6081 = vunpack.c.l.b16 %v5937
        %v6082 = vunpack.c.l.b16 %v5938
        %v6083 = vunpack.c.l.b16 %v5939
        %v6084 = vunpack.c.l.b16 %v5940
        %v6085 = vunpack.c.l.b16 %v5941
        %v6086 = vunpack.c.l.b16 %v5942
        %v6087 = vunpack.c.l.b16 %v5943
        %v6088 = vunpack.c.l.b16 %v5944
        %v6089 = vunpack.c.l.b16 %v5945
        %v6090 = vunpack.c.l.b16 %v5946
        %v6091 = vunpack.c.l.b16 %v5947
        %v6092 = vunpack.c.l.b16 %v5948
        %v6093 = vunpack.c.l.b16 %v5949
        %v6094 = vunpack.c.l.b16 %v5950
        %v6095 = vunpack.c.l.b16 %v5951
        %v6096 = vunpack.c.l.b16 %v5952
        %v6097 = vunpack.c.l.b16 %v5953
        %v6098 = vunpack.c.l.b16 %v5954
        %v6099 = vunpack.c.l.b16 %v5955
        %v6100 = vunpack.c.l.b16 %v5956
        %v6101 = vunpack.c.l.b16 %v5957
        %v6102 = vunpack.c.l.b16 %v5958
        %v6103 = vunpack.c.l.b16 %v5959
        %v6104 = vunpack.c.l.b16 %v5960
        %v6105 = vunpack.c.l.b16 %v5961
        %v6106 = vunpack.c.l.b16 %v5962
        %v6107 = vunpack.c.l.b16 %v5963
        %v6108 = vunpack.c.l.b16 %v5964
        %v6109 = vunpack.c.l.b16 %v5965
        %v6110 = vunpack.c.l.b16 %v5966
        %v6111 = vunpack.c.l.b16 %v5967
        %v6112 = vunpack.c.l.b16 %v5968
        %v6113 = vunpack.c.l.b16 %v5969
        %v6114 = vunpack.c.l.b16 %v5970
        %v6115 = vunpack.c.l.b16 %v5971
        %v6116 = vunpack.c.l.b16 %v5972
        %v6117 = vunpack.c.l.b16 %v5973
        %v6118 = vunpack.c.l.b16 %v5974
        %v6119 = vunpack.c.l.b16 %v5975
        %v6120 = vunpack.c.l.b16 %v5976
        %v6121 = vunpack.c.l.b16 %v5977
        %v6122 = vunpack.c.l.b16 %v5978
        %v6123 = vunpack.c.l.b16 %v5979
        %v6124 = vunpack.c.l.b16 %v5980
        %v6125 = vunpack.c.l.b16 %v5981
        %v6126 = vunpack.c.l.b16 %v5982
        %v6127 = vunpack.c.l.b16 %v5983
        %v6128 = vunpack.c.l.b16 %v5984
        %v6129 = vunpack.c.l.b16 %v5985
        %v6130 = vunpack.c.l.b16 %v5986
        %v6131 = vunpack.c.l.b16 %v5987
        %v6132 = vunpack.c.l.b16 %v5988
        %v6133 = vunpack.c.l.b16 %v5989
        %v6134 = vunpack.c.l.b16 %v5990
        %v6135 = vunpack.c.l.b16 %v5991
        %v6136 = vunpack.c.l.b16 %v5992
        %v6137 = vunpack.c.l.b16 %v5993
        %v6138 = vunpack.c.l.b16 %v5994
        %v6139 = vpack.c.b16 %v6068, %v6067
        %v6140 = vpack.c.b16 %v6070, %v6069
        %v6141 = vpack.c.b16 %v6072, %v6071
        %v6142 = vpack.c.b16 %v6074, %v6073
        %v6143 = vpack.c.b16 %v6076, %v6075
        %v6144 = vpack.c.b16 %v6078, %v6077
        %v6145 = vpack.c.b16 %v6080, %v6079
        %v6146 = vpack.c.b16 %v6082, %v6081
        %v6147 = vpack.c.b16 %v6084, %v6083
        %v6148 = vpack.c.b16 %v6086, %v6085
        %v6149 = vpack.c.b16 %v6088, %v6087
        %v6150 = vpack.c.b16 %v6090, %v6089
        %v6151 = vpack.c.b16 %v6092, %v6091
        %v6152 = vpack.c.b16 %v6094, %v6093
        %v6153 = vpack.c.b16 %v6096, %v6095
        %v6154 = vpack.c.b16 %v6098, %v6097
        %v6155 = vpack.c.b16 %v6100, %v6099
        %v6156 = vpack.c.b16 %v6102, %v6101
        %v6157 = vpack.c.b16 %v6104, %v6103
        %v6158 = vpack.c.b16 %v6106, %v6105
        %v6159 = vpack.c.b16 %v6108, %v6107
        %v6160 = vpack.c.b16 %v6110, %v6109
        %v6161 = vpack.c.b16 %v6112, %v6111
        %v6162 = vpack.c.b16 %v6114, %v6113
        %v6163 = vpack.c.b16 %v6116, %v6115
        %v6164 = vpack.c.b16 %v6118, %v6117
        %v6165 = vpack.c.b16 %v6120, %v6119
        %v6166 = vpack.c.b16 %v6122, %v6121
        %v6167 = vpack.c.b16 %v6124, %v6123
        %v6168 = vpack.c.b16 %v6126, %v6125
        %v6169 = vpack.c.b16 %v6128, %v6127
        %v6170 = vpack.c.b16 %v6130, %v6129
        %v6171 = vpack.c.b16 %v6132, %v6131
        %v6172 = vpack.c.b16 %v6134, %v6133
        %v6173 = vpack.c.b16 %v6136, %v6135
        %v6174 = vpack.c.b16 %v6138, %v6137
        %v6212 = vsel %vm230, %v5607, 0
        %v6215 = vsel %vm230, %v5612, 0
        %v6218 = vsel %vm230, %v5617, 0
        %v6221 = vsel %vm230, %v5622, 0
        %v6224 = vsel %vm230, %v5627, 0
        %v6227 = vsel %vm230, %v5632, 0
        %v6230 = vsel %vm230, %v5637, 0
        %v6233 = vsel %vm230, %v5642, 0
        %v6236 = vsel %vm230, %v5647, 0
        %v6239 = vsel %vm230, %v5652, 0
        %v6242 = vsel %vm230, %v5657, 0
        %v6245 = vsel %vm230, %v5662, 0
        %v6248 = vsel %vm230, %v5667, 0
        %v6251 = vsel %vm230, %v5672, 0
        %v6254 = vsel %vm230, %v5677, 0
        %v6257 = vsel %vm230, %v5682, 0
        %v6260 = vsel %vm230, %v5687, 0
        %v6263 = vsel %vm230, %v5692, 0
        %v6266 = vsel %vm230, %v5697, 0
        %v6269 = vsel %vm230, %v5702, 0
        %v6272 = vsel %vm230, %v5707, 0
        %v6275 = vsel %vm230, %v5712, 0
        %v6278 = vsel %vm230, %v5717, 0
        %v6281 = vsel %vm230, %v5722, 0
        %v6284 = vsel %vm230, %v5727, 0
        %v6287 = vsel %vm230, %v5732, 0
        %v6290 = vsel %vm230, %v5737, 0
        %v6293 = vsel %vm230, %v5742, 0
        %v6296 = vsel %vm230, %v5747, 0
        %v6299 = vsel %vm230, %v5752, 0
        %v6302 = vsel %vm230, %v5757, 0
        %v6305 = vsel %vm230, %v5762, 0
        %v6308 = vsel %vm230, %v5767, 0
        %v6311 = vsel %vm230, %v5772, 0
        %v6314 = vsel %vm230, %v5777, 0
        %v6317 = vsel %vm230, %v5782, 0
        %v6320 = vsel %vm230, %v5787, 0
        %v6323 = vsel %vm230, %v5792, 0
        %v6326 = vsel %vm230, %v5797, 0
        %v6329 = vsel %vm230, %v5802, 0
        %v6332 = vsel %vm230, %v5807, 0
        %v6335 = vsel %vm230, %v5812, 0
        %v6338 = vsel %vm230, %v5817, 0
        %v6341 = vsel %vm230, %v5822, 0
        %v6344 = vsel %vm230, %v5827, 0
        %v6347 = vsel %vm230, %v5832, 0
        %v6350 = vsel %vm230, %v5837, 0
        %v6353 = vsel %vm230, %v5842, 0
        %v6356 = vsel %vm230, %v5847, 0
        %v6359 = vsel %vm230, %v5852, 0
        %v6362 = vsel %vm230, %v5857, 0
        %v6365 = vsel %vm230, %v5862, 0
        %v6368 = vsel %vm230, %v5867, 0
        %v6371 = vsel %vm230, %v5872, 0
        %v6374 = vsel %vm230, %v5877, 0
        %v6377 = vsel %vm230, %v5882, 0
        %v6380 = vsel %vm230, %v5887, 0
        %v6383 = vsel %vm230, %v5892, 0
        %v6386 = vsel %vm230, %v5897, 0
        %v6389 = vsel %vm230, %v5902, 0
        %v6392 = vsel %vm230, %v5907, 0
        %v6395 = vsel %vm230, %v5912, 0
        %v6398 = vsel %vm230, %v5917, 0
        %v6401 = vsel %vm230, %v5922, 0
        %6403 = vmatprep.subr.bf16.mxu0 0
        %6404 = vmatpush1.bf16.msra.mxu0 %v6139
        %6405 = vmatprep.subr.bf16.mxu0 0
        %6406 = vmatpush1.bf16.msra.mxu0 %v6140
        %6407 = vmatprep.subr.bf16.mxu0 0
        %6408 = vmatpush1.bf16.msra.mxu0 %v6141
        %6409 = vmatprep.subr.bf16.mxu0 0
        %6410 = vmatpush1.bf16.msra.mxu0 %v6142
        %6411 = vmatprep.subr.bf16.mxu0 0
        %6412 = vmatpush1.bf16.msra.mxu0 %v6143
        %6413 = vmatprep.subr.bf16.mxu0 0
        %6414 = vmatpush1.bf16.msra.mxu0 %v6144
        %6415 = vmatprep.subr.bf16.mxu0 0
        %6416 = vmatpush1.bf16.msra.mxu0 %v6145
        %6417 = vmatprep.subr.bf16.mxu0 0
        %6418 = vmatpush1.bf16.msra.mxu0 %v6146
        %6419 = vmatprep.subr.bf16.mxu0 0
        %6420 = vmatpush1.bf16.msra.mxu0 %v6147
        %6421 = vmatprep.subr.bf16.mxu0 0
        %6422 = vmatpush1.bf16.msra.mxu0 %v6148
        %6423 = vmatprep.subr.bf16.mxu0 0
        %6424 = vmatpush1.bf16.msra.mxu0 %v6149
        %6425 = vmatprep.subr.bf16.mxu0 0
        %6426 = vmatpush1.bf16.msra.mxu0 %v6150
        %6427 = vmatprep.subr.bf16.mxu0 0
        %6428 = vmatpush1.bf16.msra.mxu0 %v6151
        %6429 = vmatprep.subr.bf16.mxu0 0
        %6430 = vmatpush1.bf16.msra.mxu0 %v6152
        %6431 = vmatprep.subr.bf16.mxu0 0
        %6432 = vmatpush1.bf16.msra.mxu0 %v6153
        %6433 = vmatprep.subr.bf16.mxu0 0
        %6434 = vmatpush1.bf16.msra.mxu0 %v6154
        %6435 = vmatprep.mubr.bf16.mxu0 %v5604
        %6436 = vmatmul.mubr.bf16.gmra.mrb[0].mxu0 %v5603
        %v6437 = vpop.f32.mrb[0].mxu0
        %v6438 = vadd.f32 0.0, %v6437
        %v6439 = vpop.f32.mrb[0].mxu0
        %v6440 = vpop.f32.mrb[0].mxu0
        %v6441 = vadd.f32 0.0, %v6440
        %v6442 = vpop.f32.mrb[0].mxu0
        %6443 = vmatprep.mubr.bf16.mxu0 %v5609
        %6444 = vmatmul.mubr.bf16.gmra.mrb[0].mxu0 %v5608
        %v6445 = vpop.f32.mrb[0].mxu0
        %v6446 = vadd.f32 0.0, %v6445
        %v6447 = vpop.f32.mrb[0].mxu0
        %v6448 = vpop.f32.mrb[0].mxu0
        %v6449 = vadd.f32 0.0, %v6448
        %v6450 = vpop.f32.mrb[0].mxu0
        %6451 = vmatprep.mubr.bf16.mxu0 %v5614
        %6452 = vmatmul.mubr.bf16.gmra.mrb[0].mxu0 %v5613
        %v6453 = vpop.f32.mrb[0].mxu0
        %v6454 = vadd.f32 0.0, %v6453
        %v6455 = vpop.f32.mrb[0].mxu0
        %v6456 = vpop.f32.mrb[0].mxu0
        %v6457 = vadd.f32 0.0, %v6456
        %v6458 = vpop.f32.mrb[0].mxu0
        %6459 = vmatprep.mubr.bf16.mxu0 %v5619
        %6460 = vmatmul.mubr.bf16.gmra.mrb[0].mxu0 %v5618
        %v6461 = vpop.f32.mrb[0].mxu0
        %v6462 = vadd.f32 0.0, %v6461
        %v6463 = vpop.f32.mrb[0].mxu0
        %v6464 = vpop.f32.mrb[0].mxu0
        %v6465 = vadd.f32 0.0, %v6464
        %v6466 = vpop.f32.mrb[0].mxu0
        %6467 = vmatprep.mubr.bf16.mxu0 %v5624
        %6468 = vmatmul.mubr.bf16.gmra.mrb[0].mxu0 %v5623
        %v6469 = vpop.f32.mrb[0].mxu0
        %v6470 = vadd.f32 0.0, %v6469
        %v6471 = vpop.f32.mrb[0].mxu0
        %v6472 = vpop.f32.mrb[0].mxu0
        %v6473 = vadd.f32 0.0, %v6472
        %v6474 = vpop.f32.mrb[0].mxu0
        %6475 = vmatprep.mubr.bf16.mxu0 %v5629
        %6476 = vmatmul.mubr.bf16.gmra.mrb[0].mxu0 %v5628
        %v6477 = vpop.f32.mrb[0].mxu0
        %v6478 = vadd.f32 0.0, %v6477
        %v6479 = vpop.f32.mrb[0].mxu0
        %v6480 = vpop.f32.mrb[0].mxu0
        %v6481 = vadd.f32 0.0, %v6480
        %v6482 = vpop.f32.mrb[0].mxu0
        %6483 = vmatprep.mubr.bf16.mxu0 %v5634
        %6484 = vmatmul.mubr.bf16.gmra.mrb[0].mxu0 %v5633
        %v6485 = vpop.f32.mrb[0].mxu0
        %v6486 = vadd.f32 0.0, %v6485
        %v6487 = vpop.f32.mrb[0].mxu0
        %v6488 = vpop.f32.mrb[0].mxu0
        %v6489 = vadd.f32 0.0, %v6488
        %v6490 = vpop.f32.mrb[0].mxu0
        %6491 = vmatprep.mubr.bf16.mxu0 %v5639
        %6492 = vmatmul.mubr.bf16.gmra.mrb[0].mxu0 %v5638
        %v6493 = vpop.f32.mrb[0].mxu0
        %v6494 = vadd.f32 0.0, %v6493
        %v6495 = vpop.f32.mrb[0].mxu0
        %v6496 = vpop.f32.mrb[0].mxu0
        %v6497 = vadd.f32 0.0, %v6496
        %v6498 = vpop.f32.mrb[0].mxu0
        %6499 = vmatprep.mubr.bf16.mxu0 %v5644
        %6500 = vmatmul.mubr.bf16.gmra.mrb[0].mxu0 %v5643
        %v6501 = vpop.f32.mrb[0].mxu0
        %v6502 = vadd.f32 0.0, %v6501
        %v6503 = vpop.f32.mrb[0].mxu0
        %v6504 = vpop.f32.mrb[0].mxu0
        %v6505 = vadd.f32 0.0, %v6504
        %v6506 = vpop.f32.mrb[0].mxu0
        %6507 = vmatprep.mubr.bf16.mxu0 %v5649
        %6508 = vmatmul.mubr.bf16.gmra.mrb[0].mxu0 %v5648
        %v6509 = vpop.f32.mrb[0].mxu0
        %v6510 = vadd.f32 0.0, %v6509
        %v6511 = vpop.f32.mrb[0].mxu0
        %v6512 = vpop.f32.mrb[0].mxu0
        %v6513 = vadd.f32 0.0, %v6512
        %v6514 = vpop.f32.mrb[0].mxu0
        %6515 = vmatprep.mubr.bf16.mxu0 %v5654
        %6516 = vmatmul.mubr.bf16.gmra.mrb[0].mxu0 %v5653
        %v6517 = vpop.f32.mrb[0].mxu0
        %v6518 = vadd.f32 0.0, %v6517
        %v6519 = vpop.f32.mrb[0].mxu0
        %v6520 = vpop.f32.mrb[0].mxu0
        %v6521 = vadd.f32 0.0, %v6520
        %v6522 = vpop.f32.mrb[0].mxu0
        %6523 = vmatprep.mubr.bf16.mxu0 %v5659
        %6524 = vmatmul.mubr.bf16.gmra.mrb[0].mxu0 %v5658
        %v6525 = vpop.f32.mrb[0].mxu0
        %v6526 = vadd.f32 0.0, %v6525
        %v6527 = vpop.f32.mrb[0].mxu0
        %v6528 = vpop.f32.mrb[0].mxu0
        %v6529 = vadd.f32 0.0, %v6528
        %v6530 = vpop.f32.mrb[0].mxu0
        %6531 = vmatprep.mubr.bf16.mxu0 %v5664
        %6532 = vmatmul.mubr.bf16.gmra.mrb[0].mxu0 %v5663
        %v6533 = vpop.f32.mrb[0].mxu0
        %v6534 = vadd.f32 0.0, %v6533
        %v6535 = vpop.f32.mrb[0].mxu0
        %v6536 = vpop.f32.mrb[0].mxu0
        %v6537 = vadd.f32 0.0, %v6536
        %v6538 = vpop.f32.mrb[0].mxu0
        %6539 = vmatprep.mubr.bf16.mxu0 %v5669
        %6540 = vmatmul.mubr.bf16.gmra.mrb[0].mxu0 %v5668
        %v6541 = vpop.f32.mrb[0].mxu0
        %v6542 = vadd.f32 0.0, %v6541
        %v6543 = vpop.f32.mrb[0].mxu0
        %v6544 = vpop.f32.mrb[0].mxu0
        %v6545 = vadd.f32 0.0, %v6544
        %v6546 = vpop.f32.mrb[0].mxu0
        %6547 = vmatprep.mubr.bf16.mxu0 %v5674
        %6548 = vmatmul.mubr.bf16.gmra.mrb[0].mxu0 %v5673
        %v6549 = vpop.f32.mrb[0].mxu0
        %v6550 = vadd.f32 0.0, %v6549
        %v6551 = vpop.f32.mrb[0].mxu0
        %v6552 = vpop.f32.mrb[0].mxu0
        %v6553 = vadd.f32 0.0, %v6552
        %v6554 = vpop.f32.mrb[0].mxu0
        %6555 = vmatprep.mubr.bf16.mxu0 %v5679
        %6556 = vmatmul.mubr.bf16.gmra.mrb[0].mxu0 %v5678
        %v6557 = vpop.f32.mrb[0].mxu0
        %v6558 = vadd.f32 0.0, %v6557
        %v6559 = vpop.f32.mrb[0].mxu0
        %v6560 = vpop.f32.mrb[0].mxu0
        %v6561 = vadd.f32 0.0, %v6560
        %v6562 = vpop.f32.mrb[0].mxu0
        %6563 = vmatprep.mubr.bf16.mxu0 %v5684
        %6564 = vmatmul.mubr.bf16.gmra.mrb[0].mxu0 %v5683
        %v6565 = vpop.f32.mrb[0].mxu0
        %v6566 = vadd.f32 0.0, %v6565
        %v6567 = vpop.f32.mrb[0].mxu0
        %v6568 = vpop.f32.mrb[0].mxu0
        %v6569 = vadd.f32 0.0, %v6568
        %v6570 = vpop.f32.mrb[0].mxu0
        %6571 = vmatprep.mubr.bf16.mxu0 %v5689
        %6572 = vmatmul.mubr.bf16.gmra.mrb[0].mxu0 %v5688
        %v6573 = vpop.f32.mrb[0].mxu0
        %v6574 = vadd.f32 0.0, %v6573
        %v6575 = vpop.f32.mrb[0].mxu0
        %v6576 = vpop.f32.mrb[0].mxu0
        %v6577 = vadd.f32 0.0, %v6576
        %v6578 = vpop.f32.mrb[0].mxu0
        %6579 = vmatprep.mubr.bf16.mxu0 %v5694
        %6580 = vmatmul.mubr.bf16.gmra.mrb[0].mxu0 %v5693
        %v6581 = vpop.f32.mrb[0].mxu0
        %v6582 = vadd.f32 0.0, %v6581
        %v6583 = vpop.f32.mrb[0].mxu0
        %v6584 = vpop.f32.mrb[0].mxu0
        %v6585 = vadd.f32 0.0, %v6584
        %v6586 = vpop.f32.mrb[0].mxu0
        %6587 = vmatprep.mubr.bf16.mxu0 %v5699
        %6588 = vmatmul.mubr.bf16.gmra.mrb[0].mxu0 %v5698
        %v6589 = vpop.f32.mrb[0].mxu0
        %v6590 = vadd.f32 0.0, %v6589
        %v6591 = vpop.f32.mrb[0].mxu0
        %v6592 = vpop.f32.mrb[0].mxu0
        %v6593 = vadd.f32 0.0, %v6592
        %v6594 = vpop.f32.mrb[0].mxu0
        %6595 = vmatprep.mubr.bf16.mxu0 %v5704
        %6596 = vmatmul.mubr.bf16.gmra.mrb[0].mxu0 %v5703
        %v6597 = vpop.f32.mrb[0].mxu0
        %v6598 = vadd.f32 0.0, %v6597
        %v6599 = vpop.f32.mrb[0].mxu0
        %v6600 = vpop.f32.mrb[0].mxu0
        %v6601 = vadd.f32 0.0, %v6600
        %v6602 = vpop.f32.mrb[0].mxu0
        %6603 = vmatprep.mubr.bf16.mxu0 %v5709
        %6604 = vmatmul.mubr.bf16.gmra.mrb[0].mxu0 %v5708
        %v6605 = vpop.f32.mrb[0].mxu0
        %v6606 = vadd.f32 0.0, %v6605
        %v6607 = vpop.f32.mrb[0].mxu0
        %v6608 = vpop.f32.mrb[0].mxu0
        %v6609 = vadd.f32 0.0, %v6608
        %v6610 = vpop.f32.mrb[0].mxu0
        %6611 = vmatprep.mubr.bf16.mxu0 %v5714
        %6612 = vmatmul.mubr.bf16.gmra.mrb[0].mxu0 %v5713
        %v6613 = vpop.f32.mrb[0].mxu0
        %v6614 = vadd.f32 0.0, %v6613
        %v6615 = vpop.f32.mrb[0].mxu0
        %v6616 = vpop.f32.mrb[0].mxu0
        %v6617 = vadd.f32 0.0, %v6616
        %v6618 = vpop.f32.mrb[0].mxu0
        %6619 = vmatprep.mubr.bf16.mxu0 %v5719
        %6620 = vmatmul.mubr.bf16.gmra.mrb[0].mxu0 %v5718
        %v6621 = vpop.f32.mrb[0].mxu0
        %v6622 = vadd.f32 0.0, %v6621
        %v6623 = vpop.f32.mrb[0].mxu0
        %v6624 = vpop.f32.mrb[0].mxu0
        %v6625 = vadd.f32 0.0, %v6624
        %v6626 = vpop.f32.mrb[0].mxu0
        %6627 = vmatprep.mubr.bf16.mxu0 %v5724
        %6628 = vmatmul.mubr.bf16.gmra.mrb[0].mxu0 %v5723
        %v6629 = vpop.f32.mrb[0].mxu0
        %v6630 = vadd.f32 0.0, %v6629
        %v6631 = vpop.f32.mrb[0].mxu0
        %v6632 = vpop.f32.mrb[0].mxu0
        %v6633 = vadd.f32 0.0, %v6632
        %v6634 = vpop.f32.mrb[0].mxu0
        %6635 = vmatprep.mubr.bf16.mxu0 %v5729
        %6636 = vmatmul.mubr.bf16.gmra.mrb[0].mxu0 %v5728
        %v6637 = vpop.f32.mrb[0].mxu0
        %v6638 = vadd.f32 0.0, %v6637
        %v6639 = vpop.f32.mrb[0].mxu0
        %v6640 = vpop.f32.mrb[0].mxu0
        %v6641 = vadd.f32 0.0, %v6640
        %v6642 = vpop.f32.mrb[0].mxu0
        %6643 = vmatprep.mubr.bf16.mxu0 %v5734
        %6644 = vmatmul.mubr.bf16.gmra.mrb[0].mxu0 %v5733
        %v6645 = vpop.f32.mrb[0].mxu0
        %v6646 = vadd.f32 0.0, %v6645
        %v6647 = vpop.f32.mrb[0].mxu0
        %v6648 = vpop.f32.mrb[0].mxu0
        %v6649 = vadd.f32 0.0, %v6648
        %v6650 = vpop.f32.mrb[0].mxu0
        %6651 = vmatprep.mubr.bf16.mxu0 %v5739
        %6652 = vmatmul.mubr.bf16.gmra.mrb[0].mxu0 %v5738
        %v6653 = vpop.f32.mrb[0].mxu0
        %v6654 = vadd.f32 0.0, %v6653
        %v6655 = vpop.f32.mrb[0].mxu0
        %v6656 = vpop.f32.mrb[0].mxu0
        %v6657 = vadd.f32 0.0, %v6656
        %v6658 = vpop.f32.mrb[0].mxu0
        %6659 = vmatprep.mubr.bf16.mxu0 %v5744
        %6660 = vmatmul.mubr.bf16.gmra.mrb[0].mxu0 %v5743
        %v6661 = vpop.f32.mrb[0].mxu0
        %v6662 = vadd.f32 0.0, %v6661
        %v6663 = vpop.f32.mrb[0].mxu0
        %v6664 = vpop.f32.mrb[0].mxu0
        %v6665 = vadd.f32 0.0, %v6664
        %v6666 = vpop.f32.mrb[0].mxu0
        %6667 = vmatprep.mubr.bf16.mxu0 %v5749
        %6668 = vmatmul.mubr.bf16.gmra.mrb[0].mxu0 %v5748
        %v6669 = vpop.f32.mrb[0].mxu0
        %v6670 = vadd.f32 0.0, %v6669
        %v6671 = vpop.f32.mrb[0].mxu0
        %v6672 = vpop.f32.mrb[0].mxu0
        %v6673 = vadd.f32 0.0, %v6672
        %v6674 = vpop.f32.mrb[0].mxu0
        %6675 = vmatprep.mubr.bf16.mxu0 %v5754
        %6676 = vmatmul.mubr.bf16.gmra.mrb[0].mxu0 %v5753
        %v6677 = vpop.f32.mrb[0].mxu0
        %v6678 = vadd.f32 0.0, %v6677
        %v6679 = vpop.f32.mrb[0].mxu0
        %v6680 = vpop.f32.mrb[0].mxu0
        %v6681 = vadd.f32 0.0, %v6680
        %v6682 = vpop.f32.mrb[0].mxu0
        %6683 = vmatprep.mubr.bf16.mxu0 %v5759
        %6684 = vmatmul.mubr.bf16.gmra.mrb[0].mxu0 %v5758
        %v6685 = vpop.f32.mrb[0].mxu0
        %v6686 = vadd.f32 0.0, %v6685
        %v6687 = vpop.f32.mrb[0].mxu0
        %v6688 = vpop.f32.mrb[0].mxu0
        %v6689 = vadd.f32 0.0, %v6688
        %v6690 = vpop.f32.mrb[0].mxu0
        %6691 = vmatprep.mubr.bf16.mxu0 %v5764
        %6692 = vmatmul.mubr.bf16.gmra.mrb[0].mxu0 %v5763
        %v6693 = vpop.f32.mrb[0].mxu0
        %v6694 = vadd.f32 0.0, %v6693
        %v6695 = vpop.f32.mrb[0].mxu0
        %v6696 = vpop.f32.mrb[0].mxu0
        %v6697 = vadd.f32 0.0, %v6696
        %v6698 = vpop.f32.mrb[0].mxu0
        %6699 = vmatprep.mubr.bf16.mxu0 %v5769
        %6700 = vmatmul.mubr.bf16.gmra.mrb[0].mxu0 %v5768
        %v6701 = vpop.f32.mrb[0].mxu0
        %v6702 = vadd.f32 0.0, %v6701
        %v6703 = vpop.f32.mrb[0].mxu0
        %v6704 = vpop.f32.mrb[0].mxu0
        %v6705 = vadd.f32 0.0, %v6704
        %v6706 = vpop.f32.mrb[0].mxu0
        %6707 = vmatprep.mubr.bf16.mxu0 %v5774
        %6708 = vmatmul.mubr.bf16.gmra.mrb[0].mxu0 %v5773
        %v6709 = vpop.f32.mrb[0].mxu0
        %v6710 = vadd.f32 0.0, %v6709
        %v6711 = vpop.f32.mrb[0].mxu0
        %v6712 = vpop.f32.mrb[0].mxu0
        %v6713 = vadd.f32 0.0, %v6712
        %v6714 = vpop.f32.mrb[0].mxu0
        %6715 = vmatprep.mubr.bf16.mxu0 %v5779
        %6716 = vmatmul.mubr.bf16.gmra.mrb[0].mxu0 %v5778
        %v6717 = vpop.f32.mrb[0].mxu0
        %v6718 = vadd.f32 0.0, %v6717
        %v6719 = vpop.f32.mrb[0].mxu0
        %v6720 = vpop.f32.mrb[0].mxu0
        %v6721 = vadd.f32 0.0, %v6720
        %v6722 = vpop.f32.mrb[0].mxu0
        %6723 = vmatprep.mubr.bf16.mxu0 %v5784
        %6724 = vmatmul.mubr.bf16.gmra.mrb[0].mxu0 %v5783
        %v6725 = vpop.f32.mrb[0].mxu0
        %v6726 = vadd.f32 0.0, %v6725
        %v6727 = vpop.f32.mrb[0].mxu0
        %v6728 = vpop.f32.mrb[0].mxu0
        %v6729 = vadd.f32 0.0, %v6728
        %v6730 = vpop.f32.mrb[0].mxu0
        %6731 = vmatprep.mubr.bf16.mxu0 %v5789
        %6732 = vmatmul.mubr.bf16.gmra.mrb[0].mxu0 %v5788
        %v6733 = vpop.f32.mrb[0].mxu0
        %v6734 = vadd.f32 0.0, %v6733
        %v6735 = vpop.f32.mrb[0].mxu0
        %v6736 = vpop.f32.mrb[0].mxu0
        %v6737 = vadd.f32 0.0, %v6736
        %v6738 = vpop.f32.mrb[0].mxu0
        %6739 = vmatprep.mubr.bf16.mxu0 %v5794
        %6740 = vmatmul.mubr.bf16.gmra.mrb[0].mxu0 %v5793
        %v6741 = vpop.f32.mrb[0].mxu0
        %v6742 = vadd.f32 0.0, %v6741
        %v6743 = vpop.f32.mrb[0].mxu0
        %v6744 = vpop.f32.mrb[0].mxu0
        %v6745 = vadd.f32 0.0, %v6744
        %v6746 = vpop.f32.mrb[0].mxu0
        %6747 = vmatprep.mubr.bf16.mxu0 %v5799
        %6748 = vmatmul.mubr.bf16.gmra.mrb[0].mxu0 %v5798
        %v6749 = vpop.f32.mrb[0].mxu0
        %v6750 = vadd.f32 0.0, %v6749
        %v6751 = vpop.f32.mrb[0].mxu0
        %v6752 = vpop.f32.mrb[0].mxu0
        %v6753 = vadd.f32 0.0, %v6752
        %v6754 = vpop.f32.mrb[0].mxu0
        %6755 = vmatprep.mubr.bf16.mxu0 %v5804
        %6756 = vmatmul.mubr.bf16.gmra.mrb[0].mxu0 %v5803
        %v6757 = vpop.f32.mrb[0].mxu0
        %v6758 = vadd.f32 0.0, %v6757
        %v6759 = vpop.f32.mrb[0].mxu0
        %v6760 = vpop.f32.mrb[0].mxu0
        %v6761 = vadd.f32 0.0, %v6760
        %v6762 = vpop.f32.mrb[0].mxu0
        %6763 = vmatprep.mubr.bf16.mxu0 %v5809
        %6764 = vmatmul.mubr.bf16.gmra.mrb[0].mxu0 %v5808
        %v6765 = vpop.f32.mrb[0].mxu0
        %v6766 = vadd.f32 0.0, %v6765
        %v6767 = vpop.f32.mrb[0].mxu0
        %v6768 = vpop.f32.mrb[0].mxu0
        %v6769 = vadd.f32 0.0, %v6768
        %v6770 = vpop.f32.mrb[0].mxu0
        %6771 = vmatprep.mubr.bf16.mxu0 %v5814
        %6772 = vmatmul.mubr.bf16.gmra.mrb[0].mxu0 %v5813
        %v6773 = vpop.f32.mrb[0].mxu0
        %v6774 = vadd.f32 0.0, %v6773
        %v6775 = vpop.f32.mrb[0].mxu0
        %v6776 = vpop.f32.mrb[0].mxu0
        %v6777 = vadd.f32 0.0, %v6776
        %v6778 = vpop.f32.mrb[0].mxu0
        %6779 = vmatprep.mubr.bf16.mxu0 %v5819
        %6780 = vmatmul.mubr.bf16.gmra.mrb[0].mxu0 %v5818
        %v6781 = vpop.f32.mrb[0].mxu0
        %v6782 = vadd.f32 0.0, %v6781
        %v6783 = vpop.f32.mrb[0].mxu0
        %v6784 = vpop.f32.mrb[0].mxu0
        %v6785 = vadd.f32 0.0, %v6784
        %v6786 = vpop.f32.mrb[0].mxu0
        %6787 = vmatprep.mubr.bf16.mxu0 %v5824
        %6788 = vmatmul.mubr.bf16.gmra.mrb[0].mxu0 %v5823
        %v6789 = vpop.f32.mrb[0].mxu0
        %v6790 = vadd.f32 0.0, %v6789
        %v6791 = vpop.f32.mrb[0].mxu0
        %v6792 = vpop.f32.mrb[0].mxu0
        %v6793 = vadd.f32 0.0, %v6792
        %v6794 = vpop.f32.mrb[0].mxu0
        %6795 = vmatprep.mubr.bf16.mxu0 %v5829
        %6796 = vmatmul.mubr.bf16.gmra.mrb[0].mxu0 %v5828
        %v6797 = vpop.f32.mrb[0].mxu0
        %v6798 = vadd.f32 0.0, %v6797
        %v6799 = vpop.f32.mrb[0].mxu0
        %v6800 = vpop.f32.mrb[0].mxu0
        %v6801 = vadd.f32 0.0, %v6800
        %v6802 = vpop.f32.mrb[0].mxu0
        %6803 = vmatprep.mubr.bf16.mxu0 %v5834
        %6804 = vmatmul.mubr.bf16.gmra.mrb[0].mxu0 %v5833
        %v6805 = vpop.f32.mrb[0].mxu0
        %v6806 = vadd.f32 0.0, %v6805
        %v6807 = vpop.f32.mrb[0].mxu0
        %v6808 = vpop.f32.mrb[0].mxu0
        %v6809 = vadd.f32 0.0, %v6808
        %v6810 = vpop.f32.mrb[0].mxu0
        %6811 = vmatprep.mubr.bf16.mxu0 %v5839
        %6812 = vmatmul.mubr.bf16.gmra.mrb[0].mxu0 %v5838
        %v6813 = vpop.f32.mrb[0].mxu0
        %v6814 = vadd.f32 0.0, %v6813
        %v6815 = vpop.f32.mrb[0].mxu0
        %v6816 = vpop.f32.mrb[0].mxu0
        %v6817 = vadd.f32 0.0, %v6816
        %v6818 = vpop.f32.mrb[0].mxu0
        %6819 = vmatprep.mubr.bf16.mxu0 %v5844
        %6820 = vmatmul.mubr.bf16.gmra.mrb[0].mxu0 %v5843
        %v6821 = vpop.f32.mrb[0].mxu0
        %v6822 = vadd.f32 0.0, %v6821
        %v6823 = vpop.f32.mrb[0].mxu0
        %v6824 = vpop.f32.mrb[0].mxu0
        %v6825 = vadd.f32 0.0, %v6824
        %v6826 = vpop.f32.mrb[0].mxu0
        %6827 = vmatprep.mubr.bf16.mxu0 %v5849
        %6828 = vmatmul.mubr.bf16.gmra.mrb[0].mxu0 %v5848
        %v6829 = vpop.f32.mrb[0].mxu0
        %v6830 = vadd.f32 0.0, %v6829
        %v6831 = vpop.f32.mrb[0].mxu0
        %v6832 = vpop.f32.mrb[0].mxu0
        %v6833 = vadd.f32 0.0, %v6832
        %v6834 = vpop.f32.mrb[0].mxu0
        %6835 = vmatprep.mubr.bf16.mxu0 %v5854
        %6836 = vmatmul.mubr.bf16.gmra.mrb[0].mxu0 %v5853
        %v6837 = vpop.f32.mrb[0].mxu0
        %v6838 = vadd.f32 0.0, %v6837
        %v6839 = vpop.f32.mrb[0].mxu0
        %v6840 = vpop.f32.mrb[0].mxu0
        %v6841 = vadd.f32 0.0, %v6840
        %v6842 = vpop.f32.mrb[0].mxu0
        %6843 = vmatprep.mubr.bf16.mxu0 %v5859
        %6844 = vmatmul.mubr.bf16.gmra.mrb[0].mxu0 %v5858
        %v6845 = vpop.f32.mrb[0].mxu0
        %v6846 = vadd.f32 0.0, %v6845
        %v6847 = vpop.f32.mrb[0].mxu0
        %v6848 = vpop.f32.mrb[0].mxu0
        %v6849 = vadd.f32 0.0, %v6848
        %v6850 = vpop.f32.mrb[0].mxu0
        %6851 = vmatprep.mubr.bf16.mxu0 %v5864
        %6852 = vmatmul.mubr.bf16.gmra.mrb[0].mxu0 %v5863
        %v6853 = vpop.f32.mrb[0].mxu0
        %v6854 = vadd.f32 0.0, %v6853
        %v6855 = vpop.f32.mrb[0].mxu0
        %v6856 = vpop.f32.mrb[0].mxu0
        %v6857 = vadd.f32 0.0, %v6856
        %v6858 = vpop.f32.mrb[0].mxu0
        %6859 = vmatprep.mubr.bf16.mxu0 %v5869
        %6860 = vmatmul.mubr.bf16.gmra.mrb[0].mxu0 %v5868
        %v6861 = vpop.f32.mrb[0].mxu0
        %v6862 = vadd.f32 0.0, %v6861
        %v6863 = vpop.f32.mrb[0].mxu0
        %v6864 = vpop.f32.mrb[0].mxu0
        %v6865 = vadd.f32 0.0, %v6864
        %v6866 = vpop.f32.mrb[0].mxu0
        %6867 = vmatprep.mubr.bf16.mxu0 %v5874
        %6868 = vmatmul.mubr.bf16.gmra.mrb[0].mxu0 %v5873
        %v6869 = vpop.f32.mrb[0].mxu0
        %v6870 = vadd.f32 0.0, %v6869
        %v6871 = vpop.f32.mrb[0].mxu0
        %v6872 = vpop.f32.mrb[0].mxu0
        %v6873 = vadd.f32 0.0, %v6872
        %v6874 = vpop.f32.mrb[0].mxu0
        %6875 = vmatprep.mubr.bf16.mxu0 %v5879
        %6876 = vmatmul.mubr.bf16.gmra.mrb[0].mxu0 %v5878
        %v6877 = vpop.f32.mrb[0].mxu0
        %v6878 = vadd.f32 0.0, %v6877
        %v6879 = vpop.f32.mrb[0].mxu0
        %v6880 = vpop.f32.mrb[0].mxu0
        %v6881 = vadd.f32 0.0, %v6880
        %v6882 = vpop.f32.mrb[0].mxu0
        %6883 = vmatprep.mubr.bf16.mxu0 %v5884
        %6884 = vmatmul.mubr.bf16.gmra.mrb[0].mxu0 %v5883
        %v6885 = vpop.f32.mrb[0].mxu0
        %v6886 = vadd.f32 0.0, %v6885
        %v6887 = vpop.f32.mrb[0].mxu0
        %v6888 = vpop.f32.mrb[0].mxu0
        %v6889 = vadd.f32 0.0, %v6888
        %v6890 = vpop.f32.mrb[0].mxu0
        %6891 = vmatprep.mubr.bf16.mxu0 %v5889
        %6892 = vmatmul.mubr.bf16.gmra.mrb[0].mxu0 %v5888
        %v6893 = vpop.f32.mrb[0].mxu0
        %v6894 = vadd.f32 0.0, %v6893
        %v6895 = vpop.f32.mrb[0].mxu0
        %v6896 = vpop.f32.mrb[0].mxu0
        %v6897 = vadd.f32 0.0, %v6896
        %v6898 = vpop.f32.mrb[0].mxu0
        %6899 = vmatprep.mubr.bf16.mxu0 %v5894
        %6900 = vmatmul.mubr.bf16.gmra.mrb[0].mxu0 %v5893
        %v6901 = vpop.f32.mrb[0].mxu0
        %v6902 = vadd.f32 0.0, %v6901
        %v6903 = vpop.f32.mrb[0].mxu0
        %v6904 = vpop.f32.mrb[0].mxu0
        %v6905 = vadd.f32 0.0, %v6904
        %v6906 = vpop.f32.mrb[0].mxu0
        %6907 = vmatprep.mubr.bf16.mxu0 %v5899
        %6908 = vmatmul.mubr.bf16.gmra.mrb[0].mxu0 %v5898
        %v6909 = vpop.f32.mrb[0].mxu0
        %v6910 = vadd.f32 0.0, %v6909
        %v6911 = vpop.f32.mrb[0].mxu0
        %v6912 = vpop.f32.mrb[0].mxu0
        %v6913 = vadd.f32 0.0, %v6912
        %v6914 = vpop.f32.mrb[0].mxu0
        %6915 = vmatprep.mubr.bf16.mxu0 %v5904
        %6916 = vmatmul.mubr.bf16.gmra.mrb[0].mxu0 %v5903
        %v6917 = vpop.f32.mrb[0].mxu0
        %v6918 = vadd.f32 0.0, %v6917
        %v6919 = vpop.f32.mrb[0].mxu0
        %v6920 = vpop.f32.mrb[0].mxu0
        %v6921 = vadd.f32 0.0, %v6920
        %v6922 = vpop.f32.mrb[0].mxu0
        %6923 = vmatprep.mubr.bf16.mxu0 %v5909
        %6924 = vmatmul.mubr.bf16.gmra.mrb[0].mxu0 %v5908
        %v6925 = vpop.f32.mrb[0].mxu0
        %v6926 = vadd.f32 0.0, %v6925
        %v6927 = vpop.f32.mrb[0].mxu0
        %v6928 = vpop.f32.mrb[0].mxu0
        %v6929 = vadd.f32 0.0, %v6928
        %v6930 = vpop.f32.mrb[0].mxu0
        %6931 = vmatprep.mubr.bf16.mxu0 %v5914
        %6932 = vmatmul.mubr.bf16.gmra.mrb[0].mxu0 %v5913
        %v6933 = vpop.f32.mrb[0].mxu0
        %v6934 = vadd.f32 0.0, %v6933
        %v6935 = vpop.f32.mrb[0].mxu0
        %v6936 = vpop.f32.mrb[0].mxu0
        %v6937 = vadd.f32 0.0, %v6936
        %v6938 = vpop.f32.mrb[0].mxu0
        %6939 = vmatprep.mubr.bf16.mxu0 %v5919
        %6940 = vmatmul.mubr.bf16.gmra.mrb[0].mxu0 %v5918
        %v6941 = vpop.f32.mrb[0].mxu0
        %v6942 = vadd.f32 0.0, %v6941
        %v6943 = vpop.f32.mrb[0].mxu0
        %v6944 = vpop.f32.mrb[0].mxu0
        %v6945 = vadd.f32 0.0, %v6944
        %v6946 = vpop.f32.mrb[0].mxu0
        %6947 = vdwg.mxu0
        %6948 = vmatprep.subr.bf16.mxu0 0
        %6949 = vmatpush1.bf16.msra.mxu0 %v6155
        %6950 = vmatprep.subr.bf16.mxu0 0
        %6951 = vmatpush1.bf16.msra.mxu0 %v6156
        %6952 = vmatprep.subr.bf16.mxu0 0
        %6953 = vmatpush1.bf16.msra.mxu0 %v6157
        %6954 = vmatprep.subr.bf16.mxu0 0
        %6955 = vmatpush1.bf16.msra.mxu0 %v6158
        %6956 = vmatprep.subr.bf16.mxu0 0
        %6957 = vmatpush1.bf16.msra.mxu0 %v6159
        %6958 = vmatprep.subr.bf16.mxu0 0
        %6959 = vmatpush1.bf16.msra.mxu0 %v6160
        %6960 = vmatprep.subr.bf16.mxu0 0
        %6961 = vmatpush1.bf16.msra.mxu0 %v6161
        %6962 = vmatprep.subr.bf16.mxu0 0
        %6963 = vmatpush1.bf16.msra.mxu0 %v6162
        %6964 = vmatprep.subr.bf16.mxu0 0
        %6965 = vmatpush1.bf16.msra.mxu0 %v6163
        %6966 = vmatprep.subr.bf16.mxu0 0
        %6967 = vmatpush1.bf16.msra.mxu0 %v6164
        %6968 = vmatprep.subr.bf16.mxu0 0
        %6969 = vmatpush1.bf16.msra.mxu0 %v6165
        %6970 = vmatprep.subr.bf16.mxu0 0
        %6971 = vmatpush1.bf16.msra.mxu0 %v6166
        %6972 = vmatprep.subr.bf16.mxu0 0
        %6973 = vmatpush1.bf16.msra.mxu0 %v6167
        %6974 = vmatprep.subr.bf16.mxu0 0
        %6975 = vmatpush1.bf16.msra.mxu0 %v6168
        %6976 = vmatprep.subr.bf16.mxu0 0
        %6977 = vmatpush1.bf16.msra.mxu0 %v6169
        %6978 = vmatprep.subr.bf16.mxu0 0
        %6979 = vmatpush1.bf16.msra.mxu0 %v6170
        %6980 = vmatprep.mubr.bf16.mxu0 %v5606
        %6981 = vmatmul.mubr.bf16.gmra.mrb[0].mxu0 %v5605
        %v6982 = vpop.f32.mrb[0].mxu0
        %v6983 = vadd.f32 %v6438, %v6982
        %v6984 = vpop.f32.mrb[0].mxu0
        %v6985 = vpop.f32.mrb[0].mxu0
        %v6986 = vadd.f32 %v6441, %v6985
        %v6987 = vpop.f32.mrb[0].mxu0
        %6988 = vmatprep.mubr.bf16.mxu0 %v5611
        %6989 = vmatmul.mubr.bf16.gmra.mrb[0].mxu0 %v5610
        %v6990 = vpop.f32.mrb[0].mxu0
        %v6991 = vadd.f32 %v6446, %v6990
        %v6992 = vpop.f32.mrb[0].mxu0
        %v6993 = vpop.f32.mrb[0].mxu0
        %v6994 = vadd.f32 %v6449, %v6993
        %v6995 = vpop.f32.mrb[0].mxu0
        %6996 = vmatprep.mubr.bf16.mxu0 %v5616
        %6997 = vmatmul.mubr.bf16.gmra.mrb[0].mxu0 %v5615
        %v6998 = vpop.f32.mrb[0].mxu0
        %v6999 = vadd.f32 %v6454, %v6998
        %v7000 = vpop.f32.mrb[0].mxu0
        %v7001 = vpop.f32.mrb[0].mxu0
        %v7002 = vadd.f32 %v6457, %v7001
        %v7003 = vpop.f32.mrb[0].mxu0
        %7004 = vmatprep.mubr.bf16.mxu0 %v5621
        %7005 = vmatmul.mubr.bf16.gmra.mrb[0].mxu0 %v5620
        %v7006 = vpop.f32.mrb[0].mxu0
        %v7007 = vadd.f32 %v6462, %v7006
        %v7008 = vpop.f32.mrb[0].mxu0
        %v7009 = vpop.f32.mrb[0].mxu0
        %v7010 = vadd.f32 %v6465, %v7009
        %v7011 = vpop.f32.mrb[0].mxu0
        %7012 = vmatprep.mubr.bf16.mxu0 %v5626
        %7013 = vmatmul.mubr.bf16.gmra.mrb[0].mxu0 %v5625
        %v7014 = vpop.f32.mrb[0].mxu0
        %v7015 = vadd.f32 %v6470, %v7014
        %v7016 = vpop.f32.mrb[0].mxu0
        %v7017 = vpop.f32.mrb[0].mxu0
        %v7018 = vadd.f32 %v6473, %v7017
        %v7019 = vpop.f32.mrb[0].mxu0
        %7020 = vmatprep.mubr.bf16.mxu0 %v5631
        %7021 = vmatmul.mubr.bf16.gmra.mrb[0].mxu0 %v5630
        %v7022 = vpop.f32.mrb[0].mxu0
        %v7023 = vadd.f32 %v6478, %v7022
        %v7024 = vpop.f32.mrb[0].mxu0
        %v7025 = vpop.f32.mrb[0].mxu0
        %v7026 = vadd.f32 %v6481, %v7025
        %v7027 = vpop.f32.mrb[0].mxu0
        %7028 = vmatprep.mubr.bf16.mxu0 %v5636
        %7029 = vmatmul.mubr.bf16.gmra.mrb[0].mxu0 %v5635
        %v7030 = vpop.f32.mrb[0].mxu0
        %v7031 = vadd.f32 %v6486, %v7030
        %v7032 = vpop.f32.mrb[0].mxu0
        %v7033 = vpop.f32.mrb[0].mxu0
        %v7034 = vadd.f32 %v6489, %v7033
        %v7035 = vpop.f32.mrb[0].mxu0
        %7036 = vmatprep.mubr.bf16.mxu0 %v5641
        %7037 = vmatmul.mubr.bf16.gmra.mrb[0].mxu0 %v5640
        %v7038 = vpop.f32.mrb[0].mxu0
        %v7039 = vadd.f32 %v6494, %v7038
        %v7040 = vpop.f32.mrb[0].mxu0
        %v7041 = vpop.f32.mrb[0].mxu0
        %v7042 = vadd.f32 %v6497, %v7041
        %v7043 = vpop.f32.mrb[0].mxu0
        %7044 = vmatprep.mubr.bf16.mxu0 %v5646
        %7045 = vmatmul.mubr.bf16.gmra.mrb[0].mxu0 %v5645
        %v7046 = vpop.f32.mrb[0].mxu0
        %v7047 = vadd.f32 %v6502, %v7046
        %v7048 = vpop.f32.mrb[0].mxu0
        %v7049 = vpop.f32.mrb[0].mxu0
        %v7050 = vadd.f32 %v6505, %v7049
        %v7051 = vpop.f32.mrb[0].mxu0
        %7052 = vmatprep.mubr.bf16.mxu0 %v5651
        %7053 = vmatmul.mubr.bf16.gmra.mrb[0].mxu0 %v5650
        %v7054 = vpop.f32.mrb[0].mxu0
        %v7055 = vadd.f32 %v6510, %v7054
        %v7056 = vpop.f32.mrb[0].mxu0
        %v7057 = vpop.f32.mrb[0].mxu0
        %v7058 = vadd.f32 %v6513, %v7057
        %v7059 = vpop.f32.mrb[0].mxu0
        %7060 = vmatprep.mubr.bf16.mxu0 %v5656
        %7061 = vmatmul.mubr.bf16.gmra.mrb[0].mxu0 %v5655
        %v7062 = vpop.f32.mrb[0].mxu0
        %v7063 = vadd.f32 %v6518, %v7062
        %v7064 = vpop.f32.mrb[0].mxu0
        %v7065 = vpop.f32.mrb[0].mxu0
        %v7066 = vadd.f32 %v6521, %v7065
        %v7067 = vpop.f32.mrb[0].mxu0
        %7068 = vmatprep.mubr.bf16.mxu0 %v5661
        %7069 = vmatmul.mubr.bf16.gmra.mrb[0].mxu0 %v5660
        %v7070 = vpop.f32.mrb[0].mxu0
        %v7071 = vadd.f32 %v6526, %v7070
        %v7072 = vpop.f32.mrb[0].mxu0
        %v7073 = vpop.f32.mrb[0].mxu0
        %v7074 = vadd.f32 %v6529, %v7073
        %v7075 = vpop.f32.mrb[0].mxu0
        %7076 = vmatprep.mubr.bf16.mxu0 %v5666
        %7077 = vmatmul.mubr.bf16.gmra.mrb[0].mxu0 %v5665
        %v7078 = vpop.f32.mrb[0].mxu0
        %v7079 = vadd.f32 %v6534, %v7078
        %v7080 = vpop.f32.mrb[0].mxu0
        %v7081 = vpop.f32.mrb[0].mxu0
        %v7082 = vadd.f32 %v6537, %v7081
        %v7083 = vpop.f32.mrb[0].mxu0
        %7084 = vmatprep.mubr.bf16.mxu0 %v5671
        %7085 = vmatmul.mubr.bf16.gmra.mrb[0].mxu0 %v5670
        %v7086 = vpop.f32.mrb[0].mxu0
        %v7087 = vadd.f32 %v6542, %v7086
        %v7088 = vpop.f32.mrb[0].mxu0
        %v7089 = vpop.f32.mrb[0].mxu0
        %v7090 = vadd.f32 %v6545, %v7089
        %v7091 = vpop.f32.mrb[0].mxu0
        %7092 = vmatprep.mubr.bf16.mxu0 %v5676
        %7093 = vmatmul.mubr.bf16.gmra.mrb[0].mxu0 %v5675
        %v7094 = vpop.f32.mrb[0].mxu0
        %v7095 = vadd.f32 %v6550, %v7094
        %v7096 = vpop.f32.mrb[0].mxu0
        %v7097 = vpop.f32.mrb[0].mxu0
        %v7098 = vadd.f32 %v6553, %v7097
        %v7099 = vpop.f32.mrb[0].mxu0
        %7100 = vmatprep.mubr.bf16.mxu0 %v5681
        %7101 = vmatmul.mubr.bf16.gmra.mrb[0].mxu0 %v5680
        %v7102 = vpop.f32.mrb[0].mxu0
        %v7103 = vadd.f32 %v6558, %v7102
        %v7104 = vpop.f32.mrb[0].mxu0
        %v7105 = vpop.f32.mrb[0].mxu0
        %v7106 = vadd.f32 %v6561, %v7105
        %v7107 = vpop.f32.mrb[0].mxu0
        %7108 = vmatprep.mubr.bf16.mxu0 %v5686
        %7109 = vmatmul.mubr.bf16.gmra.mrb[0].mxu0 %v5685
        %v7110 = vpop.f32.mrb[0].mxu0
        %v7111 = vadd.f32 %v6566, %v7110
        %v7112 = vpop.f32.mrb[0].mxu0
        %v7113 = vpop.f32.mrb[0].mxu0
        %v7114 = vadd.f32 %v6569, %v7113
        %v7115 = vpop.f32.mrb[0].mxu0
        %7116 = vmatprep.mubr.bf16.mxu0 %v5691
        %7117 = vmatmul.mubr.bf16.gmra.mrb[0].mxu0 %v5690
        %v7118 = vpop.f32.mrb[0].mxu0
        %v7119 = vadd.f32 %v6574, %v7118
        %v7120 = vpop.f32.mrb[0].mxu0
        %v7121 = vpop.f32.mrb[0].mxu0
        %v7122 = vadd.f32 %v6577, %v7121
        %v7123 = vpop.f32.mrb[0].mxu0
        %7124 = vmatprep.mubr.bf16.mxu0 %v5696
        %7125 = vmatmul.mubr.bf16.gmra.mrb[0].mxu0 %v5695
        %v7126 = vpop.f32.mrb[0].mxu0
        %v7127 = vadd.f32 %v6582, %v7126
        %v7128 = vpop.f32.mrb[0].mxu0
        %v7129 = vpop.f32.mrb[0].mxu0
        %v7130 = vadd.f32 %v6585, %v7129
        %v7131 = vpop.f32.mrb[0].mxu0
        %7132 = vmatprep.mubr.bf16.mxu0 %v5701
        %7133 = vmatmul.mubr.bf16.gmra.mrb[0].mxu0 %v5700
        %v7134 = vpop.f32.mrb[0].mxu0
        %v7135 = vadd.f32 %v6590, %v7134
        %v7136 = vpop.f32.mrb[0].mxu0
        %v7137 = vpop.f32.mrb[0].mxu0
        %v7138 = vadd.f32 %v6593, %v7137
        %v7139 = vpop.f32.mrb[0].mxu0
        %7140 = vmatprep.mubr.bf16.mxu0 %v5706
        %7141 = vmatmul.mubr.bf16.gmra.mrb[0].mxu0 %v5705
        %v7142 = vpop.f32.mrb[0].mxu0
        %v7143 = vadd.f32 %v6598, %v7142
        %v7144 = vpop.f32.mrb[0].mxu0
        %v7145 = vpop.f32.mrb[0].mxu0
        %v7146 = vadd.f32 %v6601, %v7145
        %v7147 = vpop.f32.mrb[0].mxu0
        %7148 = vmatprep.mubr.bf16.mxu0 %v5711
        %7149 = vmatmul.mubr.bf16.gmra.mrb[0].mxu0 %v5710
        %v7150 = vpop.f32.mrb[0].mxu0
        %v7151 = vadd.f32 %v6606, %v7150
        %v7152 = vpop.f32.mrb[0].mxu0
        %v7153 = vpop.f32.mrb[0].mxu0
        %v7154 = vadd.f32 %v6609, %v7153
        %v7155 = vpop.f32.mrb[0].mxu0
        %7156 = vmatprep.mubr.bf16.mxu0 %v5716
        %7157 = vmatmul.mubr.bf16.gmra.mrb[0].mxu0 %v5715
        %v7158 = vpop.f32.mrb[0].mxu0
        %v7159 = vadd.f32 %v6614, %v7158
        %v7160 = vpop.f32.mrb[0].mxu0
        %v7161 = vpop.f32.mrb[0].mxu0
        %v7162 = vadd.f32 %v6617, %v7161
        %v7163 = vpop.f32.mrb[0].mxu0
        %7164 = vmatprep.mubr.bf16.mxu0 %v5721
        %7165 = vmatmul.mubr.bf16.gmra.mrb[0].mxu0 %v5720
        %v7166 = vpop.f32.mrb[0].mxu0
        %v7167 = vadd.f32 %v6622, %v7166
        %v7168 = vpop.f32.mrb[0].mxu0
        %v7169 = vpop.f32.mrb[0].mxu0
        %v7170 = vadd.f32 %v6625, %v7169
        %v7171 = vpop.f32.mrb[0].mxu0
        %7172 = vmatprep.mubr.bf16.mxu0 %v5726
        %7173 = vmatmul.mubr.bf16.gmra.mrb[0].mxu0 %v5725
        %v7174 = vpop.f32.mrb[0].mxu0
        %v7175 = vadd.f32 %v6630, %v7174
        %v7176 = vpop.f32.mrb[0].mxu0
        %v7177 = vpop.f32.mrb[0].mxu0
        %v7178 = vadd.f32 %v6633, %v7177
        %v7179 = vpop.f32.mrb[0].mxu0
        %7180 = vmatprep.mubr.bf16.mxu0 %v5731
        %7181 = vmatmul.mubr.bf16.gmra.mrb[0].mxu0 %v5730
        %v7182 = vpop.f32.mrb[0].mxu0
        %v7183 = vadd.f32 %v6638, %v7182
        %v7184 = vpop.f32.mrb[0].mxu0
        %v7185 = vpop.f32.mrb[0].mxu0
        %v7186 = vadd.f32 %v6641, %v7185
        %v7187 = vpop.f32.mrb[0].mxu0
        %7188 = vmatprep.mubr.bf16.mxu0 %v5736
        %7189 = vmatmul.mubr.bf16.gmra.mrb[0].mxu0 %v5735
        %v7190 = vpop.f32.mrb[0].mxu0
        %v7191 = vadd.f32 %v6646, %v7190
        %v7192 = vpop.f32.mrb[0].mxu0
        %v7193 = vpop.f32.mrb[0].mxu0
        %v7194 = vadd.f32 %v6649, %v7193
        %v7195 = vpop.f32.mrb[0].mxu0
        %7196 = vmatprep.mubr.bf16.mxu0 %v5741
        %7197 = vmatmul.mubr.bf16.gmra.mrb[0].mxu0 %v5740
        %v7198 = vpop.f32.mrb[0].mxu0
        %v7199 = vadd.f32 %v6654, %v7198
        %v7200 = vpop.f32.mrb[0].mxu0
        %v7201 = vpop.f32.mrb[0].mxu0
        %v7202 = vadd.f32 %v6657, %v7201
        %v7203 = vpop.f32.mrb[0].mxu0
        %7204 = vmatprep.mubr.bf16.mxu0 %v5746
        %7205 = vmatmul.mubr.bf16.gmra.mrb[0].mxu0 %v5745
        %v7206 = vpop.f32.mrb[0].mxu0
        %v7207 = vadd.f32 %v6662, %v7206
        %v7208 = vpop.f32.mrb[0].mxu0
        %v7209 = vpop.f32.mrb[0].mxu0
        %v7210 = vadd.f32 %v6665, %v7209
        %v7211 = vpop.f32.mrb[0].mxu0
        %7212 = vmatprep.mubr.bf16.mxu0 %v5751
        %7213 = vmatmul.mubr.bf16.gmra.mrb[0].mxu0 %v5750
        %v7214 = vpop.f32.mrb[0].mxu0
        %v7215 = vadd.f32 %v6670, %v7214
        %v7216 = vpop.f32.mrb[0].mxu0
        %v7217 = vpop.f32.mrb[0].mxu0
        %v7218 = vadd.f32 %v6673, %v7217
        %v7219 = vpop.f32.mrb[0].mxu0
        %7220 = vmatprep.mubr.bf16.mxu0 %v5756
        %7221 = vmatmul.mubr.bf16.gmra.mrb[0].mxu0 %v5755
        %v7222 = vpop.f32.mrb[0].mxu0
        %v7223 = vadd.f32 %v6678, %v7222
        %v7224 = vpop.f32.mrb[0].mxu0
        %v7225 = vpop.f32.mrb[0].mxu0
        %v7226 = vadd.f32 %v6681, %v7225
        %v7227 = vpop.f32.mrb[0].mxu0
        %7228 = vmatprep.mubr.bf16.mxu0 %v5761
        %7229 = vmatmul.mubr.bf16.gmra.mrb[0].mxu0 %v5760
        %v7230 = vpop.f32.mrb[0].mxu0
        %v7231 = vadd.f32 %v6686, %v7230
        %v7232 = vpop.f32.mrb[0].mxu0
        %v7233 = vpop.f32.mrb[0].mxu0
        %v7234 = vadd.f32 %v6689, %v7233
        %v7235 = vpop.f32.mrb[0].mxu0
        %7236 = vmatprep.mubr.bf16.mxu0 %v5766
        %7237 = vmatmul.mubr.bf16.gmra.mrb[0].mxu0 %v5765
        %v7238 = vpop.f32.mrb[0].mxu0
        %v7239 = vadd.f32 %v6694, %v7238
        %v7240 = vpop.f32.mrb[0].mxu0
        %v7241 = vpop.f32.mrb[0].mxu0
        %v7242 = vadd.f32 %v6697, %v7241
        %v7243 = vpop.f32.mrb[0].mxu0
        %7244 = vmatprep.mubr.bf16.mxu0 %v5771
        %7245 = vmatmul.mubr.bf16.gmra.mrb[0].mxu0 %v5770
        %v7246 = vpop.f32.mrb[0].mxu0
        %v7247 = vadd.f32 %v6702, %v7246
        %v7248 = vpop.f32.mrb[0].mxu0
        %v7249 = vpop.f32.mrb[0].mxu0
        %v7250 = vadd.f32 %v6705, %v7249
        %v7251 = vpop.f32.mrb[0].mxu0
        %7252 = vmatprep.mubr.bf16.mxu0 %v5776
        %7253 = vmatmul.mubr.bf16.gmra.mrb[0].mxu0 %v5775
        %v7254 = vpop.f32.mrb[0].mxu0
        %v7255 = vadd.f32 %v6710, %v7254
        %v7256 = vpop.f32.mrb[0].mxu0
        %v7257 = vpop.f32.mrb[0].mxu0
        %v7258 = vadd.f32 %v6713, %v7257
        %v7259 = vpop.f32.mrb[0].mxu0
        %7260 = vmatprep.mubr.bf16.mxu0 %v5781
        %7261 = vmatmul.mubr.bf16.gmra.mrb[0].mxu0 %v5780
        %v7262 = vpop.f32.mrb[0].mxu0
        %v7263 = vadd.f32 %v6718, %v7262
        %v7264 = vpop.f32.mrb[0].mxu0
        %v7265 = vpop.f32.mrb[0].mxu0
        %v7266 = vadd.f32 %v6721, %v7265
        %v7267 = vpop.f32.mrb[0].mxu0
        %7268 = vmatprep.mubr.bf16.mxu0 %v5786
        %7269 = vmatmul.mubr.bf16.gmra.mrb[0].mxu0 %v5785
        %v7270 = vpop.f32.mrb[0].mxu0
        %v7271 = vadd.f32 %v6726, %v7270
        %v7272 = vpop.f32.mrb[0].mxu0
        %v7273 = vpop.f32.mrb[0].mxu0
        %v7274 = vadd.f32 %v6729, %v7273
        %v7275 = vpop.f32.mrb[0].mxu0
        %7276 = vmatprep.mubr.bf16.mxu0 %v5791
        %7277 = vmatmul.mubr.bf16.gmra.mrb[0].mxu0 %v5790
        %v7278 = vpop.f32.mrb[0].mxu0
        %v7279 = vadd.f32 %v6734, %v7278
        %v7280 = vpop.f32.mrb[0].mxu0
        %v7281 = vpop.f32.mrb[0].mxu0
        %v7282 = vadd.f32 %v6737, %v7281
        %v7283 = vpop.f32.mrb[0].mxu0
        %7284 = vmatprep.mubr.bf16.mxu0 %v5796
        %7285 = vmatmul.mubr.bf16.gmra.mrb[0].mxu0 %v5795
        %v7286 = vpop.f32.mrb[0].mxu0
        %v7287 = vadd.f32 %v6742, %v7286
        %v7288 = vpop.f32.mrb[0].mxu0
        %v7289 = vpop.f32.mrb[0].mxu0
        %v7290 = vadd.f32 %v6745, %v7289
        %v7291 = vpop.f32.mrb[0].mxu0
        %7292 = vmatprep.mubr.bf16.mxu0 %v5801
        %7293 = vmatmul.mubr.bf16.gmra.mrb[0].mxu0 %v5800
        %v7294 = vpop.f32.mrb[0].mxu0
        %v7295 = vadd.f32 %v6750, %v7294
        %v7296 = vpop.f32.mrb[0].mxu0
        %v7297 = vpop.f32.mrb[0].mxu0
        %v7298 = vadd.f32 %v6753, %v7297
        %v7299 = vpop.f32.mrb[0].mxu0
        %7300 = vmatprep.mubr.bf16.mxu0 %v5806
        %7301 = vmatmul.mubr.bf16.gmra.mrb[0].mxu0 %v5805
        %v7302 = vpop.f32.mrb[0].mxu0
        %v7303 = vadd.f32 %v6758, %v7302
        %v7304 = vpop.f32.mrb[0].mxu0
        %v7305 = vpop.f32.mrb[0].mxu0
        %v7306 = vadd.f32 %v6761, %v7305
        %v7307 = vpop.f32.mrb[0].mxu0
        %7308 = vmatprep.mubr.bf16.mxu0 %v5811
        %7309 = vmatmul.mubr.bf16.gmra.mrb[0].mxu0 %v5810
        %v7310 = vpop.f32.mrb[0].mxu0
        %v7311 = vadd.f32 %v6766, %v7310
        %v7312 = vpop.f32.mrb[0].mxu0
        %v7313 = vpop.f32.mrb[0].mxu0
        %v7314 = vadd.f32 %v6769, %v7313
        %v7315 = vpop.f32.mrb[0].mxu0
        %7316 = vmatprep.mubr.bf16.mxu0 %v5816
        %7317 = vmatmul.mubr.bf16.gmra.mrb[0].mxu0 %v5815
        %v7318 = vpop.f32.mrb[0].mxu0
        %v7319 = vadd.f32 %v6774, %v7318
        %v7320 = vpop.f32.mrb[0].mxu0
        %v7321 = vpop.f32.mrb[0].mxu0
        %v7322 = vadd.f32 %v6777, %v7321
        %v7323 = vpop.f32.mrb[0].mxu0
        %7324 = vmatprep.mubr.bf16.mxu0 %v5821
        %7325 = vmatmul.mubr.bf16.gmra.mrb[0].mxu0 %v5820
        %v7326 = vpop.f32.mrb[0].mxu0
        %v7327 = vadd.f32 %v6782, %v7326
        %v7328 = vpop.f32.mrb[0].mxu0
        %v7329 = vpop.f32.mrb[0].mxu0
        %v7330 = vadd.f32 %v6785, %v7329
        %v7331 = vpop.f32.mrb[0].mxu0
        %7332 = vmatprep.mubr.bf16.mxu0 %v5826
        %7333 = vmatmul.mubr.bf16.gmra.mrb[0].mxu0 %v5825
        %v7334 = vpop.f32.mrb[0].mxu0
        %v7335 = vadd.f32 %v6790, %v7334
        %v7336 = vpop.f32.mrb[0].mxu0
        %v7337 = vpop.f32.mrb[0].mxu0
        %v7338 = vadd.f32 %v6793, %v7337
        %v7339 = vpop.f32.mrb[0].mxu0
        %7340 = vmatprep.mubr.bf16.mxu0 %v5831
        %7341 = vmatmul.mubr.bf16.gmra.mrb[0].mxu0 %v5830
        %v7342 = vpop.f32.mrb[0].mxu0
        %v7343 = vadd.f32 %v6798, %v7342
        %v7344 = vpop.f32.mrb[0].mxu0
        %v7345 = vpop.f32.mrb[0].mxu0
        %v7346 = vadd.f32 %v6801, %v7345
        %v7347 = vpop.f32.mrb[0].mxu0
        %7348 = vmatprep.mubr.bf16.mxu0 %v5836
        %7349 = vmatmul.mubr.bf16.gmra.mrb[0].mxu0 %v5835
        %v7350 = vpop.f32.mrb[0].mxu0
        %v7351 = vadd.f32 %v6806, %v7350
        %v7352 = vpop.f32.mrb[0].mxu0
        %v7353 = vpop.f32.mrb[0].mxu0
        %v7354 = vadd.f32 %v6809, %v7353
        %v7355 = vpop.f32.mrb[0].mxu0
        %7356 = vmatprep.mubr.bf16.mxu0 %v5841
        %7357 = vmatmul.mubr.bf16.gmra.mrb[0].mxu0 %v5840
        %v7358 = vpop.f32.mrb[0].mxu0
        %v7359 = vadd.f32 %v6814, %v7358
        %v7360 = vpop.f32.mrb[0].mxu0
        %v7361 = vpop.f32.mrb[0].mxu0
        %v7362 = vadd.f32 %v6817, %v7361
        %v7363 = vpop.f32.mrb[0].mxu0
        %7364 = vmatprep.mubr.bf16.mxu0 %v5846
        %7365 = vmatmul.mubr.bf16.gmra.mrb[0].mxu0 %v5845
        %v7366 = vpop.f32.mrb[0].mxu0
        %v7367 = vadd.f32 %v6822, %v7366
        %v7368 = vpop.f32.mrb[0].mxu0
        %v7369 = vpop.f32.mrb[0].mxu0
        %v7370 = vadd.f32 %v6825, %v7369
        %v7371 = vpop.f32.mrb[0].mxu0
        %7372 = vmatprep.mubr.bf16.mxu0 %v5851
        %7373 = vmatmul.mubr.bf16.gmra.mrb[0].mxu0 %v5850
        %v7374 = vpop.f32.mrb[0].mxu0
        %v7375 = vadd.f32 %v6830, %v7374
        %v7376 = vpop.f32.mrb[0].mxu0
        %v7377 = vpop.f32.mrb[0].mxu0
        %v7378 = vadd.f32 %v6833, %v7377
        %v7379 = vpop.f32.mrb[0].mxu0
        %7380 = vmatprep.mubr.bf16.mxu0 %v5856
        %7381 = vmatmul.mubr.bf16.gmra.mrb[0].mxu0 %v5855
        %v7382 = vpop.f32.mrb[0].mxu0
        %v7383 = vadd.f32 %v6838, %v7382
        %v7384 = vpop.f32.mrb[0].mxu0
        %v7385 = vpop.f32.mrb[0].mxu0
        %v7386 = vadd.f32 %v6841, %v7385
        %v7387 = vpop.f32.mrb[0].mxu0
        %7388 = vmatprep.mubr.bf16.mxu0 %v5861
        %7389 = vmatmul.mubr.bf16.gmra.mrb[0].mxu0 %v5860
        %v7390 = vpop.f32.mrb[0].mxu0
        %v7391 = vadd.f32 %v6846, %v7390
        %v7392 = vpop.f32.mrb[0].mxu0
        %v7393 = vpop.f32.mrb[0].mxu0
        %v7394 = vadd.f32 %v6849, %v7393
        %v7395 = vpop.f32.mrb[0].mxu0
        %7396 = vmatprep.mubr.bf16.mxu0 %v5866
        %7397 = vmatmul.mubr.bf16.gmra.mrb[0].mxu0 %v5865
        %v7398 = vpop.f32.mrb[0].mxu0
        %v7399 = vadd.f32 %v6854, %v7398
        %v7400 = vpop.f32.mrb[0].mxu0
        %v7401 = vpop.f32.mrb[0].mxu0
        %v7402 = vadd.f32 %v6857, %v7401
        %v7403 = vpop.f32.mrb[0].mxu0
        %7404 = vmatprep.mubr.bf16.mxu0 %v5871
        %7405 = vmatmul.mubr.bf16.gmra.mrb[0].mxu0 %v5870
        %v7406 = vpop.f32.mrb[0].mxu0
        %v7407 = vadd.f32 %v6862, %v7406
        %v7408 = vpop.f32.mrb[0].mxu0
        %v7409 = vpop.f32.mrb[0].mxu0
        %v7410 = vadd.f32 %v6865, %v7409
        %v7411 = vpop.f32.mrb[0].mxu0
        %7412 = vmatprep.mubr.bf16.mxu0 %v5876
        %7413 = vmatmul.mubr.bf16.gmra.mrb[0].mxu0 %v5875
        %v7414 = vpop.f32.mrb[0].mxu0
        %v7415 = vadd.f32 %v6870, %v7414
        %v7416 = vpop.f32.mrb[0].mxu0
        %v7417 = vpop.f32.mrb[0].mxu0
        %v7418 = vadd.f32 %v6873, %v7417
        %v7419 = vpop.f32.mrb[0].mxu0
        %7420 = vmatprep.mubr.bf16.mxu0 %v5881
        %7421 = vmatmul.mubr.bf16.gmra.mrb[0].mxu0 %v5880
        %v7422 = vpop.f32.mrb[0].mxu0
        %v7423 = vadd.f32 %v6878, %v7422
        %v7424 = vpop.f32.mrb[0].mxu0
        %v7425 = vpop.f32.mrb[0].mxu0
        %v7426 = vadd.f32 %v6881, %v7425
        %v7427 = vpop.f32.mrb[0].mxu0
        %7428 = vmatprep.mubr.bf16.mxu0 %v5886
        %7429 = vmatmul.mubr.bf16.gmra.mrb[0].mxu0 %v5885
        %v7430 = vpop.f32.mrb[0].mxu0
        %v7431 = vadd.f32 %v6886, %v7430
        %v7432 = vpop.f32.mrb[0].mxu0
        %v7433 = vpop.f32.mrb[0].mxu0
        %v7434 = vadd.f32 %v6889, %v7433
        %v7435 = vpop.f32.mrb[0].mxu0
        %7436 = vmatprep.mubr.bf16.mxu0 %v5891
        %7437 = vmatmul.mubr.bf16.gmra.mrb[0].mxu0 %v5890
        %v7438 = vpop.f32.mrb[0].mxu0
        %v7439 = vadd.f32 %v6894, %v7438
        %v7440 = vpop.f32.mrb[0].mxu0
        %v7441 = vpop.f32.mrb[0].mxu0
        %v7442 = vadd.f32 %v6897, %v7441
        %v7443 = vpop.f32.mrb[0].mxu0
        %7444 = vmatprep.mubr.bf16.mxu0 %v5896
        %7445 = vmatmul.mubr.bf16.gmra.mrb[0].mxu0 %v5895
        %v7446 = vpop.f32.mrb[0].mxu0
        %v7447 = vadd.f32 %v6902, %v7446
        %v7448 = vpop.f32.mrb[0].mxu0
        %v7449 = vpop.f32.mrb[0].mxu0
        %v7450 = vadd.f32 %v6905, %v7449
        %v7451 = vpop.f32.mrb[0].mxu0
        %7452 = vmatprep.mubr.bf16.mxu0 %v5901
        %7453 = vmatmul.mubr.bf16.gmra.mrb[0].mxu0 %v5900
        %v7454 = vpop.f32.mrb[0].mxu0
        %v7455 = vadd.f32 %v6910, %v7454
        %v7456 = vpop.f32.mrb[0].mxu0
        %v7457 = vpop.f32.mrb[0].mxu0
        %v7458 = vadd.f32 %v6913, %v7457
        %v7459 = vpop.f32.mrb[0].mxu0
        %7460 = vmatprep.mubr.bf16.mxu0 %v5906
        %7461 = vmatmul.mubr.bf16.gmra.mrb[0].mxu0 %v5905
        %v7462 = vpop.f32.mrb[0].mxu0
        %v7463 = vadd.f32 %v6918, %v7462
        %v7464 = vpop.f32.mrb[0].mxu0
        %v7465 = vpop.f32.mrb[0].mxu0
        %v7466 = vadd.f32 %v6921, %v7465
        %v7467 = vpop.f32.mrb[0].mxu0
        %7468 = vmatprep.mubr.bf16.mxu0 %v5911
        %7469 = vmatmul.mubr.bf16.gmra.mrb[0].mxu0 %v5910
        %v7470 = vpop.f32.mrb[0].mxu0
        %v7471 = vadd.f32 %v6926, %v7470
        %v7472 = vpop.f32.mrb[0].mxu0
        %v7473 = vpop.f32.mrb[0].mxu0
        %v7474 = vadd.f32 %v6929, %v7473
        %v7475 = vpop.f32.mrb[0].mxu0
        %7476 = vmatprep.mubr.bf16.mxu0 %v5916
        %7477 = vmatmul.mubr.bf16.gmra.mrb[0].mxu0 %v5915
        %v7478 = vpop.f32.mrb[0].mxu0
        %v7479 = vadd.f32 %v6934, %v7478
        %v7480 = vpop.f32.mrb[0].mxu0
        %v7481 = vpop.f32.mrb[0].mxu0
        %v7482 = vadd.f32 %v6937, %v7481
        %v7483 = vpop.f32.mrb[0].mxu0
        %7484 = vmatprep.mubr.bf16.mxu0 %v5921
        %7485 = vmatmul.mubr.bf16.gmra.mrb[0].mxu0 %v5920
        %v7486 = vpop.f32.mrb[0].mxu0
        %v7487 = vadd.f32 %v6942, %v7486
        %v7488 = vpop.f32.mrb[0].mxu0
        %v7489 = vpop.f32.mrb[0].mxu0
        %v7490 = vadd.f32 %v6945, %v7489
        %v7491 = vpop.f32.mrb[0].mxu0
        %7492 = vdwg.mxu0
        %7493 = vmatprep.subr.bf16.mxu0 0
        %7494 = vmatpush1.bf16.msra.mxu0 %v6171
        %7495 = vmatprep.subr.bf16.mxu0 0
        %7496 = vmatpush1.bf16.msra.mxu0 %v6172
        %7497 = vmatprep.subr.bf16.mxu0 0
        %7498 = vmatpush1.bf16.msra.mxu0 %v6173
        %7499 = vmatprep.subr.bf16.mxu0 0
        %7500 = vmatpush1.bf16.msra.mxu0 %v6174
        %7501 = vmatprep.subr.bf16.mxu0 0
        %7502 = vmatpush1.bf16.msra.mxu0 0
        %7503 = vmatprep.subr.bf16.mxu0 0
        %7504 = vmatpush1.bf16.msra.mxu0 0
        %7505 = vmatprep.subr.bf16.mxu0 0
        %7506 = vmatpush1.bf16.msra.mxu0 0
        %7507 = vmatprep.subr.bf16.mxu0 0
        %7508 = vmatpush1.bf16.msra.mxu0 0
        %7509 = vmatprep.subr.bf16.mxu0 0
        %7510 = vmatpush1.bf16.msra.mxu0 0
        %7511 = vmatprep.subr.bf16.mxu0 0
        %7512 = vmatpush1.bf16.msra.mxu0 0
        %7513 = vmatprep.subr.bf16.mxu0 0
        %7514 = vmatpush1.bf16.msra.mxu0 0
        %7515 = vmatprep.subr.bf16.mxu0 0
        %7516 = vmatpush1.bf16.msra.mxu0 0
        %7517 = vmatprep.subr.bf16.mxu0 0
        %7518 = vmatpush1.bf16.msra.mxu0 0
        %7519 = vmatprep.subr.bf16.mxu0 0
        %7520 = vmatpush1.bf16.msra.mxu0 0
        %7521 = vmatprep.subr.bf16.mxu0 0
        %7522 = vmatpush1.bf16.msra.mxu0 0
        %7523 = vmatprep.subr.bf16.mxu0 0
        %7524 = vmatpush1.bf16.msra.mxu0 0
        %7525 = vmatprep.mubr.bf16.mxu0 0
        %7526 = vmatmul.mubr.bf16.gmra.mrb[0].mxu0 %v6212
        %v7527 = vpop.f32.mrb[0].mxu0
        %v7528 = vadd.f32 %v6983, %v7527
        %v7529 = vpop.f32.mrb[0].mxu0
        %v7530 = vpop.f32.mrb[0].mxu0
        %v7531 = vadd.f32 %v6986, %v7530
        %v7532 = vpop.f32.mrb[0].mxu0
        %7533 = vmatprep.mubr.bf16.mxu0 0
        %7534 = vmatmul.mubr.bf16.gmra.mrb[0].mxu0 %v6215
        %v7535 = vpop.f32.mrb[0].mxu0
        %v7536 = vadd.f32 %v6991, %v7535
        %v7537 = vpop.f32.mrb[0].mxu0
        %v7538 = vpop.f32.mrb[0].mxu0
        %v7539 = vadd.f32 %v6994, %v7538
        %v7540 = vpop.f32.mrb[0].mxu0
        %7541 = vmatprep.mubr.bf16.mxu0 0
        %7542 = vmatmul.mubr.bf16.gmra.mrb[0].mxu0 %v6218
        %v7543 = vpop.f32.mrb[0].mxu0
        %v7544 = vadd.f32 %v6999, %v7543
        %v7545 = vpop.f32.mrb[0].mxu0
        %v7546 = vpop.f32.mrb[0].mxu0
        %v7547 = vadd.f32 %v7002, %v7546
        %v7548 = vpop.f32.mrb[0].mxu0
        %7549 = vmatprep.mubr.bf16.mxu0 0
        %7550 = vmatmul.mubr.bf16.gmra.mrb[0].mxu0 %v6221
        %v7551 = vpop.f32.mrb[0].mxu0
        %v7552 = vadd.f32 %v7007, %v7551
        %v7553 = vpop.f32.mrb[0].mxu0
        %v7554 = vpop.f32.mrb[0].mxu0
        %v7555 = vadd.f32 %v7010, %v7554
        %v7556 = vpop.f32.mrb[0].mxu0
        %7557 = vmatprep.mubr.bf16.mxu0 0
        %7558 = vmatmul.mubr.bf16.gmra.mrb[0].mxu0 %v6224
        %v7559 = vpop.f32.mrb[0].mxu0
        %v7560 = vadd.f32 %v7015, %v7559
        %v7561 = vpop.f32.mrb[0].mxu0
        %v7562 = vpop.f32.mrb[0].mxu0
        %v7563 = vadd.f32 %v7018, %v7562
        %v7564 = vpop.f32.mrb[0].mxu0
        %7565 = vmatprep.mubr.bf16.mxu0 0
        %7566 = vmatmul.mubr.bf16.gmra.mrb[0].mxu0 %v6227
        %v7567 = vpop.f32.mrb[0].mxu0
        %v7568 = vadd.f32 %v7023, %v7567
        %v7569 = vpop.f32.mrb[0].mxu0
        %v7570 = vpop.f32.mrb[0].mxu0
        %v7571 = vadd.f32 %v7026, %v7570
        %v7572 = vpop.f32.mrb[0].mxu0
        %7573 = vmatprep.mubr.bf16.mxu0 0
        %7574 = vmatmul.mubr.bf16.gmra.mrb[0].mxu0 %v6230
        %v7575 = vpop.f32.mrb[0].mxu0
        %v7576 = vadd.f32 %v7031, %v7575
        %v7577 = vpop.f32.mrb[0].mxu0
        %v7578 = vpop.f32.mrb[0].mxu0
        %v7579 = vadd.f32 %v7034, %v7578
        %v7580 = vpop.f32.mrb[0].mxu0
        %7581 = vmatprep.mubr.bf16.mxu0 0
        %7582 = vmatmul.mubr.bf16.gmra.mrb[0].mxu0 %v6233
        %v7583 = vpop.f32.mrb[0].mxu0
        %v7584 = vadd.f32 %v7039, %v7583
        %v7585 = vpop.f32.mrb[0].mxu0
        %v7586 = vpop.f32.mrb[0].mxu0
        %v7587 = vadd.f32 %v7042, %v7586
        %v7588 = vpop.f32.mrb[0].mxu0
        %7589 = vmatprep.mubr.bf16.mxu0 0
        %7590 = vmatmul.mubr.bf16.gmra.mrb[0].mxu0 %v6236
        %v7591 = vpop.f32.mrb[0].mxu0
        %v7592 = vadd.f32 %v7047, %v7591
        %v7593 = vpop.f32.mrb[0].mxu0
        %v7594 = vpop.f32.mrb[0].mxu0
        %v7595 = vadd.f32 %v7050, %v7594
        %v7596 = vpop.f32.mrb[0].mxu0
        %7597 = vmatprep.mubr.bf16.mxu0 0
        %7598 = vmatmul.mubr.bf16.gmra.mrb[0].mxu0 %v6239
        %v7599 = vpop.f32.mrb[0].mxu0
        %v7600 = vadd.f32 %v7055, %v7599
        %v7601 = vpop.f32.mrb[0].mxu0
        %v7602 = vpop.f32.mrb[0].mxu0
        %v7603 = vadd.f32 %v7058, %v7602
        %v7604 = vpop.f32.mrb[0].mxu0
        %7605 = vmatprep.mubr.bf16.mxu0 0
        %7606 = vmatmul.mubr.bf16.gmra.mrb[0].mxu0 %v6242
        %v7607 = vpop.f32.mrb[0].mxu0
        %v7608 = vadd.f32 %v7063, %v7607
        %v7609 = vpop.f32.mrb[0].mxu0
        %v7610 = vpop.f32.mrb[0].mxu0
        %v7611 = vadd.f32 %v7066, %v7610
        %v7612 = vpop.f32.mrb[0].mxu0
        %7613 = vmatprep.mubr.bf16.mxu0 0
        %7614 = vmatmul.mubr.bf16.gmra.mrb[0].mxu0 %v6245
        %v7615 = vpop.f32.mrb[0].mxu0
        %v7616 = vadd.f32 %v7071, %v7615
        %v7617 = vpop.f32.mrb[0].mxu0
        %v7618 = vpop.f32.mrb[0].mxu0
        %v7619 = vadd.f32 %v7074, %v7618
        %v7620 = vpop.f32.mrb[0].mxu0
        %7621 = vmatprep.mubr.bf16.mxu0 0
        %7622 = vmatmul.mubr.bf16.gmra.mrb[0].mxu0 %v6248
        %v7623 = vpop.f32.mrb[0].mxu0
        %v7624 = vadd.f32 %v7079, %v7623
        %v7625 = vpop.f32.mrb[0].mxu0
        %v7626 = vpop.f32.mrb[0].mxu0
        %v7627 = vadd.f32 %v7082, %v7626
        %v7628 = vpop.f32.mrb[0].mxu0
        %7629 = vmatprep.mubr.bf16.mxu0 0
        %7630 = vmatmul.mubr.bf16.gmra.mrb[0].mxu0 %v6251
        %v7631 = vpop.f32.mrb[0].mxu0
        %v7632 = vadd.f32 %v7087, %v7631
        %v7633 = vpop.f32.mrb[0].mxu0
        %v7634 = vpop.f32.mrb[0].mxu0
        %v7635 = vadd.f32 %v7090, %v7634
        %v7636 = vpop.f32.mrb[0].mxu0
        %7637 = vmatprep.mubr.bf16.mxu0 0
        %7638 = vmatmul.mubr.bf16.gmra.mrb[0].mxu0 %v6254
        %v7639 = vpop.f32.mrb[0].mxu0
        %v7640 = vadd.f32 %v7095, %v7639
        %v7641 = vpop.f32.mrb[0].mxu0
        %v7642 = vpop.f32.mrb[0].mxu0
        %v7643 = vadd.f32 %v7098, %v7642
        %v7644 = vpop.f32.mrb[0].mxu0
        %7645 = vmatprep.mubr.bf16.mxu0 0
        %7646 = vmatmul.mubr.bf16.gmra.mrb[0].mxu0 %v6257
        %v7647 = vpop.f32.mrb[0].mxu0
        %v7648 = vadd.f32 %v7103, %v7647
        %v7649 = vpop.f32.mrb[0].mxu0
        %v7650 = vpop.f32.mrb[0].mxu0
        %v7651 = vadd.f32 %v7106, %v7650
        %v7652 = vpop.f32.mrb[0].mxu0
        %7653 = vmatprep.mubr.bf16.mxu0 0
        %7654 = vmatmul.mubr.bf16.gmra.mrb[0].mxu0 %v6260
        %v7655 = vpop.f32.mrb[0].mxu0
        %v7656 = vadd.f32 %v7111, %v7655
        %v7657 = vpop.f32.mrb[0].mxu0
        %v7658 = vpop.f32.mrb[0].mxu0
        %v7659 = vadd.f32 %v7114, %v7658
        %v7660 = vpop.f32.mrb[0].mxu0
        %7661 = vmatprep.mubr.bf16.mxu0 0
        %7662 = vmatmul.mubr.bf16.gmra.mrb[0].mxu0 %v6263
        %v7663 = vpop.f32.mrb[0].mxu0
        %v7664 = vadd.f32 %v7119, %v7663
        %v7665 = vpop.f32.mrb[0].mxu0
        %v7666 = vpop.f32.mrb[0].mxu0
        %v7667 = vadd.f32 %v7122, %v7666
        %v7668 = vpop.f32.mrb[0].mxu0
        %7669 = vmatprep.mubr.bf16.mxu0 0
        %7670 = vmatmul.mubr.bf16.gmra.mrb[0].mxu0 %v6266
        %v7671 = vpop.f32.mrb[0].mxu0
        %v7672 = vadd.f32 %v7127, %v7671
        %v7673 = vpop.f32.mrb[0].mxu0
        %v7674 = vpop.f32.mrb[0].mxu0
        %v7675 = vadd.f32 %v7130, %v7674
        %v7676 = vpop.f32.mrb[0].mxu0
        %7677 = vmatprep.mubr.bf16.mxu0 0
        %7678 = vmatmul.mubr.bf16.gmra.mrb[0].mxu0 %v6269
        %v7679 = vpop.f32.mrb[0].mxu0
        %v7680 = vadd.f32 %v7135, %v7679
        %v7681 = vpop.f32.mrb[0].mxu0
        %v7682 = vpop.f32.mrb[0].mxu0
        %v7683 = vadd.f32 %v7138, %v7682
        %v7684 = vpop.f32.mrb[0].mxu0
        %7685 = vmatprep.mubr.bf16.mxu0 0
        %7686 = vmatmul.mubr.bf16.gmra.mrb[0].mxu0 %v6272
        %v7687 = vpop.f32.mrb[0].mxu0
        %v7688 = vadd.f32 %v7143, %v7687
        %v7689 = vpop.f32.mrb[0].mxu0
        %v7690 = vpop.f32.mrb[0].mxu0
        %v7691 = vadd.f32 %v7146, %v7690
        %v7692 = vpop.f32.mrb[0].mxu0
        %7693 = vmatprep.mubr.bf16.mxu0 0
        %7694 = vmatmul.mubr.bf16.gmra.mrb[0].mxu0 %v6275
        %v7695 = vpop.f32.mrb[0].mxu0
        %v7696 = vadd.f32 %v7151, %v7695
        %v7697 = vpop.f32.mrb[0].mxu0
        %v7698 = vpop.f32.mrb[0].mxu0
        %v7699 = vadd.f32 %v7154, %v7698
        %v7700 = vpop.f32.mrb[0].mxu0
        %7701 = vmatprep.mubr.bf16.mxu0 0
        %7702 = vmatmul.mubr.bf16.gmra.mrb[0].mxu0 %v6278
        %v7703 = vpop.f32.mrb[0].mxu0
        %v7704 = vadd.f32 %v7159, %v7703
        %v7705 = vpop.f32.mrb[0].mxu0
        %v7706 = vpop.f32.mrb[0].mxu0
        %v7707 = vadd.f32 %v7162, %v7706
        %v7708 = vpop.f32.mrb[0].mxu0
        %7709 = vmatprep.mubr.bf16.mxu0 0
        %7710 = vmatmul.mubr.bf16.gmra.mrb[0].mxu0 %v6281
        %v7711 = vpop.f32.mrb[0].mxu0
        %v7712 = vadd.f32 %v7167, %v7711
        %v7713 = vpop.f32.mrb[0].mxu0
        %v7714 = vpop.f32.mrb[0].mxu0
        %v7715 = vadd.f32 %v7170, %v7714
        %v7716 = vpop.f32.mrb[0].mxu0
        %7717 = vmatprep.mubr.bf16.mxu0 0
        %7718 = vmatmul.mubr.bf16.gmra.mrb[0].mxu0 %v6284
        %v7719 = vpop.f32.mrb[0].mxu0
        %v7720 = vadd.f32 %v7175, %v7719
        %v7721 = vpop.f32.mrb[0].mxu0
        %v7722 = vpop.f32.mrb[0].mxu0
        %v7723 = vadd.f32 %v7178, %v7722
        %v7724 = vpop.f32.mrb[0].mxu0
        %7725 = vmatprep.mubr.bf16.mxu0 0
        %7726 = vmatmul.mubr.bf16.gmra.mrb[0].mxu0 %v6287
        %v7727 = vpop.f32.mrb[0].mxu0
        %v7728 = vadd.f32 %v7183, %v7727
        %v7729 = vpop.f32.mrb[0].mxu0
        %v7730 = vpop.f32.mrb[0].mxu0
        %v7731 = vadd.f32 %v7186, %v7730
        %v7732 = vpop.f32.mrb[0].mxu0
        %7733 = vmatprep.mubr.bf16.mxu0 0
        %7734 = vmatmul.mubr.bf16.gmra.mrb[0].mxu0 %v6290
        %v7735 = vpop.f32.mrb[0].mxu0
        %v7736 = vadd.f32 %v7191, %v7735
        %v7737 = vpop.f32.mrb[0].mxu0
        %v7738 = vpop.f32.mrb[0].mxu0
        %v7739 = vadd.f32 %v7194, %v7738
        %v7740 = vpop.f32.mrb[0].mxu0
        %7741 = vmatprep.mubr.bf16.mxu0 0
        %7742 = vmatmul.mubr.bf16.gmra.mrb[0].mxu0 %v6293
        %v7743 = vpop.f32.mrb[0].mxu0
        %v7744 = vadd.f32 %v7199, %v7743
        %v7745 = vpop.f32.mrb[0].mxu0
        %v7746 = vpop.f32.mrb[0].mxu0
        %v7747 = vadd.f32 %v7202, %v7746
        %v7748 = vpop.f32.mrb[0].mxu0
        %7749 = vmatprep.mubr.bf16.mxu0 0
        %7750 = vmatmul.mubr.bf16.gmra.mrb[0].mxu0 %v6296
        %v7751 = vpop.f32.mrb[0].mxu0
        %v7752 = vadd.f32 %v7207, %v7751
        %v7753 = vpop.f32.mrb[0].mxu0
        %v7754 = vpop.f32.mrb[0].mxu0
        %v7755 = vadd.f32 %v7210, %v7754
        %v7756 = vpop.f32.mrb[0].mxu0
        %7757 = vmatprep.mubr.bf16.mxu0 0
        %7758 = vmatmul.mubr.bf16.gmra.mrb[0].mxu0 %v6299
        %v7759 = vpop.f32.mrb[0].mxu0
        %v7760 = vadd.f32 %v7215, %v7759
        %v7761 = vpop.f32.mrb[0].mxu0
        %v7762 = vpop.f32.mrb[0].mxu0
        %v7763 = vadd.f32 %v7218, %v7762
        %v7764 = vpop.f32.mrb[0].mxu0
        %7765 = vmatprep.mubr.bf16.mxu0 0
        %7766 = vmatmul.mubr.bf16.gmra.mrb[0].mxu0 %v6302
        %v7767 = vpop.f32.mrb[0].mxu0
        %v7768 = vadd.f32 %v7223, %v7767
        %v7769 = vpop.f32.mrb[0].mxu0
        %v7770 = vpop.f32.mrb[0].mxu0
        %v7771 = vadd.f32 %v7226, %v7770
        %v7772 = vpop.f32.mrb[0].mxu0
        %7773 = vmatprep.mubr.bf16.mxu0 0
        %7774 = vmatmul.mubr.bf16.gmra.mrb[0].mxu0 %v6305
        %v7775 = vpop.f32.mrb[0].mxu0
        %v7776 = vadd.f32 %v7231, %v7775
        %v7777 = vpop.f32.mrb[0].mxu0
        %v7778 = vpop.f32.mrb[0].mxu0
        %v7779 = vadd.f32 %v7234, %v7778
        %v7780 = vpop.f32.mrb[0].mxu0
        %7781 = vmatprep.mubr.bf16.mxu0 0
        %7782 = vmatmul.mubr.bf16.gmra.mrb[0].mxu0 %v6308
        %v7783 = vpop.f32.mrb[0].mxu0
        %v7784 = vadd.f32 %v7239, %v7783
        %v7785 = vpop.f32.mrb[0].mxu0
        %v7786 = vpop.f32.mrb[0].mxu0
        %v7787 = vadd.f32 %v7242, %v7786
        %v7788 = vpop.f32.mrb[0].mxu0
        %7789 = vmatprep.mubr.bf16.mxu0 0
        %7790 = vmatmul.mubr.bf16.gmra.mrb[0].mxu0 %v6311
        %v7791 = vpop.f32.mrb[0].mxu0
        %v7792 = vadd.f32 %v7247, %v7791
        %v7793 = vpop.f32.mrb[0].mxu0
        %v7794 = vpop.f32.mrb[0].mxu0
        %v7795 = vadd.f32 %v7250, %v7794
        %v7796 = vpop.f32.mrb[0].mxu0
        %7797 = vmatprep.mubr.bf16.mxu0 0
        %7798 = vmatmul.mubr.bf16.gmra.mrb[0].mxu0 %v6314
        %v7799 = vpop.f32.mrb[0].mxu0
        %v7800 = vadd.f32 %v7255, %v7799
        %v7801 = vpop.f32.mrb[0].mxu0
        %v7802 = vpop.f32.mrb[0].mxu0
        %v7803 = vadd.f32 %v7258, %v7802
        %v7804 = vpop.f32.mrb[0].mxu0
        %7805 = vmatprep.mubr.bf16.mxu0 0
        %7806 = vmatmul.mubr.bf16.gmra.mrb[0].mxu0 %v6317
        %v7807 = vpop.f32.mrb[0].mxu0
        %v7808 = vadd.f32 %v7263, %v7807
        %v7809 = vpop.f32.mrb[0].mxu0
        %v7810 = vpop.f32.mrb[0].mxu0
        %v7811 = vadd.f32 %v7266, %v7810
        %v7812 = vpop.f32.mrb[0].mxu0
        %7813 = vmatprep.mubr.bf16.mxu0 0
        %7814 = vmatmul.mubr.bf16.gmra.mrb[0].mxu0 %v6320
        %v7815 = vpop.f32.mrb[0].mxu0
        %v7816 = vadd.f32 %v7271, %v7815
        %v7817 = vpop.f32.mrb[0].mxu0
        %v7818 = vpop.f32.mrb[0].mxu0
        %v7819 = vadd.f32 %v7274, %v7818
        %v7820 = vpop.f32.mrb[0].mxu0
        %7821 = vmatprep.mubr.bf16.mxu0 0
        %7822 = vmatmul.mubr.bf16.gmra.mrb[0].mxu0 %v6323
        %v7823 = vpop.f32.mrb[0].mxu0
        %v7824 = vadd.f32 %v7279, %v7823
        %v7825 = vpop.f32.mrb[0].mxu0
        %v7826 = vpop.f32.mrb[0].mxu0
        %v7827 = vadd.f32 %v7282, %v7826
        %v7828 = vpop.f32.mrb[0].mxu0
        %7829 = vmatprep.mubr.bf16.mxu0 0
        %7830 = vmatmul.mubr.bf16.gmra.mrb[0].mxu0 %v6326
        %v7831 = vpop.f32.mrb[0].mxu0
        %v7832 = vadd.f32 %v7287, %v7831
        %v7833 = vpop.f32.mrb[0].mxu0
        %v7834 = vpop.f32.mrb[0].mxu0
        %v7835 = vadd.f32 %v7290, %v7834
        %v7836 = vpop.f32.mrb[0].mxu0
        %7837 = vmatprep.mubr.bf16.mxu0 0
        %7838 = vmatmul.mubr.bf16.gmra.mrb[0].mxu0 %v6329
        %v7839 = vpop.f32.mrb[0].mxu0
        %v7840 = vadd.f32 %v7295, %v7839
        %v7841 = vpop.f32.mrb[0].mxu0
        %v7842 = vpop.f32.mrb[0].mxu0
        %v7843 = vadd.f32 %v7298, %v7842
        %v7844 = vpop.f32.mrb[0].mxu0
        %7845 = vmatprep.mubr.bf16.mxu0 0
        %7846 = vmatmul.mubr.bf16.gmra.mrb[0].mxu0 %v6332
        %v7847 = vpop.f32.mrb[0].mxu0
        %v7848 = vadd.f32 %v7303, %v7847
        %v7849 = vpop.f32.mrb[0].mxu0
        %v7850 = vpop.f32.mrb[0].mxu0
        %v7851 = vadd.f32 %v7306, %v7850
        %v7852 = vpop.f32.mrb[0].mxu0
        %7853 = vmatprep.mubr.bf16.mxu0 0
        %7854 = vmatmul.mubr.bf16.gmra.mrb[0].mxu0 %v6335
        %v7855 = vpop.f32.mrb[0].mxu0
        %v7856 = vadd.f32 %v7311, %v7855
        %v7857 = vpop.f32.mrb[0].mxu0
        %v7858 = vpop.f32.mrb[0].mxu0
        %v7859 = vadd.f32 %v7314, %v7858
        %v7860 = vpop.f32.mrb[0].mxu0
        %7861 = vmatprep.mubr.bf16.mxu0 0
        %7862 = vmatmul.mubr.bf16.gmra.mrb[0].mxu0 %v6338
        %v7863 = vpop.f32.mrb[0].mxu0
        %v7864 = vadd.f32 %v7319, %v7863
        %v7865 = vpop.f32.mrb[0].mxu0
        %v7866 = vpop.f32.mrb[0].mxu0
        %v7867 = vadd.f32 %v7322, %v7866
        %v7868 = vpop.f32.mrb[0].mxu0
        %7869 = vmatprep.mubr.bf16.mxu0 0
        %7870 = vmatmul.mubr.bf16.gmra.mrb[0].mxu0 %v6341
        %v7871 = vpop.f32.mrb[0].mxu0
        %v7872 = vadd.f32 %v7327, %v7871
        %v7873 = vpop.f32.mrb[0].mxu0
        %v7874 = vpop.f32.mrb[0].mxu0
        %v7875 = vadd.f32 %v7330, %v7874
        %v7876 = vpop.f32.mrb[0].mxu0
        %7877 = vmatprep.mubr.bf16.mxu0 0
        %7878 = vmatmul.mubr.bf16.gmra.mrb[0].mxu0 %v6344
        %v7879 = vpop.f32.mrb[0].mxu0
        %v7880 = vadd.f32 %v7335, %v7879
        %v7881 = vpop.f32.mrb[0].mxu0
        %v7882 = vpop.f32.mrb[0].mxu0
        %v7883 = vadd.f32 %v7338, %v7882
        %v7884 = vpop.f32.mrb[0].mxu0
        %7885 = vmatprep.mubr.bf16.mxu0 0
        %7886 = vmatmul.mubr.bf16.gmra.mrb[0].mxu0 %v6347
        %v7887 = vpop.f32.mrb[0].mxu0
        %v7888 = vadd.f32 %v7343, %v7887
        %v7889 = vpop.f32.mrb[0].mxu0
        %v7890 = vpop.f32.mrb[0].mxu0
        %v7891 = vadd.f32 %v7346, %v7890
        %v7892 = vpop.f32.mrb[0].mxu0
        %7893 = vmatprep.mubr.bf16.mxu0 0
        %7894 = vmatmul.mubr.bf16.gmra.mrb[0].mxu0 %v6350
        %v7895 = vpop.f32.mrb[0].mxu0
        %v7896 = vadd.f32 %v7351, %v7895
        %v7897 = vpop.f32.mrb[0].mxu0
        %v7898 = vpop.f32.mrb[0].mxu0
        %v7899 = vadd.f32 %v7354, %v7898
        %v7900 = vpop.f32.mrb[0].mxu0
        %7901 = vmatprep.mubr.bf16.mxu0 0
        %7902 = vmatmul.mubr.bf16.gmra.mrb[0].mxu0 %v6353
        %v7903 = vpop.f32.mrb[0].mxu0
        %v7904 = vadd.f32 %v7359, %v7903
        %v7905 = vpop.f32.mrb[0].mxu0
        %v7906 = vpop.f32.mrb[0].mxu0
        %v7907 = vadd.f32 %v7362, %v7906
        %v7908 = vpop.f32.mrb[0].mxu0
        %7909 = vmatprep.mubr.bf16.mxu0 0
        %7910 = vmatmul.mubr.bf16.gmra.mrb[0].mxu0 %v6356
        %v7911 = vpop.f32.mrb[0].mxu0
        %v7912 = vadd.f32 %v7367, %v7911
        %v7913 = vpop.f32.mrb[0].mxu0
        %v7914 = vpop.f32.mrb[0].mxu0
        %v7915 = vadd.f32 %v7370, %v7914
        %v7916 = vpop.f32.mrb[0].mxu0
        %7917 = vmatprep.mubr.bf16.mxu0 0
        %7918 = vmatmul.mubr.bf16.gmra.mrb[0].mxu0 %v6359
        %v7919 = vpop.f32.mrb[0].mxu0
        %v7920 = vadd.f32 %v7375, %v7919
        %v7921 = vpop.f32.mrb[0].mxu0
        %v7922 = vpop.f32.mrb[0].mxu0
        %v7923 = vadd.f32 %v7378, %v7922
        %v7924 = vpop.f32.mrb[0].mxu0
        %7925 = vmatprep.mubr.bf16.mxu0 0
        %7926 = vmatmul.mubr.bf16.gmra.mrb[0].mxu0 %v6362
        %v7927 = vpop.f32.mrb[0].mxu0
        %v7928 = vadd.f32 %v7383, %v7927
        %v7929 = vpop.f32.mrb[0].mxu0
        %v7930 = vpop.f32.mrb[0].mxu0
        %v7931 = vadd.f32 %v7386, %v7930
        %v7932 = vpop.f32.mrb[0].mxu0
        %7933 = vmatprep.mubr.bf16.mxu0 0
        %7934 = vmatmul.mubr.bf16.gmra.mrb[0].mxu0 %v6365
        %v7935 = vpop.f32.mrb[0].mxu0
        %v7936 = vadd.f32 %v7391, %v7935
        %v7937 = vpop.f32.mrb[0].mxu0
        %v7938 = vpop.f32.mrb[0].mxu0
        %v7939 = vadd.f32 %v7394, %v7938
        %v7940 = vpop.f32.mrb[0].mxu0
        %7941 = vmatprep.mubr.bf16.mxu0 0
        %7942 = vmatmul.mubr.bf16.gmra.mrb[0].mxu0 %v6368
        %v7943 = vpop.f32.mrb[0].mxu0
        %v7944 = vadd.f32 %v7399, %v7943
        %v7945 = vpop.f32.mrb[0].mxu0
        %v7946 = vpop.f32.mrb[0].mxu0
        %v7947 = vadd.f32 %v7402, %v7946
        %v7948 = vpop.f32.mrb[0].mxu0
        %7949 = vmatprep.mubr.bf16.mxu0 0
        %7950 = vmatmul.mubr.bf16.gmra.mrb[0].mxu0 %v6371
        %v7951 = vpop.f32.mrb[0].mxu0
        %v7952 = vadd.f32 %v7407, %v7951
        %v7953 = vpop.f32.mrb[0].mxu0
        %v7954 = vpop.f32.mrb[0].mxu0
        %v7955 = vadd.f32 %v7410, %v7954
        %v7956 = vpop.f32.mrb[0].mxu0
        %7957 = vmatprep.mubr.bf16.mxu0 0
        %7958 = vmatmul.mubr.bf16.gmra.mrb[0].mxu0 %v6374
        %v7959 = vpop.f32.mrb[0].mxu0
        %v7960 = vadd.f32 %v7415, %v7959
        %v7961 = vpop.f32.mrb[0].mxu0
        %v7962 = vpop.f32.mrb[0].mxu0
        %v7963 = vadd.f32 %v7418, %v7962
        %v7964 = vpop.f32.mrb[0].mxu0
        %7965 = vmatprep.mubr.bf16.mxu0 0
        %7966 = vmatmul.mubr.bf16.gmra.mrb[0].mxu0 %v6377
        %v7967 = vpop.f32.mrb[0].mxu0
        %v7968 = vadd.f32 %v7423, %v7967
        %v7969 = vpop.f32.mrb[0].mxu0
        %v7970 = vpop.f32.mrb[0].mxu0
        %v7971 = vadd.f32 %v7426, %v7970
        %v7972 = vpop.f32.mrb[0].mxu0
        %7973 = vmatprep.mubr.bf16.mxu0 0
        %7974 = vmatmul.mubr.bf16.gmra.mrb[0].mxu0 %v6380
        %v7975 = vpop.f32.mrb[0].mxu0
        %v7976 = vadd.f32 %v7431, %v7975
        %v7977 = vpop.f32.mrb[0].mxu0
        %v7978 = vpop.f32.mrb[0].mxu0
        %v7979 = vadd.f32 %v7434, %v7978
        %v7980 = vpop.f32.mrb[0].mxu0
        %7981 = vmatprep.mubr.bf16.mxu0 0
        %7982 = vmatmul.mubr.bf16.gmra.mrb[0].mxu0 %v6383
        %v7983 = vpop.f32.mrb[0].mxu0
        %v7984 = vadd.f32 %v7439, %v7983
        %v7985 = vpop.f32.mrb[0].mxu0
        %v7986 = vpop.f32.mrb[0].mxu0
        %v7987 = vadd.f32 %v7442, %v7986
        %v7988 = vpop.f32.mrb[0].mxu0
        %7989 = vmatprep.mubr.bf16.mxu0 0
        %7990 = vmatmul.mubr.bf16.gmra.mrb[0].mxu0 %v6386
        %v7991 = vpop.f32.mrb[0].mxu0
        %v7992 = vadd.f32 %v7447, %v7991
        %v7993 = vpop.f32.mrb[0].mxu0
        %v7994 = vpop.f32.mrb[0].mxu0
        %v7995 = vadd.f32 %v7450, %v7994
        %v7996 = vpop.f32.mrb[0].mxu0
        %7997 = vmatprep.mubr.bf16.mxu0 0
        %7998 = vmatmul.mubr.bf16.gmra.mrb[0].mxu0 %v6389
        %v7999 = vpop.f32.mrb[0].mxu0
        %v8000 = vadd.f32 %v7455, %v7999
        %v8001 = vpop.f32.mrb[0].mxu0
        %v8002 = vpop.f32.mrb[0].mxu0
        %v8003 = vadd.f32 %v7458, %v8002
        %v8004 = vpop.f32.mrb[0].mxu0
        %8005 = vmatprep.mubr.bf16.mxu0 0
        %8006 = vmatmul.mubr.bf16.gmra.mrb[0].mxu0 %v6392
        %v8007 = vpop.f32.mrb[0].mxu0
        %v8008 = vadd.f32 %v7463, %v8007
        %v8009 = vpop.f32.mrb[0].mxu0
        %v8010 = vpop.f32.mrb[0].mxu0
        %v8011 = vadd.f32 %v7466, %v8010
        %v8012 = vpop.f32.mrb[0].mxu0
        %8013 = vmatprep.mubr.bf16.mxu0 0
        %8014 = vmatmul.mubr.bf16.gmra.mrb[0].mxu0 %v6395
        %v8015 = vpop.f32.mrb[0].mxu0
        %v8016 = vadd.f32 %v7471, %v8015
        %v8017 = vpop.f32.mrb[0].mxu0
        %v8018 = vpop.f32.mrb[0].mxu0
        %v8019 = vadd.f32 %v7474, %v8018
        %v8020 = vpop.f32.mrb[0].mxu0
        %8021 = vmatprep.mubr.bf16.mxu0 0
        %8022 = vmatmul.mubr.bf16.gmra.mrb[0].mxu0 %v6398
        %v8023 = vpop.f32.mrb[0].mxu0
        %v8024 = vadd.f32 %v7479, %v8023
        %v8025 = vpop.f32.mrb[0].mxu0
        %v8026 = vpop.f32.mrb[0].mxu0
        %v8027 = vadd.f32 %v7482, %v8026
        %v8028 = vpop.f32.mrb[0].mxu0
        %8029 = vmatprep.mubr.bf16.mxu0 0
        %8030 = vmatmul.mubr.bf16.gmra.mrb[0].mxu0 %v6401
        %v8031 = vpop.f32.mrb[0].mxu0
        %v8032 = vadd.f32 %v7487, %v8031
        %v8033 = vpop.f32.mrb[0].mxu0
        %v8034 = vpop.f32.mrb[0].mxu0
        %v8035 = vadd.f32 %v7490, %v8034
        %v8036 = vpop.f32.mrb[0].mxu0
        %8037 = vdwg.mxu0
        %v8038 = vmax.f32 %v7528, %v7536
        %v8039 = vmax.f32 %v7531, %v7539
        %v8040 = vmax.f32 %v7544, %v7552
        %v8041 = vmax.f32 %v7547, %v7555
        %v8042 = vmax.f32 %v7560, %v7568
        %v8043 = vmax.f32 %v7563, %v7571
        %v8044 = vmax.f32 %v7576, %v7584
        %v8045 = vmax.f32 %v7579, %v7587
        %v8046 = vmax.f32 %v7592, %v7600
        %v8047 = vmax.f32 %v7595, %v7603
        %v8048 = vmax.f32 %v7608, %v7616
        %v8049 = vmax.f32 %v7611, %v7619
        %v8050 = vmax.f32 %v7624, %v7632
        %v8051 = vmax.f32 %v7627, %v7635
        %v8052 = vmax.f32 %v7640, %v7648
        %v8053 = vmax.f32 %v7643, %v7651
        %v8054 = vmax.f32 %v7656, %v7664
        %v8055 = vmax.f32 %v7659, %v7667
        %v8056 = vmax.f32 %v7672, %v7680
        %v8057 = vmax.f32 %v7675, %v7683
        %v8058 = vmax.f32 %v7688, %v7696
        %v8059 = vmax.f32 %v7691, %v7699
        %v8060 = vmax.f32 %v7704, %v7712
        %v8061 = vmax.f32 %v7707, %v7715
        %v8062 = vmax.f32 %v7720, %v7728
        %v8063 = vmax.f32 %v7723, %v7731
        %v8064 = vmax.f32 %v7736, %v7744
        %v8065 = vmax.f32 %v7739, %v7747
        %v8066 = vmax.f32 %v7752, %v7760
        %v8067 = vmax.f32 %v7755, %v7763
        %v8068 = vmax.f32 %v7768, %v7776
        %v8069 = vmax.f32 %v7771, %v7779
        %v8070 = vmax.f32 %v7784, %v7792
        %v8071 = vmax.f32 %v7787, %v7795
        %v8072 = vmax.f32 %v7800, %v7808
        %v8073 = vmax.f32 %v7803, %v7811
        %v8074 = vmax.f32 %v7816, %v7824
        %v8075 = vmax.f32 %v7819, %v7827
        %v8076 = vmax.f32 %v7832, %v7840
        %v8077 = vmax.f32 %v7835, %v7843
        %v8078 = vmax.f32 %v7848, %v7856
        %v8079 = vmax.f32 %v7851, %v7859
        %v8080 = vmax.f32 %v7864, %v7872
        %v8081 = vmax.f32 %v7867, %v7875
        %v8082 = vmax.f32 %v7880, %v7888
        %v8083 = vmax.f32 %v7883, %v7891
        %v8084 = vmax.f32 %v7896, %v7904
        %v8085 = vmax.f32 %v7899, %v7907
        %v8086 = vmax.f32 %v7912, %v7920
        %v8087 = vmax.f32 %v7915, %v7923
        %v8088 = vmax.f32 %v7928, %v7936
        %v8089 = vmax.f32 %v7931, %v7939
        %v8090 = vmax.f32 %v7944, %v7952
        %v8091 = vmax.f32 %v7947, %v7955
        %v8092 = vmax.f32 %v7960, %v7968
        %v8093 = vmax.f32 %v7963, %v7971
        %v8094 = vmax.f32 %v7976, %v7984
        %v8095 = vmax.f32 %v7979, %v7987
        %v8096 = vmax.f32 %v7992, %v8000
        %v8097 = vmax.f32 %v7995, %v8003
        %v8098 = vmax.f32 %v8008, %v8016
        %v8099 = vmax.f32 %v8011, %v8019
        %v8100 = vmax.f32 %v8024, %v8032
        %v8101 = vmax.f32 %v8027, %v8035
        %8102 = vst [vmem:[#allocation3] sm:$0xff] %v8038
        %8103 = vst [vmem:[#allocation3 + $0x8] sm:$0xff] %v8039
        %8104 = vst [vmem:[#allocation3 + $0x10] sm:$0xff] %v8040
        %8105 = vst [vmem:[#allocation3 + $0x18] sm:$0xff] %v8041
        %8106 = vst [vmem:[#allocation3 + $0x20] sm:$0xff] %v8042
        %8107 = vst [vmem:[#allocation3 + $0x28] sm:$0xff] %v8043
        %8108 = vst [vmem:[#allocation3 + $0x30] sm:$0xff] %v8044
        %8109 = vst [vmem:[#allocation3 + $0x38] sm:$0xff] %v8045
        %8110 = vst [vmem:[#allocation3 + $0x40] sm:$0xff] %v8046
        %8111 = vst [vmem:[#allocation3 + $0x48] sm:$0xff] %v8047
        %8112 = vst [vmem:[#allocation3 + $0x50] sm:$0xff] %v8048
        %8113 = vst [vmem:[#allocation3 + $0x58] sm:$0xff] %v8049
        %8114 = vst [vmem:[#allocation3 + $0x60] sm:$0xff] %v8050
        %8115 = vst [vmem:[#allocation3 + $0x68] sm:$0xff] %v8051
        %8116 = vst [vmem:[#allocation3 + $0x70] sm:$0xff] %v8052
        %8117 = vst [vmem:[#allocation3 + $0x78] sm:$0xff] %v8053
        %8118 = vst [vmem:[#allocation3 + $0x80] sm:$0xff] %v8054
        %8119 = vst [vmem:[#allocation3 + $0x88] sm:$0xff] %v8055
        %8120 = vst [vmem:[#allocation3 + $0x90] sm:$0xff] %v8056
        %8121 = vst [vmem:[#allocation3 + $0x98] sm:$0xff] %v8057
        %8122 = vst [vmem:[#allocation3 + $0xa0] sm:$0xff] %v8058
        %8123 = vst [vmem:[#allocation3 + $0xa8] sm:$0xff] %v8059
        %8124 = vst [vmem:[#allocation3 + $0xb0] sm:$0xff] %v8060
        %8125 = vst [vmem:[#allocation3 + $0xb8] sm:$0xff] %v8061
        %8126 = vst [vmem:[#allocation3 + $0xc0] sm:$0xff] %v8062
        %8127 = vst [vmem:[#allocation3 + $0xc8] sm:$0xff] %v8063
        %8128 = vst [vmem:[#allocation3 + $0xd0] sm:$0xff] %v8064
        %8129 = vst [vmem:[#allocation3 + $0xd8] sm:$0xff] %v8065
        %8130 = vst [vmem:[#allocation3 + $0xe0] sm:$0xff] %v8066
        %8131 = vst [vmem:[#allocation3 + $0xe8] sm:$0xff] %v8067
        %8132 = vst [vmem:[#allocation3 + $0xf0] sm:$0xff] %v8068
        %8133 = vst [vmem:[#allocation3 + $0xf8] sm:$0xff] %v8069
        %8134 = vst [vmem:[#allocation3 + $0x100] sm:$0xff] %v8070
        %8135 = vst [vmem:[#allocation3 + $0x108] sm:$0xff] %v8071
        %8136 = vst [vmem:[#allocation3 + $0x110] sm:$0xff] %v8072
        %8137 = vst [vmem:[#allocation3 + $0x118] sm:$0xff] %v8073
        %8138 = vst [vmem:[#allocation3 + $0x120] sm:$0xff] %v8074
        %8139 = vst [vmem:[#allocation3 + $0x128] sm:$0xff] %v8075
        %8140 = vst [vmem:[#allocation3 + $0x130] sm:$0xff] %v8076
        %8141 = vst [vmem:[#allocation3 + $0x138] sm:$0xff] %v8077
        %8142 = vst [vmem:[#allocation3 + $0x140] sm:$0xff] %v8078
        %8143 = vst [vmem:[#allocation3 + $0x148] sm:$0xff] %v8079
        %8144 = vst [vmem:[#allocation3 + $0x150] sm:$0xff] %v8080
        %8145 = vst [vmem:[#allocation3 + $0x158] sm:$0xff] %v8081
        %8146 = vst [vmem:[#allocation3 + $0x160] sm:$0xff] %v8082
        %8147 = vst [vmem:[#allocation3 + $0x168] sm:$0xff] %v8083
        %8148 = vst [vmem:[#allocation3 + $0x170] sm:$0xff] %v8084
        %8149 = vst [vmem:[#allocation3 + $0x178] sm:$0xff] %v8085
        %8150 = vst [vmem:[#allocation3 + $0x180] sm:$0xff] %v8086
        %8151 = vst [vmem:[#allocation3 + $0x188] sm:$0xff] %v8087
        %8152 = vst [vmem:[#allocation3 + $0x190] sm:$0xff] %v8088
        %8153 = vst [vmem:[#allocation3 + $0x198] sm:$0xff] %v8089
        %8154 = vst [vmem:[#allocation3 + $0x1a0] sm:$0xff] %v8090
        %8155 = vst [vmem:[#allocation3 + $0x1a8] sm:$0xff] %v8091
        %8156 = vst [vmem:[#allocation3 + $0x1b0] sm:$0xff] %v8092
        %8157 = vst [vmem:[#allocation3 + $0x1b8] sm:$0xff] %v8093
        %8158 = vst [vmem:[#allocation3 + $0x1c0] sm:$0xff] %v8094
        %8159 = vst [vmem:[#allocation3 + $0x1c8] sm:$0xff] %v8095
        %8160 = vst [vmem:[#allocation3 + $0x1d0] sm:$0xff] %v8096
        %8161 = vst [vmem:[#allocation3 + $0x1d8] sm:$0xff] %v8097
        %8162 = vst [vmem:[#allocation3 + $0x1e0] sm:$0xff] %v8098
        %8163 = vst [vmem:[#allocation3 + $0x1e8] sm:$0xff] %v8099
        %8164 = vst [vmem:[#allocation3 + $0x1f0] sm:$0xff] %v8100
        %8165 = vst [vmem:[#allocation3 + $0x1f8] sm:$0xff] %v8101
        %v8166 = vld [vmem:[#allocation3] ss:$2 sm:$0xff]
        %s8167 = scalar_lea.vmem [#allocation3], 16
        %v8168 = vld [vmem:[%s8167] ss:$2 sm:$0xff]
        %s8169 = scalar_lea.vmem [#allocation3], 32
        %v8170 = vld [vmem:[%s8169] ss:$2 sm:$0xff]
        %s8171 = scalar_lea.vmem [#allocation3], 48
        %v8172 = vld [vmem:[%s8171] ss:$2 sm:$0xff]
        %s8173 = scalar_lea.vmem [#allocation3], 64
        %v8174 = vld [vmem:[%s8173] ss:$2 sm:$0xff]
        %s8175 = scalar_lea.vmem [#allocation3], 80
        %v8176 = vld [vmem:[%s8175] ss:$2 sm:$0xff]
        %s8177 = scalar_lea.vmem [#allocation3], 96
        %v8178 = vld [vmem:[%s8177] ss:$2 sm:$0xff]
        %s8179 = scalar_lea.vmem [#allocation3], 112
        %v8180 = vld [vmem:[%s8179] ss:$2 sm:$0xff]
        %s8181 = scalar_lea.vmem [#allocation3], 128
        %v8182 = vld [vmem:[%s8181] ss:$2 sm:$0xff]
        %s8183 = scalar_lea.vmem [#allocation3], 144
        %v8184 = vld [vmem:[%s8183] ss:$2 sm:$0xff]
        %s8185 = scalar_lea.vmem [#allocation3], 160
        %v8186 = vld [vmem:[%s8185] ss:$2 sm:$0xff]
        %s8187 = scalar_lea.vmem [#allocation3], 176
        %v8188 = vld [vmem:[%s8187] ss:$2 sm:$0xff]
        %s8189 = scalar_lea.vmem [#allocation3], 192
        %v8190 = vld [vmem:[%s8189] ss:$2 sm:$0xff]
        %s8191 = scalar_lea.vmem [#allocation3], 208
        %v8192 = vld [vmem:[%s8191] ss:$2 sm:$0xff]
        %s8193 = scalar_lea.vmem [#allocation3], 224
        %v8194 = vld [vmem:[%s8193] ss:$2 sm:$0xff]
        %s8195 = scalar_lea.vmem [#allocation3], 240
        %v8196 = vld [vmem:[%s8195] ss:$2 sm:$0xff]
        %s8197 = scalar_lea.vmem [#allocation3], 256
        %v8198 = vld [vmem:[%s8197] ss:$2 sm:$0xff]
        %s8199 = scalar_lea.vmem [#allocation3], 272
        %v8200 = vld [vmem:[%s8199] ss:$2 sm:$0xff]
        %s8201 = scalar_lea.vmem [#allocation3], 288
        %v8202 = vld [vmem:[%s8201] ss:$2 sm:$0xff]
        %s8203 = scalar_lea.vmem [#allocation3], 304
        %v8204 = vld [vmem:[%s8203] ss:$2 sm:$0xff]
        %s8205 = scalar_lea.vmem [#allocation3], 320
        %v8206 = vld [vmem:[%s8205] ss:$2 sm:$0xff]
        %s8207 = scalar_lea.vmem [#allocation3], 336
        %v8208 = vld [vmem:[%s8207] ss:$2 sm:$0xff]
        %s8209 = scalar_lea.vmem [#allocation3], 352
        %v8210 = vld [vmem:[%s8209] ss:$2 sm:$0xff]
        %s8211 = scalar_lea.vmem [#allocation3], 368
        %v8212 = vld [vmem:[%s8211] ss:$2 sm:$0xff]
        %s8213 = scalar_lea.vmem [#allocation3], 384
        %v8214 = vld [vmem:[%s8213] ss:$2 sm:$0xff]
        %s8215 = scalar_lea.vmem [#allocation3], 400
        %v8216 = vld [vmem:[%s8215] ss:$2 sm:$0xff]
        %s8217 = scalar_lea.vmem [#allocation3], 416
        %v8218 = vld [vmem:[%s8217] ss:$2 sm:$0xff]
        %s8219 = scalar_lea.vmem [#allocation3], 432
        %v8220 = vld [vmem:[%s8219] ss:$2 sm:$0xff]
        %s8221 = scalar_lea.vmem [#allocation3], 448
        %v8222 = vld [vmem:[%s8221] ss:$2 sm:$0xff]
        %s8223 = scalar_lea.vmem [#allocation3], 464
        %v8224 = vld [vmem:[%s8223] ss:$2 sm:$0xff]
        %s8225 = scalar_lea.vmem [#allocation3], 480
        %v8226 = vld [vmem:[%s8225] ss:$2 sm:$0xff]
        %s8227 = scalar_lea.vmem [#allocation3], 496
        %v8228 = vld [vmem:[%s8227] ss:$2 sm:$0xff]
        %s8229 = scalar_lea.vmem [#allocation3], 1
        %v8230 = vld [vmem:[%s8229] ss:$2 sm:$0xff]
        %s8231 = scalar_lea.vmem [#allocation3], 17
        %v8232 = vld [vmem:[%s8231] ss:$2 sm:$0xff]
        %s8233 = scalar_lea.vmem [#allocation3], 33
        %v8234 = vld [vmem:[%s8233] ss:$2 sm:$0xff]
        %s8235 = scalar_lea.vmem [#allocation3], 49
        %v8236 = vld [vmem:[%s8235] ss:$2 sm:$0xff]
        %s8237 = scalar_lea.vmem [#allocation3], 65
        %v8238 = vld [vmem:[%s8237] ss:$2 sm:$0xff]
        %s8239 = scalar_lea.vmem [#allocation3], 81
        %v8240 = vld [vmem:[%s8239] ss:$2 sm:$0xff]
        %s8241 = scalar_lea.vmem [#allocation3], 97
        %v8242 = vld [vmem:[%s8241] ss:$2 sm:$0xff]
        %s8243 = scalar_lea.vmem [#allocation3], 113
        %v8244 = vld [vmem:[%s8243] ss:$2 sm:$0xff]
        %s8245 = scalar_lea.vmem [#allocation3], 129
        %v8246 = vld [vmem:[%s8245] ss:$2 sm:$0xff]
        %s8247 = scalar_lea.vmem [#allocation3], 145
        %v8248 = vld [vmem:[%s8247] ss:$2 sm:$0xff]
        %s8249 = scalar_lea.vmem [#allocation3], 161
        %v8250 = vld [vmem:[%s8249] ss:$2 sm:$0xff]
        %s8251 = scalar_lea.vmem [#allocation3], 177
        %v8252 = vld [vmem:[%s8251] ss:$2 sm:$0xff]
        %s8253 = scalar_lea.vmem [#allocation3], 193
        %v8254 = vld [vmem:[%s8253] ss:$2 sm:$0xff]
        %s8255 = scalar_lea.vmem [#allocation3], 209
        %v8256 = vld [vmem:[%s8255] ss:$2 sm:$0xff]
        %s8257 = scalar_lea.vmem [#allocation3], 225
        %v8258 = vld [vmem:[%s8257] ss:$2 sm:$0xff]
        %s8259 = scalar_lea.vmem [#allocation3], 241
        %v8260 = vld [vmem:[%s8259] ss:$2 sm:$0xff]
        %s8261 = scalar_lea.vmem [#allocation3], 257
        %v8262 = vld [vmem:[%s8261] ss:$2 sm:$0xff]
        %s8263 = scalar_lea.vmem [#allocation3], 273
        %v8264 = vld [vmem:[%s8263] ss:$2 sm:$0xff]
        %s8265 = scalar_lea.vmem [#allocation3], 289
        %v8266 = vld [vmem:[%s8265] ss:$2 sm:$0xff]
        %s8267 = scalar_lea.vmem [#allocation3], 305
        %v8268 = vld [vmem:[%s8267] ss:$2 sm:$0xff]
        %s8269 = scalar_lea.vmem [#allocation3], 321
        %v8270 = vld [vmem:[%s8269] ss:$2 sm:$0xff]
        %s8271 = scalar_lea.vmem [#allocation3], 337
        %v8272 = vld [vmem:[%s8271] ss:$2 sm:$0xff]
        %s8273 = scalar_lea.vmem [#allocation3], 353
        %v8274 = vld [vmem:[%s8273] ss:$2 sm:$0xff]
        %s8275 = scalar_lea.vmem [#allocation3], 369
        %v8276 = vld [vmem:[%s8275] ss:$2 sm:$0xff]
        %s8277 = scalar_lea.vmem [#allocation3], 385
        %v8278 = vld [vmem:[%s8277] ss:$2 sm:$0xff]
        %s8279 = scalar_lea.vmem [#allocation3], 401
        %v8280 = vld [vmem:[%s8279] ss:$2 sm:$0xff]
        %s8281 = scalar_lea.vmem [#allocation3], 417
        %v8282 = vld [vmem:[%s8281] ss:$2 sm:$0xff]
        %s8283 = scalar_lea.vmem [#allocation3], 433
        %v8284 = vld [vmem:[%s8283] ss:$2 sm:$0xff]
        %s8285 = scalar_lea.vmem [#allocation3], 449
        %v8286 = vld [vmem:[%s8285] ss:$2 sm:$0xff]
        %s8287 = scalar_lea.vmem [#allocation3], 465
        %v8288 = vld [vmem:[%s8287] ss:$2 sm:$0xff]
        %s8289 = scalar_lea.vmem [#allocation3], 481
        %v8290 = vld [vmem:[%s8289] ss:$2 sm:$0xff]
        %s8291 = scalar_lea.vmem [#allocation3], 497
        %v8292 = vld [vmem:[%s8291] ss:$2 sm:$0xff]
        %v8293 = vmax.f32 %v8166, %v8230
        %v8294 = vmax.f32 %v8168, %v8232
        %v8295 = vmax.f32 %v8170, %v8234
        %v8296 = vmax.f32 %v8172, %v8236
        %v8297 = vmax.f32 %v8174, %v8238
        %v8298 = vmax.f32 %v8176, %v8240
        %v8299 = vmax.f32 %v8178, %v8242
        %v8300 = vmax.f32 %v8180, %v8244
        %v8301 = vmax.f32 %v8182, %v8246
        %v8302 = vmax.f32 %v8184, %v8248
        %v8303 = vmax.f32 %v8186, %v8250
        %v8304 = vmax.f32 %v8188, %v8252
        %v8305 = vmax.f32 %v8190, %v8254
        %v8306 = vmax.f32 %v8192, %v8256
        %v8307 = vmax.f32 %v8194, %v8258
        %v8308 = vmax.f32 %v8196, %v8260
        %v8309 = vmax.f32 %v8198, %v8262
        %v8310 = vmax.f32 %v8200, %v8264
        %v8311 = vmax.f32 %v8202, %v8266
        %v8312 = vmax.f32 %v8204, %v8268
        %v8313 = vmax.f32 %v8206, %v8270
        %v8314 = vmax.f32 %v8208, %v8272
        %v8315 = vmax.f32 %v8210, %v8274
        %v8316 = vmax.f32 %v8212, %v8276
        %v8317 = vmax.f32 %v8214, %v8278
        %v8318 = vmax.f32 %v8216, %v8280
        %v8319 = vmax.f32 %v8218, %v8282
        %v8320 = vmax.f32 %v8220, %v8284
        %v8321 = vmax.f32 %v8222, %v8286
        %v8322 = vmax.f32 %v8224, %v8288
        %v8323 = vmax.f32 %v8226, %v8290
        %v8324 = vmax.f32 %v8228, %v8292
        %v8325 = vld [vmem:[%s4] sm:$0x1]
        %v8327 = vlaneseq
        %v8328 = vshrl.u32 %v8327, 7
        %v8329 = vsub.s32 0, %v8328
        %v8330 = vrot.slane %v8325, %v8329
        %v8332 = vadd.f32 %v8293, %v8330
        %v8333 = vadd.f32 %v8294, %v8330
        %v8334 = vadd.f32 %v8295, %v8330
        %v8335 = vadd.f32 %v8296, %v8330
        %v8336 = vadd.f32 %v8297, %v8330
        %v8337 = vadd.f32 %v8298, %v8330
        %v8338 = vadd.f32 %v8299, %v8330
        %v8339 = vadd.f32 %v8300, %v8330
        %v8340 = vadd.f32 %v8301, %v8330
        %v8341 = vadd.f32 %v8302, %v8330
        %v8342 = vadd.f32 %v8303, %v8330
        %v8343 = vadd.f32 %v8304, %v8330
        %v8344 = vadd.f32 %v8305, %v8330
        %v8345 = vadd.f32 %v8306, %v8330
        %v8346 = vadd.f32 %v8307, %v8330
        %v8347 = vadd.f32 %v8308, %v8330
        %v8348 = vadd.f32 %v8309, %v8330
        %v8349 = vadd.f32 %v8310, %v8330
        %v8350 = vadd.f32 %v8311, %v8330
        %v8351 = vadd.f32 %v8312, %v8330
        %v8352 = vadd.f32 %v8313, %v8330
        %v8353 = vadd.f32 %v8314, %v8330
        %v8354 = vadd.f32 %v8315, %v8330
        %v8355 = vadd.f32 %v8316, %v8330
        %v8356 = vadd.f32 %v8317, %v8330
        %v8357 = vadd.f32 %v8318, %v8330
        %v8358 = vadd.f32 %v8319, %v8330
        %v8359 = vadd.f32 %v8320, %v8330
        %v8360 = vadd.f32 %v8321, %v8330
        %v8361 = vadd.f32 %v8322, %v8330
        %v8362 = vadd.f32 %v8323, %v8330
        %v8363 = vadd.f32 %v8324, %v8330
        %v8364 = vmax.f32 %v8332, 0.0
        %v8365 = vmax.f32 %v8333, 0.0
        %v8366 = vmax.f32 %v8334, 0.0
        %v8367 = vmax.f32 %v8335, 0.0
        %v8368 = vmax.f32 %v8336, 0.0
        %v8369 = vmax.f32 %v8337, 0.0
        %v8370 = vmax.f32 %v8338, 0.0
        %v8371 = vmax.f32 %v8339, 0.0
        %v8372 = vmax.f32 %v8340, 0.0
        %v8373 = vmax.f32 %v8341, 0.0
        %v8374 = vmax.f32 %v8342, 0.0
        %v8375 = vmax.f32 %v8343, 0.0
        %v8376 = vmax.f32 %v8344, 0.0
        %v8377 = vmax.f32 %v8345, 0.0
        %v8378 = vmax.f32 %v8346, 0.0
        %v8379 = vmax.f32 %v8347, 0.0
        %v8380 = vmax.f32 %v8348, 0.0
        %v8381 = vmax.f32 %v8349, 0.0
        %v8382 = vmax.f32 %v8350, 0.0
        %v8383 = vmax.f32 %v8351, 0.0
        %v8384 = vmax.f32 %v8352, 0.0
        %v8385 = vmax.f32 %v8353, 0.0
        %v8386 = vmax.f32 %v8354, 0.0
        %v8387 = vmax.f32 %v8355, 0.0
        %v8388 = vmax.f32 %v8356, 0.0
        %v8389 = vmax.f32 %v8357, 0.0
        %v8390 = vmax.f32 %v8358, 0.0
        %v8391 = vmax.f32 %v8359, 0.0
        %v8392 = vmax.f32 %v8360, 0.0
        %v8393 = vmax.f32 %v8361, 0.0
        %v8394 = vmax.f32 %v8362, 0.0
        %v8395 = vmax.f32 %v8363, 0.0
        %8396 = vst [vmem:[%s220] sm:$0xff] %v8364
        %8397 = vst [vmem:[%s220 + $0x8] sm:$0xff] %v8365
        %8398 = vst [vmem:[%s220 + $0x10] sm:$0xff] %v8366
        %8399 = vst [vmem:[%s220 + $0x18] sm:$0xff] %v8367
        %8400 = vst [vmem:[%s220 + $0x20] sm:$0xff] %v8368
        %8401 = vst [vmem:[%s220 + $0x28] sm:$0xff] %v8369
        %8402 = vst [vmem:[%s220 + $0x30] sm:$0xff] %v8370
        %8403 = vst [vmem:[%s220 + $0x38] sm:$0xff] %v8371
        %8404 = vst [vmem:[%s220 + $0x40] sm:$0xff] %v8372
        %8405 = vst [vmem:[%s220 + $0x48] sm:$0xff] %v8373
        %8406 = vst [vmem:[%s220 + $0x50] sm:$0xff] %v8374
        %8407 = vst [vmem:[%s220 + $0x58] sm:$0xff] %v8375
        %8408 = vst [vmem:[%s220 + $0x60] sm:$0xff] %v8376
        %8409 = vst [vmem:[%s220 + $0x68] sm:$0xff] %v8377
        %8410 = vst [vmem:[%s220 + $0x70] sm:$0xff] %v8378
        %8411 = vst [vmem:[%s220 + $0x78] sm:$0xff] %v8379
        %8412 = vst [vmem:[%s220 + $0x80] sm:$0xff] %v8380
        %8413 = vst [vmem:[%s220 + $0x88] sm:$0xff] %v8381
        %8414 = vst [vmem:[%s220 + $0x90] sm:$0xff] %v8382
        %8415 = vst [vmem:[%s220 + $0x98] sm:$0xff] %v8383
        %8416 = vst [vmem:[%s220 + $0xa0] sm:$0xff] %v8384
        %8417 = vst [vmem:[%s220 + $0xa8] sm:$0xff] %v8385
        %8418 = vst [vmem:[%s220 + $0xb0] sm:$0xff] %v8386
        %8419 = vst [vmem:[%s220 + $0xb8] sm:$0xff] %v8387
        %8420 = vst [vmem:[%s220 + $0xc0] sm:$0xff] %v8388
        %8421 = vst [vmem:[%s220 + $0xc8] sm:$0xff] %v8389
        %8422 = vst [vmem:[%s220 + $0xd0] sm:$0xff] %v8390
        %8423 = vst [vmem:[%s220 + $0xd8] sm:$0xff] %v8391
        %8424 = vst [vmem:[%s220 + $0xe0] sm:$0xff] %v8392
        %8425 = vst [vmem:[%s220 + $0xe8] sm:$0xff] %v8393
        %8426 = vst [vmem:[%s220 + $0xf0] sm:$0xff] %v8394
        %8427 = vst [vmem:[%s220 + $0xf8] sm:$0xff] %v8395
        %s8428 = sand.u32 %s137, 1
        %s8429 = scalar_lea.sflag [#allocation5], %s8428
        %s8430 = sand.u32 %s137, 1
        %s8431 = smul.addr %s8430, 256
        %s8432 = scalar_lea.vmem [#allocation4], %s8431
        // Predicated region
        $region41: #{tpu_custom_call.1} parent=39 // pred_check
          %p8433 = pneg %p147
        $region42: #{tpu_custom_call.1} parent=39 // pred_check_branch
          %8435 = sbr.rel (%p8433) target = $region44
        $region43: #{tpu_custom_call.1} parent=39 // pred_region
          %s8436 = smul.u32 4, %s19
          %s8438 = ssub.s32 4096, 4096
          %8439 = vsyncadd %s8429, %s8438
          %s8440 = smul.addr %s8436, 8
          %s8441 = smul.addr %s8440, 128
          %s8442 = scalar_lea.hbm %s5, %s8441
          %s8443 = sshll.u32 %s8432, 4
          %s8444 = int_to_ptr.vmem [resolvable:$true] %s8443
          %8449 = dma.vmem_to_hbm [thread:$0]  %s8444, 4096, %s8442, %s8429, 128, 128, 8
        $region44: #{tpu_custom_call.1} parent=39 // pred_fallthru
          _
      $region40: #{tpu_custom_call.1} parent=5 // pred_fallthru
        _
      %p8450 = scmp.le.s32.totalorder 2, %s14
      // Predicated region
      $region45: #{tpu_custom_call.1} parent=5 // pred_check
        %p8451 = pneg %p8450
      $region46: #{tpu_custom_call.1} parent=5 // pred_check_branch
        %8453 = sbr.rel (%p8451) target = $region48
      $region47: #{tpu_custom_call.1} parent=5 // pred_region
        %s8454 = ssub.s32 %s14, 2
        // Predicated region
        $region49: #{tpu_custom_call.1} parent=47 // pred_check
          %p8455 = pneg %p153
        $region50: #{tpu_custom_call.1} parent=47 // pred_check_branch
          %8457 = sbr.rel (%p8455) target = $region52
        $region51: #{tpu_custom_call.1} parent=47 // pred_region
          %s8458 = sand.u32 %s138, 1
          %s8459 = scalar_lea.sflag [#allocation5], %s8458
          %s8460 = sand.u32 %s138, 1
          %s8461 = smul.addr %s8460, 256
          %s8462 = scalar_lea.vmem [#allocation4], %s8461
          %8463 = dma.done %s8459, 4096
        $region52: #{tpu_custom_call.1} parent=47 // pred_fallthru
          _
      $region48: #{tpu_custom_call.1} parent=5 // pred_fallthru
        _
    $region6: #{tpu_custom_call.1} parent=1 // loop_footer
      %s18 = sadd.s32 1, %s14
    $region7: #{tpu_custom_call.1} parent=1 // loop_footer_branch
      %13 = sbr.rel target = $region3
    $region8: #{tpu_custom_call.1} parent=1 // loop_exit
      _
    %8464 = vsyncpa [#allocation5], 1
    %s8465 = scalar_lea.sflag [#allocation5], 1
    %8466 = vsyncpa %s8465, 1

</llo_original>
